<compile_context>
chip_gen: v5e
topology: v5e:2x2
jax: 0.10.0
libtpu: 0.0.40
codegen_flags: <defaults>
</compile_context>

<pallas_src>
import jax
import jax.numpy as jnp
from jax.experimental import pallas as pl
from jax.experimental.pallas import tpu as pltpu

# ----------------------------- configuration --------------------------------
B, S, H = 2, 128, 128          # batch, seq_len, hidden_size
NH, HD = 2, 64                 # num attention heads, head dim
I = 256                        # FFN intermediate size
L = 8                          # num_labels
NLAYERS = 2                    # transformer layers
VOCAB, TYPES, MAXPOS = 100, 2, 128
TM = 128                       # row tile for the (B*S, ...) head kernel
LN_EPS = 1e-12


# ------------------------------ kernel helpers -------------------------------
def _ln(h, g, b):
    mean = jnp.mean(h, axis=-1, keepdims=True)
    var = jnp.mean(jnp.square(h - mean), axis=-1, keepdims=True)
    return (h - mean) * jax.lax.rsqrt(var + LN_EPS) * g + b


def _softmax_rows(s):
    s = s - jnp.max(s, axis=-1, keepdims=True)
    p = jnp.exp(s)
    return p * pl.reciprocal(jnp.sum(p, axis=-1, keepdims=True), approx=True)


# --------------------------- fused encoder kernel ----------------------------
def _encoder_kernel(x_ref, m_ref, eg_ref, eb_ref,
                    qkvw_ref, qkvb_ref, wo_ref, bo_ref, ag_ref, ab_ref,
                    winw_ref, winb_ref, woutw_ref, woutb_ref, fg_ref, fb_ref,
                    o_ref):
    # embedding LayerNorm (residual-free; no zero-tensor DMA)
    x = _ln(x_ref[0], eg_ref[...], eb_ref[...])                # (S, H) f32
    mask_add = m_ref[0]                                        # (1, S) additive mask
    scale = 1.0 / (HD ** 0.5)

    for lyr in range(NLAYERS):                                 # static unroll
        # ---- self-attention: fused QKV, per-head softmax, single Wo matmul ----
        xb = x.astype(jnp.bfloat16)
        qkv = (jnp.dot(xb, qkvw_ref[lyr], preferred_element_type=jnp.float32)
               + qkvb_ref[lyr])                                # (S, 3H)
        ctx_parts = []
        for h in range(NH):                                    # static unroll over heads
            lo = h * HD
            qh = qkv[:, lo:lo + HD].astype(jnp.bfloat16)
            kh = qkv[:, H + lo:H + lo + HD].astype(jnp.bfloat16)
            vh = qkv[:, 2 * H + lo:2 * H + lo + HD].astype(jnp.bfloat16)
            s = jax.lax.dot_general(qh, kh, (((1,), (1,)), ((), ())),
                                    preferred_element_type=jnp.float32)
            p = _softmax_rows(s * scale + mask_add)
            ctx_parts.append(jnp.dot(p.astype(jnp.bfloat16), vh,
                                     preferred_element_type=jnp.float32))
        ctx = jnp.concatenate(ctx_parts, axis=-1).astype(jnp.bfloat16)   # (S, H)
        attn = (jnp.dot(ctx, wo_ref[lyr], preferred_element_type=jnp.float32)
                + bo_ref[lyr])
        x = _ln(attn + x, ag_ref[lyr], ab_ref[lyr])

        # ---- FFN ----
        # TODO(synk): HF BertIntermediate default "gelu" is the exact erf form;
        # tanh-approx kept here for Mosaic-lowering safety (tiny numeric delta).
        mid = jax.nn.gelu(jnp.dot(x.astype(jnp.bfloat16), winw_ref[lyr],
                                  preferred_element_type=jnp.float32)
                          + winb_ref[lyr])
        ffn = (jnp.dot(mid.astype(jnp.bfloat16), woutw_ref[lyr],
                       preferred_element_type=jnp.float32) + woutb_ref[lyr])
        x = _ln(ffn + x, fg_ref[lyr], fb_ref[lyr])

    o_ref[0] = x


def encoder(emb3, mask_add, params):
    full = lambda arr: pl.BlockSpec(arr.shape, lambda b: (0,) * arr.ndim)
    weights = [params[k] for k in (
        "emb_ln_g", "emb_ln_b", "qkv_w", "qkv_b", "wo", "bo",
        "attn_ln_g", "attn_ln_b", "w_in", "b_in", "w_out", "b_out",
        "ffn_ln_g", "ffn_ln_b")]
    return pl.pallas_call(
        _encoder_kernel,
        out_shape=jax.ShapeDtypeStruct((B, S, H), jnp.float32),
        grid=(B,),
        in_specs=[pl.BlockSpec((1, S, H), lambda b: (b, 0, 0)),
                  pl.BlockSpec((1, 1, S), lambda b: (b, 0, 0))]
                 + [full(w) for w in weights],
        out_specs=pl.BlockSpec((1, S, H), lambda b: (b, 0, 0)),
        compiler_params=pltpu.CompilerParams(dimension_semantics=("parallel",)),
        cost_estimate=pl.CostEstimate(flops=170_000_000, transcendentals=270_000,
                                      bytes_accessed=1_600_000),
    )(emb3, mask_add, *weights)


# ------------------------ fused start + end head kernel -----------------------
def _head_kernel(x_ref, sw_ref, sb_ref, w0h_ref, w0p_ref, b0_ref,
                 g_ref, be_ref, w1_ref, b1_ref, start_ref, end_ref):
    x = x_ref[...].astype(jnp.bfloat16)                        # (TM, H)
    # PoolerStartLogits: dense H -> L
    start = (jnp.dot(x, sw_ref[...], preferred_element_type=jnp.float32)
             + sb_ref[...])                                    # (TM, L)
    start_ref[...] = start
    # eval path, soft_label=True: label_logits = softmax(start_logits)
    p = _softmax_rows(start)
    # PoolerEndLogits.dense_0(concat([x, p])) == x @ W0[:H] + p @ W0[H:]
    h = (jnp.dot(x, w0h_ref[...], preferred_element_type=jnp.float32)
         + jnp.dot(p.astype(jnp.bfloat16), w0p_ref[...],
                   preferred_element_type=jnp.float32)
         + b0_ref[...])
    h = jnp.tanh(h)
    h = _ln(h, g_ref[...], be_ref[...])
    end_ref[...] = (jnp.dot(h.astype(jnp.bfloat16), w1_ref[...],
                            preferred_element_type=jnp.float32) + b1_ref[...])


def ner_head(x, params):
    M = x.shape[0]
    full = lambda arr: pl.BlockSpec(arr.shape, lambda i: (0,) * arr.ndim)
    weights = [params[k] for k in (
        "start_w", "start_b", "end_w0h", "end_w0p", "end_b0",
        "end_ln_g", "end_ln_b", "end_w1", "end_b1")]
    return pl.pallas_call(
        _head_kernel,
        out_shape=(jax.ShapeDtypeStruct((M, L), jnp.float32),
                   jax.ShapeDtypeStruct((M, L), jnp.float32)),
        grid=(M // TM,),
        in_specs=[pl.BlockSpec((TM, H), lambda i: (i, 0))]
                 + [full(w) for w in weights],
        out_specs=(pl.BlockSpec((TM, L), lambda i: (i, 0)),
                   pl.BlockSpec((TM, L), lambda i: (i, 0))),
        compiler_params=pltpu.CompilerParams(dimension_semantics=("parallel",)),
        cost_estimate=pl.CostEstimate(flops=11_000_000, transcendentals=40_000,
                                      bytes_accessed=350_000),
    )(x, *weights)


# ------------------------------- parameters ----------------------------------
def init_params(key):
    ks = iter(jax.random.split(key, 32))
    nrm = lambda shape: jax.random.normal(next(ks), shape, jnp.float32) * 0.02
    bf = lambda shape: nrm(shape).astype(jnp.bfloat16)        # matmul operands in bf16
    return {
        "word_emb": nrm((VOCAB, H)),
        "pos_emb": nrm((MAXPOS, H)),
        "type_emb": nrm((TYPES, H)),
        "emb_ln_g": jnp.ones((1, H), jnp.float32),
        "emb_ln_b": jnp.zeros((1, H), jnp.float32),
        # stacked per-layer encoder weights (bf16 matmuls, f32 bias/LayerNorm)
        "qkv_w": bf((NLAYERS, H, 3 * H)),
        "qkv_b": jnp.zeros((NLAYERS, 1, 3 * H), jnp.float32),
        "wo": bf((NLAYERS, H, H)),
        "bo": jnp.zeros((NLAYERS, 1, H), jnp.float32),
        "attn_ln_g": jnp.ones((NLAYERS, 1, H), jnp.float32),
        "attn_ln_b": jnp.zeros((NLAYERS, 1, H), jnp.float32),
        "w_in": bf((NLAYERS, H, I)),
        "b_in": jnp.zeros((NLAYERS, 1, I), jnp.float32),
        "w_out": bf((NLAYERS, I, H)),
        "b_out": jnp.zeros((NLAYERS, 1, H), jnp.float32),
        "ffn_ln_g": jnp.ones((NLAYERS, 1, H), jnp.float32),
        "ffn_ln_b": jnp.zeros((NLAYERS, 1, H), jnp.float32),
        # span-NER head (end_fc input width = H + L, soft_label=True)
        "start_w": bf((H, L)),
        "start_b": jnp.zeros((1, L), jnp.float32),
        "end_w0h": bf((H, H + L)),          # rows [:H]  of dense_0 weight
        "end_w0p": bf((L, H + L)),          # rows [H:]  of dense_0 weight
        "end_b0": jnp.zeros((1, H + L), jnp.float32),
        "end_ln_g": jnp.ones((1, H + L), jnp.float32),
        "end_ln_b": jnp.zeros((1, H + L), jnp.float32),
        "end_w1": bf((H + L, L)),
        "end_b1": jnp.zeros((1, L), jnp.float32),
    }


# ------------------------------- forward pass ---------------------------------
def bert_span_forward(params, input_ids, token_type_ids, attention_mask):
    Bc, Sc = input_ids.shape
    pos_ids = jnp.arange(Sc, dtype=jnp.int32)[None, :]
    emb = (params["word_emb"][input_ids]
           + params["pos_emb"][pos_ids]
           + params["type_emb"][token_type_ids])                       # (B, S, H)
    # additive attention mask: (1 - mask) * -10000, shape (B, 1, S)
    mask_add = (1.0 - attention_mask.astype(jnp.float32))[:, None, :] * -10000.0

    x = encoder(emb, mask_add, params).reshape(Bc * Sc, H)             # (B*S, H)
    # dropout(hidden_dropout_prob) is identity in eval mode
    start_logits, end_logits = ner_head(x, params)                     # 2x (B*S, L)
    # TODO(synk): training-time loss branch (CE/focal/LSR over boolean-masked
    # active tokens) needs dynamic-shape gather; not translated.
    return start_logits.reshape(Bc, Sc, L), end_logits.reshape(Bc, Sc, L)


# ----------------------------------- main -------------------------------------
if __name__ == "__main__":
    key = jax.random.PRNGKey(0)
    kp, ki = jax.random.split(key)
    params = init_params(kp)

    input_ids = jax.random.randint(ki, (B, S), 0, VOCAB, dtype=jnp.int32)
    token_type_ids = jnp.zeros((B, S), jnp.int32)
    attention_mask = jnp.ones((B, S), jnp.int32)

    fwd = jax.jit(lambda ids, tt, am: bert_span_forward(params, ids, tt, am))
    start_logits, end_logits = fwd(input_ids, token_type_ids, attention_mask)
    jax.block_until_ready((start_logits, end_logits))

    assert start_logits.shape == (B, S, L) and end_logits.shape == (B, S, L)
    assert bool(jnp.all(jnp.isfinite(start_logits))) and bool(jnp.all(jnp.isfinite(end_logits)))
    print("KERNEL_OK")
</pallas_src>

<mosaic_0001>
module attributes {stable_mosaic.version = 11 : i64} {
  func.func @_head_kernel(%arg0: i32, %arg1: memref<128x128xf32, #tpu.memory_space<vmem>>, %arg2: memref<128x8xbf16, #tpu.memory_space<vmem>>, %arg3: memref<1x8xf32, #tpu.memory_space<vmem>>, %arg4: memref<128x136xbf16, #tpu.memory_space<vmem>>, %arg5: memref<8x136xbf16, #tpu.memory_space<vmem>>, %arg6: memref<1x136xf32, #tpu.memory_space<vmem>>, %arg7: memref<1x136xf32, #tpu.memory_space<vmem>>, %arg8: memref<1x136xf32, #tpu.memory_space<vmem>>, %arg9: memref<136x8xbf16, #tpu.memory_space<vmem>>, %arg10: memref<1x8xf32, #tpu.memory_space<vmem>>, %arg11: memref<128x8xf32, #tpu.memory_space<vmem>>, %arg12: memref<128x8xf32, #tpu.memory_space<vmem>>) attributes {dimension_semantics = [#tpu.dimension_semantics<parallel>], iteration_bounds = array<i64: 2>, scalar_prefetch = 0 : i64, scratch_operands = 0 : i64, tpu.core_type = #tpu.core_type<tc>, window_params = [{transform_indices = @transform_0, window_bounds = array<i64: 128, 128>}, {pipeline_mode = #tpu.pipeline_mode<synchronous>, transform_indices = @transform_1, window_bounds = array<i64: 128, 8>}, {pipeline_mode = #tpu.pipeline_mode<synchronous>, transform_indices = @transform_2, window_bounds = array<i64: 1, 8>}, {pipeline_mode = #tpu.pipeline_mode<synchronous>, transform_indices = @transform_3, window_bounds = array<i64: 128, 136>}, {pipeline_mode = #tpu.pipeline_mode<synchronous>, transform_indices = @transform_4, window_bounds = array<i64: 8, 136>}, {pipeline_mode = #tpu.pipeline_mode<synchronous>, transform_indices = @transform_5, window_bounds = array<i64: 1, 136>}, {pipeline_mode = #tpu.pipeline_mode<synchronous>, transform_indices = @transform_6, window_bounds = array<i64: 1, 136>}, {pipeline_mode = #tpu.pipeline_mode<synchronous>, transform_indices = @transform_7, window_bounds = array<i64: 1, 136>}, {pipeline_mode = #tpu.pipeline_mode<synchronous>, transform_indices = @transform_8, window_bounds = array<i64: 136, 8>}, {pipeline_mode = #tpu.pipeline_mode<synchronous>, transform_indices = @transform_9, window_bounds = array<i64: 1, 8>}, {transform_indices = @transform_10, window_bounds = array<i64: 128, 8>}, {transform_indices = @transform_11, window_bounds = array<i64: 128, 8>}]} {
    %c0 = arith.constant 0 : index
    %c0_0 = arith.constant 0 : index
    %0 = vector.load %arg1[%c0, %c0_0] : memref<128x128xf32, #tpu.memory_space<vmem>>, vector<128x128xf32>
    %1 = arith.truncf %0 : vector<128x128xf32> to vector<128x128xbf16>
    %c0_1 = arith.constant 0 : index
    %c0_2 = arith.constant 0 : index
    %2 = vector.load %arg2[%c0_1, %c0_2] : memref<128x8xbf16, #tpu.memory_space<vmem>>, vector<128x8xbf16>
    %cst = arith.constant dense<0.000000e+00> : vector<128x8xf32>
    %3 = tpu.matmul %1, %2, %cst {dimension_numbers = #tpu.dot_dimension_numbers<[1], [0], [0], [1], [0, 0, 1, 1], [], []>} : vector<128x128xbf16>, vector<128x8xbf16>, vector<128x8xf32> -> vector<128x8xf32>
    %c0_3 = arith.constant 0 : index
    %c0_4 = arith.constant 0 : index
    %4 = vector.load %arg3[%c0_3, %c0_4] : memref<1x8xf32, #tpu.memory_space<vmem>>, vector<1x8xf32>
    %5 = vector.broadcast %4 : vector<1x8xf32> to vector<128x8xf32>
    %6 = arith.addf %3, %5 : vector<128x8xf32>
    %c0_5 = arith.constant 0 : index
    %c0_6 = arith.constant 0 : index
    %7 = vector.load %arg11[%c0_5, %c0_6] : memref<128x8xf32, #tpu.memory_space<vmem>>, vector<128x8xf32>
    tpu.vector_store %arg11[%c0_5, %c0_6], %6 {strides = array<i32>} : memref<128x8xf32, #tpu.memory_space<vmem>>, vector<128x8xf32>,
    %cst_7 = arith.constant dense<0xFF800000> : vector<128xf32>
    %8 = vector.multi_reduction <maximumf>, %6, %cst_7 [1] : vector<128x8xf32> to vector<128xf32>
    %9 = vector.shape_cast %8 : vector<128xf32> to vector<128x1xf32>
    %10 = vector.broadcast %9 : vector<128x1xf32> to vector<128x8xf32>
    %11 = arith.subf %6, %10 : vector<128x8xf32>
    %12 = math.exp %11 : vector<128x8xf32>
    %cst_8 = arith.constant dense<0.000000e+00> : vector<128xf32>
    %13 = vector.multi_reduction <add>, %12, %cst_8 [1] : vector<128x8xf32> to vector<128xf32>
    %14 = vector.shape_cast %13 : vector<128xf32> to vector<128x1xf32>
    %15 = tpu.reciprocal %14 {approx = true} : vector<128x1xf32> -> vector<128x1xf32>
    %16 = vector.broadcast %15 : vector<128x1xf32> to vector<128x8xf32>
    %17 = arith.mulf %12, %16 : vector<128x8xf32>
    %c0_9 = arith.constant 0 : index
    %c0_10 = arith.constant 0 : index
    %18 = vector.load %arg4[%c0_9, %c0_10] : memref<128x136xbf16, #tpu.memory_space<vmem>>, vector<128x136xbf16>
    %cst_11 = arith.constant dense<0.000000e+00> : vector<128x136xf32>
    %19 = tpu.matmul %1, %18, %cst_11 {dimension_numbers = #tpu.dot_dimension_numbers<[1], [0], [0], [1], [0, 0, 1, 1], [], []>} : vector<128x128xbf16>, vector<128x136xbf16>, vector<128x136xf32> -> vector<128x136xf32>
    %20 = arith.truncf %17 : vector<128x8xf32> to vector<128x8xbf16>
    %c0_12 = arith.constant 0 : index
    %c0_13 = arith.constant 0 : index
    %21 = vector.load %arg5[%c0_12, %c0_13] : memref<8x136xbf16, #tpu.memory_space<vmem>>, vector<8x136xbf16>
    %cst_14 = arith.constant dense<0.000000e+00> : vector<128x136xf32>
    %22 = tpu.matmul %20, %21, %cst_14 {dimension_numbers = #tpu.dot_dimension_numbers<[1], [0], [0], [1], [0, 0, 1, 1], [], []>} : vector<128x8xbf16>, vector<8x136xbf16>, vector<128x136xf32> -> vector<128x136xf32>
    %23 = arith.addf %19, %22 : vector<128x136xf32>
    %c0_15 = arith.constant 0 : index
    %c0_16 = arith.constant 0 : index
    %24 = vector.load %arg6[%c0_15, %c0_16] : memref<1x136xf32, #tpu.memory_space<vmem>>, vector<1x136xf32>
    %25 = vector.broadcast %24 : vector<1x136xf32> to vector<128x136xf32>
    %26 = arith.addf %23, %25 : vector<128x136xf32>
    %27 = math.tanh %26 : vector<128x136xf32>
    %c0_17 = arith.constant 0 : index
    %c0_18 = arith.constant 0 : index
    %28 = vector.load %arg7[%c0_17, %c0_18] : memref<1x136xf32, #tpu.memory_space<vmem>>, vector<1x136xf32>
    %c0_19 = arith.constant 0 : index
    %c0_20 = arith.constant 0 : index
    %29 = vector.load %arg8[%c0_19, %c0_20] : memref<1x136xf32, #tpu.memory_space<vmem>>, vector<1x136xf32>
    %cst_21 = arith.constant dense<0.000000e+00> : vector<128xf32>
    %30 = vector.multi_reduction <add>, %27, %cst_21 [1] : vector<128x136xf32> to vector<128xf32>
    %31 = vector.shape_cast %30 : vector<128xf32> to vector<128x1xf32>
    %cst_22 = arith.constant 1.360000e+02 : f32
    %32 = vector.broadcast %cst_22 : f32 to vector<128x1xf32>
    %33 = arith.divf %31, %32 : vector<128x1xf32>
    %34 = vector.broadcast %33 : vector<128x1xf32> to vector<128x136xf32>
    %35 = arith.subf %27, %34 : vector<128x136xf32>
    %36 = arith.mulf %35, %35 : vector<128x136xf32>
    %cst_23 = arith.constant dense<0.000000e+00> : vector<128xf32>
    %37 = vector.multi_reduction <add>, %36, %cst_23 [1] : vector<128x136xf32> to vector<128xf32>
    %38 = vector.shape_cast %37 : vector<128xf32> to vector<128x1xf32>
    %cst_24 = arith.constant 1.360000e+02 : f32
    %39 = vector.broadcast %cst_24 : f32 to vector<128x1xf32>
    %40 = arith.divf %38, %39 : vector<128x1xf32>
    %41 = vector.broadcast %33 : vector<128x1xf32> to vector<128x136xf32>
    %42 = arith.subf %27, %41 : vector<128x136xf32>
    %cst_25 = arith.constant 9.99999996E-13 : f32
    %43 = vector.broadcast %cst_25 : f32 to vector<128x1xf32>
    %44 = arith.addf %40, %43 : vector<128x1xf32>
    %45 = math.rsqrt %44 : vector<128x1xf32>
    %46 = vector.broadcast %45 : vector<128x1xf32> to vector<128x136xf32>
    %47 = arith.mulf %42, %46 : vector<128x136xf32>
    %48 = vector.broadcast %28 : vector<1x136xf32> to vector<128x136xf32>
    %49 = arith.mulf %47, %48 : vector<128x136xf32>
    %50 = vector.broadcast %29 : vector<1x136xf32> to vector<128x136xf32>
    %51 = arith.addf %49, %50 : vector<128x136xf32>
    %52 = arith.truncf %51 : vector<128x136xf32> to vector<128x136xbf16>
    %c0_26 = arith.constant 0 : index
    %c0_27 = arith.constant 0 : index
    %53 = vector.load %arg9[%c0_26, %c0_27] : memref<136x8xbf16, #tpu.memory_space<vmem>>, vector<136x8xbf16>
    %cst_28 = arith.constant dense<0.000000e+00> : vector<128x8xf32>
    %54 = tpu.matmul %52, %53, %cst_28 {dimension_numbers = #tpu.dot_dimension_numbers<[1], [0], [0], [1], [0, 0, 1, 1], [], []>} : vector<128x136xbf16>, vector<136x8xbf16>, vector<128x8xf32> -> vector<128x8xf32>
    %c0_29 = arith.constant 0 : index
    %c0_30 = arith.constant 0 : index
    %55 = vector.load %arg10[%c0_29, %c0_30] : memref<1x8xf32, #tpu.memory_space<vmem>>, vector<1x8xf32>
    %56 = vector.broadcast %55 : vector<1x8xf32> to vector<128x8xf32>
    %57 = arith.addf %54, %56 : vector<128x8xf32>
    %c0_31 = arith.constant 0 : index
    %c0_32 = arith.constant 0 : index
    %58 = vector.load %arg12[%c0_31, %c0_32] : memref<128x8xf32, #tpu.memory_space<vmem>>, vector<128x8xf32>
    tpu.vector_store %arg12[%c0_31, %c0_32], %57 {strides = array<i32>} : memref<128x8xf32, #tpu.memory_space<vmem>>, vector<128x8xf32>,
    return
  }
  func.func @transform_0(%arg0: i32) -> (i32, i32) {
    %c0_i32 = arith.constant 0 : i32
    %c0_i32_0 = arith.constant 0 : i32
    return %arg0, %c0_i32 : i32, i32
  }
  func.func @transform_1(%arg0: i32) -> (i32, i32) {
    %c0_i32 = arith.constant 0 : i32
    %c0_i32_0 = arith.constant 0 : i32
    %c0_i32_1 = arith.constant 0 : i32
    return %c0_i32, %c0_i32_0 : i32, i32
  }
  func.func @transform_2(%arg0: i32) -> (i32, i32) {
    %c0_i32 = arith.constant 0 : i32
    %c0_i32_0 = arith.constant 0 : i32
    %c0_i32_1 = arith.constant 0 : i32
    return %c0_i32, %c0_i32_0 : i32, i32
  }
  func.func @transform_3(%arg0: i32) -> (i32, i32) {
    %c0_i32 = arith.constant 0 : i32
    %c0_i32_0 = arith.constant 0 : i32
    %c0_i32_1 = arith.constant 0 : i32
    return %c0_i32, %c0_i32_0 : i32, i32
  }
  func.func @transform_4(%arg0: i32) -> (i32, i32) {
    %c0_i32 = arith.constant 0 : i32
    %c0_i32_0 = arith.constant 0 : i32
    %c0_i32_1 = arith.constant 0 : i32
    return %c0_i32, %c0_i32_0 : i32, i32
  }
  func.func @transform_5(%arg0: i32) -> (i32, i32) {
    %c0_i32 = arith.constant 0 : i32
    %c0_i32_0 = arith.constant 0 : i32
    %c0_i32_1 = arith.constant 0 : i32
    return %c0_i32, %c0_i32_0 : i32, i32
  }
  func.func @transform_6(%arg0: i32) -> (i32, i32) {
    %c0_i32 = arith.constant 0 : i32
    %c0_i32_0 = arith.constant 0 : i32
    %c0_i32_1 = arith.constant 0 : i32
    return %c0_i32, %c0_i32_0 : i32, i32
  }
  func.func @transform_7(%arg0: i32) -> (i32, i32) {
    %c0_i32 = arith.constant 0 : i32
    %c0_i32_0 = arith.constant 0 : i32
    %c0_i32_1 = arith.constant 0 : i32
    return %c0_i32, %c0_i32_0 : i32, i32
  }
  func.func @transform_8(%arg0: i32) -> (i32, i32) {
    %c0_i32 = arith.constant 0 : i32
    %c0_i32_0 = arith.constant 0 : i32
    %c0_i32_1 = arith.constant 0 : i32
    return %c0_i32, %c0_i32_0 : i32, i32
  }
  func.func @transform_9(%arg0: i32) -> (i32, i32) {
    %c0_i32 = arith.constant 0 : i32
    %c0_i32_0 = arith.constant 0 : i32
    %c0_i32_1 = arith.constant 0 : i32
    return %c0_i32, %c0_i32_0 : i32, i32
  }
  func.func @transform_10(%arg0: i32) -> (i32, i32) {
    %c0_i32 = arith.constant 0 : i32
    %c0_i32_0 = arith.constant 0 : i32
    return %arg0, %c0_i32 : i32, i32
  }
  func.func @transform_11(%arg0: i32) -> (i32, i32) {
    %c0_i32 = arith.constant 0 : i32
    %c0_i32_0 = arith.constant 0 : i32
    return %arg0, %c0_i32 : i32, i32
  }
}

module attributes {stable_mosaic.version = 11 : i64} {
  func.func @_encoder_kernel(%arg0: i32, %arg1: memref<1x128x128xf32, #tpu.memory_space<vmem>>, %arg2: memref<1x1x128xf32, #tpu.memory_space<vmem>>, %arg3: memref<1x128xf32, #tpu.memory_space<vmem>>, %arg4: memref<1x128xf32, #tpu.memory_space<vmem>>, %arg5: memref<2x128x384xbf16, #tpu.memory_space<vmem>>, %arg6: memref<2x1x384xf32, #tpu.memory_space<vmem>>, %arg7: memref<2x128x128xbf16, #tpu.memory_space<vmem>>, %arg8: memref<2x1x128xf32, #tpu.memory_space<vmem>>, %arg9: memref<2x1x128xf32, #tpu.memory_space<vmem>>, %arg10: memref<2x1x128xf32, #tpu.memory_space<vmem>>, %arg11: memref<2x128x256xbf16, #tpu.memory_space<vmem>>, %arg12: memref<2x1x256xf32, #tpu.memory_space<vmem>>, %arg13: memref<2x256x128xbf16, #tpu.memory_space<vmem>>, %arg14: memref<2x1x128xf32, #tpu.memory_space<vmem>>, %arg15: memref<2x1x128xf32, #tpu.memory_space<vmem>>, %arg16: memref<2x1x128xf32, #tpu.memory_space<vmem>>, %arg17: memref<1x128x128xf32, #tpu.memory_space<vmem>>) attributes {dimension_semantics = [#tpu.dimension_semantics<parallel>], iteration_bounds = array<i64: 2>, scalar_prefetch = 0 : i64, scratch_operands = 0 : i64, tpu.core_type = #tpu.core_type<tc>, window_params = [{transform_indices = @transform_0, window_bounds = array<i64: 1, 128, 128>}, {transform_indices = @transform_1, window_bounds = array<i64: 1, 1, 128>}, {pipeline_mode = #tpu.pipeline_mode<synchronous>, transform_indices = @transform_2, window_bounds = array<i64: 1, 128>}, {pipeline_mode = #tpu.pipeline_mode<synchronous>, transform_indices = @transform_3, window_bounds = array<i64: 1, 128>}, {pipeline_mode = #tpu.pipeline_mode<synchronous>, transform_indices = @transform_4, window_bounds = array<i64: 2, 128, 384>}, {pipeline_mode = #tpu.pipeline_mode<synchronous>, transform_indices = @transform_5, window_bounds = array<i64: 2, 1, 384>}, {pipeline_mode = #tpu.pipeline_mode<synchronous>, transform_indices = @transform_6, window_bounds = array<i64: 2, 128, 128>}, {pipeline_mode = #tpu.pipeline_mode<synchronous>, transform_indices = @transform_7, window_bounds = array<i64: 2, 1, 128>}, {pipeline_mode = #tpu.pipeline_mode<synchronous>, transform_indices = @transform_8, window_bounds = array<i64: 2, 1, 128>}, {pipeline_mode = #tpu.pipeline_mode<synchronous>, transform_indices = @transform_9, window_bounds = array<i64: 2, 1, 128>}, {pipeline_mode = #tpu.pipeline_mode<synchronous>, transform_indices = @transform_10, window_bounds = array<i64: 2, 128, 256>}, {pipeline_mode = #tpu.pipeline_mode<synchronous>, transform_indices = @transform_11, window_bounds = array<i64: 2, 1, 256>}, {pipeline_mode = #tpu.pipeline_mode<synchronous>, transform_indices = @transform_12, window_bounds = array<i64: 2, 256, 128>}, {pipeline_mode = #tpu.pipeline_mode<synchronous>, transform_indices = @transform_13, window_bounds = array<i64: 2, 1, 128>}, {pipeline_mode = #tpu.pipeline_mode<synchronous>, transform_indices = @transform_14, window_bounds = array<i64: 2, 1, 128>}, {pipeline_mode = #tpu.pipeline_mode<synchronous>, transform_indices = @transform_15, window_bounds = array<i64: 2, 1, 128>}, {transform_indices = @transform_16, window_bounds = array<i64: 1, 128, 128>}]} {
    %c0 = arith.constant 0 : index
    %c0_0 = arith.constant 0 : index
    %c0_1 = arith.constant 0 : index
    %0 = vector.load %arg1[%c0, %c0_0, %c0_1] : memref<1x128x128xf32, #tpu.memory_space<vmem>>, vector<1x128x128xf32>
    %1 = vector.shape_cast %0 : vector<1x128x128xf32> to vector<128x128xf32>
    %c0_2 = arith.constant 0 : index
    %c0_3 = arith.constant 0 : index
    %2 = vector.load %arg3[%c0_2, %c0_3] : memref<1x128xf32, #tpu.memory_space<vmem>>, vector<1x128xf32>
    %c0_4 = arith.constant 0 : index
    %c0_5 = arith.constant 0 : index
    %3 = vector.load %arg4[%c0_4, %c0_5] : memref<1x128xf32, #tpu.memory_space<vmem>>, vector<1x128xf32>
    %cst = arith.constant dense<0.000000e+00> : vector<128xf32>
    %4 = vector.multi_reduction <add>, %1, %cst [1] : vector<128x128xf32> to vector<128xf32>
    %5 = vector.shape_cast %4 : vector<128xf32> to vector<128x1xf32>
    %cst_6 = arith.constant 1.280000e+02 : f32
    %6 = vector.broadcast %cst_6 : f32 to vector<128x1xf32>
    %7 = arith.divf %5, %6 : vector<128x1xf32>
    %8 = vector.broadcast %7 : vector<128x1xf32> to vector<128x128xf32>
    %9 = arith.subf %1, %8 : vector<128x128xf32>
    %10 = arith.mulf %9, %9 : vector<128x128xf32>
    %cst_7 = arith.constant dense<0.000000e+00> : vector<128xf32>
    %11 = vector.multi_reduction <add>, %10, %cst_7 [1] : vector<128x128xf32> to vector<128xf32>
    %12 = vector.shape_cast %11 : vector<128xf32> to vector<128x1xf32>
    %cst_8 = arith.constant 1.280000e+02 : f32
    %13 = vector.broadcast %cst_8 : f32 to vector<128x1xf32>
    %14 = arith.divf %12, %13 : vector<128x1xf32>
    %15 = vector.broadcast %7 : vector<128x1xf32> to vector<128x128xf32>
    %16 = arith.subf %1, %15 : vector<128x128xf32>
    %cst_9 = arith.constant 9.99999996E-13 : f32
    %17 = vector.broadcast %cst_9 : f32 to vector<128x1xf32>
    %18 = arith.addf %14, %17 : vector<128x1xf32>
    %19 = math.rsqrt %18 : vector<128x1xf32>
    %20 = vector.broadcast %19 : vector<128x1xf32> to vector<128x128xf32>
    %21 = arith.mulf %16, %20 : vector<128x128xf32>
    %22 = vector.broadcast %2 : vector<1x128xf32> to vector<128x128xf32>
    %23 = arith.mulf %21, %22 : vector<128x128xf32>
    %24 = vector.broadcast %3 : vector<1x128xf32> to vector<128x128xf32>
    %25 = arith.addf %23, %24 : vector<128x128xf32>
    %c0_10 = arith.constant 0 : index
    %c0_11 = arith.constant 0 : index
    %c0_12 = arith.constant 0 : index
    %26 = vector.load %arg2[%c0_10, %c0_11, %c0_12] : memref<1x1x128xf32, #tpu.memory_space<vmem>>, vector<1x1x128xf32>
    %27 = vector.shape_cast %26 : vector<1x1x128xf32> to vector<1x128xf32>
    %28 = arith.truncf %25 : vector<128x128xf32> to vector<128x128xbf16>
    %c0_13 = arith.constant 0 : index
    %c0_14 = arith.constant 0 : index
    %c0_15 = arith.constant 0 : index
    %29 = vector.load %arg5[%c0_13, %c0_14, %c0_15] : memref<2x128x384xbf16, #tpu.memory_space<vmem>>, vector<1x128x384xbf16>
    %30 = vector.shape_cast %29 : vector<1x128x384xbf16> to vector<128x384xbf16>
    %cst_16 = arith.constant dense<0.000000e+00> : vector<128x384xf32>
    %31 = tpu.matmul %28, %30, %cst_16 {dimension_numbers = #tpu.dot_dimension_numbers<[1], [0], [0], [1], [0, 0, 1, 1], [], []>} : vector<128x128xbf16>, vector<128x384xbf16>, vector<128x384xf32> -> vector<128x384xf32>
    %c0_17 = arith.constant 0 : index
    %c0_18 = arith.constant 0 : index
    %c0_19 = arith.constant 0 : index
    %32 = vector.load %arg6[%c0_17, %c0_18, %c0_19] : memref<2x1x384xf32, #tpu.memory_space<vmem>>, vector<1x1x384xf32>
    %33 = vector.shape_cast %32 : vector<1x1x384xf32> to vector<1x384xf32>
    %34 = vector.broadcast %33 : vector<1x384xf32> to vector<128x384xf32>
    %35 = arith.addf %31, %34 : vector<128x384xf32>
    %36 = vector.extract_strided_slice %35 {offsets = [0, 0], sizes = [128, 64], strides = [1, 1]} : vector<128x384xf32> to vector<128x64xf32>
    %37 = arith.truncf %36 : vector<128x64xf32> to vector<128x64xbf16>
    %38 = vector.extract_strided_slice %35 {offsets = [0, 128], sizes = [128, 64], strides = [1, 1]} : vector<128x384xf32> to vector<128x64xf32>
    %39 = arith.truncf %38 : vector<128x64xf32> to vector<128x64xbf16>
    %40 = vector.extract_strided_slice %35 {offsets = [0, 256], sizes = [128, 64], strides = [1, 1]} : vector<128x384xf32> to vector<128x64xf32>
    %41 = arith.truncf %40 : vector<128x64xf32> to vector<128x64xbf16>
    %cst_20 = arith.constant dense<0.000000e+00> : vector<128x128xf32>
    %42 = tpu.matmul %37, %39, %cst_20 {dimension_numbers = #tpu.dot_dimension_numbers<[1], [1], [0], [0], [0, 0, 1, 0], [], []>} : vector<128x64xbf16>, vector<128x64xbf16>, vector<128x128xf32> -> vector<128x128xf32>
    %cst_21 = arith.constant 1.250000e-01 : f32
    %43 = vector.broadcast %cst_21 : f32 to vector<128x128xf32>
    %44 = arith.mulf %42, %43 : vector<128x128xf32>
    %45 = vector.broadcast %27 : vector<1x128xf32> to vector<128x128xf32>
    %46 = arith.addf %44, %45 : vector<128x128xf32>
    %cst_22 = arith.constant dense<0xFF800000> : vector<128xf32>
    %47 = vector.multi_reduction <maximumf>, %46, %cst_22 [1] : vector<128x128xf32> to vector<128xf32>
    %48 = vector.shape_cast %47 : vector<128xf32> to vector<128x1xf32>
    %49 = vector.broadcast %48 : vector<128x1xf32> to vector<128x128xf32>
    %50 = arith.subf %46, %49 : vector<128x128xf32>
    %51 = math.exp %50 : vector<128x128xf32>
    %cst_23 = arith.constant dense<0.000000e+00> : vector<128xf32>
    %52 = vector.multi_reduction <add>, %51, %cst_23 [1] : vector<128x128xf32> to vector<128xf32>
    %53 = vector.shape_cast %52 : vector<128xf32> to vector<128x1xf32>
    %54 = tpu.reciprocal %53 {approx = true} : vector<128x1xf32> -> vector<128x1xf32>
    %55 = vector.broadcast %54 : vector<128x1xf32> to vector<128x128xf32>
    %56 = arith.mulf %51, %55 : vector<128x128xf32>
    %57 = arith.truncf %56 : vector<128x128xf32> to vector<128x128xbf16>
    %cst_24 = arith.constant dense<0.000000e+00> : vector<128x64xf32>
    %58 = tpu.matmul %57, %41, %cst_24 {dimension_numbers = #tpu.dot_dimension_numbers<[1], [0], [0], [1], [0, 0, 1, 1], [], []>} : vector<128x128xbf16>, vector<128x64xbf16>, vector<128x64xf32> -> vector<128x64xf32>
    %59 = vector.extract_strided_slice %35 {offsets = [0, 64], sizes = [128, 64], strides = [1, 1]} : vector<128x384xf32> to vector<128x64xf32>
    %60 = arith.truncf %59 : vector<128x64xf32> to vector<128x64xbf16>
    %61 = vector.extract_strided_slice %35 {offsets = [0, 192], sizes = [128, 64], strides = [1, 1]} : vector<128x384xf32> to vector<128x64xf32>
    %62 = arith.truncf %61 : vector<128x64xf32> to vector<128x64xbf16>
    %63 = vector.extract_strided_slice %35 {offsets = [0, 320], sizes = [128, 64], strides = [1, 1]} : vector<128x384xf32> to vector<128x64xf32>
    %64 = arith.truncf %63 : vector<128x64xf32> to vector<128x64xbf16>
    %cst_25 = arith.constant dense<0.000000e+00> : vector<128x128xf32>
    %65 = tpu.matmul %60, %62, %cst_25 {dimension_numbers = #tpu.dot_dimension_numbers<[1], [1], [0], [0], [0, 0, 1, 0], [], []>} : vector<128x64xbf16>, vector<128x64xbf16>, vector<128x128xf32> -> vector<128x128xf32>
    %cst_26 = arith.constant 1.250000e-01 : f32
    %66 = vector.broadcast %cst_26 : f32 to vector<128x128xf32>
    %67 = arith.mulf %65, %66 : vector<128x128xf32>
    %68 = vector.broadcast %27 : vector<1x128xf32> to vector<128x128xf32>
    %69 = arith.addf %67, %68 : vector<128x128xf32>
    %cst_27 = arith.constant dense<0xFF800000> : vector<128xf32>
    %70 = vector.multi_reduction <maximumf>, %69, %cst_27 [1] : vector<128x128xf32> to vector<128xf32>
    %71 = vector.shape_cast %70 : vector<128xf32> to vector<128x1xf32>
    %72 = vector.broadcast %71 : vector<128x1xf32> to vector<128x128xf32>
    %73 = arith.subf %69, %72 : vector<128x128xf32>
    %74 = math.exp %73 : vector<128x128xf32>
    %cst_28 = arith.constant dense<0.000000e+00> : vector<128xf32>
    %75 = vector.multi_reduction <add>, %74, %cst_28 [1] : vector<128x128xf32> to vector<128xf32>
    %76 = vector.shape_cast %75 : vector<128xf32> to vector<128x1xf32>
    %77 = tpu.reciprocal %76 {approx = true} : vector<128x1xf32> -> vector<128x1xf32>
    %78 = vector.broadcast %77 : vector<128x1xf32> to vector<128x128xf32>
    %79 = arith.mulf %74, %78 : vector<128x128xf32>
    %80 = arith.truncf %79 : vector<128x128xf32> to vector<128x128xbf16>
    %cst_29 = arith.constant dense<0.000000e+00> : vector<128x64xf32>
    %81 = tpu.matmul %80, %64, %cst_29 {dimension_numbers = #tpu.dot_dimension_numbers<[1], [0], [0], [1], [0, 0, 1, 1], [], []>} : vector<128x128xbf16>, vector<128x64xbf16>, vector<128x64xf32> -> vector<128x64xf32>
    %82 = tpu.concatenate %58, %81 in 1 : vector<128x64xf32>, vector<128x64xf32> -> vector<128x128xf32>
    %83 = arith.truncf %82 : vector<128x128xf32> to vector<128x128xbf16>
    %c0_30 = arith.constant 0 : index
    %c0_31 = arith.constant 0 : index
    %c0_32 = arith.constant 0 : index
    %84 = vector.load %arg7[%c0_30, %c0_31, %c0_32] : memref<2x128x128xbf16, #tpu.memory_space<vmem>>, vector<1x128x128xbf16>
    %85 = vector.shape_cast %84 : vector<1x128x128xbf16> to vector<128x128xbf16>
    %cst_33 = arith.constant dense<0.000000e+00> : vector<128x128xf32>
    %86 = tpu.matmul %83, %85, %cst_33 {dimension_numbers = #tpu.dot_dimension_numbers<[1], [0], [0], [1], [0, 0, 1, 1], [], []>} : vector<128x128xbf16>, vector<128x128xbf16>, vector<128x128xf32> -> vector<128x128xf32>
    %c0_34 = arith.constant 0 : index
    %c0_35 = arith.constant 0 : index
    %c0_36 = arith.constant 0 : index
    %87 = vector.load %arg8[%c0_34, %c0_35, %c0_36] : memref<2x1x128xf32, #tpu.memory_space<vmem>>, vector<1x1x128xf32>
    %88 = vector.shape_cast %87 : vector<1x1x128xf32> to vector<1x128xf32>
    %89 = vector.broadcast %88 : vector<1x128xf32> to vector<128x128xf32>
    %90 = arith.addf %86, %89 : vector<128x128xf32>
    %91 = arith.addf %90, %25 : vector<128x128xf32>
    %c0_37 = arith.constant 0 : index
    %c0_38 = arith.constant 0 : index
    %c0_39 = arith.constant 0 : index
    %92 = vector.load %arg9[%c0_37, %c0_38, %c0_39] : memref<2x1x128xf32, #tpu.memory_space<vmem>>, vector<1x1x128xf32>
    %93 = vector.shape_cast %92 : vector<1x1x128xf32> to vector<1x128xf32>
    %c0_40 = arith.constant 0 : index
    %c0_41 = arith.constant 0 : index
    %c0_42 = arith.constant 0 : index
    %94 = vector.load %arg10[%c0_40, %c0_41, %c0_42] : memref<2x1x128xf32, #tpu.memory_space<vmem>>, vector<1x1x128xf32>
    %95 = vector.shape_cast %94 : vector<1x1x128xf32> to vector<1x128xf32>
    %cst_43 = arith.constant dense<0.000000e+00> : vector<128xf32>
    %96 = vector.multi_reduction <add>, %91, %cst_43 [1] : vector<128x128xf32> to vector<128xf32>
    %97 = vector.shape_cast %96 : vector<128xf32> to vector<128x1xf32>
    %cst_44 = arith.constant 1.280000e+02 : f32
    %98 = vector.broadcast %cst_44 : f32 to vector<128x1xf32>
    %99 = arith.divf %97, %98 : vector<128x1xf32>
    %100 = vector.broadcast %99 : vector<128x1xf32> to vector<128x128xf32>
    %101 = arith.subf %91, %100 : vector<128x128xf32>
    %102 = arith.mulf %101, %101 : vector<128x128xf32>
    %cst_45 = arith.constant dense<0.000000e+00> : vector<128xf32>
    %103 = vector.multi_reduction <add>, %102, %cst_45 [1] : vector<128x128xf32> to vector<128xf32>
    %104 = vector.shape_cast %103 : vector<128xf32> to vector<128x1xf32>
    %cst_46 = arith.constant 1.280000e+02 : f32
    %105 = vector.broadcast %cst_46 : f32 to vector<128x1xf32>
    %106 = arith.divf %104, %105 : vector<128x1xf32>
    %107 = vector.broadcast %99 : vector<128x1xf32> to vector<128x128xf32>
    %108 = arith.subf %91, %107 : vector<128x128xf32>
    %cst_47 = arith.constant 9.99999996E-13 : f32
    %109 = vector.broadcast %cst_47 : f32 to vector<128x1xf32>
    %110 = arith.addf %106, %109 : vector<128x1xf32>
    %111 = math.rsqrt %110 : vector<128x1xf32>
    %112 = vector.broadcast %111 : vector<128x1xf32> to vector<128x128xf32>
    %113 = arith.mulf %108, %112 : vector<128x128xf32>
    %114 = vector.broadcast %93 : vector<1x128xf32> to vector<128x128xf32>
    %115 = arith.mulf %113, %114 : vector<128x128xf32>
    %116 = vector.broadcast %95 : vector<1x128xf32> to vector<128x128xf32>
    %117 = arith.addf %115, %116 : vector<128x128xf32>
    %118 = arith.truncf %117 : vector<128x128xf32> to vector<128x128xbf16>
    %c0_48 = arith.constant 0 : index
    %c0_49 = arith.constant 0 : index
    %c0_50 = arith.constant 0 : index
    %119 = vector.load %arg11[%c0_48, %c0_49, %c0_50] : memref<2x128x256xbf16, #tpu.memory_space<vmem>>, vector<1x128x256xbf16>
    %120 = vector.shape_cast %119 : vector<1x128x256xbf16> to vector<128x256xbf16>
    %cst_51 = arith.constant dense<0.000000e+00> : vector<128x256xf32>
    %121 = tpu.matmul %118, %120, %cst_51 {dimension_numbers = #tpu.dot_dimension_numbers<[1], [0], [0], [1], [0, 0, 1, 1], [], []>} : vector<128x128xbf16>, vector<128x256xbf16>, vector<128x256xf32> -> vector<128x256xf32>
    %c0_52 = arith.constant 0 : index
    %c0_53 = arith.constant 0 : index
    %c0_54 = arith.constant 0 : index
    %122 = vector.load %arg12[%c0_52, %c0_53, %c0_54] : memref<2x1x256xf32, #tpu.memory_space<vmem>>, vector<1x1x256xf32>
    %123 = vector.shape_cast %122 : vector<1x1x256xf32> to vector<1x256xf32>
    %124 = vector.broadcast %123 : vector<1x256xf32> to vector<128x256xf32>
    %125 = arith.addf %121, %124 : vector<128x256xf32>
    %126 = arith.mulf %125, %125 : vector<128x256xf32>
    %127 = arith.mulf %125, %126 : vector<128x256xf32>
    %cst_55 = arith.constant 4.471500e-02 : f32
    %128 = vector.broadcast %cst_55 : f32 to vector<128x256xf32>
    %129 = arith.mulf %128, %127 : vector<128x256xf32>
    %130 = arith.addf %125, %129 : vector<128x256xf32>
    %cst_56 = arith.constant 0.797884583 : f32
    %131 = vector.broadcast %cst_56 : f32 to vector<128x256xf32>
    %132 = arith.mulf %131, %130 : vector<128x256xf32>
    %133 = math.tanh %132 : vector<128x256xf32>
    %cst_57 = arith.constant 1.000000e+00 : f32
    %134 = vector.broadcast %cst_57 : f32 to vector<128x256xf32>
    %135 = arith.addf %134, %133 : vector<128x256xf32>
    %cst_58 = arith.constant 5.000000e-01 : f32
    %136 = vector.broadcast %cst_58 : f32 to vector<128x256xf32>
    %137 = arith.mulf %136, %135 : vector<128x256xf32>
    %138 = arith.mulf %125, %137 : vector<128x256xf32>
    %139 = arith.truncf %138 : vector<128x256xf32> to vector<128x256xbf16>
    %c0_59 = arith.constant 0 : index
    %c0_60 = arith.constant 0 : index
    %c0_61 = arith.constant 0 : index
    %140 = vector.load %arg13[%c0_59, %c0_60, %c0_61] : memref<2x256x128xbf16, #tpu.memory_space<vmem>>, vector<1x256x128xbf16>
    %141 = vector.shape_cast %140 : vector<1x256x128xbf16> to vector<256x128xbf16>
    %cst_62 = arith.constant dense<0.000000e+00> : vector<128x128xf32>
    %142 = tpu.matmul %139, %141, %cst_62 {dimension_numbers = #tpu.dot_dimension_numbers<[1], [0], [0], [1], [0, 0, 1, 1], [], []>} : vector<128x256xbf16>, vector<256x128xbf16>, vector<128x128xf32> -> vector<128x128xf32>
    %c0_63 = arith.constant 0 : index
    %c0_64 = arith.constant 0 : index
    %c0_65 = arith.constant 0 : index
    %143 = vector.load %arg14[%c0_63, %c0_64, %c0_65] : memref<2x1x128xf32, #tpu.memory_space<vmem>>, vector<1x1x128xf32>
    %144 = vector.shape_cast %143 : vector<1x1x128xf32> to vector<1x128xf32>
    %145 = vector.broadcast %144 : vector<1x128xf32> to vector<128x128xf32>
    %146 = arith.addf %142, %145 : vector<128x128xf32>
    %147 = arith.addf %146, %117 : vector<128x128xf32>
    %c0_66 = arith.constant 0 : index
    %c0_67 = arith.constant 0 : index
    %c0_68 = arith.constant 0 : index
    %148 = vector.load %arg15[%c0_66, %c0_67, %c0_68] : memref<2x1x128xf32, #tpu.memory_space<vmem>>, vector<1x1x128xf32>
    %149 = vector.shape_cast %148 : vector<1x1x128xf32> to vector<1x128xf32>
    %c0_69 = arith.constant 0 : index
    %c0_70 = arith.constant 0 : index
    %c0_71 = arith.constant 0 : index
    %150 = vector.load %arg16[%c0_69, %c0_70, %c0_71] : memref<2x1x128xf32, #tpu.memory_space<vmem>>, vector<1x1x128xf32>
    %151 = vector.shape_cast %150 : vector<1x1x128xf32> to vector<1x128xf32>
    %cst_72 = arith.constant dense<0.000000e+00> : vector<128xf32>
    %152 = vector.multi_reduction <add>, %147, %cst_72 [1] : vector<128x128xf32> to vector<128xf32>
    %153 = vector.shape_cast %152 : vector<128xf32> to vector<128x1xf32>
    %cst_73 = arith.constant 1.280000e+02 : f32
    %154 = vector.broadcast %cst_73 : f32 to vector<128x1xf32>
    %155 = arith.divf %153, %154 : vector<128x1xf32>
    %156 = vector.broadcast %155 : vector<128x1xf32> to vector<128x128xf32>
    %157 = arith.subf %147, %156 : vector<128x128xf32>
    %158 = arith.mulf %157, %157 : vector<128x128xf32>
    %cst_74 = arith.constant dense<0.000000e+00> : vector<128xf32>
    %159 = vector.multi_reduction <add>, %158, %cst_74 [1] : vector<128x128xf32> to vector<128xf32>
    %160 = vector.shape_cast %159 : vector<128xf32> to vector<128x1xf32>
    %cst_75 = arith.constant 1.280000e+02 : f32
    %161 = vector.broadcast %cst_75 : f32 to vector<128x1xf32>
    %162 = arith.divf %160, %161 : vector<128x1xf32>
    %163 = vector.broadcast %155 : vector<128x1xf32> to vector<128x128xf32>
    %164 = arith.subf %147, %163 : vector<128x128xf32>
    %cst_76 = arith.constant 9.99999996E-13 : f32
    %165 = vector.broadcast %cst_76 : f32 to vector<128x1xf32>
    %166 = arith.addf %162, %165 : vector<128x1xf32>
    %167 = math.rsqrt %166 : vector<128x1xf32>
    %168 = vector.broadcast %167 : vector<128x1xf32> to vector<128x128xf32>
    %169 = arith.mulf %164, %168 : vector<128x128xf32>
    %170 = vector.broadcast %149 : vector<1x128xf32> to vector<128x128xf32>
    %171 = arith.mulf %169, %170 : vector<128x128xf32>
    %172 = vector.broadcast %151 : vector<1x128xf32> to vector<128x128xf32>
    %173 = arith.addf %171, %172 : vector<128x128xf32>
    %174 = arith.truncf %173 : vector<128x128xf32> to vector<128x128xbf16>
    %c1 = arith.constant 1 : index
    %c0_77 = arith.constant 0 : index
    %c0_78 = arith.constant 0 : index
    %175 = vector.load %arg5[%c1, %c0_77, %c0_78] : memref<2x128x384xbf16, #tpu.memory_space<vmem>>, vector<1x128x384xbf16>
    %176 = vector.shape_cast %175 : vector<1x128x384xbf16> to vector<128x384xbf16>
    %cst_79 = arith.constant dense<0.000000e+00> : vector<128x384xf32>
    %177 = tpu.matmul %174, %176, %cst_79 {dimension_numbers = #tpu.dot_dimension_numbers<[1], [0], [0], [1], [0, 0, 1, 1], [], []>} : vector<128x128xbf16>, vector<128x384xbf16>, vector<128x384xf32> -> vector<128x384xf32>
    %c1_80 = arith.constant 1 : index
    %c0_81 = arith.constant 0 : index
    %c0_82 = arith.constant 0 : index
    %178 = vector.load %arg6[%c1_80, %c0_81, %c0_82] : memref<2x1x384xf32, #tpu.memory_space<vmem>>, vector<1x1x384xf32>
    %179 = vector.shape_cast %178 : vector<1x1x384xf32> to vector<1x384xf32>
    %180 = vector.broadcast %179 : vector<1x384xf32> to vector<128x384xf32>
    %181 = arith.addf %177, %180 : vector<128x384xf32>
    %182 = vector.extract_strided_slice %181 {offsets = [0, 0], sizes = [128, 64], strides = [1, 1]} : vector<128x384xf32> to vector<128x64xf32>
    %183 = arith.truncf %182 : vector<128x64xf32> to vector<128x64xbf16>
    %184 = vector.extract_strided_slice %181 {offsets = [0, 128], sizes = [128, 64], strides = [1, 1]} : vector<128x384xf32> to vector<128x64xf32>
    %185 = arith.truncf %184 : vector<128x64xf32> to vector<128x64xbf16>
    %186 = vector.extract_strided_slice %181 {offsets = [0, 256], sizes = [128, 64], strides = [1, 1]} : vector<128x384xf32> to vector<128x64xf32>
    %187 = arith.truncf %186 : vector<128x64xf32> to vector<128x64xbf16>
    %cst_83 = arith.constant dense<0.000000e+00> : vector<128x128xf32>
    %188 = tpu.matmul %183, %185, %cst_83 {dimension_numbers = #tpu.dot_dimension_numbers<[1], [1], [0], [0], [0, 0, 1, 0], [], []>} : vector<128x64xbf16>, vector<128x64xbf16>, vector<128x128xf32> -> vector<128x128xf32>
    %cst_84 = arith.constant 1.250000e-01 : f32
    %189 = vector.broadcast %cst_84 : f32 to vector<128x128xf32>
    %190 = arith.mulf %188, %189 : vector<128x128xf32>
    %191 = vector.broadcast %27 : vector<1x128xf32> to vector<128x128xf32>
    %192 = arith.addf %190, %191 : vector<128x128xf32>
    %cst_85 = arith.constant dense<0xFF800000> : vector<128xf32>
    %193 = vector.multi_reduction <maximumf>, %192, %cst_85 [1] : vector<128x128xf32> to vector<128xf32>
    %194 = vector.shape_cast %193 : vector<128xf32> to vector<128x1xf32>
    %195 = vector.broadcast %194 : vector<128x1xf32> to vector<128x128xf32>
    %196 = arith.subf %192, %195 : vector<128x128xf32>
    %197 = math.exp %196 : vector<128x128xf32>
    %cst_86 = arith.constant dense<0.000000e+00> : vector<128xf32>
    %198 = vector.multi_reduction <add>, %197, %cst_86 [1] : vector<128x128xf32> to vector<128xf32>
    %199 = vector.shape_cast %198 : vector<128xf32> to vector<128x1xf32>
    %200 = tpu.reciprocal %199 {approx = true} : vector<128x1xf32> -> vector<128x1xf32>
    %201 = vector.broadcast %200 : vector<128x1xf32> to vector<128x128xf32>
    %202 = arith.mulf %197, %201 : vector<128x128xf32>
    %203 = arith.truncf %202 : vector<128x128xf32> to vector<128x128xbf16>
    %cst_87 = arith.constant dense<0.000000e+00> : vector<128x64xf32>
    %204 = tpu.matmul %203, %187, %cst_87 {dimension_numbers = #tpu.dot_dimension_numbers<[1], [0], [0], [1], [0, 0, 1, 1], [], []>} : vector<128x128xbf16>, vector<128x64xbf16>, vector<128x64xf32> -> vector<128x64xf32>
    %205 = vector.extract_strided_slice %181 {offsets = [0, 64], sizes = [128, 64], strides = [1, 1]} : vector<128x384xf32> to vector<128x64xf32>
    %206 = arith.truncf %205 : vector<128x64xf32> to vector<128x64xbf16>
    %207 = vector.extract_strided_slice %181 {offsets = [0, 192], sizes = [128, 64], strides = [1, 1]} : vector<128x384xf32> to vector<128x64xf32>
    %208 = arith.truncf %207 : vector<128x64xf32> to vector<128x64xbf16>
    %209 = vector.extract_strided_slice %181 {offsets = [0, 320], sizes = [128, 64], strides = [1, 1]} : vector<128x384xf32> to vector<128x64xf32>
    %210 = arith.truncf %209 : vector<128x64xf32> to vector<128x64xbf16>
    %cst_88 = arith.constant dense<0.000000e+00> : vector<128x128xf32>
    %211 = tpu.matmul %206, %208, %cst_88 {dimension_numbers = #tpu.dot_dimension_numbers<[1], [1], [0], [0], [0, 0, 1, 0], [], []>} : vector<128x64xbf16>, vector<128x64xbf16>, vector<128x128xf32> -> vector<128x128xf32>
    %cst_89 = arith.constant 1.250000e-01 : f32
    %212 = vector.broadcast %cst_89 : f32 to vector<128x128xf32>
    %213 = arith.mulf %211, %212 : vector<128x128xf32>
    %214 = vector.broadcast %27 : vector<1x128xf32> to vector<128x128xf32>
    %215 = arith.addf %213, %214 : vector<128x128xf32>
    %cst_90 = arith.constant dense<0xFF800000> : vector<128xf32>
    %216 = vector.multi_reduction <maximumf>, %215, %cst_90 [1] : vector<128x128xf32> to vector<128xf32>
    %217 = vector.shape_cast %216 : vector<128xf32> to vector<128x1xf32>
    %218 = vector.broadcast %217 : vector<128x1xf32> to vector<128x128xf32>
    %219 = arith.subf %215, %218 : vector<128x128xf32>
    %220 = math.exp %219 : vector<128x128xf32>
    %cst_91 = arith.constant dense<0.000000e+00> : vector<128xf32>
    %221 = vector.multi_reduction <add>, %220, %cst_91 [1] : vector<128x128xf32> to vector<128xf32>
    %222 = vector.shape_cast %221 : vector<128xf32> to vector<128x1xf32>
    %223 = tpu.reciprocal %222 {approx = true} : vector<128x1xf32> -> vector<128x1xf32>
    %224 = vector.broadcast %223 : vector<128x1xf32> to vector<128x128xf32>
    %225 = arith.mulf %220, %224 : vector<128x128xf32>
    %226 = arith.truncf %225 : vector<128x128xf32> to vector<128x128xbf16>
    %cst_92 = arith.constant dense<0.000000e+00> : vector<128x64xf32>
    %227 = tpu.matmul %226, %210, %cst_92 {dimension_numbers = #tpu.dot_dimension_numbers<[1], [0], [0], [1], [0, 0, 1, 1], [], []>} : vector<128x128xbf16>, vector<128x64xbf16>, vector<128x64xf32> -> vector<128x64xf32>
    %228 = tpu.concatenate %204, %227 in 1 : vector<128x64xf32>, vector<128x64xf32> -> vector<128x128xf32>
    %229 = arith.truncf %228 : vector<128x128xf32> to vector<128x128xbf16>
    %c1_93 = arith.constant 1 : index
    %c0_94 = arith.constant 0 : index
    %c0_95 = arith.constant 0 : index
    %230 = vector.load %arg7[%c1_93, %c0_94, %c0_95] : memref<2x128x128xbf16, #tpu.memory_space<vmem>>, vector<1x128x128xbf16>
    %231 = vector.shape_cast %230 : vector<1x128x128xbf16> to vector<128x128xbf16>
    %cst_96 = arith.constant dense<0.000000e+00> : vector<128x128xf32>
    %232 = tpu.matmul %229, %231, %cst_96 {dimension_numbers = #tpu.dot_dimension_numbers<[1], [0], [0], [1], [0, 0, 1, 1], [], []>} : vector<128x128xbf16>, vector<128x128xbf16>, vector<128x128xf32> -> vector<128x128xf32>
    %c1_97 = arith.constant 1 : index
    %c0_98 = arith.constant 0 : index
    %c0_99 = arith.constant 0 : index
    %233 = vector.load %arg8[%c1_97, %c0_98, %c0_99] : memref<2x1x128xf32, #tpu.memory_space<vmem>>, vector<1x1x128xf32>
    %234 = vector.shape_cast %233 : vector<1x1x128xf32> to vector<1x128xf32>
    %235 = vector.broadcast %234 : vector<1x128xf32> to vector<128x128xf32>
    %236 = arith.addf %232, %235 : vector<128x128xf32>
    %237 = arith.addf %236, %173 : vector<128x128xf32>
    %c1_100 = arith.constant 1 : index
    %c0_101 = arith.constant 0 : index
    %c0_102 = arith.constant 0 : index
    %238 = vector.load %arg9[%c1_100, %c0_101, %c0_102] : memref<2x1x128xf32, #tpu.memory_space<vmem>>, vector<1x1x128xf32>
    %239 = vector.shape_cast %238 : vector<1x1x128xf32> to vector<1x128xf32>
    %c1_103 = arith.constant 1 : index
    %c0_104 = arith.constant 0 : index
    %c0_105 = arith.constant 0 : index
    %240 = vector.load %arg10[%c1_103, %c0_104, %c0_105] : memref<2x1x128xf32, #tpu.memory_space<vmem>>, vector<1x1x128xf32>
    %241 = vector.shape_cast %240 : vector<1x1x128xf32> to vector<1x128xf32>
    %cst_106 = arith.constant dense<0.000000e+00> : vector<128xf32>
    %242 = vector.multi_reduction <add>, %237, %cst_106 [1] : vector<128x128xf32> to vector<128xf32>
    %243 = vector.shape_cast %242 : vector<128xf32> to vector<128x1xf32>
    %cst_107 = arith.constant 1.280000e+02 : f32
    %244 = vector.broadcast %cst_107 : f32 to vector<128x1xf32>
    %245 = arith.divf %243, %244 : vector<128x1xf32>
    %246 = vector.broadcast %245 : vector<128x1xf32> to vector<128x128xf32>
    %247 = arith.subf %237, %246 : vector<128x128xf32>
    %248 = arith.mulf %247, %247 : vector<128x128xf32>
    %cst_108 = arith.constant dense<0.000000e+00> : vector<128xf32>
    %249 = vector.multi_reduction <add>, %248, %cst_108 [1] : vector<128x128xf32> to vector<128xf32>
    %250 = vector.shape_cast %249 : vector<128xf32> to vector<128x1xf32>
    %cst_109 = arith.constant 1.280000e+02 : f32
    %251 = vector.broadcast %cst_109 : f32 to vector<128x1xf32>
    %252 = arith.divf %250, %251 : vector<128x1xf32>
    %253 = vector.broadcast %245 : vector<128x1xf32> to vector<128x128xf32>
    %254 = arith.subf %237, %253 : vector<128x128xf32>
    %cst_110 = arith.constant 9.99999996E-13 : f32
    %255 = vector.broadcast %cst_110 : f32 to vector<128x1xf32>
    %256 = arith.addf %252, %255 : vector<128x1xf32>
    %257 = math.rsqrt %256 : vector<128x1xf32>
    %258 = vector.broadcast %257 : vector<128x1xf32> to vector<128x128xf32>
    %259 = arith.mulf %254, %258 : vector<128x128xf32>
    %260 = vector.broadcast %239 : vector<1x128xf32> to vector<128x128xf32>
    %261 = arith.mulf %259, %260 : vector<128x128xf32>
    %262 = vector.broadcast %241 : vector<1x128xf32> to vector<128x128xf32>
    %263 = arith.addf %261, %262 : vector<128x128xf32>
    %264 = arith.truncf %263 : vector<128x128xf32> to vector<128x128xbf16>
    %c1_111 = arith.constant 1 : index
    %c0_112 = arith.constant 0 : index
    %c0_113 = arith.constant 0 : index
    %265 = vector.load %arg11[%c1_111, %c0_112, %c0_113] : memref<2x128x256xbf16, #tpu.memory_space<vmem>>, vector<1x128x256xbf16>
    %266 = vector.shape_cast %265 : vector<1x128x256xbf16> to vector<128x256xbf16>
    %cst_114 = arith.constant dense<0.000000e+00> : vector<128x256xf32>
    %267 = tpu.matmul %264, %266, %cst_114 {dimension_numbers = #tpu.dot_dimension_numbers<[1], [0], [0], [1], [0, 0, 1, 1], [], []>} : vector<128x128xbf16>, vector<128x256xbf16>, vector<128x256xf32> -> vector<128x256xf32>
    %c1_115 = arith.constant 1 : index
    %c0_116 = arith.constant 0 : index
    %c0_117 = arith.constant 0 : index
    %268 = vector.load %arg12[%c1_115, %c0_116, %c0_117] : memref<2x1x256xf32, #tpu.memory_space<vmem>>, vector<1x1x256xf32>
    %269 = vector.shape_cast %268 : vector<1x1x256xf32> to vector<1x256xf32>
    %270 = vector.broadcast %269 : vector<1x256xf32> to vector<128x256xf32>
    %271 = arith.addf %267, %270 : vector<128x256xf32>
    %272 = arith.mulf %271, %271 : vector<128x256xf32>
    %273 = arith.mulf %271, %272 : vector<128x256xf32>
    %cst_118 = arith.constant 4.471500e-02 : f32
    %274 = vector.broadcast %cst_118 : f32 to vector<128x256xf32>
    %275 = arith.mulf %274, %273 : vector<128x256xf32>
    %276 = arith.addf %271, %275 : vector<128x256xf32>
    %cst_119 = arith.constant 0.797884583 : f32
    %277 = vector.broadcast %cst_119 : f32 to vector<128x256xf32>
    %278 = arith.mulf %277, %276 : vector<128x256xf32>
    %279 = math.tanh %278 : vector<128x256xf32>
    %cst_120 = arith.constant 1.000000e+00 : f32
    %280 = vector.broadcast %cst_120 : f32 to vector<128x256xf32>
    %281 = arith.addf %280, %279 : vector<128x256xf32>
    %cst_121 = arith.constant 5.000000e-01 : f32
    %282 = vector.broadcast %cst_121 : f32 to vector<128x256xf32>
    %283 = arith.mulf %282, %281 : vector<128x256xf32>
    %284 = arith.mulf %271, %283 : vector<128x256xf32>
    %285 = arith.truncf %284 : vector<128x256xf32> to vector<128x256xbf16>
    %c1_122 = arith.constant 1 : index
    %c0_123 = arith.constant 0 : index
    %c0_124 = arith.constant 0 : index
    %286 = vector.load %arg13[%c1_122, %c0_123, %c0_124] : memref<2x256x128xbf16, #tpu.memory_space<vmem>>, vector<1x256x128xbf16>
    %287 = vector.shape_cast %286 : vector<1x256x128xbf16> to vector<256x128xbf16>
    %cst_125 = arith.constant dense<0.000000e+00> : vector<128x128xf32>
    %288 = tpu.matmul %285, %287, %cst_125 {dimension_numbers = #tpu.dot_dimension_numbers<[1], [0], [0], [1], [0, 0, 1, 1], [], []>} : vector<128x256xbf16>, vector<256x128xbf16>, vector<128x128xf32> -> vector<128x128xf32>
    %c1_126 = arith.constant 1 : index
    %c0_127 = arith.constant 0 : index
    %c0_128 = arith.constant 0 : index
    %289 = vector.load %arg14[%c1_126, %c0_127, %c0_128] : memref<2x1x128xf32, #tpu.memory_space<vmem>>, vector<1x1x128xf32>
    %290 = vector.shape_cast %289 : vector<1x1x128xf32> to vector<1x128xf32>
    %291 = vector.broadcast %290 : vector<1x128xf32> to vector<128x128xf32>
    %292 = arith.addf %288, %291 : vector<128x128xf32>
    %293 = arith.addf %292, %263 : vector<128x128xf32>
    %c1_129 = arith.constant 1 : index
    %c0_130 = arith.constant 0 : index
    %c0_131 = arith.constant 0 : index
    %294 = vector.load %arg15[%c1_129, %c0_130, %c0_131] : memref<2x1x128xf32, #tpu.memory_space<vmem>>, vector<1x1x128xf32>
    %295 = vector.shape_cast %294 : vector<1x1x128xf32> to vector<1x128xf32>
    %c1_132 = arith.constant 1 : index
    %c0_133 = arith.constant 0 : index
    %c0_134 = arith.constant 0 : index
    %296 = vector.load %arg16[%c1_132, %c0_133, %c0_134] : memref<2x1x128xf32, #tpu.memory_space<vmem>>, vector<1x1x128xf32>
    %297 = vector.shape_cast %296 : vector<1x1x128xf32> to vector<1x128xf32>
    %cst_135 = arith.constant dense<0.000000e+00> : vector<128xf32>
    %298 = vector.multi_reduction <add>, %293, %cst_135 [1] : vector<128x128xf32> to vector<128xf32>
    %299 = vector.shape_cast %298 : vector<128xf32> to vector<128x1xf32>
    %cst_136 = arith.constant 1.280000e+02 : f32
    %300 = vector.broadcast %cst_136 : f32 to vector<128x1xf32>
    %301 = arith.divf %299, %300 : vector<128x1xf32>
    %302 = vector.broadcast %301 : vector<128x1xf32> to vector<128x128xf32>
    %303 = arith.subf %293, %302 : vector<128x128xf32>
    %304 = arith.mulf %303, %303 : vector<128x128xf32>
    %cst_137 = arith.constant dense<0.000000e+00> : vector<128xf32>
    %305 = vector.multi_reduction <add>, %304, %cst_137 [1] : vector<128x128xf32> to vector<128xf32>
    %306 = vector.shape_cast %305 : vector<128xf32> to vector<128x1xf32>
    %cst_138 = arith.constant 1.280000e+02 : f32
    %307 = vector.broadcast %cst_138 : f32 to vector<128x1xf32>
    %308 = arith.divf %306, %307 : vector<128x1xf32>
    %309 = vector.broadcast %301 : vector<128x1xf32> to vector<128x128xf32>
    %310 = arith.subf %293, %309 : vector<128x128xf32>
    %cst_139 = arith.constant 9.99999996E-13 : f32
    %311 = vector.broadcast %cst_139 : f32 to vector<128x1xf32>
    %312 = arith.addf %308, %311 : vector<128x1xf32>
    %313 = math.rsqrt %312 : vector<128x1xf32>
    %314 = vector.broadcast %313 : vector<128x1xf32> to vector<128x128xf32>
    %315 = arith.mulf %310, %314 : vector<128x128xf32>
    %316 = vector.broadcast %295 : vector<1x128xf32> to vector<128x128xf32>
    %317 = arith.mulf %315, %316 : vector<128x128xf32>
    %318 = vector.broadcast %297 : vector<1x128xf32> to vector<128x128xf32>
    %319 = arith.addf %317, %318 : vector<128x128xf32>
    %c0_140 = arith.constant 0 : index
    %c0_141 = arith.constant 0 : index
    %c0_142 = arith.constant 0 : index
    %320 = vector.load %arg17[%c0_140, %c0_141, %c0_142] : memref<1x128x128xf32, #tpu.memory_space<vmem>>, vector<1x128x128xf32>
    %321 = vector.shape_cast %320 : vector<1x128x128xf32> to vector<128x128xf32>
    %322 = vector.shape_cast %319 : vector<128x128xf32> to vector<1x128x128xf32>
    tpu.vector_store %arg17[%c0_140, %c0_141, %c0_142], %322 {strides = array<i32>} : memref<1x128x128xf32, #tpu.memory_space<vmem>>, vector<1x128x128xf32>,
    return
  }
  func.func @transform_0(%arg0: i32) -> (i32, i32, i32) {
    %c0_i32 = arith.constant 0 : i32
    %c0_i32_0 = arith.constant 0 : i32
    %c0_i32_1 = arith.constant 0 : i32
    return %arg0, %c0_i32, %c0_i32_0 : i32, i32, i32
  }
  func.func @transform_1(%arg0: i32) -> (i32, i32, i32) {
    %c0_i32 = arith.constant 0 : i32
    %c0_i32_0 = arith.constant 0 : i32
    %c0_i32_1 = arith.constant 0 : i32
    return %arg0, %c0_i32, %c0_i32_0 : i32, i32, i32
  }
  func.func @transform_2(%arg0: i32) -> (i32, i32) {
    %c0_i32 = arith.constant 0 : i32
    %c0_i32_0 = arith.constant 0 : i32
    %c0_i32_1 = arith.constant 0 : i32
    return %c0_i32, %c0_i32_0 : i32, i32
  }
  func.func @transform_3(%arg0: i32) -> (i32, i32) {
    %c0_i32 = arith.constant 0 : i32
    %c0_i32_0 = arith.constant 0 : i32
    %c0_i32_1 = arith.constant 0 : i32
    return %c0_i32, %c0_i32_0 : i32, i32
  }
  func.func @transform_4(%arg0: i32) -> (i32, i32, i32) {
    %c0_i32 = arith.constant 0 : i32
    %c0_i32_0 = arith.constant 0 : i32
    %c0_i32_1 = arith.constant 0 : i32
    %c0_i32_2 = arith.constant 0 : i32
    return %c0_i32, %c0_i32_0, %c0_i32_1 : i32, i32, i32
  }
  func.func @transform_5(%arg0: i32) -> (i32, i32, i32) {
    %c0_i32 = arith.constant 0 : i32
    %c0_i32_0 = arith.constant 0 : i32
    %c0_i32_1 = arith.constant 0 : i32
    %c0_i32_2 = arith.constant 0 : i32
    return %c0_i32, %c0_i32_0, %c0_i32_1 : i32, i32, i32
  }
  func.func @transform_6(%arg0: i32) -> (i32, i32, i32) {
    %c0_i32 = arith.constant 0 : i32
    %c0_i32_0 = arith.constant 0 : i32
    %c0_i32_1 = arith.constant 0 : i32
    %c0_i32_2 = arith.constant 0 : i32
    return %c0_i32, %c0_i32_0, %c0_i32_1 : i32, i32, i32
  }
  func.func @transform_7(%arg0: i32) -> (i32, i32, i32) {
    %c0_i32 = arith.constant 0 : i32
    %c0_i32_0 = arith.constant 0 : i32
    %c0_i32_1 = arith.constant 0 : i32
    %c0_i32_2 = arith.constant 0 : i32
    return %c0_i32, %c0_i32_0, %c0_i32_1 : i32, i32, i32
  }
  func.func @transform_8(%arg0: i32) -> (i32, i32, i32) {
    %c0_i32 = arith.constant 0 : i32
    %c0_i32_0 = arith.constant 0 : i32
    %c0_i32_1 = arith.constant 0 : i32
    %c0_i32_2 = arith.constant 0 : i32
    return %c0_i32, %c0_i32_0, %c0_i32_1 : i32, i32, i32
  }
  func.func @transform_9(%arg0: i32) -> (i32, i32, i32) {
    %c0_i32 = arith.constant 0 : i32
    %c0_i32_0 = arith.constant 0 : i32
    %c0_i32_1 = arith.constant 0 : i32
    %c0_i32_2 = arith.constant 0 : i32
    return %c0_i32, %c0_i32_0, %c0_i32_1 : i32, i32, i32
  }
  func.func @transform_10(%arg0: i32) -> (i32, i32, i32) {
    %c0_i32 = arith.constant 0 : i32
    %c0_i32_0 = arith.constant 0 : i32
    %c0_i32_1 = arith.constant 0 : i32
    %c0_i32_2 = arith.constant 0 : i32
    return %c0_i32, %c0_i32_0, %c0_i32_1 : i32, i32, i32
  }
  func.func @transform_11(%arg0: i32) -> (i32, i32, i32) {
    %c0_i32 = arith.constant 0 : i32
    %c0_i32_0 = arith.constant 0 : i32
    %c0_i32_1 = arith.constant 0 : i32
    %c0_i32_2 = arith.constant 0 : i32
    return %c0_i32, %c0_i32_0, %c0_i32_1 : i32, i32, i32
  }
  func.func @transform_12(%arg0: i32) -> (i32, i32, i32) {
    %c0_i32 = arith.constant 0 : i32
    %c0_i32_0 = arith.constant 0 : i32
    %c0_i32_1 = arith.constant 0 : i32
    %c0_i32_2 = arith.constant 0 : i32
    return %c0_i32, %c0_i32_0, %c0_i32_1 : i32, i32, i32
  }
  func.func @transform_13(%arg0: i32) -> (i32, i32, i32) {
    %c0_i32 = arith.constant 0 : i32
    %c0_i32_0 = arith.constant 0 : i32
    %c0_i32_1 = arith.constant 0 : i32
    %c0_i32_2 = arith.constant 0 : i32
    return %c0_i32, %c0_i32_0, %c0_i32_1 : i32, i32, i32
  }
  func.func @transform_14(%arg0: i32) -> (i32, i32, i32) {
    %c0_i32 = arith.constant 0 : i32
    %c0_i32_0 = arith.constant 0 : i32
    %c0_i32_1 = arith.constant 0 : i32
    %c0_i32_2 = arith.constant 0 : i32
    return %c0_i32, %c0_i32_0, %c0_i32_1 : i32, i32, i32
  }
  func.func @transform_15(%arg0: i32) -> (i32, i32, i32) {
    %c0_i32 = arith.constant 0 : i32
    %c0_i32_0 = arith.constant 0 : i32
    %c0_i32_1 = arith.constant 0 : i32
    %c0_i32_2 = arith.constant 0 : i32
    return %c0_i32, %c0_i32_0, %c0_i32_1 : i32, i32, i32
  }
  func.func @transform_16(%arg0: i32) -> (i32, i32, i32) {
    %c0_i32 = arith.constant 0 : i32
    %c0_i32_0 = arith.constant 0 : i32
    %c0_i32_1 = arith.constant 0 : i32
    return %arg0, %c0_i32, %c0_i32_0 : i32, i32, i32
  }
}

</mosaic_0001>

<llo_original>
// kernel: _lambda_.3
$region0: #{_lambda_.3}
  #allocation0 [shape = 'u32[]', space=smem, size = 0x4, offset = 0x4, fixed_abs, tag = 'smem constant byte address 0x4 - core index']
  #allocation1 [shape = 'u32[72,128]{1,0:T(1,128)}', space=vmem, size = 0x9000, scoped, tag = 'internal scratch']
  %s0 = inlined_call_operand.vmem [shape: f32[256,128], index: 0, kind: input, shape index: {}]
  %s1 = inlined_call_operand.vmem [shape: bf16[128,8], index: 1, kind: input, shape index: {}]
  %s2 = inlined_call_operand.vmem [shape: f32[1,8], index: 2, kind: input, shape index: {}, may-alias: {2,9}]
  %s3 = inlined_call_operand.vmem [shape: bf16[128,136], index: 3, kind: input, shape index: {}]
  %s4 = inlined_call_operand.vmem [shape: bf16[8,136], index: 4, kind: input, shape index: {}]
  %s5 = inlined_call_operand.vmem [shape: f32[1,136], index: 5, kind: input, shape index: {}, may-alias: {5,7}]
  %s6 = inlined_call_operand.vmem [shape: f32[1,136], index: 6, kind: input, shape index: {}]
  %s7 = inlined_call_operand.vmem [shape: f32[1,136], index: 7, kind: input, shape index: {}, may-alias: {5,7}]
  %s8 = inlined_call_operand.vmem [shape: bf16[136,8], index: 8, kind: input, shape index: {}]
  %s9 = inlined_call_operand.vmem [shape: f32[1,8], index: 9, kind: input, shape index: {}, may-alias: {2,9}]
  %s10 = inlined_call_operand.vmem [shape: f32[256,8], index: 10, kind: output, shape index: {0}]
  %s11 = inlined_call_operand.vmem [shape: f32[256,8], index: 11, kind: output, shape index: {1}]
  %12 = xla_tuple %s10, %s11
  %s13 = sld [smem:[#allocation0]]
  $region81: #{_lambda_.3} parent=0
    _
  %s15 = ssub.s32 1, %s13
  %s16 = scalar_select 0, %s15, %s13
  loop: start=0, step=1, limit=4
  $region2: #{_lambda_.3} parent=0 // loop_pre_header
    _
  $region3: #{_lambda_.3} parent=0 // loop_header
    %s18 = sphi 0, %s22
    %p19 = scmp.ge.s32.totalorder %s18, 4
    %s28 = sphi 0, %s30
    %s31 = sphi 0, %s28
    %s32 = sphi 0, %s31
    %s48 = sphi 0, %s32
    %s52 = sphi 0, %s52
    %s54 = sphi 0, %s52
    %s55 = sphi 0, %s54
    %s69 = sphi 0, %s55
    %s73 = sphi 0, %s73
    %s75 = sphi 0, %s73
    %s76 = sphi 0, %s75
    %s90 = sphi 0, %s76
    %s94 = sphi 0, %s94
    %s96 = sphi 0, %s94
    %s97 = sphi 0, %s96
    %s111 = sphi 0, %s97
    %s115 = sphi 0, %s115
    %s117 = sphi 0, %s115
    %s118 = sphi 0, %s117
    %s132 = sphi 0, %s118
    %s136 = sphi 0, %s136
    %s138 = sphi 0, %s136
    %s139 = sphi 0, %s138
    %s153 = sphi 0, %s139
    %s157 = sphi 0, %s157
    %s159 = sphi 0, %s157
    %s160 = sphi 0, %s159
    %s174 = sphi 0, %s160
    %s178 = sphi 0, %s178
    %s180 = sphi 0, %s178
    %s181 = sphi 0, %s180
    %s195 = sphi 0, %s181
    %s199 = sphi 0, %s199
    %s201 = sphi 0, %s199
    %s202 = sphi 0, %s201
    %s216 = sphi 0, %s202
    %s220 = sphi 0, %s220
    %s222 = sphi 0, %s220
    %s223 = sphi 0, %s222
    %s237 = sphi 0, %s223
    %s243 = sphi 0, %s245
    %s246 = sphi 0, %s243
    %s247 = sphi 0, %s246
    %s263 = sphi 0, %s247
    %s269 = sphi 0, %s271
    %s272 = sphi 0, %s269
    %s273 = sphi 0, %s272
    %s289 = sphi 0, %s273
  $region4: #{_lambda_.3} parent=0 // loop_header_branch
    %21 = sbr.rel (%p19) target = $region8
  $region5: #{_lambda_.3} parent=0 // loop_body
    %s23 = ssub.s32 %s18, 1
    %s24 = ssub.s32 %s18, 2
    %s25 = sadd.s32 %s18, 1
    %s26 = ssub.s32 %s18, %s25
    %p27 = scmp.eq.s32.totalorder %s26, 0
    %s29 = sadd.s32 %s28, 1
    %s30 = scalar_select %p27, %s28, %s29
    %p33 = pneg %p27
    %p34 = scmp.eq.s32.totalorder %s18, 1
    %p35 = por %p33, %p34
    %p36 = scmp.ne.s32.totalorder %s28, %s31
    %p37 = scmp.eq.s32.totalorder %s18, 0
    %p38 = por %p36, %p37
    %p39 = scmp.ne.s32.totalorder %s28, %s31
    %p40 = scmp.eq.s32.totalorder %s23, 1
    %p41 = por %p39, %p40
    %p42 = scmp.ne.s32.totalorder %s31, %s32
    %p43 = scmp.eq.s32.totalorder %s23, 0
    %p44 = por %p42, %p43
    %p45 = scmp.ne.s32.totalorder %s31, %s32
    %p46 = scmp.eq.s32.totalorder %s24, 1
    %p47 = por %p45, %p46
    %p49 = scmp.ne.s32.totalorder %s32, %s48
    %p50 = scmp.eq.s32.totalorder %s24, 0
    %p51 = por %p49, %p50
    %s53 = sadd.s32 %s52, 1
    %p56 = scmp.eq.s32.totalorder %s18, 1
    %p57 = scmp.ne.s32.totalorder %s52, %s54
    %p58 = scmp.eq.s32.totalorder %s18, 0
    %p59 = por %p57, %p58
    %p60 = scmp.ne.s32.totalorder %s52, %s54
    %p61 = scmp.eq.s32.totalorder %s23, 1
    %p62 = por %p60, %p61
    %p63 = scmp.ne.s32.totalorder %s54, %s55
    %p64 = scmp.eq.s32.totalorder %s23, 0
    %p65 = por %p63, %p64
    %p66 = scmp.ne.s32.totalorder %s54, %s55
    %p67 = scmp.eq.s32.totalorder %s24, 1
    %p68 = por %p66, %p67
    %p70 = scmp.ne.s32.totalorder %s55, %s69
    %p71 = scmp.eq.s32.totalorder %s24, 0
    %p72 = por %p70, %p71
    %s74 = sadd.s32 %s73, 1
    %p77 = scmp.eq.s32.totalorder %s18, 1
    %p78 = scmp.ne.s32.totalorder %s73, %s75
    %p79 = scmp.eq.s32.totalorder %s18, 0
    %p80 = por %p78, %p79
    %p81 = scmp.ne.s32.totalorder %s73, %s75
    %p82 = scmp.eq.s32.totalorder %s23, 1
    %p83 = por %p81, %p82
    %p84 = scmp.ne.s32.totalorder %s75, %s76
    %p85 = scmp.eq.s32.totalorder %s23, 0
    %p86 = por %p84, %p85
    %p87 = scmp.ne.s32.totalorder %s75, %s76
    %p88 = scmp.eq.s32.totalorder %s24, 1
    %p89 = por %p87, %p88
    %p91 = scmp.ne.s32.totalorder %s76, %s90
    %p92 = scmp.eq.s32.totalorder %s24, 0
    %p93 = por %p91, %p92
    %s95 = sadd.s32 %s94, 1
    %p98 = scmp.eq.s32.totalorder %s18, 1
    %p99 = scmp.ne.s32.totalorder %s94, %s96
    %p100 = scmp.eq.s32.totalorder %s18, 0
    %p101 = por %p99, %p100
    %p102 = scmp.ne.s32.totalorder %s94, %s96
    %p103 = scmp.eq.s32.totalorder %s23, 1
    %p104 = por %p102, %p103
    %p105 = scmp.ne.s32.totalorder %s96, %s97
    %p106 = scmp.eq.s32.totalorder %s23, 0
    %p107 = por %p105, %p106
    %p108 = scmp.ne.s32.totalorder %s96, %s97
    %p109 = scmp.eq.s32.totalorder %s24, 1
    %p110 = por %p108, %p109
    %p112 = scmp.ne.s32.totalorder %s97, %s111
    %p113 = scmp.eq.s32.totalorder %s24, 0
    %p114 = por %p112, %p113
    %s116 = sadd.s32 %s115, 1
    %p119 = scmp.eq.s32.totalorder %s18, 1
    %p120 = scmp.ne.s32.totalorder %s115, %s117
    %p121 = scmp.eq.s32.totalorder %s18, 0
    %p122 = por %p120, %p121
    %p123 = scmp.ne.s32.totalorder %s115, %s117
    %p124 = scmp.eq.s32.totalorder %s23, 1
    %p125 = por %p123, %p124
    %p126 = scmp.ne.s32.totalorder %s117, %s118
    %p127 = scmp.eq.s32.totalorder %s23, 0
    %p128 = por %p126, %p127
    %p129 = scmp.ne.s32.totalorder %s117, %s118
    %p130 = scmp.eq.s32.totalorder %s24, 1
    %p131 = por %p129, %p130
    %p133 = scmp.ne.s32.totalorder %s118, %s132
    %p134 = scmp.eq.s32.totalorder %s24, 0
    %p135 = por %p133, %p134
    %s137 = sadd.s32 %s136, 1
    %p140 = scmp.eq.s32.totalorder %s18, 1
    %p141 = scmp.ne.s32.totalorder %s136, %s138
    %p142 = scmp.eq.s32.totalorder %s18, 0
    %p143 = por %p141, %p142
    %p144 = scmp.ne.s32.totalorder %s136, %s138
    %p145 = scmp.eq.s32.totalorder %s23, 1
    %p146 = por %p144, %p145
    %p147 = scmp.ne.s32.totalorder %s138, %s139
    %p148 = scmp.eq.s32.totalorder %s23, 0
    %p149 = por %p147, %p148
    %p150 = scmp.ne.s32.totalorder %s138, %s139
    %p151 = scmp.eq.s32.totalorder %s24, 1
    %p152 = por %p150, %p151
    %p154 = scmp.ne.s32.totalorder %s139, %s153
    %p155 = scmp.eq.s32.totalorder %s24, 0
    %p156 = por %p154, %p155
    %s158 = sadd.s32 %s157, 1
    %p161 = scmp.eq.s32.totalorder %s18, 1
    %p162 = scmp.ne.s32.totalorder %s157, %s159
    %p163 = scmp.eq.s32.totalorder %s18, 0
    %p164 = por %p162, %p163
    %p165 = scmp.ne.s32.totalorder %s157, %s159
    %p166 = scmp.eq.s32.totalorder %s23, 1
    %p167 = por %p165, %p166
    %p168 = scmp.ne.s32.totalorder %s159, %s160
    %p169 = scmp.eq.s32.totalorder %s23, 0
    %p170 = por %p168, %p169
    %p171 = scmp.ne.s32.totalorder %s159, %s160
    %p172 = scmp.eq.s32.totalorder %s24, 1
    %p173 = por %p171, %p172
    %p175 = scmp.ne.s32.totalorder %s160, %s174
    %p176 = scmp.eq.s32.totalorder %s24, 0
    %p177 = por %p175, %p176
    %s179 = sadd.s32 %s178, 1
    %p182 = scmp.eq.s32.totalorder %s18, 1
    %p183 = scmp.ne.s32.totalorder %s178, %s180
    %p184 = scmp.eq.s32.totalorder %s18, 0
    %p185 = por %p183, %p184
    %p186 = scmp.ne.s32.totalorder %s178, %s180
    %p187 = scmp.eq.s32.totalorder %s23, 1
    %p188 = por %p186, %p187
    %p189 = scmp.ne.s32.totalorder %s180, %s181
    %p190 = scmp.eq.s32.totalorder %s23, 0
    %p191 = por %p189, %p190
    %p192 = scmp.ne.s32.totalorder %s180, %s181
    %p193 = scmp.eq.s32.totalorder %s24, 1
    %p194 = por %p192, %p193
    %p196 = scmp.ne.s32.totalorder %s181, %s195
    %p197 = scmp.eq.s32.totalorder %s24, 0
    %p198 = por %p196, %p197
    %s200 = sadd.s32 %s199, 1
    %p203 = scmp.eq.s32.totalorder %s18, 1
    %p204 = scmp.ne.s32.totalorder %s199, %s201
    %p205 = scmp.eq.s32.totalorder %s18, 0
    %p206 = por %p204, %p205
    %p207 = scmp.ne.s32.totalorder %s199, %s201
    %p208 = scmp.eq.s32.totalorder %s23, 1
    %p209 = por %p207, %p208
    %p210 = scmp.ne.s32.totalorder %s201, %s202
    %p211 = scmp.eq.s32.totalorder %s23, 0
    %p212 = por %p210, %p211
    %p213 = scmp.ne.s32.totalorder %s201, %s202
    %p214 = scmp.eq.s32.totalorder %s24, 1
    %p215 = por %p213, %p214
    %p217 = scmp.ne.s32.totalorder %s202, %s216
    %p218 = scmp.eq.s32.totalorder %s24, 0
    %p219 = por %p217, %p218
    %s221 = sadd.s32 %s220, 1
    %p224 = scmp.eq.s32.totalorder %s18, 1
    %p225 = scmp.ne.s32.totalorder %s220, %s222
    %p226 = scmp.eq.s32.totalorder %s18, 0
    %p227 = por %p225, %p226
    %p228 = scmp.ne.s32.totalorder %s220, %s222
    %p229 = scmp.eq.s32.totalorder %s23, 1
    %p230 = por %p228, %p229
    %p231 = scmp.ne.s32.totalorder %s222, %s223
    %p232 = scmp.eq.s32.totalorder %s23, 0
    %p233 = por %p231, %p232
    %p234 = scmp.ne.s32.totalorder %s222, %s223
    %p235 = scmp.eq.s32.totalorder %s24, 1
    %p236 = por %p234, %p235
    %p238 = scmp.ne.s32.totalorder %s223, %s237
    %p239 = scmp.eq.s32.totalorder %s24, 0
    %p240 = por %p238, %p239
    %s241 = ssub.s32 %s18, %s25
    %p242 = scmp.eq.s32.totalorder %s241, 0
    %s244 = sadd.s32 %s243, 1
    %s245 = scalar_select %p242, %s243, %s244
    %p248 = pneg %p242
    %p249 = scmp.eq.s32.totalorder %s18, 1
    %p250 = por %p248, %p249
    %p251 = scmp.ne.s32.totalorder %s243, %s246
    %p252 = scmp.eq.s32.totalorder %s18, 0
    %p253 = por %p251, %p252
    %p254 = scmp.ne.s32.totalorder %s243, %s246
    %p255 = scmp.eq.s32.totalorder %s23, 1
    %p256 = por %p254, %p255
    %p257 = scmp.ne.s32.totalorder %s246, %s247
    %p258 = scmp.eq.s32.totalorder %s23, 0
    %p259 = por %p257, %p258
    %p260 = scmp.ne.s32.totalorder %s246, %s247
    %p261 = scmp.eq.s32.totalorder %s24, 1
    %p262 = por %p260, %p261
    %p264 = scmp.ne.s32.totalorder %s247, %s263
    %p265 = scmp.eq.s32.totalorder %s24, 0
    %p266 = por %p264, %p265
    %s267 = ssub.s32 %s18, %s25
    %p268 = scmp.eq.s32.totalorder %s267, 0
    %s270 = sadd.s32 %s269, 1
    %s271 = scalar_select %p268, %s269, %s270
    %p274 = pneg %p268
    %p275 = scmp.eq.s32.totalorder %s18, 1
    %p276 = por %p274, %p275
    %p277 = scmp.ne.s32.totalorder %s269, %s272
    %p278 = scmp.eq.s32.totalorder %s18, 0
    %p279 = por %p277, %p278
    %p280 = scmp.ne.s32.totalorder %s269, %s272
    %p281 = scmp.eq.s32.totalorder %s23, 1
    %p282 = por %p280, %p281
    %p283 = scmp.ne.s32.totalorder %s272, %s273
    %p284 = scmp.eq.s32.totalorder %s23, 0
    %p285 = por %p283, %p284
    %p286 = scmp.ne.s32.totalorder %s272, %s273
    %p287 = scmp.eq.s32.totalorder %s24, 1
    %p288 = por %p286, %p287
    %p290 = scmp.ne.s32.totalorder %s273, %s289
    %p291 = scmp.eq.s32.totalorder %s24, 0
    %p292 = por %p290, %p291
    %p293 = scmp.le.s32.totalorder 1, %s18
    %p294 = scmp.lt.s32.totalorder %s18, 3
    %p295 = pnand %p293, %p294
    %p296 = pneg %p295
    // Predicated region
    $region9: #{_lambda_.3} parent=5 // pred_check
      _
    $region10: #{_lambda_.3} parent=5 // pred_check_branch
      %298 = sbr.rel (%p295) target = $region12
    $region11: #{_lambda_.3} parent=5 // pred_region
      %s299 = ssub.s32 %s18, 1
      // Predicated region
      $region13: #{_lambda_.3} parent=11 // pred_check
        %p300 = pneg %p65
      $region14: #{_lambda_.3} parent=11 // pred_check_branch
        %302 = sbr.rel (%p300) target = $region16
      $region15: #{_lambda_.3} parent=11 // pred_region
        _
      $region16: #{_lambda_.3} parent=11 // pred_fallthru
        _
      // Predicated region
      $region17: #{_lambda_.3} parent=11 // pred_check
        %p303 = pneg %p86
      $region18: #{_lambda_.3} parent=11 // pred_check_branch
        %305 = sbr.rel (%p303) target = $region20
      $region19: #{_lambda_.3} parent=11 // pred_region
        _
      $region20: #{_lambda_.3} parent=11 // pred_fallthru
        _
      // Predicated region
      $region21: #{_lambda_.3} parent=11 // pred_check
        %p306 = pneg %p107
      $region22: #{_lambda_.3} parent=11 // pred_check_branch
        %308 = sbr.rel (%p306) target = $region24
      $region23: #{_lambda_.3} parent=11 // pred_region
        _
      $region24: #{_lambda_.3} parent=11 // pred_fallthru
        _
      // Predicated region
      $region25: #{_lambda_.3} parent=11 // pred_check
        %p309 = pneg %p128
      $region26: #{_lambda_.3} parent=11 // pred_check_branch
        %311 = sbr.rel (%p309) target = $region28
      $region27: #{_lambda_.3} parent=11 // pred_region
        _
      $region28: #{_lambda_.3} parent=11 // pred_fallthru
        _
      // Predicated region
      $region29: #{_lambda_.3} parent=11 // pred_check
        %p312 = pneg %p149
      $region30: #{_lambda_.3} parent=11 // pred_check_branch
        %314 = sbr.rel (%p312) target = $region32
      $region31: #{_lambda_.3} parent=11 // pred_region
        _
      $region32: #{_lambda_.3} parent=11 // pred_fallthru
        _
      // Predicated region
      $region33: #{_lambda_.3} parent=11 // pred_check
        %p315 = pneg %p170
      $region34: #{_lambda_.3} parent=11 // pred_check_branch
        %317 = sbr.rel (%p315) target = $region36
      $region35: #{_lambda_.3} parent=11 // pred_region
        _
      $region36: #{_lambda_.3} parent=11 // pred_fallthru
        _
      // Predicated region
      $region37: #{_lambda_.3} parent=11 // pred_check
        %p318 = pneg %p191
      $region38: #{_lambda_.3} parent=11 // pred_check_branch
        %320 = sbr.rel (%p318) target = $region40
      $region39: #{_lambda_.3} parent=11 // pred_region
        _
      $region40: #{_lambda_.3} parent=11 // pred_fallthru
        _
      // Predicated region
      $region41: #{_lambda_.3} parent=11 // pred_check
        %p321 = pneg %p212
      $region42: #{_lambda_.3} parent=11 // pred_check_branch
        %323 = sbr.rel (%p321) target = $region44
      $region43: #{_lambda_.3} parent=11 // pred_region
        _
      $region44: #{_lambda_.3} parent=11 // pred_fallthru
        _
      // Predicated region
      $region45: #{_lambda_.3} parent=11 // pred_check
        %p324 = pneg %p233
      $region46: #{_lambda_.3} parent=11 // pred_check_branch
        %326 = sbr.rel (%p324) target = $region48
      $region47: #{_lambda_.3} parent=11 // pred_region
        _
      $region48: #{_lambda_.3} parent=11 // pred_fallthru
        _
    $region12: #{_lambda_.3} parent=5 // pred_fallthru
      _
    %p327 = scmp.lt.s32.totalorder %s18, 2
    // Predicated region
    $region49: #{_lambda_.3} parent=5 // pred_check
      %p328 = pneg %p327
    $region50: #{_lambda_.3} parent=5 // pred_check_branch
      %330 = sbr.rel (%p328) target = $region52
    $region51: #{_lambda_.3} parent=5 // pred_region
      // Predicated region
      $region53: #{_lambda_.3} parent=51 // pred_check
        %p331 = pneg %p38
      $region54: #{_lambda_.3} parent=51 // pred_check_branch
        %333 = sbr.rel (%p331) target = $region56
      $region55: #{_lambda_.3} parent=51 // pred_region
        %s334 = smul.u32 16, %s18
        %p335 = scmp.lt.s32.totalorder %s334, 31
        %s336 = scalar_select %p335, %s334, 31
        %s337 = smul.addr %s336, 8
        %s338 = scalar_lea.vmem %s0, %s337
        %s339 = smul.u32 16, %s18
      $region56: #{_lambda_.3} parent=51 // pred_fallthru
        _
    $region52: #{_lambda_.3} parent=5 // pred_fallthru
      _
    %p340 = scmp.le.s32.totalorder 1, %s18
    %p341 = scmp.lt.s32.totalorder %s18, 3
    %p342 = pnand %p340, %p341
    %p343 = pneg %p342
    // Predicated region
    $region57: #{_lambda_.3} parent=5 // pred_check
      _
    $region58: #{_lambda_.3} parent=5 // pred_check_branch
      %345 = sbr.rel (%p342) target = $region60
    $region59: #{_lambda_.3} parent=5 // pred_region
      %s346 = ssub.s32 %s18, 1
      %s347 = smul.u32 16, %s23
      %p348 = scmp.lt.s32.totalorder %s347, 31
      %s349 = scalar_select %p348, %s347, 31
      %s350 = smul.addr %s349, 8
      %s351 = scalar_lea.vmem %s0, %s350
      %p352 = pneg %p44
      %p353 = pneg %p41
      %p354 = pneg %p65
      %p355 = pneg %p62
      %p356 = pneg %p86
      %p357 = pneg %p83
      %p358 = pneg %p107
      %p359 = pneg %p104
      %p360 = pneg %p128
      %p361 = pneg %p125
      %p362 = pneg %p149
      %p363 = pneg %p146
      %p364 = pneg %p170
      %p365 = pneg %p167
      %p366 = pneg %p191
      %p367 = pneg %p188
      %p368 = pneg %p212
      %p369 = pneg %p209
      %p370 = pneg %p233
      %p371 = pneg %p230
      %p372 = pneg %p259
      %p373 = pneg %p256
      %s374 = smul.u32 16, %s23
      %p375 = scmp.lt.s32.totalorder %s374, 31
      %s376 = scalar_select %p375, %s374, 31
      %s377 = smul.addr %s376, 8
      %s378 = scalar_lea.vmem %s10, %s377
      %p379 = pneg %p285
      %p380 = pneg %p282
      %s381 = smul.u32 16, %s23
      %p382 = scmp.lt.s32.totalorder %s381, 31
      %s383 = scalar_select %p382, %s381, 31
      %s384 = smul.addr %s383, 8
      %s385 = scalar_lea.vmem %s11, %s384
      %s386 = smul.u32 16, %s23
      %p387 = scmp.lt.s32.totalorder %s386, 31
      %s388 = scalar_select %p387, %s386, 31
      %s389 = smul.addr %s388, 8
      %s390 = scalar_lea.vmem %s0, %s389
      %s391 = smul.u32 16, %s23
      %s392 = smul.u32 16, %s23
      %p393 = scmp.lt.s32.totalorder %s392, 31
      %s394 = scalar_select %p393, %s392, 31
      %s395 = smul.addr %s394, 8
      %s396 = scalar_lea.vmem %s10, %s395
      %s397 = smul.u32 16, %s23
      %s398 = smul.u32 16, %s23
      %p399 = scmp.lt.s32.totalorder %s398, 31
      %s400 = scalar_select %p399, %s398, 31
      %s401 = smul.addr %s400, 8
      %s402 = scalar_lea.vmem %s11, %s401
      %s403 = smul.u32 16, %s23
      %v405 = vld [vmem:[%s390] sm:$0xff]
      %v406 = vld [vmem:[%s390 + $0x8] sm:$0xff]
      %v407 = vld [vmem:[%s390 + $0x10] sm:$0xff]
      %v408 = vld [vmem:[%s390 + $0x18] sm:$0xff]
      %v409 = vld [vmem:[%s390 + $0x20] sm:$0xff]
      %v410 = vld [vmem:[%s390 + $0x28] sm:$0xff]
      %v411 = vld [vmem:[%s390 + $0x30] sm:$0xff]
      %v412 = vld [vmem:[%s390 + $0x38] sm:$0xff]
      %v413 = vld [vmem:[%s390 + $0x40] sm:$0xff]
      %v414 = vld [vmem:[%s390 + $0x48] sm:$0xff]
      %v415 = vld [vmem:[%s390 + $0x50] sm:$0xff]
      %v416 = vld [vmem:[%s390 + $0x58] sm:$0xff]
      %v417 = vld [vmem:[%s390 + $0x60] sm:$0xff]
      %v418 = vld [vmem:[%s390 + $0x68] sm:$0xff]
      %v419 = vld [vmem:[%s390 + $0x70] sm:$0xff]
      %v420 = vld [vmem:[%s390 + $0x78] sm:$0xff]
      %v421 = vpack.c.bf16 %v406, %v405
      %v422 = vpack.c.bf16 %v408, %v407
      %v423 = vpack.c.bf16 %v410, %v409
      %v424 = vpack.c.bf16 %v412, %v411
      %v425 = vpack.c.bf16 %v414, %v413
      %v426 = vpack.c.bf16 %v416, %v415
      %v427 = vpack.c.bf16 %v418, %v417
      %v428 = vpack.c.bf16 %v420, %v419
      %v429 = vld [vmem:[%s1] sm:$0xf]
      %v430 = vld [vmem:[%s1 + $0x4] sm:$0xf]
      %v431 = vld [vmem:[%s1 + $0x8] sm:$0xf]
      %v432 = vld [vmem:[%s1 + $0xc] sm:$0xf]
      %v433 = vld [vmem:[%s1 + $0x10] sm:$0xf]
      %v434 = vld [vmem:[%s1 + $0x14] sm:$0xf]
      %v435 = vld [vmem:[%s1 + $0x18] sm:$0xf]
      %v436 = vld [vmem:[%s1 + $0x1c] sm:$0xf]
      %v437 = vld [vmem:[%s1 + $0x20] sm:$0xf]
      %v438 = vld [vmem:[%s1 + $0x24] sm:$0xf]
      %v439 = vld [vmem:[%s1 + $0x28] sm:$0xf]
      %v440 = vld [vmem:[%s1 + $0x2c] sm:$0xf]
      %v441 = vld [vmem:[%s1 + $0x30] sm:$0xf]
      %v442 = vld [vmem:[%s1 + $0x34] sm:$0xf]
      %v443 = vld [vmem:[%s1 + $0x38] sm:$0xf]
      %v444 = vld [vmem:[%s1 + $0x3c] sm:$0xf]
      %v445 = vld [vmem:[%s2] sm:$0x1]
      %v447 = vperm.slane %v445, 0
      %v465 = vunpack.c.l.b16 %v429
      %v466 = vunpack.c.l.b16 %v430
      %v467 = vunpack.c.l.b16 %v431
      %v468 = vunpack.c.l.b16 %v432
      %v469 = vunpack.c.l.b16 %v433
      %v470 = vunpack.c.l.b16 %v434
      %v471 = vunpack.c.l.b16 %v435
      %v472 = vunpack.c.l.b16 %v436
      %v473 = vunpack.c.l.b16 %v437
      %v474 = vunpack.c.l.b16 %v438
      %v475 = vunpack.c.l.b16 %v439
      %v476 = vunpack.c.l.b16 %v440
      %v477 = vunpack.c.l.b16 %v441
      %v478 = vunpack.c.l.b16 %v442
      %v479 = vunpack.c.l.b16 %v443
      %v480 = vunpack.c.l.b16 %v444
      %v481 = vpack.c.b16 %v466, %v465
      %v482 = vpack.c.b16 %v468, %v467
      %v483 = vpack.c.b16 %v470, %v469
      %v484 = vpack.c.b16 %v472, %v471
      %v485 = vpack.c.b16 %v474, %v473
      %v486 = vpack.c.b16 %v476, %v475
      %v487 = vpack.c.b16 %v478, %v477
      %v488 = vpack.c.b16 %v480, %v479
      %497 = vmatpush.bf16.msra.mxu0 %v488
      %498 = vmatpush.bf16.msra.mxu0 %v487
      %499 = vmatpush.bf16.msra.mxu0 %v486
      %500 = vmatpush.bf16.msra.mxu0 %v485
      %501 = vmatpush.bf16.msra.mxu0 %v484
      %502 = vmatpush.bf16.msra.mxu0 %v483
      %503 = vmatpush.bf16.msra.mxu0 %v482
      %504 = vmatpush.bf16.msra.mxu0 %v481
      %505 = vmatmul.bf16.gmra.mxu0 %v421
      %v506 = vpop.f32.mrf.mxu0
      %v507 = vadd.f32 %v447, %v506
      %v508 = vpop.f32.mrf.mxu0
      %v509 = vadd.f32 %v447, %v508
      %510 = vmatmul.bf16.gmra.mxu0 %v422
      %v511 = vpop.f32.mrf.mxu0
      %v512 = vadd.f32 %v447, %v511
      %v513 = vpop.f32.mrf.mxu0
      %v514 = vadd.f32 %v447, %v513
      %515 = vmatmul.bf16.gmra.mxu0 %v423
      %v516 = vpop.f32.mrf.mxu0
      %v517 = vadd.f32 %v447, %v516
      %v518 = vpop.f32.mrf.mxu0
      %v519 = vadd.f32 %v447, %v518
      %520 = vmatmul.bf16.gmra.mxu0 %v424
      %v521 = vpop.f32.mrf.mxu0
      %v522 = vadd.f32 %v447, %v521
      %v523 = vpop.f32.mrf.mxu0
      %v524 = vadd.f32 %v447, %v523
      %525 = vmatmul.bf16.gmra.mxu0 %v425
      %v526 = vpop.f32.mrf.mxu0
      %v527 = vadd.f32 %v447, %v526
      %v528 = vpop.f32.mrf.mxu0
      %v529 = vadd.f32 %v447, %v528
      %530 = vmatmul.bf16.gmra.mxu0 %v426
      %v531 = vpop.f32.mrf.mxu0
      %v532 = vadd.f32 %v447, %v531
      %v533 = vpop.f32.mrf.mxu0
      %v534 = vadd.f32 %v447, %v533
      %535 = vmatmul.bf16.gmra.mxu0 %v427
      %v536 = vpop.f32.mrf.mxu0
      %v537 = vadd.f32 %v447, %v536
      %v538 = vpop.f32.mrf.mxu0
      %v539 = vadd.f32 %v447, %v538
      %540 = vmatmul.bf16.gmra.mxu0 %v428
      %v541 = vpop.f32.mrf.mxu0
      %v542 = vadd.f32 %v447, %v541
      %v543 = vpop.f32.mrf.mxu0
      %v544 = vadd.f32 %v447, %v543
      %545 = vdwg.mxu0
      %vm546 = vcmask 64512
      %547 = vst.msk [vmem:[%s396] sm:$0xff] %vm546, %v507
      %548 = vst.msk [vmem:[%s396 + $0x8] sm:$0xff] %vm546, %v509
      %549 = vst.msk [vmem:[%s396 + $0x10] sm:$0xff] %vm546, %v512
      %550 = vst.msk [vmem:[%s396 + $0x18] sm:$0xff] %vm546, %v514
      %551 = vst.msk [vmem:[%s396 + $0x20] sm:$0xff] %vm546, %v517
      %552 = vst.msk [vmem:[%s396 + $0x28] sm:$0xff] %vm546, %v519
      %553 = vst.msk [vmem:[%s396 + $0x30] sm:$0xff] %vm546, %v522
      %554 = vst.msk [vmem:[%s396 + $0x38] sm:$0xff] %vm546, %v524
      %555 = vst.msk [vmem:[%s396 + $0x40] sm:$0xff] %vm546, %v527
      %556 = vst.msk [vmem:[%s396 + $0x48] sm:$0xff] %vm546, %v529
      %557 = vst.msk [vmem:[%s396 + $0x50] sm:$0xff] %vm546, %v532
      %558 = vst.msk [vmem:[%s396 + $0x58] sm:$0xff] %vm546, %v534
      %559 = vst.msk [vmem:[%s396 + $0x60] sm:$0xff] %vm546, %v537
      %560 = vst.msk [vmem:[%s396 + $0x68] sm:$0xff] %vm546, %v539
      %561 = vst.msk [vmem:[%s396 + $0x70] sm:$0xff] %vm546, %v542
      %562 = vst.msk [vmem:[%s396 + $0x78] sm:$0xff] %vm546, %v544
      %v563 = vsel %vm546, %v507, -inf
      %564 = vmax.xlane.f32.xlu0 %v563
      %v565 = vpop.xlane.xlu0 %564
      %v566 = vsel %vm546, %v509, -inf
      %567 = vmax.xlane.f32.xlu0 %v566
      %v568 = vpop.xlane.xlu0 %567
      %v569 = vsel %vm546, %v512, -inf
      %570 = vmax.xlane.f32.xlu0 %v569
      %v571 = vpop.xlane.xlu0 %570
      %v572 = vsel %vm546, %v514, -inf
      %573 = vmax.xlane.f32.xlu0 %v572
      %v574 = vpop.xlane.xlu0 %573
      %v575 = vsel %vm546, %v517, -inf
      %576 = vmax.xlane.f32.xlu0 %v575
      %v577 = vpop.xlane.xlu0 %576
      %v578 = vsel %vm546, %v519, -inf
      %579 = vmax.xlane.f32.xlu0 %v578
      %v580 = vpop.xlane.xlu0 %579
      %v581 = vsel %vm546, %v522, -inf
      %582 = vmax.xlane.f32.xlu0 %v581
      %v583 = vpop.xlane.xlu0 %582
      %v584 = vsel %vm546, %v524, -inf
      %585 = vmax.xlane.f32.xlu0 %v584
      %v586 = vpop.xlane.xlu0 %585
      %v587 = vsel %vm546, %v527, -inf
      %588 = vmax.xlane.f32.xlu0 %v587
      %v589 = vpop.xlane.xlu0 %588
      %v590 = vsel %vm546, %v529, -inf
      %591 = vmax.xlane.f32.xlu0 %v590
      %v592 = vpop.xlane.xlu0 %591
      %v593 = vsel %vm546, %v532, -inf
      %594 = vmax.xlane.f32.xlu0 %v593
      %v595 = vpop.xlane.xlu0 %594
      %v596 = vsel %vm546, %v534, -inf
      %597 = vmax.xlane.f32.xlu0 %v596
      %v598 = vpop.xlane.xlu0 %597
      %v599 = vsel %vm546, %v537, -inf
      %600 = vmax.xlane.f32.xlu0 %v599
      %v601 = vpop.xlane.xlu0 %600
      %v602 = vsel %vm546, %v539, -inf
      %603 = vmax.xlane.f32.xlu0 %v602
      %v604 = vpop.xlane.xlu0 %603
      %v605 = vsel %vm546, %v542, -inf
      %606 = vmax.xlane.f32.xlu0 %v605
      %v607 = vpop.xlane.xlu0 %606
      %v608 = vsel %vm546, %v544, -inf
      %609 = vmax.xlane.f32.xlu0 %v608
      %v610 = vpop.xlane.xlu0 %609
      %v611 = vsub.f32 %v507, %v565
      %v612 = vsub.f32 %v509, %v568
      %v613 = vsub.f32 %v512, %v571
      %v614 = vsub.f32 %v514, %v574
      %v615 = vsub.f32 %v517, %v577
      %v616 = vsub.f32 %v519, %v580
      %v617 = vsub.f32 %v522, %v583
      %v618 = vsub.f32 %v524, %v586
      %v619 = vsub.f32 %v527, %v589
      %v620 = vsub.f32 %v529, %v592
      %v621 = vsub.f32 %v532, %v595
      %v622 = vsub.f32 %v534, %v598
      %v623 = vsub.f32 %v537, %v601
      %v624 = vsub.f32 %v539, %v604
      %v625 = vsub.f32 %v542, %v607
      %v626 = vsub.f32 %v544, %v610
      %v627 = vmul.f32 %v611, 1.442695
      %v628 = vpow.pop %v627
      %v629 = vmul.f32 %v612, 1.442695
      %v630 = vpow.pop %v629
      %v631 = vmul.f32 %v613, 1.442695
      %v632 = vpow.pop %v631
      %v633 = vmul.f32 %v614, 1.442695
      %v634 = vpow.pop %v633
      %v635 = vmul.f32 %v615, 1.442695
      %v636 = vpow.pop %v635
      %v637 = vmul.f32 %v616, 1.442695
      %v638 = vpow.pop %v637
      %v639 = vmul.f32 %v617, 1.442695
      %v640 = vpow.pop %v639
      %v641 = vmul.f32 %v618, 1.442695
      %v642 = vpow.pop %v641
      %v643 = vmul.f32 %v619, 1.442695
      %v644 = vpow.pop %v643
      %v645 = vmul.f32 %v620, 1.442695
      %v646 = vpow.pop %v645
      %v647 = vmul.f32 %v621, 1.442695
      %v648 = vpow.pop %v647
      %v649 = vmul.f32 %v622, 1.442695
      %v650 = vpow.pop %v649
      %v651 = vmul.f32 %v623, 1.442695
      %v652 = vpow.pop %v651
      %v653 = vmul.f32 %v624, 1.442695
      %v654 = vpow.pop %v653
      %v655 = vmul.f32 %v625, 1.442695
      %v656 = vpow.pop %v655
      %v657 = vmul.f32 %v626, 1.442695
      %v658 = vpow.pop %v657
      %v659 = vsel %vm546, %v628, 0.0
      %660 = vadd.xlane.f32.xlu0 %v659
      %v661 = vpop.xlane.xlu0 %660
      %v662 = vsel %vm546, %v630, 0.0
      %663 = vadd.xlane.f32.xlu0 %v662
      %v664 = vpop.xlane.xlu0 %663
      %v665 = vsel %vm546, %v632, 0.0
      %666 = vadd.xlane.f32.xlu0 %v665
      %v667 = vpop.xlane.xlu0 %666
      %v668 = vsel %vm546, %v634, 0.0
      %669 = vadd.xlane.f32.xlu0 %v668
      %v670 = vpop.xlane.xlu0 %669
      %v671 = vsel %vm546, %v636, 0.0
      %672 = vadd.xlane.f32.xlu0 %v671
      %v673 = vpop.xlane.xlu0 %672
      %v674 = vsel %vm546, %v638, 0.0
      %675 = vadd.xlane.f32.xlu0 %v674
      %v676 = vpop.xlane.xlu0 %675
      %v677 = vsel %vm546, %v640, 0.0
      %678 = vadd.xlane.f32.xlu0 %v677
      %v679 = vpop.xlane.xlu0 %678
      %v680 = vsel %vm546, %v642, 0.0
      %681 = vadd.xlane.f32.xlu0 %v680
      %v682 = vpop.xlane.xlu0 %681
      %v683 = vsel %vm546, %v644, 0.0
      %684 = vadd.xlane.f32.xlu0 %v683
      %v685 = vpop.xlane.xlu0 %684
      %v686 = vsel %vm546, %v646, 0.0
      %687 = vadd.xlane.f32.xlu0 %v686
      %v688 = vpop.xlane.xlu0 %687
      %v689 = vsel %vm546, %v648, 0.0
      %690 = vadd.xlane.f32.xlu0 %v689
      %v691 = vpop.xlane.xlu0 %690
      %v692 = vsel %vm546, %v650, 0.0
      %693 = vadd.xlane.f32.xlu0 %v692
      %v694 = vpop.xlane.xlu0 %693
      %v695 = vsel %vm546, %v652, 0.0
      %696 = vadd.xlane.f32.xlu0 %v695
      %v697 = vpop.xlane.xlu0 %696
      %v698 = vsel %vm546, %v654, 0.0
      %699 = vadd.xlane.f32.xlu0 %v698
      %v700 = vpop.xlane.xlu0 %699
      %v701 = vsel %vm546, %v656, 0.0
      %702 = vadd.xlane.f32.xlu0 %v701
      %v703 = vpop.xlane.xlu0 %702
      %v704 = vsel %vm546, %v658, 0.0
      %705 = vadd.xlane.f32.xlu0 %v704
      %v706 = vpop.xlane.xlu0 %705
      %v707 = vrcp.pop %v661
      %v708 = vrcp.pop %v664
      %v709 = vrcp.pop %v667
      %v710 = vrcp.pop %v670
      %v711 = vrcp.pop %v673
      %v712 = vrcp.pop %v676
      %v713 = vrcp.pop %v679
      %v714 = vrcp.pop %v682
      %v715 = vrcp.pop %v685
      %v716 = vrcp.pop %v688
      %v717 = vrcp.pop %v691
      %v718 = vrcp.pop %v694
      %v719 = vrcp.pop %v697
      %v720 = vrcp.pop %v700
      %v721 = vrcp.pop %v703
      %v722 = vrcp.pop %v706
      %v723 = vmul.f32 %v628, %v707
      %v724 = vmul.f32 %v630, %v708
      %v725 = vmul.f32 %v632, %v709
      %v726 = vmul.f32 %v634, %v710
      %v727 = vmul.f32 %v636, %v711
      %v728 = vmul.f32 %v638, %v712
      %v729 = vmul.f32 %v640, %v713
      %v730 = vmul.f32 %v642, %v714
      %v731 = vmul.f32 %v644, %v715
      %v732 = vmul.f32 %v646, %v716
      %v733 = vmul.f32 %v648, %v717
      %v734 = vmul.f32 %v650, %v718
      %v735 = vmul.f32 %v652, %v719
      %v736 = vmul.f32 %v654, %v720
      %v737 = vmul.f32 %v656, %v721
      %v738 = vmul.f32 %v658, %v722
      %v739 = vld [vmem:[%s3] sm:$0xff]
      %v740 = vld [vmem:[%s3 + $0x8] sm:$0xff]
      %v741 = vld [vmem:[%s3 + $0x10] sm:$0xff]
      %v742 = vld [vmem:[%s3 + $0x18] sm:$0xff]
      %v743 = vld [vmem:[%s3 + $0x20] sm:$0xff]
      %v744 = vld [vmem:[%s3 + $0x28] sm:$0xff]
      %v745 = vld [vmem:[%s3 + $0x30] sm:$0xff]
      %v746 = vld [vmem:[%s3 + $0x38] sm:$0xff]
      %v747 = vld [vmem:[%s3 + $0x40] sm:$0xff]
      %v748 = vld [vmem:[%s3 + $0x48] sm:$0xff]
      %v749 = vld [vmem:[%s3 + $0x50] sm:$0xff]
      %v750 = vld [vmem:[%s3 + $0x58] sm:$0xff]
      %v751 = vld [vmem:[%s3 + $0x60] sm:$0xff]
      %v752 = vld [vmem:[%s3 + $0x68] sm:$0xff]
      %v753 = vld [vmem:[%s3 + $0x70] sm:$0xff]
      %v754 = vld [vmem:[%s3 + $0x78] sm:$0xff]
      %v755 = vpack.c.bf16 %v724, %v723
      %v756 = vpack.c.bf16 %v726, %v725
      %v757 = vpack.c.bf16 %v728, %v727
      %v758 = vpack.c.bf16 %v730, %v729
      %v759 = vpack.c.bf16 %v732, %v731
      %v760 = vpack.c.bf16 %v734, %v733
      %v761 = vpack.c.bf16 %v736, %v735
      %v762 = vpack.c.bf16 %v738, %v737
      %v763 = vld [vmem:[%s4] sm:$0xff]
      %v765 = vunpack.c.l.b16 %v763
      %v766 = vunpack.c.h.b16 %v763
      %v767 = vpack.c.b16 %v765, %v765
      %v768 = vpack.c.b16 %v766, %v766
      %v770 = vsel %vm546, %v755, 0
      %v773 = vsel %vm546, %v756, 0
      %v776 = vsel %vm546, %v757, 0
      %v779 = vsel %vm546, %v758, 0
      %v782 = vsel %vm546, %v759, 0
      %v785 = vsel %vm546, %v760, 0
      %v788 = vsel %vm546, %v761, 0
      %v791 = vsel %vm546, %v762, 0
      %vm793 = vcmask 1043456
      %v795 = vsel %vm793, %v767, 0
      %v798 = vsel %vm793, %v768, 0
      %800 = vmatpush.bf16.msra.mxu0 0
      %801 = vmatpush.bf16.msra.mxu0 0
      %802 = vmatpush.bf16.msra.mxu0 0
      %803 = vmatpush.bf16.msra.mxu0 0
      %804 = vmatpush.bf16.msra.mxu0 0
      %805 = vmatpush.bf16.msra.mxu0 0
      %806 = vmatpush.bf16.msra.mxu0 0
      %807 = vmatpush.bf16.msra.mxu0 %v795
      %808 = vmatmul.bf16.gmra.mxu0 %v770
      %v809 = vpop.f32.mrf.mxu0
      %v810 = vadd.f32 0.0, %v809
      %v811 = vpop.f32.mrf.mxu0
      %v812 = vadd.f32 0.0, %v811
      %813 = vmatmul.bf16.gmra.mxu0 %v773
      %v814 = vpop.f32.mrf.mxu0
      %v815 = vadd.f32 0.0, %v814
      %v816 = vpop.f32.mrf.mxu0
      %v817 = vadd.f32 0.0, %v816
      %818 = vmatmul.bf16.gmra.mxu0 %v776
      %v819 = vpop.f32.mrf.mxu0
      %v820 = vadd.f32 0.0, %v819
      %v821 = vpop.f32.mrf.mxu0
      %v822 = vadd.f32 0.0, %v821
      %823 = vmatmul.bf16.gmra.mxu0 %v779
      %v824 = vpop.f32.mrf.mxu0
      %v825 = vadd.f32 0.0, %v824
      %v826 = vpop.f32.mrf.mxu0
      %v827 = vadd.f32 0.0, %v826
      %828 = vmatmul.bf16.gmra.mxu0 %v782
      %v829 = vpop.f32.mrf.mxu0
      %v830 = vadd.f32 0.0, %v829
      %v831 = vpop.f32.mrf.mxu0
      %v832 = vadd.f32 0.0, %v831
      %833 = vmatmul.bf16.gmra.mxu0 %v785
      %v834 = vpop.f32.mrf.mxu0
      %v835 = vadd.f32 0.0, %v834
      %v836 = vpop.f32.mrf.mxu0
      %v837 = vadd.f32 0.0, %v836
      %838 = vmatmul.bf16.gmra.mxu0 %v788
      %v839 = vpop.f32.mrf.mxu0
      %v840 = vadd.f32 0.0, %v839
      %v841 = vpop.f32.mrf.mxu0
      %v842 = vadd.f32 0.0, %v841
      %843 = vmatmul.bf16.gmra.mxu0 %v791
      %v844 = vpop.f32.mrf.mxu0
      %v845 = vadd.f32 0.0, %v844
      %v846 = vpop.f32.mrf.mxu0
      %v847 = vadd.f32 0.0, %v846
      %848 = vdwg.mxu0
      %849 = vmatpush.bf16.msra.mxu0 0
      %850 = vmatpush.bf16.msra.mxu0 0
      %851 = vmatpush.bf16.msra.mxu0 0
      %852 = vmatpush.bf16.msra.mxu0 0
      %853 = vmatpush.bf16.msra.mxu0 0
      %854 = vmatpush.bf16.msra.mxu0 0
      %855 = vmatpush.bf16.msra.mxu0 0
      %856 = vmatpush.bf16.msra.mxu0 %v798
      %857 = vmatmul.bf16.gmra.mxu0 %v770
      %v858 = vpop.f32.mrf.mxu0
      %v859 = vadd.f32 0.0, %v858
      %v860 = vpop.f32.mrf.mxu0
      %v861 = vadd.f32 0.0, %v860
      %862 = vmatmul.bf16.gmra.mxu0 %v773
      %v863 = vpop.f32.mrf.mxu0
      %v864 = vadd.f32 0.0, %v863
      %v865 = vpop.f32.mrf.mxu0
      %v866 = vadd.f32 0.0, %v865
      %867 = vmatmul.bf16.gmra.mxu0 %v776
      %v868 = vpop.f32.mrf.mxu0
      %v869 = vadd.f32 0.0, %v868
      %v870 = vpop.f32.mrf.mxu0
      %v871 = vadd.f32 0.0, %v870
      %872 = vmatmul.bf16.gmra.mxu0 %v779
      %v873 = vpop.f32.mrf.mxu0
      %v874 = vadd.f32 0.0, %v873
      %v875 = vpop.f32.mrf.mxu0
      %v876 = vadd.f32 0.0, %v875
      %877 = vmatmul.bf16.gmra.mxu0 %v782
      %v878 = vpop.f32.mrf.mxu0
      %v879 = vadd.f32 0.0, %v878
      %v880 = vpop.f32.mrf.mxu0
      %v881 = vadd.f32 0.0, %v880
      %882 = vmatmul.bf16.gmra.mxu0 %v785
      %v883 = vpop.f32.mrf.mxu0
      %v884 = vadd.f32 0.0, %v883
      %v885 = vpop.f32.mrf.mxu0
      %v886 = vadd.f32 0.0, %v885
      %887 = vmatmul.bf16.gmra.mxu0 %v788
      %v888 = vpop.f32.mrf.mxu0
      %v889 = vadd.f32 0.0, %v888
      %v890 = vpop.f32.mrf.mxu0
      %v891 = vadd.f32 0.0, %v890
      %892 = vmatmul.bf16.gmra.mxu0 %v791
      %v893 = vpop.f32.mrf.mxu0
      %v894 = vadd.f32 0.0, %v893
      %v895 = vpop.f32.mrf.mxu0
      %v896 = vadd.f32 0.0, %v895
      %897 = vdwg.mxu0
      %v914 = vunpack.c.l.b16 %v739
      %v915 = vunpack.c.h.b16 %v739
      %v916 = vunpack.c.l.b16 %v740
      %v917 = vunpack.c.h.b16 %v740
      %v918 = vunpack.c.l.b16 %v741
      %v919 = vunpack.c.h.b16 %v741
      %v920 = vunpack.c.l.b16 %v742
      %v921 = vunpack.c.h.b16 %v742
      %v922 = vunpack.c.l.b16 %v743
      %v923 = vunpack.c.h.b16 %v743
      %v924 = vunpack.c.l.b16 %v744
      %v925 = vunpack.c.h.b16 %v744
      %v926 = vunpack.c.l.b16 %v745
      %v927 = vunpack.c.h.b16 %v745
      %v928 = vunpack.c.l.b16 %v746
      %v929 = vunpack.c.h.b16 %v746
      %v930 = vunpack.c.l.b16 %v747
      %v931 = vunpack.c.h.b16 %v747
      %v932 = vunpack.c.l.b16 %v748
      %v933 = vunpack.c.h.b16 %v748
      %v934 = vunpack.c.l.b16 %v749
      %v935 = vunpack.c.h.b16 %v749
      %v936 = vunpack.c.l.b16 %v750
      %v937 = vunpack.c.h.b16 %v750
      %v938 = vunpack.c.l.b16 %v751
      %v939 = vunpack.c.h.b16 %v751
      %v940 = vunpack.c.l.b16 %v752
      %v941 = vunpack.c.h.b16 %v752
      %v942 = vunpack.c.l.b16 %v753
      %v943 = vunpack.c.h.b16 %v753
      %v944 = vunpack.c.l.b16 %v754
      %v945 = vunpack.c.h.b16 %v754
      %v946 = vpack.c.b16 %v916, %v914
      %v947 = vpack.c.b16 %v917, %v915
      %v948 = vpack.c.b16 %v920, %v918
      %v949 = vpack.c.b16 %v921, %v919
      %v950 = vpack.c.b16 %v924, %v922
      %v951 = vpack.c.b16 %v925, %v923
      %v952 = vpack.c.b16 %v928, %v926
      %v953 = vpack.c.b16 %v929, %v927
      %v954 = vpack.c.b16 %v932, %v930
      %v955 = vpack.c.b16 %v933, %v931
      %v956 = vpack.c.b16 %v936, %v934
      %v957 = vpack.c.b16 %v937, %v935
      %v958 = vpack.c.b16 %v940, %v938
      %v959 = vpack.c.b16 %v941, %v939
      %v960 = vpack.c.b16 %v944, %v942
      %v961 = vpack.c.b16 %v945, %v943
      %978 = vmatpush.bf16.msra.mxu0 %v960
      %979 = vmatpush.bf16.msra.mxu0 %v958
      %980 = vmatpush.bf16.msra.mxu0 %v956
      %981 = vmatpush.bf16.msra.mxu0 %v954
      %982 = vmatpush.bf16.msra.mxu0 %v952
      %983 = vmatpush.bf16.msra.mxu0 %v950
      %984 = vmatpush.bf16.msra.mxu0 %v948
      %985 = vmatpush.bf16.msra.mxu0 %v946
      %986 = vmatmul.bf16.gmra.mxu0 %v421
      %v987 = vpop.f32.mrf.mxu0
      %v988 = vadd.f32 %v810, %v987
      %v989 = vpop.f32.mrf.mxu0
      %v990 = vadd.f32 %v812, %v989
      %991 = vmatmul.bf16.gmra.mxu0 %v422
      %v992 = vpop.f32.mrf.mxu0
      %v993 = vadd.f32 %v815, %v992
      %v994 = vpop.f32.mrf.mxu0
      %v995 = vadd.f32 %v817, %v994
      %996 = vmatmul.bf16.gmra.mxu0 %v423
      %v997 = vpop.f32.mrf.mxu0
      %v998 = vadd.f32 %v820, %v997
      %v999 = vpop.f32.mrf.mxu0
      %v1000 = vadd.f32 %v822, %v999
      %1001 = vmatmul.bf16.gmra.mxu0 %v424
      %v1002 = vpop.f32.mrf.mxu0
      %v1003 = vadd.f32 %v825, %v1002
      %v1004 = vpop.f32.mrf.mxu0
      %v1005 = vadd.f32 %v827, %v1004
      %1006 = vmatmul.bf16.gmra.mxu0 %v425
      %v1007 = vpop.f32.mrf.mxu0
      %v1008 = vadd.f32 %v830, %v1007
      %v1009 = vpop.f32.mrf.mxu0
      %v1010 = vadd.f32 %v832, %v1009
      %1011 = vmatmul.bf16.gmra.mxu0 %v426
      %v1012 = vpop.f32.mrf.mxu0
      %v1013 = vadd.f32 %v835, %v1012
      %v1014 = vpop.f32.mrf.mxu0
      %v1015 = vadd.f32 %v837, %v1014
      %1016 = vmatmul.bf16.gmra.mxu0 %v427
      %v1017 = vpop.f32.mrf.mxu0
      %v1018 = vadd.f32 %v840, %v1017
      %v1019 = vpop.f32.mrf.mxu0
      %v1020 = vadd.f32 %v842, %v1019
      %1021 = vmatmul.bf16.gmra.mxu0 %v428
      %v1022 = vpop.f32.mrf.mxu0
      %v1023 = vadd.f32 %v845, %v1022
      %v1024 = vpop.f32.mrf.mxu0
      %v1025 = vadd.f32 %v847, %v1024
      %1026 = vdwg.mxu0
      %1027 = vmatpush.bf16.msra.mxu0 %v961
      %1028 = vmatpush.bf16.msra.mxu0 %v959
      %1029 = vmatpush.bf16.msra.mxu0 %v957
      %1030 = vmatpush.bf16.msra.mxu0 %v955
      %1031 = vmatpush.bf16.msra.mxu0 %v953
      %1032 = vmatpush.bf16.msra.mxu0 %v951
      %1033 = vmatpush.bf16.msra.mxu0 %v949
      %1034 = vmatpush.bf16.msra.mxu0 %v947
      %1035 = vmatmul.bf16.gmra.mxu0 %v421
      %v1036 = vpop.f32.mrf.mxu0
      %v1037 = vadd.f32 %v859, %v1036
      %v1038 = vpop.f32.mrf.mxu0
      %v1039 = vadd.f32 %v861, %v1038
      %1040 = vmatmul.bf16.gmra.mxu0 %v422
      %v1041 = vpop.f32.mrf.mxu0
      %v1042 = vadd.f32 %v864, %v1041
      %v1043 = vpop.f32.mrf.mxu0
      %v1044 = vadd.f32 %v866, %v1043
      %1045 = vmatmul.bf16.gmra.mxu0 %v423
      %v1046 = vpop.f32.mrf.mxu0
      %v1047 = vadd.f32 %v869, %v1046
      %v1048 = vpop.f32.mrf.mxu0
      %v1049 = vadd.f32 %v871, %v1048
      %1050 = vmatmul.bf16.gmra.mxu0 %v424
      %v1051 = vpop.f32.mrf.mxu0
      %v1052 = vadd.f32 %v874, %v1051
      %v1053 = vpop.f32.mrf.mxu0
      %v1054 = vadd.f32 %v876, %v1053
      %1055 = vmatmul.bf16.gmra.mxu0 %v425
      %v1056 = vpop.f32.mrf.mxu0
      %v1057 = vadd.f32 %v879, %v1056
      %v1058 = vpop.f32.mrf.mxu0
      %v1059 = vadd.f32 %v881, %v1058
      %1060 = vmatmul.bf16.gmra.mxu0 %v426
      %v1061 = vpop.f32.mrf.mxu0
      %v1062 = vadd.f32 %v884, %v1061
      %v1063 = vpop.f32.mrf.mxu0
      %v1064 = vadd.f32 %v886, %v1063
      %1065 = vmatmul.bf16.gmra.mxu0 %v427
      %v1066 = vpop.f32.mrf.mxu0
      %v1067 = vadd.f32 %v889, %v1066
      %v1068 = vpop.f32.mrf.mxu0
      %v1069 = vadd.f32 %v891, %v1068
      %1070 = vmatmul.bf16.gmra.mxu0 %v428
      %v1071 = vpop.f32.mrf.mxu0
      %v1072 = vadd.f32 %v894, %v1071
      %v1073 = vpop.f32.mrf.mxu0
      %v1074 = vadd.f32 %v896, %v1073
      %1075 = vdwg.mxu0
      %v1076 = vld [vmem:[%s5] sm:$0x3]
      %v1078 = vperm.slane %v1076, 0
      %v1079 = vperm.slane %v1076, 1
      %v1082 = vadd.f32 %v988, %v1078
      %v1083 = vadd.f32 %v1037, %v1079
      %v1084 = vadd.f32 %v990, %v1078
      %v1085 = vadd.f32 %v1039, %v1079
      %v1086 = vadd.f32 %v993, %v1078
      %v1087 = vadd.f32 %v1042, %v1079
      %v1088 = vadd.f32 %v995, %v1078
      %v1089 = vadd.f32 %v1044, %v1079
      %v1090 = vadd.f32 %v998, %v1078
      %v1091 = vadd.f32 %v1047, %v1079
      %v1092 = vadd.f32 %v1000, %v1078
      %v1093 = vadd.f32 %v1049, %v1079
      %v1094 = vadd.f32 %v1003, %v1078
      %v1095 = vadd.f32 %v1052, %v1079
      %v1096 = vadd.f32 %v1005, %v1078
      %v1097 = vadd.f32 %v1054, %v1079
      %v1098 = vadd.f32 %v1008, %v1078
      %v1099 = vadd.f32 %v1057, %v1079
      %v1100 = vadd.f32 %v1010, %v1078
      %v1101 = vadd.f32 %v1059, %v1079
      %v1102 = vadd.f32 %v1013, %v1078
      %v1103 = vadd.f32 %v1062, %v1079
      %v1104 = vadd.f32 %v1015, %v1078
      %v1105 = vadd.f32 %v1064, %v1079
      %v1106 = vadd.f32 %v1018, %v1078
      %v1107 = vadd.f32 %v1067, %v1079
      %v1108 = vadd.f32 %v1020, %v1078
      %v1109 = vadd.f32 %v1069, %v1079
      %v1110 = vadd.f32 %v1023, %v1078
      %v1111 = vadd.f32 %v1072, %v1079
      %v1112 = vadd.f32 %v1025, %v1078
      %v1113 = vadd.f32 %v1074, %v1079
      %v1114 = vtanh.pop %v1082
      %v1115 = vtanh.pop %v1083
      %v1116 = vtanh.pop %v1084
      %v1117 = vtanh.pop %v1085
      %v1118 = vtanh.pop %v1086
      %v1119 = vtanh.pop %v1087
      %v1120 = vtanh.pop %v1088
      %v1121 = vtanh.pop %v1089
      %v1122 = vtanh.pop %v1090
      %v1123 = vtanh.pop %v1091
      %v1124 = vtanh.pop %v1092
      %v1125 = vtanh.pop %v1093
      %v1126 = vtanh.pop %v1094
      %v1127 = vtanh.pop %v1095
      %v1128 = vtanh.pop %v1096
      %v1129 = vtanh.pop %v1097
      %v1130 = vtanh.pop %v1098
      %v1131 = vtanh.pop %v1099
      %v1132 = vtanh.pop %v1100
      %v1133 = vtanh.pop %v1101
      %v1134 = vtanh.pop %v1102
      %v1135 = vtanh.pop %v1103
      %v1136 = vtanh.pop %v1104
      %v1137 = vtanh.pop %v1105
      %v1138 = vtanh.pop %v1106
      %v1139 = vtanh.pop %v1107
      %v1140 = vtanh.pop %v1108
      %v1141 = vtanh.pop %v1109
      %v1142 = vtanh.pop %v1110
      %v1143 = vtanh.pop %v1111
      %v1144 = vtanh.pop %v1112
      %v1145 = vtanh.pop %v1113
      %v1146 = vld [vmem:[%s6] sm:$0x3]
      %v1147 = vld [vmem:[%s7] sm:$0x3]
      %v1148 = vsel %vm546, %v1115, 0.0
      %v1149 = vadd.f32 %v1114, %v1148
      %1150 = vadd.xlane.f32.xlu0 %v1149
      %v1151 = vpop.xlane.xlu0 %1150
      %v1152 = vsel %vm546, %v1117, 0.0
      %v1153 = vadd.f32 %v1116, %v1152
      %1154 = vadd.xlane.f32.xlu0 %v1153
      %v1155 = vpop.xlane.xlu0 %1154
      %v1156 = vsel %vm546, %v1119, 0.0
      %v1157 = vadd.f32 %v1118, %v1156
      %1158 = vadd.xlane.f32.xlu0 %v1157
      %v1159 = vpop.xlane.xlu0 %1158
      %v1160 = vsel %vm546, %v1121, 0.0
      %v1161 = vadd.f32 %v1120, %v1160
      %1162 = vadd.xlane.f32.xlu0 %v1161
      %v1163 = vpop.xlane.xlu0 %1162
      %v1164 = vsel %vm546, %v1123, 0.0
      %v1165 = vadd.f32 %v1122, %v1164
      %1166 = vadd.xlane.f32.xlu0 %v1165
      %v1167 = vpop.xlane.xlu0 %1166
      %v1168 = vsel %vm546, %v1125, 0.0
      %v1169 = vadd.f32 %v1124, %v1168
      %1170 = vadd.xlane.f32.xlu0 %v1169
      %v1171 = vpop.xlane.xlu0 %1170
      %v1172 = vsel %vm546, %v1127, 0.0
      %v1173 = vadd.f32 %v1126, %v1172
      %1174 = vadd.xlane.f32.xlu0 %v1173
      %v1175 = vpop.xlane.xlu0 %1174
      %v1176 = vsel %vm546, %v1129, 0.0
      %v1177 = vadd.f32 %v1128, %v1176
      %1178 = vadd.xlane.f32.xlu0 %v1177
      %v1179 = vpop.xlane.xlu0 %1178
      %v1180 = vsel %vm546, %v1131, 0.0
      %v1181 = vadd.f32 %v1130, %v1180
      %1182 = vadd.xlane.f32.xlu0 %v1181
      %v1183 = vpop.xlane.xlu0 %1182
      %v1184 = vsel %vm546, %v1133, 0.0
      %v1185 = vadd.f32 %v1132, %v1184
      %1186 = vadd.xlane.f32.xlu0 %v1185
      %v1187 = vpop.xlane.xlu0 %1186
      %v1188 = vsel %vm546, %v1135, 0.0
      %v1189 = vadd.f32 %v1134, %v1188
      %1190 = vadd.xlane.f32.xlu0 %v1189
      %v1191 = vpop.xlane.xlu0 %1190
      %v1192 = vsel %vm546, %v1137, 0.0
      %v1193 = vadd.f32 %v1136, %v1192
      %1194 = vadd.xlane.f32.xlu0 %v1193
      %v1195 = vpop.xlane.xlu0 %1194
      %v1196 = vsel %vm546, %v1139, 0.0
      %v1197 = vadd.f32 %v1138, %v1196
      %1198 = vadd.xlane.f32.xlu0 %v1197
      %v1199 = vpop.xlane.xlu0 %1198
      %v1200 = vsel %vm546, %v1141, 0.0
      %v1201 = vadd.f32 %v1140, %v1200
      %1202 = vadd.xlane.f32.xlu0 %v1201
      %v1203 = vpop.xlane.xlu0 %1202
      %v1204 = vsel %vm546, %v1143, 0.0
      %v1205 = vadd.f32 %v1142, %v1204
      %1206 = vadd.xlane.f32.xlu0 %v1205
      %v1207 = vpop.xlane.xlu0 %1206
      %v1208 = vsel %vm546, %v1145, 0.0
      %v1209 = vadd.f32 %v1144, %v1208
      %1210 = vadd.xlane.f32.xlu0 %v1209
      %v1211 = vpop.xlane.xlu0 %1210
      %v1212 = vrcp.pop 136.0
      %v1213 = vmul.f32 136.0, %v1212
      %v1214 = vsub.f32 1.0, %v1213
      %v1215 = vmul.f32 %v1212, %v1214
      %v1216 = vadd.f32 %v1212, %v1215
      %vm1217 = vweird.f32 %v1212
      %v1218 = vsel %vm1217, %v1212, %v1216
      %v1219 = vmul.f32 %v1151, %v1218
      %v1220 = vmul.f32 %v1155, %v1218
      %v1221 = vmul.f32 %v1159, %v1218
      %v1222 = vmul.f32 %v1163, %v1218
      %v1223 = vmul.f32 %v1167, %v1218
      %v1224 = vmul.f32 %v1171, %v1218
      %v1225 = vmul.f32 %v1175, %v1218
      %v1226 = vmul.f32 %v1179, %v1218
      %v1227 = vmul.f32 %v1183, %v1218
      %v1228 = vmul.f32 %v1187, %v1218
      %v1229 = vmul.f32 %v1191, %v1218
      %v1230 = vmul.f32 %v1195, %v1218
      %v1231 = vmul.f32 %v1199, %v1218
      %v1232 = vmul.f32 %v1203, %v1218
      %v1233 = vmul.f32 %v1207, %v1218
      %v1234 = vmul.f32 %v1211, %v1218
      %v1235 = vsub.f32 %v1114, %v1219
      %v1236 = vsub.f32 %v1115, %v1219
      %v1237 = vsub.f32 %v1116, %v1220
      %v1238 = vsub.f32 %v1117, %v1220
      %v1239 = vsub.f32 %v1118, %v1221
      %v1240 = vsub.f32 %v1119, %v1221
      %v1241 = vsub.f32 %v1120, %v1222
      %v1242 = vsub.f32 %v1121, %v1222
      %v1243 = vsub.f32 %v1122, %v1223
      %v1244 = vsub.f32 %v1123, %v1223
      %v1245 = vsub.f32 %v1124, %v1224
      %v1246 = vsub.f32 %v1125, %v1224
      %v1247 = vsub.f32 %v1126, %v1225
      %v1248 = vsub.f32 %v1127, %v1225
      %v1249 = vsub.f32 %v1128, %v1226
      %v1250 = vsub.f32 %v1129, %v1226
      %v1251 = vsub.f32 %v1130, %v1227
      %v1252 = vsub.f32 %v1131, %v1227
      %v1253 = vsub.f32 %v1132, %v1228
      %v1254 = vsub.f32 %v1133, %v1228
      %v1255 = vsub.f32 %v1134, %v1229
      %v1256 = vsub.f32 %v1135, %v1229
      %v1257 = vsub.f32 %v1136, %v1230
      %v1258 = vsub.f32 %v1137, %v1230
      %v1259 = vsub.f32 %v1138, %v1231
      %v1260 = vsub.f32 %v1139, %v1231
      %v1261 = vsub.f32 %v1140, %v1232
      %v1262 = vsub.f32 %v1141, %v1232
      %v1263 = vsub.f32 %v1142, %v1233
      %v1264 = vsub.f32 %v1143, %v1233
      %v1265 = vsub.f32 %v1144, %v1234
      %v1266 = vsub.f32 %v1145, %v1234
      %v1267 = vmul.f32 %v1235, %v1235
      %v1268 = vmul.f32 %v1236, %v1236
      %v1269 = vmul.f32 %v1237, %v1237
      %v1270 = vmul.f32 %v1238, %v1238
      %v1271 = vmul.f32 %v1239, %v1239
      %v1272 = vmul.f32 %v1240, %v1240
      %v1273 = vmul.f32 %v1241, %v1241
      %v1274 = vmul.f32 %v1242, %v1242
      %v1275 = vmul.f32 %v1243, %v1243
      %v1276 = vmul.f32 %v1244, %v1244
      %v1277 = vmul.f32 %v1245, %v1245
      %v1278 = vmul.f32 %v1246, %v1246
      %v1279 = vmul.f32 %v1247, %v1247
      %v1280 = vmul.f32 %v1248, %v1248
      %v1281 = vmul.f32 %v1249, %v1249
      %v1282 = vmul.f32 %v1250, %v1250
      %v1283 = vmul.f32 %v1251, %v1251
      %v1284 = vmul.f32 %v1252, %v1252
      %v1285 = vmul.f32 %v1253, %v1253
      %v1286 = vmul.f32 %v1254, %v1254
      %v1287 = vmul.f32 %v1255, %v1255
      %v1288 = vmul.f32 %v1256, %v1256
      %v1289 = vmul.f32 %v1257, %v1257
      %v1290 = vmul.f32 %v1258, %v1258
      %v1291 = vmul.f32 %v1259, %v1259
      %v1292 = vmul.f32 %v1260, %v1260
      %v1293 = vmul.f32 %v1261, %v1261
      %v1294 = vmul.f32 %v1262, %v1262
      %v1295 = vmul.f32 %v1263, %v1263
      %v1296 = vmul.f32 %v1264, %v1264
      %v1297 = vmul.f32 %v1265, %v1265
      %v1298 = vmul.f32 %v1266, %v1266
      %v1299 = vsel %vm546, %v1268, 0.0
      %v1300 = vadd.f32 %v1267, %v1299
      %1301 = vadd.xlane.f32.xlu0 %v1300
      %v1302 = vpop.xlane.xlu0 %1301
      %v1303 = vsel %vm546, %v1270, 0.0
      %v1304 = vadd.f32 %v1269, %v1303
      %1305 = vadd.xlane.f32.xlu0 %v1304
      %v1306 = vpop.xlane.xlu0 %1305
      %v1307 = vsel %vm546, %v1272, 0.0
      %v1308 = vadd.f32 %v1271, %v1307
      %1309 = vadd.xlane.f32.xlu0 %v1308
      %v1310 = vpop.xlane.xlu0 %1309
      %v1311 = vsel %vm546, %v1274, 0.0
      %v1312 = vadd.f32 %v1273, %v1311
      %1313 = vadd.xlane.f32.xlu0 %v1312
      %v1314 = vpop.xlane.xlu0 %1313
      %v1315 = vsel %vm546, %v1276, 0.0
      %v1316 = vadd.f32 %v1275, %v1315
      %1317 = vadd.xlane.f32.xlu0 %v1316
      %v1318 = vpop.xlane.xlu0 %1317
      %v1319 = vsel %vm546, %v1278, 0.0
      %v1320 = vadd.f32 %v1277, %v1319
      %1321 = vadd.xlane.f32.xlu0 %v1320
      %v1322 = vpop.xlane.xlu0 %1321
      %v1323 = vsel %vm546, %v1280, 0.0
      %v1324 = vadd.f32 %v1279, %v1323
      %1325 = vadd.xlane.f32.xlu0 %v1324
      %v1326 = vpop.xlane.xlu0 %1325
      %v1327 = vsel %vm546, %v1282, 0.0
      %v1328 = vadd.f32 %v1281, %v1327
      %1329 = vadd.xlane.f32.xlu0 %v1328
      %v1330 = vpop.xlane.xlu0 %1329
      %v1331 = vsel %vm546, %v1284, 0.0
      %v1332 = vadd.f32 %v1283, %v1331
      %1333 = vadd.xlane.f32.xlu0 %v1332
      %v1334 = vpop.xlane.xlu0 %1333
      %v1335 = vsel %vm546, %v1286, 0.0
      %v1336 = vadd.f32 %v1285, %v1335
      %1337 = vadd.xlane.f32.xlu0 %v1336
      %v1338 = vpop.xlane.xlu0 %1337
      %v1339 = vsel %vm546, %v1288, 0.0
      %v1340 = vadd.f32 %v1287, %v1339
      %1341 = vadd.xlane.f32.xlu0 %v1340
      %v1342 = vpop.xlane.xlu0 %1341
      %v1343 = vsel %vm546, %v1290, 0.0
      %v1344 = vadd.f32 %v1289, %v1343
      %1345 = vadd.xlane.f32.xlu0 %v1344
      %v1346 = vpop.xlane.xlu0 %1345
      %v1347 = vsel %vm546, %v1292, 0.0
      %v1348 = vadd.f32 %v1291, %v1347
      %1349 = vadd.xlane.f32.xlu0 %v1348
      %v1350 = vpop.xlane.xlu0 %1349
      %v1351 = vsel %vm546, %v1294, 0.0
      %v1352 = vadd.f32 %v1293, %v1351
      %1353 = vadd.xlane.f32.xlu0 %v1352
      %v1354 = vpop.xlane.xlu0 %1353
      %v1355 = vsel %vm546, %v1296, 0.0
      %v1356 = vadd.f32 %v1295, %v1355
      %1357 = vadd.xlane.f32.xlu0 %v1356
      %v1358 = vpop.xlane.xlu0 %1357
      %v1359 = vsel %vm546, %v1298, 0.0
      %v1360 = vadd.f32 %v1297, %v1359
      %1361 = vadd.xlane.f32.xlu0 %v1360
      %v1362 = vpop.xlane.xlu0 %1361
      %v1363 = vmul.f32 %v1302, %v1218
      %v1364 = vmul.f32 %v1306, %v1218
      %v1365 = vmul.f32 %v1310, %v1218
      %v1366 = vmul.f32 %v1314, %v1218
      %v1367 = vmul.f32 %v1318, %v1218
      %v1368 = vmul.f32 %v1322, %v1218
      %v1369 = vmul.f32 %v1326, %v1218
      %v1370 = vmul.f32 %v1330, %v1218
      %v1371 = vmul.f32 %v1334, %v1218
      %v1372 = vmul.f32 %v1338, %v1218
      %v1373 = vmul.f32 %v1342, %v1218
      %v1374 = vmul.f32 %v1346, %v1218
      %v1375 = vmul.f32 %v1350, %v1218
      %v1376 = vmul.f32 %v1354, %v1218
      %v1377 = vmul.f32 %v1358, %v1218
      %v1378 = vmul.f32 %v1362, %v1218
      %v1379 = vadd.f32 %v1363, 1e-12
      %v1380 = vadd.f32 %v1364, 1e-12
      %v1381 = vadd.f32 %v1365, 1e-12
      %v1382 = vadd.f32 %v1366, 1e-12
      %v1383 = vadd.f32 %v1367, 1e-12
      %v1384 = vadd.f32 %v1368, 1e-12
      %v1385 = vadd.f32 %v1369, 1e-12
      %v1386 = vadd.f32 %v1370, 1e-12
      %v1387 = vadd.f32 %v1371, 1e-12
      %v1388 = vadd.f32 %v1372, 1e-12
      %v1389 = vadd.f32 %v1373, 1e-12
      %v1390 = vadd.f32 %v1374, 1e-12
      %v1391 = vadd.f32 %v1375, 1e-12
      %v1392 = vadd.f32 %v1376, 1e-12
      %v1393 = vadd.f32 %v1377, 1e-12
      %v1394 = vadd.f32 %v1378, 1e-12
      %v1395 = vrsqrt.pop %v1379
      %v1396 = vmul.f32 %v1395, %v1379
      %v1397 = vmul.f32 %v1396, %v1395
      %v1398 = vmul.f32 0.5, %v1397
      %v1399 = vsub.f32 1.5, %v1398
      %v1400 = vmul.f32 %v1395, %v1399
      %vm1401 = vweird.f32 %v1379
      %vm1402 = vweird.f32 %v1395
      %vm1403 = vmor %vm1401, %vm1402
      %v1404 = vsel %vm1403, %v1395, %v1400
      %v1405 = vrsqrt.pop %v1380
      %v1406 = vmul.f32 %v1405, %v1380
      %v1407 = vmul.f32 %v1406, %v1405
      %v1408 = vmul.f32 0.5, %v1407
      %v1409 = vsub.f32 1.5, %v1408
      %v1410 = vmul.f32 %v1405, %v1409
      %vm1411 = vweird.f32 %v1380
      %vm1412 = vweird.f32 %v1405
      %vm1413 = vmor %vm1411, %vm1412
      %v1414 = vsel %vm1413, %v1405, %v1410
      %v1415 = vrsqrt.pop %v1381
      %v1416 = vmul.f32 %v1415, %v1381
      %v1417 = vmul.f32 %v1416, %v1415
      %v1418 = vmul.f32 0.5, %v1417
      %v1419 = vsub.f32 1.5, %v1418
      %v1420 = vmul.f32 %v1415, %v1419
      %vm1421 = vweird.f32 %v1381
      %vm1422 = vweird.f32 %v1415
      %vm1423 = vmor %vm1421, %vm1422
      %v1424 = vsel %vm1423, %v1415, %v1420
      %v1425 = vrsqrt.pop %v1382
      %v1426 = vmul.f32 %v1425, %v1382
      %v1427 = vmul.f32 %v1426, %v1425
      %v1428 = vmul.f32 0.5, %v1427
      %v1429 = vsub.f32 1.5, %v1428
      %v1430 = vmul.f32 %v1425, %v1429
      %vm1431 = vweird.f32 %v1382
      %vm1432 = vweird.f32 %v1425
      %vm1433 = vmor %vm1431, %vm1432
      %v1434 = vsel %vm1433, %v1425, %v1430
      %v1435 = vrsqrt.pop %v1383
      %v1436 = vmul.f32 %v1435, %v1383
      %v1437 = vmul.f32 %v1436, %v1435
      %v1438 = vmul.f32 0.5, %v1437
      %v1439 = vsub.f32 1.5, %v1438
      %v1440 = vmul.f32 %v1435, %v1439
      %vm1441 = vweird.f32 %v1383
      %vm1442 = vweird.f32 %v1435
      %vm1443 = vmor %vm1441, %vm1442
      %v1444 = vsel %vm1443, %v1435, %v1440
      %v1445 = vrsqrt.pop %v1384
      %v1446 = vmul.f32 %v1445, %v1384
      %v1447 = vmul.f32 %v1446, %v1445
      %v1448 = vmul.f32 0.5, %v1447
      %v1449 = vsub.f32 1.5, %v1448
      %v1450 = vmul.f32 %v1445, %v1449
      %vm1451 = vweird.f32 %v1384
      %vm1452 = vweird.f32 %v1445
      %vm1453 = vmor %vm1451, %vm1452
      %v1454 = vsel %vm1453, %v1445, %v1450
      %v1455 = vrsqrt.pop %v1385
      %v1456 = vmul.f32 %v1455, %v1385
      %v1457 = vmul.f32 %v1456, %v1455
      %v1458 = vmul.f32 0.5, %v1457
      %v1459 = vsub.f32 1.5, %v1458
      %v1460 = vmul.f32 %v1455, %v1459
      %vm1461 = vweird.f32 %v1385
      %vm1462 = vweird.f32 %v1455
      %vm1463 = vmor %vm1461, %vm1462
      %v1464 = vsel %vm1463, %v1455, %v1460
      %v1465 = vrsqrt.pop %v1386
      %v1466 = vmul.f32 %v1465, %v1386
      %v1467 = vmul.f32 %v1466, %v1465
      %v1468 = vmul.f32 0.5, %v1467
      %v1469 = vsub.f32 1.5, %v1468
      %v1470 = vmul.f32 %v1465, %v1469
      %vm1471 = vweird.f32 %v1386
      %vm1472 = vweird.f32 %v1465
      %vm1473 = vmor %vm1471, %vm1472
      %v1474 = vsel %vm1473, %v1465, %v1470
      %v1475 = vrsqrt.pop %v1387
      %v1476 = vmul.f32 %v1475, %v1387
      %v1477 = vmul.f32 %v1476, %v1475
      %v1478 = vmul.f32 0.5, %v1477
      %v1479 = vsub.f32 1.5, %v1478
      %v1480 = vmul.f32 %v1475, %v1479
      %vm1481 = vweird.f32 %v1387
      %vm1482 = vweird.f32 %v1475
      %vm1483 = vmor %vm1481, %vm1482
      %v1484 = vsel %vm1483, %v1475, %v1480
      %v1485 = vrsqrt.pop %v1388
      %v1486 = vmul.f32 %v1485, %v1388
      %v1487 = vmul.f32 %v1486, %v1485
      %v1488 = vmul.f32 0.5, %v1487
      %v1489 = vsub.f32 1.5, %v1488
      %v1490 = vmul.f32 %v1485, %v1489
      %vm1491 = vweird.f32 %v1388
      %vm1492 = vweird.f32 %v1485
      %vm1493 = vmor %vm1491, %vm1492
      %v1494 = vsel %vm1493, %v1485, %v1490
      %v1495 = vrsqrt.pop %v1389
      %v1496 = vmul.f32 %v1495, %v1389
      %v1497 = vmul.f32 %v1496, %v1495
      %v1498 = vmul.f32 0.5, %v1497
      %v1499 = vsub.f32 1.5, %v1498
      %v1500 = vmul.f32 %v1495, %v1499
      %vm1501 = vweird.f32 %v1389
      %vm1502 = vweird.f32 %v1495
      %vm1503 = vmor %vm1501, %vm1502
      %v1504 = vsel %vm1503, %v1495, %v1500
      %v1505 = vrsqrt.pop %v1390
      %v1506 = vmul.f32 %v1505, %v1390
      %v1507 = vmul.f32 %v1506, %v1505
      %v1508 = vmul.f32 0.5, %v1507
      %v1509 = vsub.f32 1.5, %v1508
      %v1510 = vmul.f32 %v1505, %v1509
      %vm1511 = vweird.f32 %v1390
      %vm1512 = vweird.f32 %v1505
      %vm1513 = vmor %vm1511, %vm1512
      %v1514 = vsel %vm1513, %v1505, %v1510
      %v1515 = vrsqrt.pop %v1391
      %v1516 = vmul.f32 %v1515, %v1391
      %v1517 = vmul.f32 %v1516, %v1515
      %v1518 = vmul.f32 0.5, %v1517
      %v1519 = vsub.f32 1.5, %v1518
      %v1520 = vmul.f32 %v1515, %v1519
      %vm1521 = vweird.f32 %v1391
      %vm1522 = vweird.f32 %v1515
      %vm1523 = vmor %vm1521, %vm1522
      %v1524 = vsel %vm1523, %v1515, %v1520
      %v1525 = vrsqrt.pop %v1392
      %v1526 = vmul.f32 %v1525, %v1392
      %v1527 = vmul.f32 %v1526, %v1525
      %v1528 = vmul.f32 0.5, %v1527
      %v1529 = vsub.f32 1.5, %v1528
      %v1530 = vmul.f32 %v1525, %v1529
      %vm1531 = vweird.f32 %v1392
      %vm1532 = vweird.f32 %v1525
      %vm1533 = vmor %vm1531, %vm1532
      %v1534 = vsel %vm1533, %v1525, %v1530
      %v1535 = vrsqrt.pop %v1393
      %v1536 = vmul.f32 %v1535, %v1393
      %v1537 = vmul.f32 %v1536, %v1535
      %v1538 = vmul.f32 0.5, %v1537
      %v1539 = vsub.f32 1.5, %v1538
      %v1540 = vmul.f32 %v1535, %v1539
      %vm1541 = vweird.f32 %v1393
      %vm1542 = vweird.f32 %v1535
      %vm1543 = vmor %vm1541, %vm1542
      %v1544 = vsel %vm1543, %v1535, %v1540
      %v1545 = vrsqrt.pop %v1394
      %v1546 = vmul.f32 %v1545, %v1394
      %v1547 = vmul.f32 %v1546, %v1545
      %v1548 = vmul.f32 0.5, %v1547
      %v1549 = vsub.f32 1.5, %v1548
      %v1550 = vmul.f32 %v1545, %v1549
      %vm1551 = vweird.f32 %v1394
      %vm1552 = vweird.f32 %v1545
      %vm1553 = vmor %vm1551, %vm1552
      %v1554 = vsel %vm1553, %v1545, %v1550
      %v1555 = vmul.f32 %v1235, %v1404
      %v1556 = vmul.f32 %v1236, %v1404
      %v1557 = vmul.f32 %v1237, %v1414
      %v1558 = vmul.f32 %v1238, %v1414
      %v1559 = vmul.f32 %v1239, %v1424
      %v1560 = vmul.f32 %v1240, %v1424
      %v1561 = vmul.f32 %v1241, %v1434
      %v1562 = vmul.f32 %v1242, %v1434
      %v1563 = vmul.f32 %v1243, %v1444
      %v1564 = vmul.f32 %v1244, %v1444
      %v1565 = vmul.f32 %v1245, %v1454
      %v1566 = vmul.f32 %v1246, %v1454
      %v1567 = vmul.f32 %v1247, %v1464
      %v1568 = vmul.f32 %v1248, %v1464
      %v1569 = vmul.f32 %v1249, %v1474
      %v1570 = vmul.f32 %v1250, %v1474
      %v1571 = vmul.f32 %v1251, %v1484
      %v1572 = vmul.f32 %v1252, %v1484
      %v1573 = vmul.f32 %v1253, %v1494
      %v1574 = vmul.f32 %v1254, %v1494
      %v1575 = vmul.f32 %v1255, %v1504
      %v1576 = vmul.f32 %v1256, %v1504
      %v1577 = vmul.f32 %v1257, %v1514
      %v1578 = vmul.f32 %v1258, %v1514
      %v1579 = vmul.f32 %v1259, %v1524
      %v1580 = vmul.f32 %v1260, %v1524
      %v1581 = vmul.f32 %v1261, %v1534
      %v1582 = vmul.f32 %v1262, %v1534
      %v1583 = vmul.f32 %v1263, %v1544
      %v1584 = vmul.f32 %v1264, %v1544
      %v1585 = vmul.f32 %v1265, %v1554
      %v1586 = vmul.f32 %v1266, %v1554
      %v1588 = vperm.slane %v1146, 0
      %v1589 = vperm.slane %v1146, 1
      %v1592 = vmul.f32 %v1555, %v1588
      %v1593 = vmul.f32 %v1556, %v1589
      %v1594 = vmul.f32 %v1557, %v1588
      %v1595 = vmul.f32 %v1558, %v1589
      %v1596 = vmul.f32 %v1559, %v1588
      %v1597 = vmul.f32 %v1560, %v1589
      %v1598 = vmul.f32 %v1561, %v1588
      %v1599 = vmul.f32 %v1562, %v1589
      %v1600 = vmul.f32 %v1563, %v1588
      %v1601 = vmul.f32 %v1564, %v1589
      %v1602 = vmul.f32 %v1565, %v1588
      %v1603 = vmul.f32 %v1566, %v1589
      %v1604 = vmul.f32 %v1567, %v1588
      %v1605 = vmul.f32 %v1568, %v1589
      %v1606 = vmul.f32 %v1569, %v1588
      %v1607 = vmul.f32 %v1570, %v1589
      %v1608 = vmul.f32 %v1571, %v1588
      %v1609 = vmul.f32 %v1572, %v1589
      %v1610 = vmul.f32 %v1573, %v1588
      %v1611 = vmul.f32 %v1574, %v1589
      %v1612 = vmul.f32 %v1575, %v1588
      %v1613 = vmul.f32 %v1576, %v1589
      %v1614 = vmul.f32 %v1577, %v1588
      %v1615 = vmul.f32 %v1578, %v1589
      %v1616 = vmul.f32 %v1579, %v1588
      %v1617 = vmul.f32 %v1580, %v1589
      %v1618 = vmul.f32 %v1581, %v1588
      %v1619 = vmul.f32 %v1582, %v1589
      %v1620 = vmul.f32 %v1583, %v1588
      %v1621 = vmul.f32 %v1584, %v1589
      %v1622 = vmul.f32 %v1585, %v1588
      %v1623 = vmul.f32 %v1586, %v1589
      %v1625 = vperm.slane %v1147, 0
      %v1626 = vperm.slane %v1147, 1
      %v1629 = vadd.f32 %v1592, %v1625
      %v1630 = vadd.f32 %v1593, %v1626
      %v1631 = vadd.f32 %v1594, %v1625
      %v1632 = vadd.f32 %v1595, %v1626
      %v1633 = vadd.f32 %v1596, %v1625
      %v1634 = vadd.f32 %v1597, %v1626
      %v1635 = vadd.f32 %v1598, %v1625
      %v1636 = vadd.f32 %v1599, %v1626
      %v1637 = vadd.f32 %v1600, %v1625
      %v1638 = vadd.f32 %v1601, %v1626
      %v1639 = vadd.f32 %v1602, %v1625
      %v1640 = vadd.f32 %v1603, %v1626
      %v1641 = vadd.f32 %v1604, %v1625
      %v1642 = vadd.f32 %v1605, %v1626
      %v1643 = vadd.f32 %v1606, %v1625
      %v1644 = vadd.f32 %v1607, %v1626
      %v1645 = vadd.f32 %v1608, %v1625
      %v1646 = vadd.f32 %v1609, %v1626
      %v1647 = vadd.f32 %v1610, %v1625
      %v1648 = vadd.f32 %v1611, %v1626
      %v1649 = vadd.f32 %v1612, %v1625
      %v1650 = vadd.f32 %v1613, %v1626
      %v1651 = vadd.f32 %v1614, %v1625
      %v1652 = vadd.f32 %v1615, %v1626
      %v1653 = vadd.f32 %v1616, %v1625
      %v1654 = vadd.f32 %v1617, %v1626
      %v1655 = vadd.f32 %v1618, %v1625
      %v1656 = vadd.f32 %v1619, %v1626
      %v1657 = vadd.f32 %v1620, %v1625
      %v1658 = vadd.f32 %v1621, %v1626
      %v1659 = vadd.f32 %v1622, %v1625
      %v1660 = vadd.f32 %v1623, %v1626
      %v1661 = vpack.c.bf16 %v1631, %v1629
      %v1662 = vpack.c.bf16 %v1632, %v1630
      %v1663 = vpack.c.bf16 %v1635, %v1633
      %v1664 = vpack.c.bf16 %v1636, %v1634
      %v1665 = vpack.c.bf16 %v1639, %v1637
      %v1666 = vpack.c.bf16 %v1640, %v1638
      %v1667 = vpack.c.bf16 %v1643, %v1641
      %v1668 = vpack.c.bf16 %v1644, %v1642
      %v1669 = vpack.c.bf16 %v1647, %v1645
      %v1670 = vpack.c.bf16 %v1648, %v1646
      %v1671 = vpack.c.bf16 %v1651, %v1649
      %v1672 = vpack.c.bf16 %v1652, %v1650
      %v1673 = vpack.c.bf16 %v1655, %v1653
      %v1674 = vpack.c.bf16 %v1656, %v1654
      %v1675 = vpack.c.bf16 %v1659, %v1657
      %v1676 = vpack.c.bf16 %v1660, %v1658
      %v1677 = vld [vmem:[%s8] sm:$0xf]
      %v1678 = vld [vmem:[%s8 + $0x4] sm:$0xf]
      %v1679 = vld [vmem:[%s8 + $0x8] sm:$0xf]
      %v1680 = vld [vmem:[%s8 + $0xc] sm:$0xf]
      %v1681 = vld [vmem:[%s8 + $0x10] sm:$0xf]
      %v1682 = vld [vmem:[%s8 + $0x14] sm:$0xf]
      %v1683 = vld [vmem:[%s8 + $0x18] sm:$0xf]
      %v1684 = vld [vmem:[%s8 + $0x1c] sm:$0xf]
      %v1685 = vld [vmem:[%s8 + $0x20] sm:$0xf]
      %v1686 = vld [vmem:[%s8 + $0x24] sm:$0xf]
      %v1687 = vld [vmem:[%s8 + $0x28] sm:$0xf]
      %v1688 = vld [vmem:[%s8 + $0x2c] sm:$0xf]
      %v1689 = vld [vmem:[%s8 + $0x30] sm:$0xf]
      %v1690 = vld [vmem:[%s8 + $0x34] sm:$0xf]
      %v1691 = vld [vmem:[%s8 + $0x38] sm:$0xf]
      %v1692 = vld [vmem:[%s8 + $0x3c] sm:$0xf]
      %v1693 = vld [vmem:[%s8 + $0x40] sm:$0xf]
      %v1694 = vld [vmem:[%s9] sm:$0x1]
      %v1696 = vperm.slane %v1694, 0
      %v1715 = vunpack.c.l.b16 %v1677
      %v1716 = vunpack.c.l.b16 %v1678
      %v1717 = vunpack.c.l.b16 %v1679
      %v1718 = vunpack.c.l.b16 %v1680
      %v1719 = vunpack.c.l.b16 %v1681
      %v1720 = vunpack.c.l.b16 %v1682
      %v1721 = vunpack.c.l.b16 %v1683
      %v1722 = vunpack.c.l.b16 %v1684
      %v1723 = vunpack.c.l.b16 %v1685
      %v1724 = vunpack.c.l.b16 %v1686
      %v1725 = vunpack.c.l.b16 %v1687
      %v1726 = vunpack.c.l.b16 %v1688
      %v1727 = vunpack.c.l.b16 %v1689
      %v1728 = vunpack.c.l.b16 %v1690
      %v1729 = vunpack.c.l.b16 %v1691
      %v1730 = vunpack.c.l.b16 %v1692
      %v1731 = vunpack.c.l.b16 %v1693
      %v1732 = vpack.c.b16 %v1716, %v1715
      %v1733 = vpack.c.b16 %v1718, %v1717
      %v1734 = vpack.c.b16 %v1720, %v1719
      %v1735 = vpack.c.b16 %v1722, %v1721
      %v1736 = vpack.c.b16 %v1724, %v1723
      %v1737 = vpack.c.b16 %v1726, %v1725
      %v1738 = vpack.c.b16 %v1728, %v1727
      %v1739 = vpack.c.b16 %v1730, %v1729
      %v1740 = vpack.c.b16 %v1731, %v1731
      %v1750 = vsel %vm546, %v1662, 0
      %v1753 = vsel %vm546, %v1664, 0
      %v1756 = vsel %vm546, %v1666, 0
      %v1759 = vsel %vm546, %v1668, 0
      %v1762 = vsel %vm546, %v1670, 0
      %v1765 = vsel %vm546, %v1672, 0
      %v1768 = vsel %vm546, %v1674, 0
      %v1771 = vsel %vm546, %v1676, 0
      %v1774 = vsel %vm793, %v1740, 0
      %1776 = vmatpush.bf16.msra.mxu0 %v1739
      %1777 = vmatpush.bf16.msra.mxu0 %v1738
      %1778 = vmatpush.bf16.msra.mxu0 %v1737
      %1779 = vmatpush.bf16.msra.mxu0 %v1736
      %1780 = vmatpush.bf16.msra.mxu0 %v1735
      %1781 = vmatpush.bf16.msra.mxu0 %v1734
      %1782 = vmatpush.bf16.msra.mxu0 %v1733
      %1783 = vmatpush.bf16.msra.mxu0 %v1732
      %1784 = vmatmul.bf16.gmra.mxu0 %v1661
      %v1785 = vpop.f32.mrf.mxu0
      %v1786 = vadd.f32 %v1696, %v1785
      %v1787 = vpop.f32.mrf.mxu0
      %v1788 = vadd.f32 %v1696, %v1787
      %1789 = vmatmul.bf16.gmra.mxu0 %v1663
      %v1790 = vpop.f32.mrf.mxu0
      %v1791 = vadd.f32 %v1696, %v1790
      %v1792 = vpop.f32.mrf.mxu0
      %v1793 = vadd.f32 %v1696, %v1792
      %1794 = vmatmul.bf16.gmra.mxu0 %v1665
      %v1795 = vpop.f32.mrf.mxu0
      %v1796 = vadd.f32 %v1696, %v1795
      %v1797 = vpop.f32.mrf.mxu0
      %v1798 = vadd.f32 %v1696, %v1797
      %1799 = vmatmul.bf16.gmra.mxu0 %v1667
      %v1800 = vpop.f32.mrf.mxu0
      %v1801 = vadd.f32 %v1696, %v1800
      %v1802 = vpop.f32.mrf.mxu0
      %v1803 = vadd.f32 %v1696, %v1802
      %1804 = vmatmul.bf16.gmra.mxu0 %v1669
      %v1805 = vpop.f32.mrf.mxu0
      %v1806 = vadd.f32 %v1696, %v1805
      %v1807 = vpop.f32.mrf.mxu0
      %v1808 = vadd.f32 %v1696, %v1807
      %1809 = vmatmul.bf16.gmra.mxu0 %v1671
      %v1810 = vpop.f32.mrf.mxu0
      %v1811 = vadd.f32 %v1696, %v1810
      %v1812 = vpop.f32.mrf.mxu0
      %v1813 = vadd.f32 %v1696, %v1812
      %1814 = vmatmul.bf16.gmra.mxu0 %v1673
      %v1815 = vpop.f32.mrf.mxu0
      %v1816 = vadd.f32 %v1696, %v1815
      %v1817 = vpop.f32.mrf.mxu0
      %v1818 = vadd.f32 %v1696, %v1817
      %1819 = vmatmul.bf16.gmra.mxu0 %v1675
      %v1820 = vpop.f32.mrf.mxu0
      %v1821 = vadd.f32 %v1696, %v1820
      %v1822 = vpop.f32.mrf.mxu0
      %v1823 = vadd.f32 %v1696, %v1822
      %1824 = vdwg.mxu0
      %1825 = vmatpush.bf16.msra.mxu0 0
      %1826 = vmatpush.bf16.msra.mxu0 0
      %1827 = vmatpush.bf16.msra.mxu0 0
      %1828 = vmatpush.bf16.msra.mxu0 0
      %1829 = vmatpush.bf16.msra.mxu0 0
      %1830 = vmatpush.bf16.msra.mxu0 0
      %1831 = vmatpush.bf16.msra.mxu0 0
      %1832 = vmatpush.bf16.msra.mxu0 %v1774
      %1833 = vmatmul.bf16.gmra.mxu0 %v1750
      %v1834 = vpop.f32.mrf.mxu0
      %v1835 = vadd.f32 %v1786, %v1834
      %v1836 = vpop.f32.mrf.mxu0
      %v1837 = vadd.f32 %v1788, %v1836
      %1838 = vmatmul.bf16.gmra.mxu0 %v1753
      %v1839 = vpop.f32.mrf.mxu0
      %v1840 = vadd.f32 %v1791, %v1839
      %v1841 = vpop.f32.mrf.mxu0
      %v1842 = vadd.f32 %v1793, %v1841
      %1843 = vmatmul.bf16.gmra.mxu0 %v1756
      %v1844 = vpop.f32.mrf.mxu0
      %v1845 = vadd.f32 %v1796, %v1844
      %v1846 = vpop.f32.mrf.mxu0
      %v1847 = vadd.f32 %v1798, %v1846
      %1848 = vmatmul.bf16.gmra.mxu0 %v1759
      %v1849 = vpop.f32.mrf.mxu0
      %v1850 = vadd.f32 %v1801, %v1849
      %v1851 = vpop.f32.mrf.mxu0
      %v1852 = vadd.f32 %v1803, %v1851
      %1853 = vmatmul.bf16.gmra.mxu0 %v1762
      %v1854 = vpop.f32.mrf.mxu0
      %v1855 = vadd.f32 %v1806, %v1854
      %v1856 = vpop.f32.mrf.mxu0
      %v1857 = vadd.f32 %v1808, %v1856
      %1858 = vmatmul.bf16.gmra.mxu0 %v1765
      %v1859 = vpop.f32.mrf.mxu0
      %v1860 = vadd.f32 %v1811, %v1859
      %v1861 = vpop.f32.mrf.mxu0
      %v1862 = vadd.f32 %v1813, %v1861
      %1863 = vmatmul.bf16.gmra.mxu0 %v1768
      %v1864 = vpop.f32.mrf.mxu0
      %v1865 = vadd.f32 %v1816, %v1864
      %v1866 = vpop.f32.mrf.mxu0
      %v1867 = vadd.f32 %v1818, %v1866
      %1868 = vmatmul.bf16.gmra.mxu0 %v1771
      %v1869 = vpop.f32.mrf.mxu0
      %v1870 = vadd.f32 %v1821, %v1869
      %v1871 = vpop.f32.mrf.mxu0
      %v1872 = vadd.f32 %v1823, %v1871
      %1873 = vdwg.mxu0
      %1874 = vst.msk [vmem:[%s402] sm:$0xff] %vm546, %v1835
      %1875 = vst.msk [vmem:[%s402 + $0x8] sm:$0xff] %vm546, %v1837
      %1876 = vst.msk [vmem:[%s402 + $0x10] sm:$0xff] %vm546, %v1840
      %1877 = vst.msk [vmem:[%s402 + $0x18] sm:$0xff] %vm546, %v1842
      %1878 = vst.msk [vmem:[%s402 + $0x20] sm:$0xff] %vm546, %v1845
      %1879 = vst.msk [vmem:[%s402 + $0x28] sm:$0xff] %vm546, %v1847
      %1880 = vst.msk [vmem:[%s402 + $0x30] sm:$0xff] %vm546, %v1850
      %1881 = vst.msk [vmem:[%s402 + $0x38] sm:$0xff] %vm546, %v1852
      %1882 = vst.msk [vmem:[%s402 + $0x40] sm:$0xff] %vm546, %v1855
      %1883 = vst.msk [vmem:[%s402 + $0x48] sm:$0xff] %vm546, %v1857
      %1884 = vst.msk [vmem:[%s402 + $0x50] sm:$0xff] %vm546, %v1860
      %1885 = vst.msk [vmem:[%s402 + $0x58] sm:$0xff] %vm546, %v1862
      %1886 = vst.msk [vmem:[%s402 + $0x60] sm:$0xff] %vm546, %v1865
      %1887 = vst.msk [vmem:[%s402 + $0x68] sm:$0xff] %vm546, %v1867
      %1888 = vst.msk [vmem:[%s402 + $0x70] sm:$0xff] %vm546, %v1870
      %1889 = vst.msk [vmem:[%s402 + $0x78] sm:$0xff] %vm546, %v1872
      %s1890 = smul.u32 16, %s23
      %p1891 = scmp.lt.s32.totalorder %s1890, 31
      %s1892 = scalar_select %p1891, %s1890, 31
      %s1893 = smul.addr %s1892, 8
      %s1894 = scalar_lea.vmem %s10, %s1893
      %s1895 = smul.u32 16, %s23
      %p1896 = scmp.lt.s32.totalorder %s1895, 31
      %s1897 = scalar_select %p1896, %s1895, 31
      %s1898 = smul.addr %s1897, 8
      %s1899 = scalar_lea.vmem %s11, %s1898
      // Predicated region
      $region61: #{_lambda_.3} parent=59 // pred_check
        %p1900 = pneg %p256
      $region62: #{_lambda_.3} parent=59 // pred_check_branch
        %1902 = sbr.rel (%p1900) target = $region64
      $region63: #{_lambda_.3} parent=59 // pred_region
        %s1903 = smul.u32 16, %s23
      $region64: #{_lambda_.3} parent=59 // pred_fallthru
        _
      // Predicated region
      $region65: #{_lambda_.3} parent=59 // pred_check
        %p1904 = pneg %p282
      $region66: #{_lambda_.3} parent=59 // pred_check_branch
        %1906 = sbr.rel (%p1904) target = $region68
      $region67: #{_lambda_.3} parent=59 // pred_region
        %s1907 = smul.u32 16, %s23
      $region68: #{_lambda_.3} parent=59 // pred_fallthru
        _
    $region60: #{_lambda_.3} parent=5 // pred_fallthru
      _
    %p1908 = scmp.le.s32.totalorder 2, %s18
    // Predicated region
    $region69: #{_lambda_.3} parent=5 // pred_check
      %p1909 = pneg %p1908
    $region70: #{_lambda_.3} parent=5 // pred_check_branch
      %1911 = sbr.rel (%p1909) target = $region72
    $region71: #{_lambda_.3} parent=5 // pred_region
      %s1912 = ssub.s32 %s18, 2
      // Predicated region
      $region73: #{_lambda_.3} parent=71 // pred_check
        %p1913 = pneg %p262
      $region74: #{_lambda_.3} parent=71 // pred_check_branch
        %1915 = sbr.rel (%p1913) target = $region76
      $region75: #{_lambda_.3} parent=71 // pred_region
        %s1916 = smul.u32 16, %s24
        %p1917 = scmp.lt.s32.totalorder %s1916, 31
        %s1918 = scalar_select %p1917, %s1916, 31
        %s1919 = smul.addr %s1918, 8
        %s1920 = scalar_lea.vmem %s10, %s1919
      $region76: #{_lambda_.3} parent=71 // pred_fallthru
        _
      // Predicated region
      $region77: #{_lambda_.3} parent=71 // pred_check
        %p1921 = pneg %p288
      $region78: #{_lambda_.3} parent=71 // pred_check_branch
        %1923 = sbr.rel (%p1921) target = $region80
      $region79: #{_lambda_.3} parent=71 // pred_region
        %s1924 = smul.u32 16, %s24
        %p1925 = scmp.lt.s32.totalorder %s1924, 31
        %s1926 = scalar_select %p1925, %s1924, 31
        %s1927 = smul.addr %s1926, 8
        %s1928 = scalar_lea.vmem %s11, %s1927
      $region80: #{_lambda_.3} parent=71 // pred_fallthru
        _
    $region72: #{_lambda_.3} parent=5 // pred_fallthru
      _
  $region6: #{_lambda_.3} parent=0 // loop_footer
    %s22 = sadd.s32 1, %s18
  $region7: #{_lambda_.3} parent=0 // loop_footer_branch
    %17 = sbr.rel target = $region3
  $region8: #{_lambda_.3} parent=0 // loop_exit
    _

// kernel: _lambda_.2
$region0: #{_lambda_.2}
  #allocation0 [shape = 'u32[]', space=smem, size = 0x4, offset = 0x4, fixed_abs, tag = 'smem constant byte address 0x4 - core index']
  #allocation1 [shape = 'u32[72,128]{1,0:T(1,128)}', space=vmem, size = 0x9000, scoped, tag = 'internal scratch']
  %s0 = inlined_call_operand.vmem [shape: f32[2,128,128], index: 0, kind: input, shape index: {}]
  %s1 = inlined_call_operand.vmem [shape: f32[2,1,128], index: 1, kind: input, shape index: {}]
  %s2 = inlined_call_operand.vmem [shape: f32[1,128], index: 2, kind: input, shape index: {}]
  %s3 = inlined_call_operand.vmem [shape: f32[1,128], index: 3, kind: input, shape index: {}]
  %s4 = inlined_call_operand.vmem [shape: bf16[2,128,384], index: 4, kind: input, shape index: {}]
  %s5 = inlined_call_operand.vmem [shape: f32[2,1,384], index: 5, kind: input, shape index: {}]
  %s6 = inlined_call_operand.vmem [shape: bf16[2,128,128], index: 6, kind: input, shape index: {}]
  %s7 = inlined_call_operand.vmem [shape: f32[2,1,128], index: 7, kind: input, shape index: {}, may-alias: {7,9,13,15}]
  %s8 = inlined_call_operand.vmem [shape: f32[2,1,128], index: 8, kind: input, shape index: {}, may-alias: {8,14}]
  %s9 = inlined_call_operand.vmem [shape: f32[2,1,128], index: 9, kind: input, shape index: {}, may-alias: {7,9,13,15}]
  %s10 = inlined_call_operand.vmem [shape: bf16[2,128,256], index: 10, kind: input, shape index: {}]
  %s11 = inlined_call_operand.vmem [shape: f32[2,1,256], index: 11, kind: input, shape index: {}]
  %s12 = inlined_call_operand.vmem [shape: bf16[2,256,128], index: 12, kind: input, shape index: {}]
  %s13 = inlined_call_operand.vmem [shape: f32[2,1,128], index: 13, kind: input, shape index: {}, may-alias: {7,9,13,15}]
  %s14 = inlined_call_operand.vmem [shape: f32[2,1,128], index: 14, kind: input, shape index: {}, may-alias: {8,14}]
  %s15 = inlined_call_operand.vmem [shape: f32[2,1,128], index: 15, kind: input, shape index: {}, may-alias: {7,9,13,15}]
  %s16 = inlined_call_operand.vmem [shape: f32[2,128,128], index: 16, kind: output, shape index: {}]
  %s17 = sld [smem:[#allocation0]]
  $region97: #{_lambda_.2} parent=0
    _
  %s19 = ssub.s32 1, %s17
  %s20 = scalar_select 0, %s19, %s17
  loop: start=0, step=1, limit=4
  $region2: #{_lambda_.2} parent=0 // loop_pre_header
    _
  $region3: #{_lambda_.2} parent=0 // loop_header
    %s22 = sphi 0, %s26
    %p23 = scmp.ge.s32.totalorder %s22, 4
    %s32 = sphi 0, %s34
    %s35 = sphi 0, %s32
    %s36 = sphi 0, %s35
    %s52 = sphi 0, %s36
    %s58 = sphi 0, %s60
    %s61 = sphi 0, %s58
    %s62 = sphi 0, %s61
    %s78 = sphi 0, %s62
    %s82 = sphi 0, %s82
    %s84 = sphi 0, %s82
    %s85 = sphi 0, %s84
    %s99 = sphi 0, %s85
    %s103 = sphi 0, %s103
    %s105 = sphi 0, %s103
    %s106 = sphi 0, %s105
    %s120 = sphi 0, %s106
    %s124 = sphi 0, %s124
    %s126 = sphi 0, %s124
    %s127 = sphi 0, %s126
    %s141 = sphi 0, %s127
    %s145 = sphi 0, %s145
    %s147 = sphi 0, %s145
    %s148 = sphi 0, %s147
    %s162 = sphi 0, %s148
    %s166 = sphi 0, %s166
    %s168 = sphi 0, %s166
    %s169 = sphi 0, %s168
    %s183 = sphi 0, %s169
    %s187 = sphi 0, %s187
    %s189 = sphi 0, %s187
    %s190 = sphi 0, %s189
    %s204 = sphi 0, %s190
    %s208 = sphi 0, %s208
    %s210 = sphi 0, %s208
    %s211 = sphi 0, %s210
    %s225 = sphi 0, %s211
    %s229 = sphi 0, %s229
    %s231 = sphi 0, %s229
    %s232 = sphi 0, %s231
    %s246 = sphi 0, %s232
    %s250 = sphi 0, %s250
    %s252 = sphi 0, %s250
    %s253 = sphi 0, %s252
    %s267 = sphi 0, %s253
    %s271 = sphi 0, %s271
    %s273 = sphi 0, %s271
    %s274 = sphi 0, %s273
    %s288 = sphi 0, %s274
    %s292 = sphi 0, %s292
    %s294 = sphi 0, %s292
    %s295 = sphi 0, %s294
    %s309 = sphi 0, %s295
    %s313 = sphi 0, %s313
    %s315 = sphi 0, %s313
    %s316 = sphi 0, %s315
    %s330 = sphi 0, %s316
    %s334 = sphi 0, %s334
    %s336 = sphi 0, %s334
    %s337 = sphi 0, %s336
    %s351 = sphi 0, %s337
    %s355 = sphi 0, %s355
    %s357 = sphi 0, %s355
    %s358 = sphi 0, %s357
    %s372 = sphi 0, %s358
    %s378 = sphi 0, %s380
    %s381 = sphi 0, %s378
    %s382 = sphi 0, %s381
    %s398 = sphi 0, %s382
  $region4: #{_lambda_.2} parent=0 // loop_header_branch
    %25 = sbr.rel (%p23) target = $region8
  $region5: #{_lambda_.2} parent=0 // loop_body
    %s27 = ssub.s32 %s22, 1
    %s28 = ssub.s32 %s22, 2
    %s29 = sadd.s32 %s22, 1
    %s30 = ssub.s32 %s22, %s29
    %p31 = scmp.eq.s32.totalorder %s30, 0
    %s33 = sadd.s32 %s32, 1
    %s34 = scalar_select %p31, %s32, %s33
    %p37 = pneg %p31
    %p38 = scmp.eq.s32.totalorder %s22, 1
    %p39 = por %p37, %p38
    %p40 = scmp.ne.s32.totalorder %s32, %s35
    %p41 = scmp.eq.s32.totalorder %s22, 0
    %p42 = por %p40, %p41
    %p43 = scmp.ne.s32.totalorder %s32, %s35
    %p44 = scmp.eq.s32.totalorder %s27, 1
    %p45 = por %p43, %p44
    %p46 = scmp.ne.s32.totalorder %s35, %s36
    %p47 = scmp.eq.s32.totalorder %s27, 0
    %p48 = por %p46, %p47
    %p49 = scmp.ne.s32.totalorder %s35, %s36
    %p50 = scmp.eq.s32.totalorder %s28, 1
    %p51 = por %p49, %p50
    %p53 = scmp.ne.s32.totalorder %s36, %s52
    %p54 = scmp.eq.s32.totalorder %s28, 0
    %p55 = por %p53, %p54
    %s56 = ssub.s32 %s22, %s29
    %p57 = scmp.eq.s32.totalorder %s56, 0
    %s59 = sadd.s32 %s58, 1
    %s60 = scalar_select %p57, %s58, %s59
    %p63 = pneg %p57
    %p64 = scmp.eq.s32.totalorder %s22, 1
    %p65 = por %p63, %p64
    %p66 = scmp.ne.s32.totalorder %s58, %s61
    %p67 = scmp.eq.s32.totalorder %s22, 0
    %p68 = por %p66, %p67
    %p69 = scmp.ne.s32.totalorder %s58, %s61
    %p70 = scmp.eq.s32.totalorder %s27, 1
    %p71 = por %p69, %p70
    %p72 = scmp.ne.s32.totalorder %s61, %s62
    %p73 = scmp.eq.s32.totalorder %s27, 0
    %p74 = por %p72, %p73
    %p75 = scmp.ne.s32.totalorder %s61, %s62
    %p76 = scmp.eq.s32.totalorder %s28, 1
    %p77 = por %p75, %p76
    %p79 = scmp.ne.s32.totalorder %s62, %s78
    %p80 = scmp.eq.s32.totalorder %s28, 0
    %p81 = por %p79, %p80
    %s83 = sadd.s32 %s82, 1
    %p86 = scmp.eq.s32.totalorder %s22, 1
    %p87 = scmp.ne.s32.totalorder %s82, %s84
    %p88 = scmp.eq.s32.totalorder %s22, 0
    %p89 = por %p87, %p88
    %p90 = scmp.ne.s32.totalorder %s82, %s84
    %p91 = scmp.eq.s32.totalorder %s27, 1
    %p92 = por %p90, %p91
    %p93 = scmp.ne.s32.totalorder %s84, %s85
    %p94 = scmp.eq.s32.totalorder %s27, 0
    %p95 = por %p93, %p94
    %p96 = scmp.ne.s32.totalorder %s84, %s85
    %p97 = scmp.eq.s32.totalorder %s28, 1
    %p98 = por %p96, %p97
    %p100 = scmp.ne.s32.totalorder %s85, %s99
    %p101 = scmp.eq.s32.totalorder %s28, 0
    %p102 = por %p100, %p101
    %s104 = sadd.s32 %s103, 1
    %p107 = scmp.eq.s32.totalorder %s22, 1
    %p108 = scmp.ne.s32.totalorder %s103, %s105
    %p109 = scmp.eq.s32.totalorder %s22, 0
    %p110 = por %p108, %p109
    %p111 = scmp.ne.s32.totalorder %s103, %s105
    %p112 = scmp.eq.s32.totalorder %s27, 1
    %p113 = por %p111, %p112
    %p114 = scmp.ne.s32.totalorder %s105, %s106
    %p115 = scmp.eq.s32.totalorder %s27, 0
    %p116 = por %p114, %p115
    %p117 = scmp.ne.s32.totalorder %s105, %s106
    %p118 = scmp.eq.s32.totalorder %s28, 1
    %p119 = por %p117, %p118
    %p121 = scmp.ne.s32.totalorder %s106, %s120
    %p122 = scmp.eq.s32.totalorder %s28, 0
    %p123 = por %p121, %p122
    %s125 = sadd.s32 %s124, 1
    %p128 = scmp.eq.s32.totalorder %s22, 1
    %p129 = scmp.ne.s32.totalorder %s124, %s126
    %p130 = scmp.eq.s32.totalorder %s22, 0
    %p131 = por %p129, %p130
    %p132 = scmp.ne.s32.totalorder %s124, %s126
    %p133 = scmp.eq.s32.totalorder %s27, 1
    %p134 = por %p132, %p133
    %p135 = scmp.ne.s32.totalorder %s126, %s127
    %p136 = scmp.eq.s32.totalorder %s27, 0
    %p137 = por %p135, %p136
    %p138 = scmp.ne.s32.totalorder %s126, %s127
    %p139 = scmp.eq.s32.totalorder %s28, 1
    %p140 = por %p138, %p139
    %p142 = scmp.ne.s32.totalorder %s127, %s141
    %p143 = scmp.eq.s32.totalorder %s28, 0
    %p144 = por %p142, %p143
    %s146 = sadd.s32 %s145, 1
    %p149 = scmp.eq.s32.totalorder %s22, 1
    %p150 = scmp.ne.s32.totalorder %s145, %s147
    %p151 = scmp.eq.s32.totalorder %s22, 0
    %p152 = por %p150, %p151
    %p153 = scmp.ne.s32.totalorder %s145, %s147
    %p154 = scmp.eq.s32.totalorder %s27, 1
    %p155 = por %p153, %p154
    %p156 = scmp.ne.s32.totalorder %s147, %s148
    %p157 = scmp.eq.s32.totalorder %s27, 0
    %p158 = por %p156, %p157
    %p159 = scmp.ne.s32.totalorder %s147, %s148
    %p160 = scmp.eq.s32.totalorder %s28, 1
    %p161 = por %p159, %p160
    %p163 = scmp.ne.s32.totalorder %s148, %s162
    %p164 = scmp.eq.s32.totalorder %s28, 0
    %p165 = por %p163, %p164
    %s167 = sadd.s32 %s166, 1
    %p170 = scmp.eq.s32.totalorder %s22, 1
    %p171 = scmp.ne.s32.totalorder %s166, %s168
    %p172 = scmp.eq.s32.totalorder %s22, 0
    %p173 = por %p171, %p172
    %p174 = scmp.ne.s32.totalorder %s166, %s168
    %p175 = scmp.eq.s32.totalorder %s27, 1
    %p176 = por %p174, %p175
    %p177 = scmp.ne.s32.totalorder %s168, %s169
    %p178 = scmp.eq.s32.totalorder %s27, 0
    %p179 = por %p177, %p178
    %p180 = scmp.ne.s32.totalorder %s168, %s169
    %p181 = scmp.eq.s32.totalorder %s28, 1
    %p182 = por %p180, %p181
    %p184 = scmp.ne.s32.totalorder %s169, %s183
    %p185 = scmp.eq.s32.totalorder %s28, 0
    %p186 = por %p184, %p185
    %s188 = sadd.s32 %s187, 1
    %p191 = scmp.eq.s32.totalorder %s22, 1
    %p192 = scmp.ne.s32.totalorder %s187, %s189
    %p193 = scmp.eq.s32.totalorder %s22, 0
    %p194 = por %p192, %p193
    %p195 = scmp.ne.s32.totalorder %s187, %s189
    %p196 = scmp.eq.s32.totalorder %s27, 1
    %p197 = por %p195, %p196
    %p198 = scmp.ne.s32.totalorder %s189, %s190
    %p199 = scmp.eq.s32.totalorder %s27, 0
    %p200 = por %p198, %p199
    %p201 = scmp.ne.s32.totalorder %s189, %s190
    %p202 = scmp.eq.s32.totalorder %s28, 1
    %p203 = por %p201, %p202
    %p205 = scmp.ne.s32.totalorder %s190, %s204
    %p206 = scmp.eq.s32.totalorder %s28, 0
    %p207 = por %p205, %p206
    %s209 = sadd.s32 %s208, 1
    %p212 = scmp.eq.s32.totalorder %s22, 1
    %p213 = scmp.ne.s32.totalorder %s208, %s210
    %p214 = scmp.eq.s32.totalorder %s22, 0
    %p215 = por %p213, %p214
    %p216 = scmp.ne.s32.totalorder %s208, %s210
    %p217 = scmp.eq.s32.totalorder %s27, 1
    %p218 = por %p216, %p217
    %p219 = scmp.ne.s32.totalorder %s210, %s211
    %p220 = scmp.eq.s32.totalorder %s27, 0
    %p221 = por %p219, %p220
    %p222 = scmp.ne.s32.totalorder %s210, %s211
    %p223 = scmp.eq.s32.totalorder %s28, 1
    %p224 = por %p222, %p223
    %p226 = scmp.ne.s32.totalorder %s211, %s225
    %p227 = scmp.eq.s32.totalorder %s28, 0
    %p228 = por %p226, %p227
    %s230 = sadd.s32 %s229, 1
    %p233 = scmp.eq.s32.totalorder %s22, 1
    %p234 = scmp.ne.s32.totalorder %s229, %s231
    %p235 = scmp.eq.s32.totalorder %s22, 0
    %p236 = por %p234, %p235
    %p237 = scmp.ne.s32.totalorder %s229, %s231
    %p238 = scmp.eq.s32.totalorder %s27, 1
    %p239 = por %p237, %p238
    %p240 = scmp.ne.s32.totalorder %s231, %s232
    %p241 = scmp.eq.s32.totalorder %s27, 0
    %p242 = por %p240, %p241
    %p243 = scmp.ne.s32.totalorder %s231, %s232
    %p244 = scmp.eq.s32.totalorder %s28, 1
    %p245 = por %p243, %p244
    %p247 = scmp.ne.s32.totalorder %s232, %s246
    %p248 = scmp.eq.s32.totalorder %s28, 0
    %p249 = por %p247, %p248
    %s251 = sadd.s32 %s250, 1
    %p254 = scmp.eq.s32.totalorder %s22, 1
    %p255 = scmp.ne.s32.totalorder %s250, %s252
    %p256 = scmp.eq.s32.totalorder %s22, 0
    %p257 = por %p255, %p256
    %p258 = scmp.ne.s32.totalorder %s250, %s252
    %p259 = scmp.eq.s32.totalorder %s27, 1
    %p260 = por %p258, %p259
    %p261 = scmp.ne.s32.totalorder %s252, %s253
    %p262 = scmp.eq.s32.totalorder %s27, 0
    %p263 = por %p261, %p262
    %p264 = scmp.ne.s32.totalorder %s252, %s253
    %p265 = scmp.eq.s32.totalorder %s28, 1
    %p266 = por %p264, %p265
    %p268 = scmp.ne.s32.totalorder %s253, %s267
    %p269 = scmp.eq.s32.totalorder %s28, 0
    %p270 = por %p268, %p269
    %s272 = sadd.s32 %s271, 1
    %p275 = scmp.eq.s32.totalorder %s22, 1
    %p276 = scmp.ne.s32.totalorder %s271, %s273
    %p277 = scmp.eq.s32.totalorder %s22, 0
    %p278 = por %p276, %p277
    %p279 = scmp.ne.s32.totalorder %s271, %s273
    %p280 = scmp.eq.s32.totalorder %s27, 1
    %p281 = por %p279, %p280
    %p282 = scmp.ne.s32.totalorder %s273, %s274
    %p283 = scmp.eq.s32.totalorder %s27, 0
    %p284 = por %p282, %p283
    %p285 = scmp.ne.s32.totalorder %s273, %s274
    %p286 = scmp.eq.s32.totalorder %s28, 1
    %p287 = por %p285, %p286
    %p289 = scmp.ne.s32.totalorder %s274, %s288
    %p290 = scmp.eq.s32.totalorder %s28, 0
    %p291 = por %p289, %p290
    %s293 = sadd.s32 %s292, 1
    %p296 = scmp.eq.s32.totalorder %s22, 1
    %p297 = scmp.ne.s32.totalorder %s292, %s294
    %p298 = scmp.eq.s32.totalorder %s22, 0
    %p299 = por %p297, %p298
    %p300 = scmp.ne.s32.totalorder %s292, %s294
    %p301 = scmp.eq.s32.totalorder %s27, 1
    %p302 = por %p300, %p301
    %p303 = scmp.ne.s32.totalorder %s294, %s295
    %p304 = scmp.eq.s32.totalorder %s27, 0
    %p305 = por %p303, %p304
    %p306 = scmp.ne.s32.totalorder %s294, %s295
    %p307 = scmp.eq.s32.totalorder %s28, 1
    %p308 = por %p306, %p307
    %p310 = scmp.ne.s32.totalorder %s295, %s309
    %p311 = scmp.eq.s32.totalorder %s28, 0
    %p312 = por %p310, %p311
    %s314 = sadd.s32 %s313, 1
    %p317 = scmp.eq.s32.totalorder %s22, 1
    %p318 = scmp.ne.s32.totalorder %s313, %s315
    %p319 = scmp.eq.s32.totalorder %s22, 0
    %p320 = por %p318, %p319
    %p321 = scmp.ne.s32.totalorder %s313, %s315
    %p322 = scmp.eq.s32.totalorder %s27, 1
    %p323 = por %p321, %p322
    %p324 = scmp.ne.s32.totalorder %s315, %s316
    %p325 = scmp.eq.s32.totalorder %s27, 0
    %p326 = por %p324, %p325
    %p327 = scmp.ne.s32.totalorder %s315, %s316
    %p328 = scmp.eq.s32.totalorder %s28, 1
    %p329 = por %p327, %p328
    %p331 = scmp.ne.s32.totalorder %s316, %s330
    %p332 = scmp.eq.s32.totalorder %s28, 0
    %p333 = por %p331, %p332
    %s335 = sadd.s32 %s334, 1
    %p338 = scmp.eq.s32.totalorder %s22, 1
    %p339 = scmp.ne.s32.totalorder %s334, %s336
    %p340 = scmp.eq.s32.totalorder %s22, 0
    %p341 = por %p339, %p340
    %p342 = scmp.ne.s32.totalorder %s334, %s336
    %p343 = scmp.eq.s32.totalorder %s27, 1
    %p344 = por %p342, %p343
    %p345 = scmp.ne.s32.totalorder %s336, %s337
    %p346 = scmp.eq.s32.totalorder %s27, 0
    %p347 = por %p345, %p346
    %p348 = scmp.ne.s32.totalorder %s336, %s337
    %p349 = scmp.eq.s32.totalorder %s28, 1
    %p350 = por %p348, %p349
    %p352 = scmp.ne.s32.totalorder %s337, %s351
    %p353 = scmp.eq.s32.totalorder %s28, 0
    %p354 = por %p352, %p353
    %s356 = sadd.s32 %s355, 1
    %p359 = scmp.eq.s32.totalorder %s22, 1
    %p360 = scmp.ne.s32.totalorder %s355, %s357
    %p361 = scmp.eq.s32.totalorder %s22, 0
    %p362 = por %p360, %p361
    %p363 = scmp.ne.s32.totalorder %s355, %s357
    %p364 = scmp.eq.s32.totalorder %s27, 1
    %p365 = por %p363, %p364
    %p366 = scmp.ne.s32.totalorder %s357, %s358
    %p367 = scmp.eq.s32.totalorder %s27, 0
    %p368 = por %p366, %p367
    %p369 = scmp.ne.s32.totalorder %s357, %s358
    %p370 = scmp.eq.s32.totalorder %s28, 1
    %p371 = por %p369, %p370
    %p373 = scmp.ne.s32.totalorder %s358, %s372
    %p374 = scmp.eq.s32.totalorder %s28, 0
    %p375 = por %p373, %p374
    %s376 = ssub.s32 %s22, %s29
    %p377 = scmp.eq.s32.totalorder %s376, 0
    %s379 = sadd.s32 %s378, 1
    %s380 = scalar_select %p377, %s378, %s379
    %p383 = pneg %p377
    %p384 = scmp.eq.s32.totalorder %s22, 1
    %p385 = por %p383, %p384
    %p386 = scmp.ne.s32.totalorder %s378, %s381
    %p387 = scmp.eq.s32.totalorder %s22, 0
    %p388 = por %p386, %p387
    %p389 = scmp.ne.s32.totalorder %s378, %s381
    %p390 = scmp.eq.s32.totalorder %s27, 1
    %p391 = por %p389, %p390
    %p392 = scmp.ne.s32.totalorder %s381, %s382
    %p393 = scmp.eq.s32.totalorder %s27, 0
    %p394 = por %p392, %p393
    %p395 = scmp.ne.s32.totalorder %s381, %s382
    %p396 = scmp.eq.s32.totalorder %s28, 1
    %p397 = por %p395, %p396
    %p399 = scmp.ne.s32.totalorder %s382, %s398
    %p400 = scmp.eq.s32.totalorder %s28, 0
    %p401 = por %p399, %p400
    %p402 = scmp.le.s32.totalorder 1, %s22
    %p403 = scmp.lt.s32.totalorder %s22, 3
    %p404 = pnand %p402, %p403
    %p405 = pneg %p404
    // Predicated region
    $region9: #{_lambda_.2} parent=5 // pred_check
      _
    $region10: #{_lambda_.2} parent=5 // pred_check_branch
      %407 = sbr.rel (%p404) target = $region12
    $region11: #{_lambda_.2} parent=5 // pred_region
      %s408 = ssub.s32 %s22, 1
      // Predicated region
      $region13: #{_lambda_.2} parent=11 // pred_check
        %p409 = pneg %p95
      $region14: #{_lambda_.2} parent=11 // pred_check_branch
        %411 = sbr.rel (%p409) target = $region16
      $region15: #{_lambda_.2} parent=11 // pred_region
        _
      $region16: #{_lambda_.2} parent=11 // pred_fallthru
        _
      // Predicated region
      $region17: #{_lambda_.2} parent=11 // pred_check
        %p412 = pneg %p116
      $region18: #{_lambda_.2} parent=11 // pred_check_branch
        %414 = sbr.rel (%p412) target = $region20
      $region19: #{_lambda_.2} parent=11 // pred_region
        _
      $region20: #{_lambda_.2} parent=11 // pred_fallthru
        _
      // Predicated region
      $region21: #{_lambda_.2} parent=11 // pred_check
        %p415 = pneg %p137
      $region22: #{_lambda_.2} parent=11 // pred_check_branch
        %417 = sbr.rel (%p415) target = $region24
      $region23: #{_lambda_.2} parent=11 // pred_region
        _
      $region24: #{_lambda_.2} parent=11 // pred_fallthru
        _
      // Predicated region
      $region25: #{_lambda_.2} parent=11 // pred_check
        %p418 = pneg %p158
      $region26: #{_lambda_.2} parent=11 // pred_check_branch
        %420 = sbr.rel (%p418) target = $region28
      $region27: #{_lambda_.2} parent=11 // pred_region
        _
      $region28: #{_lambda_.2} parent=11 // pred_fallthru
        _
      // Predicated region
      $region29: #{_lambda_.2} parent=11 // pred_check
        %p421 = pneg %p179
      $region30: #{_lambda_.2} parent=11 // pred_check_branch
        %423 = sbr.rel (%p421) target = $region32
      $region31: #{_lambda_.2} parent=11 // pred_region
        _
      $region32: #{_lambda_.2} parent=11 // pred_fallthru
        _
      // Predicated region
      $region33: #{_lambda_.2} parent=11 // pred_check
        %p424 = pneg %p200
      $region34: #{_lambda_.2} parent=11 // pred_check_branch
        %426 = sbr.rel (%p424) target = $region36
      $region35: #{_lambda_.2} parent=11 // pred_region
        _
      $region36: #{_lambda_.2} parent=11 // pred_fallthru
        _
      // Predicated region
      $region37: #{_lambda_.2} parent=11 // pred_check
        %p427 = pneg %p221
      $region38: #{_lambda_.2} parent=11 // pred_check_branch
        %429 = sbr.rel (%p427) target = $region40
      $region39: #{_lambda_.2} parent=11 // pred_region
        _
      $region40: #{_lambda_.2} parent=11 // pred_fallthru
        _
      // Predicated region
      $region41: #{_lambda_.2} parent=11 // pred_check
        %p430 = pneg %p242
      $region42: #{_lambda_.2} parent=11 // pred_check_branch
        %432 = sbr.rel (%p430) target = $region44
      $region43: #{_lambda_.2} parent=11 // pred_region
        _
      $region44: #{_lambda_.2} parent=11 // pred_fallthru
        _
      // Predicated region
      $region45: #{_lambda_.2} parent=11 // pred_check
        %p433 = pneg %p263
      $region46: #{_lambda_.2} parent=11 // pred_check_branch
        %435 = sbr.rel (%p433) target = $region48
      $region47: #{_lambda_.2} parent=11 // pred_region
        _
      $region48: #{_lambda_.2} parent=11 // pred_fallthru
        _
      // Predicated region
      $region49: #{_lambda_.2} parent=11 // pred_check
        %p436 = pneg %p284
      $region50: #{_lambda_.2} parent=11 // pred_check_branch
        %438 = sbr.rel (%p436) target = $region52
      $region51: #{_lambda_.2} parent=11 // pred_region
        _
      $region52: #{_lambda_.2} parent=11 // pred_fallthru
        _
      // Predicated region
      $region53: #{_lambda_.2} parent=11 // pred_check
        %p439 = pneg %p305
      $region54: #{_lambda_.2} parent=11 // pred_check_branch
        %441 = sbr.rel (%p439) target = $region56
      $region55: #{_lambda_.2} parent=11 // pred_region
        _
      $region56: #{_lambda_.2} parent=11 // pred_fallthru
        _
      // Predicated region
      $region57: #{_lambda_.2} parent=11 // pred_check
        %p442 = pneg %p326
      $region58: #{_lambda_.2} parent=11 // pred_check_branch
        %444 = sbr.rel (%p442) target = $region60
      $region59: #{_lambda_.2} parent=11 // pred_region
        _
      $region60: #{_lambda_.2} parent=11 // pred_fallthru
        _
      // Predicated region
      $region61: #{_lambda_.2} parent=11 // pred_check
        %p445 = pneg %p347
      $region62: #{_lambda_.2} parent=11 // pred_check_branch
        %447 = sbr.rel (%p445) target = $region64
      $region63: #{_lambda_.2} parent=11 // pred_region
        _
      $region64: #{_lambda_.2} parent=11 // pred_fallthru
        _
      // Predicated region
      $region65: #{_lambda_.2} parent=11 // pred_check
        %p448 = pneg %p368
      $region66: #{_lambda_.2} parent=11 // pred_check_branch
        %450 = sbr.rel (%p448) target = $region68
      $region67: #{_lambda_.2} parent=11 // pred_region
        _
      $region68: #{_lambda_.2} parent=11 // pred_fallthru
        _
    $region12: #{_lambda_.2} parent=5 // pred_fallthru
      _
    %p451 = scmp.lt.s32.totalorder %s22, 2
    // Predicated region
    $region69: #{_lambda_.2} parent=5 // pred_check
      %p452 = pneg %p451
    $region70: #{_lambda_.2} parent=5 // pred_check_branch
      %454 = sbr.rel (%p452) target = $region72
    $region71: #{_lambda_.2} parent=5 // pred_region
      // Predicated region
      $region73: #{_lambda_.2} parent=71 // pred_check
        %p455 = pneg %p42
      $region74: #{_lambda_.2} parent=71 // pred_check_branch
        %457 = sbr.rel (%p455) target = $region76
      $region75: #{_lambda_.2} parent=71 // pred_region
        %p458 = scmp.lt.s32.totalorder %s22, 1
        %s459 = scalar_select %p458, %s22, 1
        %s460 = smul.addr %s459, 16
        %s461 = smul.addr %s460, 8
        %s462 = scalar_lea.vmem %s0, %s461
      $region76: #{_lambda_.2} parent=71 // pred_fallthru
        _
      // Predicated region
      $region77: #{_lambda_.2} parent=71 // pred_check
        %p463 = pneg %p68
      $region78: #{_lambda_.2} parent=71 // pred_check_branch
        %465 = sbr.rel (%p463) target = $region80
      $region79: #{_lambda_.2} parent=71 // pred_region
        %p466 = scmp.lt.s32.totalorder %s22, 1
        %s467 = scalar_select %p466, %s22, 1
        %s468 = scalar_lea.vmem %s1, %s467
      $region80: #{_lambda_.2} parent=71 // pred_fallthru
        _
    $region72: #{_lambda_.2} parent=5 // pred_fallthru
      _
    %p469 = scmp.le.s32.totalorder 1, %s22
    %p470 = scmp.lt.s32.totalorder %s22, 3
    %p471 = pnand %p469, %p470
    %p472 = pneg %p471
    // Predicated region
    $region81: #{_lambda_.2} parent=5 // pred_check
      _
    $region82: #{_lambda_.2} parent=5 // pred_check_branch
      %474 = sbr.rel (%p471) target = $region84
    $region83: #{_lambda_.2} parent=5 // pred_region
      %s475 = ssub.s32 %s22, 1
      %p476 = scmp.lt.s32.totalorder %s27, 1
      %s477 = scalar_select %p476, %s27, 1
      %s478 = smul.addr %s477, 16
      %s479 = smul.addr %s478, 8
      %s480 = scalar_lea.vmem %s0, %s479
      %p481 = pneg %p48
      %p482 = pneg %p45
      %p483 = scmp.lt.s32.totalorder %s27, 1
      %s484 = scalar_select %p483, %s27, 1
      %s485 = scalar_lea.vmem %s1, %s484
      %p486 = pneg %p74
      %p487 = pneg %p71
      %p488 = pneg %p95
      %p489 = pneg %p92
      %p490 = pneg %p116
      %p491 = pneg %p113
      %p492 = pneg %p137
      %p493 = pneg %p134
      %p494 = pneg %p158
      %p495 = pneg %p155
      %p496 = pneg %p179
      %p497 = pneg %p176
      %p498 = pneg %p200
      %p499 = pneg %p197
      %p500 = pneg %p221
      %p501 = pneg %p218
      %p502 = pneg %p242
      %p503 = pneg %p239
      %p504 = pneg %p263
      %p505 = pneg %p260
      %p506 = pneg %p284
      %p507 = pneg %p281
      %p508 = pneg %p305
      %p509 = pneg %p302
      %p510 = pneg %p326
      %p511 = pneg %p323
      %p512 = pneg %p347
      %p513 = pneg %p344
      %p514 = pneg %p368
      %p515 = pneg %p365
      %p516 = pneg %p394
      %p517 = pneg %p391
      %p518 = scmp.lt.s32.totalorder %s27, 1
      %s519 = scalar_select %p518, %s27, 1
      %s520 = smul.addr %s519, 16
      %s521 = smul.addr %s520, 8
      %s522 = scalar_lea.vmem %s16, %s521
      %p523 = scmp.lt.s32.totalorder %s27, 1
      %s524 = scalar_select %p523, %s27, 1
      %s525 = smul.addr %s524, 16
      %s526 = smul.addr %s525, 8
      %s527 = scalar_lea.vmem %s0, %s526
      %p528 = scmp.lt.s32.totalorder %s27, 1
      %s529 = scalar_select %p528, %s27, 1
      %s530 = scalar_lea.vmem %s1, %s529
      %p531 = scmp.lt.s32.totalorder %s27, 1
      %s532 = scalar_select %p531, %s27, 1
      %s533 = smul.addr %s532, 16
      %s534 = smul.addr %s533, 8
      %s535 = scalar_lea.vmem %s16, %s534
      %v536 = vld [vmem:[%s527] sm:$0xff]
      %v537 = vld [vmem:[%s527 + $0x8] sm:$0xff]
      %v538 = vld [vmem:[%s527 + $0x10] sm:$0xff]
      %v539 = vld [vmem:[%s527 + $0x18] sm:$0xff]
      %v540 = vld [vmem:[%s527 + $0x20] sm:$0xff]
      %v541 = vld [vmem:[%s527 + $0x28] sm:$0xff]
      %v542 = vld [vmem:[%s527 + $0x30] sm:$0xff]
      %v543 = vld [vmem:[%s527 + $0x38] sm:$0xff]
      %v544 = vld [vmem:[%s527 + $0x40] sm:$0xff]
      %v545 = vld [vmem:[%s527 + $0x48] sm:$0xff]
      %v546 = vld [vmem:[%s527 + $0x50] sm:$0xff]
      %v547 = vld [vmem:[%s527 + $0x58] sm:$0xff]
      %v548 = vld [vmem:[%s527 + $0x60] sm:$0xff]
      %v549 = vld [vmem:[%s527 + $0x68] sm:$0xff]
      %v550 = vld [vmem:[%s527 + $0x70] sm:$0xff]
      %v551 = vld [vmem:[%s527 + $0x78] sm:$0xff]
      %v552 = vld [vmem:[%s2] sm:$0x1]
      %v553 = vld [vmem:[%s3] sm:$0x1]
      %554 = vadd.xlane.f32.xlu0 %v536
      %v555 = vpop.xlane.xlu0 %554
      %556 = vadd.xlane.f32.xlu0 %v537
      %v557 = vpop.xlane.xlu0 %556
      %558 = vadd.xlane.f32.xlu0 %v538
      %v559 = vpop.xlane.xlu0 %558
      %560 = vadd.xlane.f32.xlu0 %v539
      %v561 = vpop.xlane.xlu0 %560
      %562 = vadd.xlane.f32.xlu0 %v540
      %v563 = vpop.xlane.xlu0 %562
      %564 = vadd.xlane.f32.xlu0 %v541
      %v565 = vpop.xlane.xlu0 %564
      %566 = vadd.xlane.f32.xlu0 %v542
      %v567 = vpop.xlane.xlu0 %566
      %568 = vadd.xlane.f32.xlu0 %v543
      %v569 = vpop.xlane.xlu0 %568
      %570 = vadd.xlane.f32.xlu0 %v544
      %v571 = vpop.xlane.xlu0 %570
      %572 = vadd.xlane.f32.xlu0 %v545
      %v573 = vpop.xlane.xlu0 %572
      %574 = vadd.xlane.f32.xlu0 %v546
      %v575 = vpop.xlane.xlu0 %574
      %576 = vadd.xlane.f32.xlu0 %v547
      %v577 = vpop.xlane.xlu0 %576
      %578 = vadd.xlane.f32.xlu0 %v548
      %v579 = vpop.xlane.xlu0 %578
      %580 = vadd.xlane.f32.xlu0 %v549
      %v581 = vpop.xlane.xlu0 %580
      %582 = vadd.xlane.f32.xlu0 %v550
      %v583 = vpop.xlane.xlu0 %582
      %584 = vadd.xlane.f32.xlu0 %v551
      %v585 = vpop.xlane.xlu0 %584
      %v586 = vrcp.pop 128.0
      %v587 = vmul.f32 128.0, %v586
      %v588 = vsub.f32 1.0, %v587
      %v589 = vmul.f32 %v586, %v588
      %v590 = vadd.f32 %v586, %v589
      %vm591 = vweird.f32 %v586
      %v592 = vsel %vm591, %v586, %v590
      %v593 = vmul.f32 %v555, %v592
      %v594 = vmul.f32 %v557, %v592
      %v595 = vmul.f32 %v559, %v592
      %v596 = vmul.f32 %v561, %v592
      %v597 = vmul.f32 %v563, %v592
      %v598 = vmul.f32 %v565, %v592
      %v599 = vmul.f32 %v567, %v592
      %v600 = vmul.f32 %v569, %v592
      %v601 = vmul.f32 %v571, %v592
      %v602 = vmul.f32 %v573, %v592
      %v603 = vmul.f32 %v575, %v592
      %v604 = vmul.f32 %v577, %v592
      %v605 = vmul.f32 %v579, %v592
      %v606 = vmul.f32 %v581, %v592
      %v607 = vmul.f32 %v583, %v592
      %v608 = vmul.f32 %v585, %v592
      %v609 = vsub.f32 %v536, %v593
      %v610 = vsub.f32 %v537, %v594
      %v611 = vsub.f32 %v538, %v595
      %v612 = vsub.f32 %v539, %v596
      %v613 = vsub.f32 %v540, %v597
      %v614 = vsub.f32 %v541, %v598
      %v615 = vsub.f32 %v542, %v599
      %v616 = vsub.f32 %v543, %v600
      %v617 = vsub.f32 %v544, %v601
      %v618 = vsub.f32 %v545, %v602
      %v619 = vsub.f32 %v546, %v603
      %v620 = vsub.f32 %v547, %v604
      %v621 = vsub.f32 %v548, %v605
      %v622 = vsub.f32 %v549, %v606
      %v623 = vsub.f32 %v550, %v607
      %v624 = vsub.f32 %v551, %v608
      %v625 = vmul.f32 %v609, %v609
      %v626 = vmul.f32 %v610, %v610
      %v627 = vmul.f32 %v611, %v611
      %v628 = vmul.f32 %v612, %v612
      %v629 = vmul.f32 %v613, %v613
      %v630 = vmul.f32 %v614, %v614
      %v631 = vmul.f32 %v615, %v615
      %v632 = vmul.f32 %v616, %v616
      %v633 = vmul.f32 %v617, %v617
      %v634 = vmul.f32 %v618, %v618
      %v635 = vmul.f32 %v619, %v619
      %v636 = vmul.f32 %v620, %v620
      %v637 = vmul.f32 %v621, %v621
      %v638 = vmul.f32 %v622, %v622
      %v639 = vmul.f32 %v623, %v623
      %v640 = vmul.f32 %v624, %v624
      %641 = vadd.xlane.f32.xlu0 %v625
      %v642 = vpop.xlane.xlu0 %641
      %643 = vadd.xlane.f32.xlu0 %v626
      %v644 = vpop.xlane.xlu0 %643
      %645 = vadd.xlane.f32.xlu0 %v627
      %v646 = vpop.xlane.xlu0 %645
      %647 = vadd.xlane.f32.xlu0 %v628
      %v648 = vpop.xlane.xlu0 %647
      %649 = vadd.xlane.f32.xlu0 %v629
      %v650 = vpop.xlane.xlu0 %649
      %651 = vadd.xlane.f32.xlu0 %v630
      %v652 = vpop.xlane.xlu0 %651
      %653 = vadd.xlane.f32.xlu0 %v631
      %v654 = vpop.xlane.xlu0 %653
      %655 = vadd.xlane.f32.xlu0 %v632
      %v656 = vpop.xlane.xlu0 %655
      %657 = vadd.xlane.f32.xlu0 %v633
      %v658 = vpop.xlane.xlu0 %657
      %659 = vadd.xlane.f32.xlu0 %v634
      %v660 = vpop.xlane.xlu0 %659
      %661 = vadd.xlane.f32.xlu0 %v635
      %v662 = vpop.xlane.xlu0 %661
      %663 = vadd.xlane.f32.xlu0 %v636
      %v664 = vpop.xlane.xlu0 %663
      %665 = vadd.xlane.f32.xlu0 %v637
      %v666 = vpop.xlane.xlu0 %665
      %667 = vadd.xlane.f32.xlu0 %v638
      %v668 = vpop.xlane.xlu0 %667
      %669 = vadd.xlane.f32.xlu0 %v639
      %v670 = vpop.xlane.xlu0 %669
      %671 = vadd.xlane.f32.xlu0 %v640
      %v672 = vpop.xlane.xlu0 %671
      %v673 = vmul.f32 %v642, %v592
      %v674 = vmul.f32 %v644, %v592
      %v675 = vmul.f32 %v646, %v592
      %v676 = vmul.f32 %v648, %v592
      %v677 = vmul.f32 %v650, %v592
      %v678 = vmul.f32 %v652, %v592
      %v679 = vmul.f32 %v654, %v592
      %v680 = vmul.f32 %v656, %v592
      %v681 = vmul.f32 %v658, %v592
      %v682 = vmul.f32 %v660, %v592
      %v683 = vmul.f32 %v662, %v592
      %v684 = vmul.f32 %v664, %v592
      %v685 = vmul.f32 %v666, %v592
      %v686 = vmul.f32 %v668, %v592
      %v687 = vmul.f32 %v670, %v592
      %v688 = vmul.f32 %v672, %v592
      %v689 = vadd.f32 %v673, 1e-12
      %v690 = vadd.f32 %v674, 1e-12
      %v691 = vadd.f32 %v675, 1e-12
      %v692 = vadd.f32 %v676, 1e-12
      %v693 = vadd.f32 %v677, 1e-12
      %v694 = vadd.f32 %v678, 1e-12
      %v695 = vadd.f32 %v679, 1e-12
      %v696 = vadd.f32 %v680, 1e-12
      %v697 = vadd.f32 %v681, 1e-12
      %v698 = vadd.f32 %v682, 1e-12
      %v699 = vadd.f32 %v683, 1e-12
      %v700 = vadd.f32 %v684, 1e-12
      %v701 = vadd.f32 %v685, 1e-12
      %v702 = vadd.f32 %v686, 1e-12
      %v703 = vadd.f32 %v687, 1e-12
      %v704 = vadd.f32 %v688, 1e-12
      %v705 = vrsqrt.pop %v689
      %v706 = vmul.f32 %v705, %v689
      %v707 = vmul.f32 %v706, %v705
      %v708 = vmul.f32 0.5, %v707
      %v709 = vsub.f32 1.5, %v708
      %v710 = vmul.f32 %v705, %v709
      %vm711 = vweird.f32 %v689
      %vm712 = vweird.f32 %v705
      %vm713 = vmor %vm711, %vm712
      %v714 = vsel %vm713, %v705, %v710
      %v715 = vrsqrt.pop %v690
      %v716 = vmul.f32 %v715, %v690
      %v717 = vmul.f32 %v716, %v715
      %v718 = vmul.f32 0.5, %v717
      %v719 = vsub.f32 1.5, %v718
      %v720 = vmul.f32 %v715, %v719
      %vm721 = vweird.f32 %v690
      %vm722 = vweird.f32 %v715
      %vm723 = vmor %vm721, %vm722
      %v724 = vsel %vm723, %v715, %v720
      %v725 = vrsqrt.pop %v691
      %v726 = vmul.f32 %v725, %v691
      %v727 = vmul.f32 %v726, %v725
      %v728 = vmul.f32 0.5, %v727
      %v729 = vsub.f32 1.5, %v728
      %v730 = vmul.f32 %v725, %v729
      %vm731 = vweird.f32 %v691
      %vm732 = vweird.f32 %v725
      %vm733 = vmor %vm731, %vm732
      %v734 = vsel %vm733, %v725, %v730
      %v735 = vrsqrt.pop %v692
      %v736 = vmul.f32 %v735, %v692
      %v737 = vmul.f32 %v736, %v735
      %v738 = vmul.f32 0.5, %v737
      %v739 = vsub.f32 1.5, %v738
      %v740 = vmul.f32 %v735, %v739
      %vm741 = vweird.f32 %v692
      %vm742 = vweird.f32 %v735
      %vm743 = vmor %vm741, %vm742
      %v744 = vsel %vm743, %v735, %v740
      %v745 = vrsqrt.pop %v693
      %v746 = vmul.f32 %v745, %v693
      %v747 = vmul.f32 %v746, %v745
      %v748 = vmul.f32 0.5, %v747
      %v749 = vsub.f32 1.5, %v748
      %v750 = vmul.f32 %v745, %v749
      %vm751 = vweird.f32 %v693
      %vm752 = vweird.f32 %v745
      %vm753 = vmor %vm751, %vm752
      %v754 = vsel %vm753, %v745, %v750
      %v755 = vrsqrt.pop %v694
      %v756 = vmul.f32 %v755, %v694
      %v757 = vmul.f32 %v756, %v755
      %v758 = vmul.f32 0.5, %v757
      %v759 = vsub.f32 1.5, %v758
      %v760 = vmul.f32 %v755, %v759
      %vm761 = vweird.f32 %v694
      %vm762 = vweird.f32 %v755
      %vm763 = vmor %vm761, %vm762
      %v764 = vsel %vm763, %v755, %v760
      %v765 = vrsqrt.pop %v695
      %v766 = vmul.f32 %v765, %v695
      %v767 = vmul.f32 %v766, %v765
      %v768 = vmul.f32 0.5, %v767
      %v769 = vsub.f32 1.5, %v768
      %v770 = vmul.f32 %v765, %v769
      %vm771 = vweird.f32 %v695
      %vm772 = vweird.f32 %v765
      %vm773 = vmor %vm771, %vm772
      %v774 = vsel %vm773, %v765, %v770
      %v775 = vrsqrt.pop %v696
      %v776 = vmul.f32 %v775, %v696
      %v777 = vmul.f32 %v776, %v775
      %v778 = vmul.f32 0.5, %v777
      %v779 = vsub.f32 1.5, %v778
      %v780 = vmul.f32 %v775, %v779
      %vm781 = vweird.f32 %v696
      %vm782 = vweird.f32 %v775
      %vm783 = vmor %vm781, %vm782
      %v784 = vsel %vm783, %v775, %v780
      %v785 = vrsqrt.pop %v697
      %v786 = vmul.f32 %v785, %v697
      %v787 = vmul.f32 %v786, %v785
      %v788 = vmul.f32 0.5, %v787
      %v789 = vsub.f32 1.5, %v788
      %v790 = vmul.f32 %v785, %v789
      %vm791 = vweird.f32 %v697
      %vm792 = vweird.f32 %v785
      %vm793 = vmor %vm791, %vm792
      %v794 = vsel %vm793, %v785, %v790
      %v795 = vrsqrt.pop %v698
      %v796 = vmul.f32 %v795, %v698
      %v797 = vmul.f32 %v796, %v795
      %v798 = vmul.f32 0.5, %v797
      %v799 = vsub.f32 1.5, %v798
      %v800 = vmul.f32 %v795, %v799
      %vm801 = vweird.f32 %v698
      %vm802 = vweird.f32 %v795
      %vm803 = vmor %vm801, %vm802
      %v804 = vsel %vm803, %v795, %v800
      %v805 = vrsqrt.pop %v699
      %v806 = vmul.f32 %v805, %v699
      %v807 = vmul.f32 %v806, %v805
      %v808 = vmul.f32 0.5, %v807
      %v809 = vsub.f32 1.5, %v808
      %v810 = vmul.f32 %v805, %v809
      %vm811 = vweird.f32 %v699
      %vm812 = vweird.f32 %v805
      %vm813 = vmor %vm811, %vm812
      %v814 = vsel %vm813, %v805, %v810
      %v815 = vrsqrt.pop %v700
      %v816 = vmul.f32 %v815, %v700
      %v817 = vmul.f32 %v816, %v815
      %v818 = vmul.f32 0.5, %v817
      %v819 = vsub.f32 1.5, %v818
      %v820 = vmul.f32 %v815, %v819
      %vm821 = vweird.f32 %v700
      %vm822 = vweird.f32 %v815
      %vm823 = vmor %vm821, %vm822
      %v824 = vsel %vm823, %v815, %v820
      %v825 = vrsqrt.pop %v701
      %v826 = vmul.f32 %v825, %v701
      %v827 = vmul.f32 %v826, %v825
      %v828 = vmul.f32 0.5, %v827
      %v829 = vsub.f32 1.5, %v828
      %v830 = vmul.f32 %v825, %v829
      %vm831 = vweird.f32 %v701
      %vm832 = vweird.f32 %v825
      %vm833 = vmor %vm831, %vm832
      %v834 = vsel %vm833, %v825, %v830
      %v835 = vrsqrt.pop %v702
      %v836 = vmul.f32 %v835, %v702
      %v837 = vmul.f32 %v836, %v835
      %v838 = vmul.f32 0.5, %v837
      %v839 = vsub.f32 1.5, %v838
      %v840 = vmul.f32 %v835, %v839
      %vm841 = vweird.f32 %v702
      %vm842 = vweird.f32 %v835
      %vm843 = vmor %vm841, %vm842
      %v844 = vsel %vm843, %v835, %v840
      %v845 = vrsqrt.pop %v703
      %v846 = vmul.f32 %v845, %v703
      %v847 = vmul.f32 %v846, %v845
      %v848 = vmul.f32 0.5, %v847
      %v849 = vsub.f32 1.5, %v848
      %v850 = vmul.f32 %v845, %v849
      %vm851 = vweird.f32 %v703
      %vm852 = vweird.f32 %v845
      %vm853 = vmor %vm851, %vm852
      %v854 = vsel %vm853, %v845, %v850
      %v855 = vrsqrt.pop %v704
      %v856 = vmul.f32 %v855, %v704
      %v857 = vmul.f32 %v856, %v855
      %v858 = vmul.f32 0.5, %v857
      %v859 = vsub.f32 1.5, %v858
      %v860 = vmul.f32 %v855, %v859
      %vm861 = vweird.f32 %v704
      %vm862 = vweird.f32 %v855
      %vm863 = vmor %vm861, %vm862
      %v864 = vsel %vm863, %v855, %v860
      %v865 = vmul.f32 %v609, %v714
      %v866 = vmul.f32 %v610, %v724
      %v867 = vmul.f32 %v611, %v734
      %v868 = vmul.f32 %v612, %v744
      %v869 = vmul.f32 %v613, %v754
      %v870 = vmul.f32 %v614, %v764
      %v871 = vmul.f32 %v615, %v774
      %v872 = vmul.f32 %v616, %v784
      %v873 = vmul.f32 %v617, %v794
      %v874 = vmul.f32 %v618, %v804
      %v875 = vmul.f32 %v619, %v814
      %v876 = vmul.f32 %v620, %v824
      %v877 = vmul.f32 %v621, %v834
      %v878 = vmul.f32 %v622, %v844
      %v879 = vmul.f32 %v623, %v854
      %v880 = vmul.f32 %v624, %v864
      %v882 = vperm.slane %v552, 0
      %v884 = vmul.f32 %v865, %v882
      %v885 = vmul.f32 %v866, %v882
      %v886 = vmul.f32 %v867, %v882
      %v887 = vmul.f32 %v868, %v882
      %v888 = vmul.f32 %v869, %v882
      %v889 = vmul.f32 %v870, %v882
      %v890 = vmul.f32 %v871, %v882
      %v891 = vmul.f32 %v872, %v882
      %v892 = vmul.f32 %v873, %v882
      %v893 = vmul.f32 %v874, %v882
      %v894 = vmul.f32 %v875, %v882
      %v895 = vmul.f32 %v876, %v882
      %v896 = vmul.f32 %v877, %v882
      %v897 = vmul.f32 %v878, %v882
      %v898 = vmul.f32 %v879, %v882
      %v899 = vmul.f32 %v880, %v882
      %v901 = vperm.slane %v553, 0
      %v903 = vadd.f32 %v884, %v901
      %v904 = vadd.f32 %v885, %v901
      %v905 = vadd.f32 %v886, %v901
      %v906 = vadd.f32 %v887, %v901
      %v907 = vadd.f32 %v888, %v901
      %v908 = vadd.f32 %v889, %v901
      %v909 = vadd.f32 %v890, %v901
      %v910 = vadd.f32 %v891, %v901
      %v911 = vadd.f32 %v892, %v901
      %v912 = vadd.f32 %v893, %v901
      %v913 = vadd.f32 %v894, %v901
      %v914 = vadd.f32 %v895, %v901
      %v915 = vadd.f32 %v896, %v901
      %v916 = vadd.f32 %v897, %v901
      %v917 = vadd.f32 %v898, %v901
      %v918 = vadd.f32 %v899, %v901
      %v919 = vld [vmem:[%s530] sm:$0x1]
      %v920 = vpack.c.bf16 %v904, %v903
      %v921 = vpack.c.bf16 %v906, %v905
      %v922 = vpack.c.bf16 %v908, %v907
      %v923 = vpack.c.bf16 %v910, %v909
      %v924 = vpack.c.bf16 %v912, %v911
      %v925 = vpack.c.bf16 %v914, %v913
      %v926 = vpack.c.bf16 %v916, %v915
      %v927 = vpack.c.bf16 %v918, %v917
      %v928 = vld [vmem:[%s4] sm:$0xff]
      %v929 = vld [vmem:[%s4 + $0x8] sm:$0xf]
      %v930 = vld [vmem:[%s4 + $0xc] sm:$0xff]
      %v931 = vld [vmem:[%s4 + $0x14] sm:$0xf]
      %v932 = vld [vmem:[%s4 + $0x18] sm:$0xff]
      %v933 = vld [vmem:[%s4 + $0x20] sm:$0xf]
      %v934 = vld [vmem:[%s4 + $0x24] sm:$0xff]
      %v935 = vld [vmem:[%s4 + $0x2c] sm:$0xf]
      %v936 = vld [vmem:[%s4 + $0x30] sm:$0xff]
      %v937 = vld [vmem:[%s4 + $0x38] sm:$0xf]
      %v938 = vld [vmem:[%s4 + $0x3c] sm:$0xff]
      %v939 = vld [vmem:[%s4 + $0x44] sm:$0xf]
      %v940 = vld [vmem:[%s4 + $0x48] sm:$0xff]
      %v941 = vld [vmem:[%s4 + $0x50] sm:$0xf]
      %v942 = vld [vmem:[%s4 + $0x54] sm:$0xff]
      %v943 = vld [vmem:[%s4 + $0x5c] sm:$0xf]
      %v944 = vld [vmem:[%s4 + $0x60] sm:$0xff]
      %v945 = vld [vmem:[%s4 + $0x68] sm:$0xf]
      %v946 = vld [vmem:[%s4 + $0x6c] sm:$0xff]
      %v947 = vld [vmem:[%s4 + $0x74] sm:$0xf]
      %v948 = vld [vmem:[%s4 + $0x78] sm:$0xff]
      %v949 = vld [vmem:[%s4 + $0x80] sm:$0xf]
      %v950 = vld [vmem:[%s4 + $0x84] sm:$0xff]
      %v951 = vld [vmem:[%s4 + $0x8c] sm:$0xf]
      %v952 = vld [vmem:[%s4 + $0x90] sm:$0xff]
      %v953 = vld [vmem:[%s4 + $0x98] sm:$0xf]
      %v954 = vld [vmem:[%s4 + $0x9c] sm:$0xff]
      %v955 = vld [vmem:[%s4 + $0xa4] sm:$0xf]
      %v956 = vld [vmem:[%s4 + $0xa8] sm:$0xff]
      %v957 = vld [vmem:[%s4 + $0xb0] sm:$0xf]
      %v958 = vld [vmem:[%s4 + $0xb4] sm:$0xff]
      %v959 = vld [vmem:[%s4 + $0xbc] sm:$0xf]
      %v960 = vld [vmem:[%s5] sm:$0x7]
      %v962 = vperm.slane %v960, 0
      %v963 = vperm.slane %v960, 1
      %v964 = vperm.slane %v960, 2
      %v1000 = vunpack.c.l.b16 %v928
      %v1001 = vunpack.c.h.b16 %v928
      %v1002 = vunpack.c.l.b16 %v929
      %v1003 = vunpack.c.l.b16 %v930
      %v1004 = vunpack.c.h.b16 %v930
      %v1005 = vunpack.c.l.b16 %v931
      %v1006 = vunpack.c.l.b16 %v932
      %v1007 = vunpack.c.h.b16 %v932
      %v1008 = vunpack.c.l.b16 %v933
      %v1009 = vunpack.c.l.b16 %v934
      %v1010 = vunpack.c.h.b16 %v934
      %v1011 = vunpack.c.l.b16 %v935
      %v1012 = vunpack.c.l.b16 %v936
      %v1013 = vunpack.c.h.b16 %v936
      %v1014 = vunpack.c.l.b16 %v937
      %v1015 = vunpack.c.l.b16 %v938
      %v1016 = vunpack.c.h.b16 %v938
      %v1017 = vunpack.c.l.b16 %v939
      %v1018 = vunpack.c.l.b16 %v940
      %v1019 = vunpack.c.h.b16 %v940
      %v1020 = vunpack.c.l.b16 %v941
      %v1021 = vunpack.c.l.b16 %v942
      %v1022 = vunpack.c.h.b16 %v942
      %v1023 = vunpack.c.l.b16 %v943
      %v1024 = vunpack.c.l.b16 %v944
      %v1025 = vunpack.c.h.b16 %v944
      %v1026 = vunpack.c.l.b16 %v945
      %v1027 = vunpack.c.l.b16 %v946
      %v1028 = vunpack.c.h.b16 %v946
      %v1029 = vunpack.c.l.b16 %v947
      %v1030 = vunpack.c.l.b16 %v948
      %v1031 = vunpack.c.h.b16 %v948
      %v1032 = vunpack.c.l.b16 %v949
      %v1033 = vunpack.c.l.b16 %v950
      %v1034 = vunpack.c.h.b16 %v950
      %v1035 = vunpack.c.l.b16 %v951
      %v1036 = vunpack.c.l.b16 %v952
      %v1037 = vunpack.c.h.b16 %v952
      %v1038 = vunpack.c.l.b16 %v953
      %v1039 = vunpack.c.l.b16 %v954
      %v1040 = vunpack.c.h.b16 %v954
      %v1041 = vunpack.c.l.b16 %v955
      %v1042 = vunpack.c.l.b16 %v956
      %v1043 = vunpack.c.h.b16 %v956
      %v1044 = vunpack.c.l.b16 %v957
      %v1045 = vunpack.c.l.b16 %v958
      %v1046 = vunpack.c.h.b16 %v958
      %v1047 = vunpack.c.l.b16 %v959
      %v1048 = vpack.c.b16 %v1003, %v1000
      %v1049 = vpack.c.b16 %v1004, %v1001
      %v1050 = vpack.c.b16 %v1005, %v1002
      %v1051 = vpack.c.b16 %v1009, %v1006
      %v1052 = vpack.c.b16 %v1010, %v1007
      %v1053 = vpack.c.b16 %v1011, %v1008
      %v1054 = vpack.c.b16 %v1015, %v1012
      %v1055 = vpack.c.b16 %v1016, %v1013
      %v1056 = vpack.c.b16 %v1017, %v1014
      %v1057 = vpack.c.b16 %v1021, %v1018
      %v1058 = vpack.c.b16 %v1022, %v1019
      %v1059 = vpack.c.b16 %v1023, %v1020
      %v1060 = vpack.c.b16 %v1027, %v1024
      %v1061 = vpack.c.b16 %v1028, %v1025
      %v1062 = vpack.c.b16 %v1029, %v1026
      %v1063 = vpack.c.b16 %v1033, %v1030
      %v1064 = vpack.c.b16 %v1034, %v1031
      %v1065 = vpack.c.b16 %v1035, %v1032
      %v1066 = vpack.c.b16 %v1039, %v1036
      %v1067 = vpack.c.b16 %v1040, %v1037
      %v1068 = vpack.c.b16 %v1041, %v1038
      %v1069 = vpack.c.b16 %v1045, %v1042
      %v1070 = vpack.c.b16 %v1046, %v1043
      %v1071 = vpack.c.b16 %v1047, %v1044
      %1096 = vmatpush.bf16.msra.mxu0 %v1069
      %1097 = vmatpush.bf16.msra.mxu0 %v1066
      %1098 = vmatpush.bf16.msra.mxu0 %v1063
      %1099 = vmatpush.bf16.msra.mxu0 %v1060
      %1100 = vmatpush.bf16.msra.mxu0 %v1057
      %1101 = vmatpush.bf16.msra.mxu0 %v1054
      %1102 = vmatpush.bf16.msra.mxu0 %v1051
      %1103 = vmatpush.bf16.msra.mxu0 %v1048
      %1104 = vmatmul.bf16.gmra.mxu0 %v920
      %v1105 = vpop.f32.mrf.mxu0
      %v1106 = vadd.f32 %v962, %v1105
      %v1107 = vpop.f32.mrf.mxu0
      %v1108 = vadd.f32 %v962, %v1107
      %1109 = vmatmul.bf16.gmra.mxu0 %v921
      %v1110 = vpop.f32.mrf.mxu0
      %v1111 = vadd.f32 %v962, %v1110
      %v1112 = vpop.f32.mrf.mxu0
      %v1113 = vadd.f32 %v962, %v1112
      %1114 = vmatmul.bf16.gmra.mxu0 %v922
      %v1115 = vpop.f32.mrf.mxu0
      %v1116 = vadd.f32 %v962, %v1115
      %v1117 = vpop.f32.mrf.mxu0
      %v1118 = vadd.f32 %v962, %v1117
      %1119 = vmatmul.bf16.gmra.mxu0 %v923
      %v1120 = vpop.f32.mrf.mxu0
      %v1121 = vadd.f32 %v962, %v1120
      %v1122 = vpop.f32.mrf.mxu0
      %v1123 = vadd.f32 %v962, %v1122
      %1124 = vmatmul.bf16.gmra.mxu0 %v924
      %v1125 = vpop.f32.mrf.mxu0
      %v1126 = vadd.f32 %v962, %v1125
      %v1127 = vpop.f32.mrf.mxu0
      %v1128 = vadd.f32 %v962, %v1127
      %1129 = vmatmul.bf16.gmra.mxu0 %v925
      %v1130 = vpop.f32.mrf.mxu0
      %v1131 = vadd.f32 %v962, %v1130
      %v1132 = vpop.f32.mrf.mxu0
      %v1133 = vadd.f32 %v962, %v1132
      %1134 = vmatmul.bf16.gmra.mxu0 %v926
      %v1135 = vpop.f32.mrf.mxu0
      %v1136 = vadd.f32 %v962, %v1135
      %v1137 = vpop.f32.mrf.mxu0
      %v1138 = vadd.f32 %v962, %v1137
      %1139 = vmatmul.bf16.gmra.mxu0 %v927
      %v1140 = vpop.f32.mrf.mxu0
      %v1141 = vadd.f32 %v962, %v1140
      %v1142 = vpop.f32.mrf.mxu0
      %v1143 = vadd.f32 %v962, %v1142
      %1144 = vdwg.mxu0
      %1145 = vmatpush.bf16.msra.mxu0 %v1070
      %1146 = vmatpush.bf16.msra.mxu0 %v1067
      %1147 = vmatpush.bf16.msra.mxu0 %v1064
      %1148 = vmatpush.bf16.msra.mxu0 %v1061
      %1149 = vmatpush.bf16.msra.mxu0 %v1058
      %1150 = vmatpush.bf16.msra.mxu0 %v1055
      %1151 = vmatpush.bf16.msra.mxu0 %v1052
      %1152 = vmatpush.bf16.msra.mxu0 %v1049
      %1153 = vmatmul.bf16.gmra.mxu0 %v920
      %v1154 = vpop.f32.mrf.mxu0
      %v1155 = vadd.f32 %v963, %v1154
      %v1156 = vpop.f32.mrf.mxu0
      %v1157 = vadd.f32 %v963, %v1156
      %1158 = vmatmul.bf16.gmra.mxu0 %v921
      %v1159 = vpop.f32.mrf.mxu0
      %v1160 = vadd.f32 %v963, %v1159
      %v1161 = vpop.f32.mrf.mxu0
      %v1162 = vadd.f32 %v963, %v1161
      %1163 = vmatmul.bf16.gmra.mxu0 %v922
      %v1164 = vpop.f32.mrf.mxu0
      %v1165 = vadd.f32 %v963, %v1164
      %v1166 = vpop.f32.mrf.mxu0
      %v1167 = vadd.f32 %v963, %v1166
      %1168 = vmatmul.bf16.gmra.mxu0 %v923
      %v1169 = vpop.f32.mrf.mxu0
      %v1170 = vadd.f32 %v963, %v1169
      %v1171 = vpop.f32.mrf.mxu0
      %v1172 = vadd.f32 %v963, %v1171
      %1173 = vmatmul.bf16.gmra.mxu0 %v924
      %v1174 = vpop.f32.mrf.mxu0
      %v1175 = vadd.f32 %v963, %v1174
      %v1176 = vpop.f32.mrf.mxu0
      %v1177 = vadd.f32 %v963, %v1176
      %1178 = vmatmul.bf16.gmra.mxu0 %v925
      %v1179 = vpop.f32.mrf.mxu0
      %v1180 = vadd.f32 %v963, %v1179
      %v1181 = vpop.f32.mrf.mxu0
      %v1182 = vadd.f32 %v963, %v1181
      %1183 = vmatmul.bf16.gmra.mxu0 %v926
      %v1184 = vpop.f32.mrf.mxu0
      %v1185 = vadd.f32 %v963, %v1184
      %v1186 = vpop.f32.mrf.mxu0
      %v1187 = vadd.f32 %v963, %v1186
      %1188 = vmatmul.bf16.gmra.mxu0 %v927
      %v1189 = vpop.f32.mrf.mxu0
      %v1190 = vadd.f32 %v963, %v1189
      %v1191 = vpop.f32.mrf.mxu0
      %v1192 = vadd.f32 %v963, %v1191
      %1193 = vdwg.mxu0
      %1194 = vmatpush.bf16.msra.mxu0 %v1071
      %1195 = vmatpush.bf16.msra.mxu0 %v1068
      %1196 = vmatpush.bf16.msra.mxu0 %v1065
      %1197 = vmatpush.bf16.msra.mxu0 %v1062
      %1198 = vmatpush.bf16.msra.mxu0 %v1059
      %1199 = vmatpush.bf16.msra.mxu0 %v1056
      %1200 = vmatpush.bf16.msra.mxu0 %v1053
      %1201 = vmatpush.bf16.msra.mxu0 %v1050
      %1202 = vmatmul.bf16.gmra.mxu0 %v920
      %v1203 = vpop.f32.mrf.mxu0
      %v1204 = vadd.f32 %v964, %v1203
      %v1205 = vpop.f32.mrf.mxu0
      %v1206 = vadd.f32 %v964, %v1205
      %1207 = vmatmul.bf16.gmra.mxu0 %v921
      %v1208 = vpop.f32.mrf.mxu0
      %v1209 = vadd.f32 %v964, %v1208
      %v1210 = vpop.f32.mrf.mxu0
      %v1211 = vadd.f32 %v964, %v1210
      %1212 = vmatmul.bf16.gmra.mxu0 %v922
      %v1213 = vpop.f32.mrf.mxu0
      %v1214 = vadd.f32 %v964, %v1213
      %v1215 = vpop.f32.mrf.mxu0
      %v1216 = vadd.f32 %v964, %v1215
      %1217 = vmatmul.bf16.gmra.mxu0 %v923
      %v1218 = vpop.f32.mrf.mxu0
      %v1219 = vadd.f32 %v964, %v1218
      %v1220 = vpop.f32.mrf.mxu0
      %v1221 = vadd.f32 %v964, %v1220
      %1222 = vmatmul.bf16.gmra.mxu0 %v924
      %v1223 = vpop.f32.mrf.mxu0
      %v1224 = vadd.f32 %v964, %v1223
      %v1225 = vpop.f32.mrf.mxu0
      %v1226 = vadd.f32 %v964, %v1225
      %1227 = vmatmul.bf16.gmra.mxu0 %v925
      %v1228 = vpop.f32.mrf.mxu0
      %v1229 = vadd.f32 %v964, %v1228
      %v1230 = vpop.f32.mrf.mxu0
      %v1231 = vadd.f32 %v964, %v1230
      %1232 = vmatmul.bf16.gmra.mxu0 %v926
      %v1233 = vpop.f32.mrf.mxu0
      %v1234 = vadd.f32 %v964, %v1233
      %v1235 = vpop.f32.mrf.mxu0
      %v1236 = vadd.f32 %v964, %v1235
      %1237 = vmatmul.bf16.gmra.mxu0 %v927
      %v1238 = vpop.f32.mrf.mxu0
      %v1239 = vadd.f32 %v964, %v1238
      %v1240 = vpop.f32.mrf.mxu0
      %v1241 = vadd.f32 %v964, %v1240
      %1242 = vdwg.mxu0
      %v1243 = vpack.c.bf16 %v1108, %v1106
      %v1244 = vpack.c.bf16 %v1113, %v1111
      %v1245 = vpack.c.bf16 %v1118, %v1116
      %v1246 = vpack.c.bf16 %v1123, %v1121
      %v1247 = vpack.c.bf16 %v1128, %v1126
      %v1248 = vpack.c.bf16 %v1133, %v1131
      %v1249 = vpack.c.bf16 %v1138, %v1136
      %v1250 = vpack.c.bf16 %v1143, %v1141
      %v1251 = vpack.c.bf16 %v1157, %v1155
      %v1252 = vpack.c.bf16 %v1162, %v1160
      %v1253 = vpack.c.bf16 %v1167, %v1165
      %v1254 = vpack.c.bf16 %v1172, %v1170
      %v1255 = vpack.c.bf16 %v1177, %v1175
      %v1256 = vpack.c.bf16 %v1182, %v1180
      %v1257 = vpack.c.bf16 %v1187, %v1185
      %v1258 = vpack.c.bf16 %v1192, %v1190
      %v1259 = vpack.c.bf16 %v1206, %v1204
      %v1260 = vpack.c.bf16 %v1211, %v1209
      %v1261 = vpack.c.bf16 %v1216, %v1214
      %v1262 = vpack.c.bf16 %v1221, %v1219
      %v1263 = vpack.c.bf16 %v1226, %v1224
      %v1264 = vpack.c.bf16 %v1231, %v1229
      %v1265 = vpack.c.bf16 %v1236, %v1234
      %v1266 = vpack.c.bf16 %v1241, %v1239
      %vm1267 = vcmask 523264
      %v1269 = vsel %vm1267, %v1243, 0
      %v1272 = vsel %vm1267, %v1244, 0
      %v1275 = vsel %vm1267, %v1245, 0
      %v1278 = vsel %vm1267, %v1246, 0
      %v1281 = vsel %vm1267, %v1247, 0
      %v1284 = vsel %vm1267, %v1248, 0
      %v1287 = vsel %vm1267, %v1249, 0
      %v1290 = vsel %vm1267, %v1250, 0
      %v1293 = vsel %vm1267, %v1251, 0
      %v1296 = vsel %vm1267, %v1252, 0
      %v1299 = vsel %vm1267, %v1253, 0
      %v1302 = vsel %vm1267, %v1254, 0
      %v1305 = vsel %vm1267, %v1255, 0
      %v1308 = vsel %vm1267, %v1256, 0
      %v1311 = vsel %vm1267, %v1257, 0
      %v1314 = vsel %vm1267, %v1258, 0
      %1316 = vmatpush.bf16.xpose.msra.mxu0 %v1314
      %1317 = vmatpush.bf16.xpose.msra.mxu0 %v1311
      %1318 = vmatpush.bf16.xpose.msra.mxu0 %v1308
      %1319 = vmatpush.bf16.xpose.msra.mxu0 %v1305
      %1320 = vmatpush.bf16.xpose.msra.mxu0 %v1302
      %1321 = vmatpush.bf16.xpose.msra.mxu0 %v1299
      %1322 = vmatpush.bf16.xpose.msra.mxu0 %v1296
      %1323 = vmatpush.bf16.xpose.msra.mxu0 %v1293
      %1324 = vmatmul.bf16.gmra.mxu0 %v1269
      %v1325 = vpop.f32.mrf.mxu0
      %v1326 = vadd.f32 0.0, %v1325
      %v1327 = vpop.f32.mrf.mxu0
      %v1328 = vadd.f32 0.0, %v1327
      %1329 = vmatmul.bf16.gmra.mxu0 %v1272
      %v1330 = vpop.f32.mrf.mxu0
      %v1331 = vadd.f32 0.0, %v1330
      %v1332 = vpop.f32.mrf.mxu0
      %v1333 = vadd.f32 0.0, %v1332
      %1334 = vmatmul.bf16.gmra.mxu0 %v1275
      %v1335 = vpop.f32.mrf.mxu0
      %v1336 = vadd.f32 0.0, %v1335
      %v1337 = vpop.f32.mrf.mxu0
      %v1338 = vadd.f32 0.0, %v1337
      %1339 = vmatmul.bf16.gmra.mxu0 %v1278
      %v1340 = vpop.f32.mrf.mxu0
      %v1341 = vadd.f32 0.0, %v1340
      %v1342 = vpop.f32.mrf.mxu0
      %v1343 = vadd.f32 0.0, %v1342
      %1344 = vmatmul.bf16.gmra.mxu0 %v1281
      %v1345 = vpop.f32.mrf.mxu0
      %v1346 = vadd.f32 0.0, %v1345
      %v1347 = vpop.f32.mrf.mxu0
      %v1348 = vadd.f32 0.0, %v1347
      %1349 = vmatmul.bf16.gmra.mxu0 %v1284
      %v1350 = vpop.f32.mrf.mxu0
      %v1351 = vadd.f32 0.0, %v1350
      %v1352 = vpop.f32.mrf.mxu0
      %v1353 = vadd.f32 0.0, %v1352
      %1354 = vmatmul.bf16.gmra.mxu0 %v1287
      %v1355 = vpop.f32.mrf.mxu0
      %v1356 = vadd.f32 0.0, %v1355
      %v1357 = vpop.f32.mrf.mxu0
      %v1358 = vadd.f32 0.0, %v1357
      %1359 = vmatmul.bf16.gmra.mxu0 %v1290
      %v1360 = vpop.f32.mrf.mxu0
      %v1361 = vadd.f32 0.0, %v1360
      %v1362 = vpop.f32.mrf.mxu0
      %v1363 = vadd.f32 0.0, %v1362
      %1364 = vdwg.mxu0
      %v1365 = vmul.f32 %v1326, 0.125
      %v1366 = vmul.f32 %v1328, 0.125
      %v1367 = vmul.f32 %v1331, 0.125
      %v1368 = vmul.f32 %v1333, 0.125
      %v1369 = vmul.f32 %v1336, 0.125
      %v1370 = vmul.f32 %v1338, 0.125
      %v1371 = vmul.f32 %v1341, 0.125
      %v1372 = vmul.f32 %v1343, 0.125
      %v1373 = vmul.f32 %v1346, 0.125
      %v1374 = vmul.f32 %v1348, 0.125
      %v1375 = vmul.f32 %v1351, 0.125
      %v1376 = vmul.f32 %v1353, 0.125
      %v1377 = vmul.f32 %v1356, 0.125
      %v1378 = vmul.f32 %v1358, 0.125
      %v1379 = vmul.f32 %v1361, 0.125
      %v1380 = vmul.f32 %v1363, 0.125
      %v1382 = vperm.slane %v919, 0
      %v1384 = vadd.f32 %v1365, %v1382
      %v1385 = vadd.f32 %v1366, %v1382
      %v1386 = vadd.f32 %v1367, %v1382
      %v1387 = vadd.f32 %v1368, %v1382
      %v1388 = vadd.f32 %v1369, %v1382
      %v1389 = vadd.f32 %v1370, %v1382
      %v1390 = vadd.f32 %v1371, %v1382
      %v1391 = vadd.f32 %v1372, %v1382
      %v1392 = vadd.f32 %v1373, %v1382
      %v1393 = vadd.f32 %v1374, %v1382
      %v1394 = vadd.f32 %v1375, %v1382
      %v1395 = vadd.f32 %v1376, %v1382
      %v1396 = vadd.f32 %v1377, %v1382
      %v1397 = vadd.f32 %v1378, %v1382
      %v1398 = vadd.f32 %v1379, %v1382
      %v1399 = vadd.f32 %v1380, %v1382
      %1400 = vmax.xlane.f32.xlu0 %v1384
      %v1401 = vpop.xlane.xlu0 %1400
      %1402 = vmax.xlane.f32.xlu0 %v1385
      %v1403 = vpop.xlane.xlu0 %1402
      %1404 = vmax.xlane.f32.xlu0 %v1386
      %v1405 = vpop.xlane.xlu0 %1404
      %1406 = vmax.xlane.f32.xlu0 %v1387
      %v1407 = vpop.xlane.xlu0 %1406
      %1408 = vmax.xlane.f32.xlu0 %v1388
      %v1409 = vpop.xlane.xlu0 %1408
      %1410 = vmax.xlane.f32.xlu0 %v1389
      %v1411 = vpop.xlane.xlu0 %1410
      %1412 = vmax.xlane.f32.xlu0 %v1390
      %v1413 = vpop.xlane.xlu0 %1412
      %1414 = vmax.xlane.f32.xlu0 %v1391
      %v1415 = vpop.xlane.xlu0 %1414
      %1416 = vmax.xlane.f32.xlu0 %v1392
      %v1417 = vpop.xlane.xlu0 %1416
      %1418 = vmax.xlane.f32.xlu0 %v1393
      %v1419 = vpop.xlane.xlu0 %1418
      %1420 = vmax.xlane.f32.xlu0 %v1394
      %v1421 = vpop.xlane.xlu0 %1420
      %1422 = vmax.xlane.f32.xlu0 %v1395
      %v1423 = vpop.xlane.xlu0 %1422
      %1424 = vmax.xlane.f32.xlu0 %v1396
      %v1425 = vpop.xlane.xlu0 %1424
      %1426 = vmax.xlane.f32.xlu0 %v1397
      %v1427 = vpop.xlane.xlu0 %1426
      %1428 = vmax.xlane.f32.xlu0 %v1398
      %v1429 = vpop.xlane.xlu0 %1428
      %1430 = vmax.xlane.f32.xlu0 %v1399
      %v1431 = vpop.xlane.xlu0 %1430
      %v1432 = vsub.f32 %v1384, %v1401
      %v1433 = vsub.f32 %v1385, %v1403
      %v1434 = vsub.f32 %v1386, %v1405
      %v1435 = vsub.f32 %v1387, %v1407
      %v1436 = vsub.f32 %v1388, %v1409
      %v1437 = vsub.f32 %v1389, %v1411
      %v1438 = vsub.f32 %v1390, %v1413
      %v1439 = vsub.f32 %v1391, %v1415
      %v1440 = vsub.f32 %v1392, %v1417
      %v1441 = vsub.f32 %v1393, %v1419
      %v1442 = vsub.f32 %v1394, %v1421
      %v1443 = vsub.f32 %v1395, %v1423
      %v1444 = vsub.f32 %v1396, %v1425
      %v1445 = vsub.f32 %v1397, %v1427
      %v1446 = vsub.f32 %v1398, %v1429
      %v1447 = vsub.f32 %v1399, %v1431
      %v1448 = vmul.f32 %v1432, 1.442695
      %v1449 = vpow.pop %v1448
      %v1450 = vmul.f32 %v1433, 1.442695
      %v1451 = vpow.pop %v1450
      %v1452 = vmul.f32 %v1434, 1.442695
      %v1453 = vpow.pop %v1452
      %v1454 = vmul.f32 %v1435, 1.442695
      %v1455 = vpow.pop %v1454
      %v1456 = vmul.f32 %v1436, 1.442695
      %v1457 = vpow.pop %v1456
      %v1458 = vmul.f32 %v1437, 1.442695
      %v1459 = vpow.pop %v1458
      %v1460 = vmul.f32 %v1438, 1.442695
      %v1461 = vpow.pop %v1460
      %v1462 = vmul.f32 %v1439, 1.442695
      %v1463 = vpow.pop %v1462
      %v1464 = vmul.f32 %v1440, 1.442695
      %v1465 = vpow.pop %v1464
      %v1466 = vmul.f32 %v1441, 1.442695
      %v1467 = vpow.pop %v1466
      %v1468 = vmul.f32 %v1442, 1.442695
      %v1469 = vpow.pop %v1468
      %v1470 = vmul.f32 %v1443, 1.442695
      %v1471 = vpow.pop %v1470
      %v1472 = vmul.f32 %v1444, 1.442695
      %v1473 = vpow.pop %v1472
      %v1474 = vmul.f32 %v1445, 1.442695
      %v1475 = vpow.pop %v1474
      %v1476 = vmul.f32 %v1446, 1.442695
      %v1477 = vpow.pop %v1476
      %v1478 = vmul.f32 %v1447, 1.442695
      %v1479 = vpow.pop %v1478
      %1480 = vadd.xlane.f32.xlu0 %v1449
      %v1481 = vpop.xlane.xlu0 %1480
      %1482 = vadd.xlane.f32.xlu0 %v1451
      %v1483 = vpop.xlane.xlu0 %1482
      %1484 = vadd.xlane.f32.xlu0 %v1453
      %v1485 = vpop.xlane.xlu0 %1484
      %1486 = vadd.xlane.f32.xlu0 %v1455
      %v1487 = vpop.xlane.xlu0 %1486
      %1488 = vadd.xlane.f32.xlu0 %v1457
      %v1489 = vpop.xlane.xlu0 %1488
      %1490 = vadd.xlane.f32.xlu0 %v1459
      %v1491 = vpop.xlane.xlu0 %1490
      %1492 = vadd.xlane.f32.xlu0 %v1461
      %v1493 = vpop.xlane.xlu0 %1492
      %1494 = vadd.xlane.f32.xlu0 %v1463
      %v1495 = vpop.xlane.xlu0 %1494
      %1496 = vadd.xlane.f32.xlu0 %v1465
      %v1497 = vpop.xlane.xlu0 %1496
      %1498 = vadd.xlane.f32.xlu0 %v1467
      %v1499 = vpop.xlane.xlu0 %1498
      %1500 = vadd.xlane.f32.xlu0 %v1469
      %v1501 = vpop.xlane.xlu0 %1500
      %1502 = vadd.xlane.f32.xlu0 %v1471
      %v1503 = vpop.xlane.xlu0 %1502
      %1504 = vadd.xlane.f32.xlu0 %v1473
      %v1505 = vpop.xlane.xlu0 %1504
      %1506 = vadd.xlane.f32.xlu0 %v1475
      %v1507 = vpop.xlane.xlu0 %1506
      %1508 = vadd.xlane.f32.xlu0 %v1477
      %v1509 = vpop.xlane.xlu0 %1508
      %1510 = vadd.xlane.f32.xlu0 %v1479
      %v1511 = vpop.xlane.xlu0 %1510
      %v1512 = vrcp.pop %v1481
      %v1513 = vrcp.pop %v1483
      %v1514 = vrcp.pop %v1485
      %v1515 = vrcp.pop %v1487
      %v1516 = vrcp.pop %v1489
      %v1517 = vrcp.pop %v1491
      %v1518 = vrcp.pop %v1493
      %v1519 = vrcp.pop %v1495
      %v1520 = vrcp.pop %v1497
      %v1521 = vrcp.pop %v1499
      %v1522 = vrcp.pop %v1501
      %v1523 = vrcp.pop %v1503
      %v1524 = vrcp.pop %v1505
      %v1525 = vrcp.pop %v1507
      %v1526 = vrcp.pop %v1509
      %v1527 = vrcp.pop %v1511
      %v1528 = vmul.f32 %v1449, %v1512
      %v1529 = vmul.f32 %v1451, %v1513
      %v1530 = vmul.f32 %v1453, %v1514
      %v1531 = vmul.f32 %v1455, %v1515
      %v1532 = vmul.f32 %v1457, %v1516
      %v1533 = vmul.f32 %v1459, %v1517
      %v1534 = vmul.f32 %v1461, %v1518
      %v1535 = vmul.f32 %v1463, %v1519
      %v1536 = vmul.f32 %v1465, %v1520
      %v1537 = vmul.f32 %v1467, %v1521
      %v1538 = vmul.f32 %v1469, %v1522
      %v1539 = vmul.f32 %v1471, %v1523
      %v1540 = vmul.f32 %v1473, %v1524
      %v1541 = vmul.f32 %v1475, %v1525
      %v1542 = vmul.f32 %v1477, %v1526
      %v1543 = vmul.f32 %v1479, %v1527
      %v1544 = vpack.c.bf16 %v1529, %v1528
      %v1545 = vpack.c.bf16 %v1531, %v1530
      %v1546 = vpack.c.bf16 %v1533, %v1532
      %v1547 = vpack.c.bf16 %v1535, %v1534
      %v1548 = vpack.c.bf16 %v1537, %v1536
      %v1549 = vpack.c.bf16 %v1539, %v1538
      %v1550 = vpack.c.bf16 %v1541, %v1540
      %v1551 = vpack.c.bf16 %v1543, %v1542
      %1552 = vmatpush.bf16.msra.mxu0 %v1266
      %1553 = vmatpush.bf16.msra.mxu0 %v1265
      %1554 = vmatpush.bf16.msra.mxu0 %v1264
      %1555 = vmatpush.bf16.msra.mxu0 %v1263
      %1556 = vmatpush.bf16.msra.mxu0 %v1262
      %1557 = vmatpush.bf16.msra.mxu0 %v1261
      %1558 = vmatpush.bf16.msra.mxu0 %v1260
      %1559 = vmatpush.bf16.msra.mxu0 %v1259
      %1560 = vmatmul.bf16.gmra.mxu0 %v1544
      %v1561 = vpop.f32.mrf.mxu0
      %v1562 = vadd.f32 0.0, %v1561
      %v1563 = vpop.f32.mrf.mxu0
      %v1564 = vadd.f32 0.0, %v1563
      %1565 = vmatmul.bf16.gmra.mxu0 %v1545
      %v1566 = vpop.f32.mrf.mxu0
      %v1567 = vadd.f32 0.0, %v1566
      %v1568 = vpop.f32.mrf.mxu0
      %v1569 = vadd.f32 0.0, %v1568
      %1570 = vmatmul.bf16.gmra.mxu0 %v1546
      %v1571 = vpop.f32.mrf.mxu0
      %v1572 = vadd.f32 0.0, %v1571
      %v1573 = vpop.f32.mrf.mxu0
      %v1574 = vadd.f32 0.0, %v1573
      %1575 = vmatmul.bf16.gmra.mxu0 %v1547
      %v1576 = vpop.f32.mrf.mxu0
      %v1577 = vadd.f32 0.0, %v1576
      %v1578 = vpop.f32.mrf.mxu0
      %v1579 = vadd.f32 0.0, %v1578
      %1580 = vmatmul.bf16.gmra.mxu0 %v1548
      %v1581 = vpop.f32.mrf.mxu0
      %v1582 = vadd.f32 0.0, %v1581
      %v1583 = vpop.f32.mrf.mxu0
      %v1584 = vadd.f32 0.0, %v1583
      %1585 = vmatmul.bf16.gmra.mxu0 %v1549
      %v1586 = vpop.f32.mrf.mxu0
      %v1587 = vadd.f32 0.0, %v1586
      %v1588 = vpop.f32.mrf.mxu0
      %v1589 = vadd.f32 0.0, %v1588
      %1590 = vmatmul.bf16.gmra.mxu0 %v1550
      %v1591 = vpop.f32.mrf.mxu0
      %v1592 = vadd.f32 0.0, %v1591
      %v1593 = vpop.f32.mrf.mxu0
      %v1594 = vadd.f32 0.0, %v1593
      %1595 = vmatmul.bf16.gmra.mxu0 %v1551
      %v1596 = vpop.f32.mrf.mxu0
      %v1597 = vadd.f32 0.0, %v1596
      %v1598 = vpop.f32.mrf.mxu0
      %v1599 = vadd.f32 0.0, %v1598
      %1600 = vdwg.mxu0
      %1609 = vrot.lane.b32.xlu0 %v1243, 64
      %v1610 = vpop.permute.xlu0 %1609
      %1611 = vrot.lane.b32.xlu0 %v1244, 64
      %v1612 = vpop.permute.xlu0 %1611
      %1613 = vrot.lane.b32.xlu0 %v1245, 64
      %v1614 = vpop.permute.xlu0 %1613
      %1615 = vrot.lane.b32.xlu0 %v1246, 64
      %v1616 = vpop.permute.xlu0 %1615
      %1617 = vrot.lane.b32.xlu0 %v1247, 64
      %v1618 = vpop.permute.xlu0 %1617
      %1619 = vrot.lane.b32.xlu0 %v1248, 64
      %v1620 = vpop.permute.xlu0 %1619
      %1621 = vrot.lane.b32.xlu0 %v1249, 64
      %v1622 = vpop.permute.xlu0 %1621
      %1623 = vrot.lane.b32.xlu0 %v1250, 64
      %v1624 = vpop.permute.xlu0 %1623
      %1633 = vrot.lane.b32.xlu0 %v1251, 64
      %v1634 = vpop.permute.xlu0 %1633
      %1635 = vrot.lane.b32.xlu0 %v1252, 64
      %v1636 = vpop.permute.xlu0 %1635
      %1637 = vrot.lane.b32.xlu0 %v1253, 64
      %v1638 = vpop.permute.xlu0 %1637
      %1639 = vrot.lane.b32.xlu0 %v1254, 64
      %v1640 = vpop.permute.xlu0 %1639
      %1641 = vrot.lane.b32.xlu0 %v1255, 64
      %v1642 = vpop.permute.xlu0 %1641
      %1643 = vrot.lane.b32.xlu0 %v1256, 64
      %v1644 = vpop.permute.xlu0 %1643
      %1645 = vrot.lane.b32.xlu0 %v1257, 64
      %v1646 = vpop.permute.xlu0 %1645
      %1647 = vrot.lane.b32.xlu0 %v1258, 64
      %v1648 = vpop.permute.xlu0 %1647
      %v1650 = vsel %vm1267, %v1610, 0
      %v1653 = vsel %vm1267, %v1612, 0
      %v1656 = vsel %vm1267, %v1614, 0
      %v1659 = vsel %vm1267, %v1616, 0
      %v1662 = vsel %vm1267, %v1618, 0
      %v1665 = vsel %vm1267, %v1620, 0
      %v1668 = vsel %vm1267, %v1622, 0
      %v1671 = vsel %vm1267, %v1624, 0
      %v1674 = vsel %vm1267, %v1634, 0
      %v1677 = vsel %vm1267, %v1636, 0
      %v1680 = vsel %vm1267, %v1638, 0
      %v1683 = vsel %vm1267, %v1640, 0
      %v1686 = vsel %vm1267, %v1642, 0
      %v1689 = vsel %vm1267, %v1644, 0
      %v1692 = vsel %vm1267, %v1646, 0
      %v1695 = vsel %vm1267, %v1648, 0
      %1697 = vmatpush.bf16.xpose.msra.mxu0 %v1695
      %1698 = vmatpush.bf16.xpose.msra.mxu0 %v1692
      %1699 = vmatpush.bf16.xpose.msra.mxu0 %v1689
      %1700 = vmatpush.bf16.xpose.msra.mxu0 %v1686
      %1701 = vmatpush.bf16.xpose.msra.mxu0 %v1683
      %1702 = vmatpush.bf16.xpose.msra.mxu0 %v1680
      %1703 = vmatpush.bf16.xpose.msra.mxu0 %v1677
      %1704 = vmatpush.bf16.xpose.msra.mxu0 %v1674
      %1705 = vmatmul.bf16.gmra.mxu0 %v1650
      %v1706 = vpop.f32.mrf.mxu0
      %v1707 = vadd.f32 0.0, %v1706
      %v1708 = vpop.f32.mrf.mxu0
      %v1709 = vadd.f32 0.0, %v1708
      %1710 = vmatmul.bf16.gmra.mxu0 %v1653
      %v1711 = vpop.f32.mrf.mxu0
      %v1712 = vadd.f32 0.0, %v1711
      %v1713 = vpop.f32.mrf.mxu0
      %v1714 = vadd.f32 0.0, %v1713
      %1715 = vmatmul.bf16.gmra.mxu0 %v1656
      %v1716 = vpop.f32.mrf.mxu0
      %v1717 = vadd.f32 0.0, %v1716
      %v1718 = vpop.f32.mrf.mxu0
      %v1719 = vadd.f32 0.0, %v1718
      %1720 = vmatmul.bf16.gmra.mxu0 %v1659
      %v1721 = vpop.f32.mrf.mxu0
      %v1722 = vadd.f32 0.0, %v1721
      %v1723 = vpop.f32.mrf.mxu0
      %v1724 = vadd.f32 0.0, %v1723
      %1725 = vmatmul.bf16.gmra.mxu0 %v1662
      %v1726 = vpop.f32.mrf.mxu0
      %v1727 = vadd.f32 0.0, %v1726
      %v1728 = vpop.f32.mrf.mxu0
      %v1729 = vadd.f32 0.0, %v1728
      %1730 = vmatmul.bf16.gmra.mxu0 %v1665
      %v1731 = vpop.f32.mrf.mxu0
      %v1732 = vadd.f32 0.0, %v1731
      %v1733 = vpop.f32.mrf.mxu0
      %v1734 = vadd.f32 0.0, %v1733
      %1735 = vmatmul.bf16.gmra.mxu0 %v1668
      %v1736 = vpop.f32.mrf.mxu0
      %v1737 = vadd.f32 0.0, %v1736
      %v1738 = vpop.f32.mrf.mxu0
      %v1739 = vadd.f32 0.0, %v1738
      %1740 = vmatmul.bf16.gmra.mxu0 %v1671
      %v1741 = vpop.f32.mrf.mxu0
      %v1742 = vadd.f32 0.0, %v1741
      %v1743 = vpop.f32.mrf.mxu0
      %v1744 = vadd.f32 0.0, %v1743
      %1745 = vdwg.mxu0
      %v1746 = vmul.f32 %v1707, 0.125
      %v1747 = vmul.f32 %v1709, 0.125
      %v1748 = vmul.f32 %v1712, 0.125
      %v1749 = vmul.f32 %v1714, 0.125
      %v1750 = vmul.f32 %v1717, 0.125
      %v1751 = vmul.f32 %v1719, 0.125
      %v1752 = vmul.f32 %v1722, 0.125
      %v1753 = vmul.f32 %v1724, 0.125
      %v1754 = vmul.f32 %v1727, 0.125
      %v1755 = vmul.f32 %v1729, 0.125
      %v1756 = vmul.f32 %v1732, 0.125
      %v1757 = vmul.f32 %v1734, 0.125
      %v1758 = vmul.f32 %v1737, 0.125
      %v1759 = vmul.f32 %v1739, 0.125
      %v1760 = vmul.f32 %v1742, 0.125
      %v1761 = vmul.f32 %v1744, 0.125
      %v1762 = vadd.f32 %v1746, %v1382
      %v1763 = vadd.f32 %v1747, %v1382
      %v1764 = vadd.f32 %v1748, %v1382
      %v1765 = vadd.f32 %v1749, %v1382
      %v1766 = vadd.f32 %v1750, %v1382
      %v1767 = vadd.f32 %v1751, %v1382
      %v1768 = vadd.f32 %v1752, %v1382
      %v1769 = vadd.f32 %v1753, %v1382
      %v1770 = vadd.f32 %v1754, %v1382
      %v1771 = vadd.f32 %v1755, %v1382
      %v1772 = vadd.f32 %v1756, %v1382
      %v1773 = vadd.f32 %v1757, %v1382
      %v1774 = vadd.f32 %v1758, %v1382
      %v1775 = vadd.f32 %v1759, %v1382
      %v1776 = vadd.f32 %v1760, %v1382
      %v1777 = vadd.f32 %v1761, %v1382
      %1778 = vmax.xlane.f32.xlu0 %v1762
      %v1779 = vpop.xlane.xlu0 %1778
      %1780 = vmax.xlane.f32.xlu0 %v1763
      %v1781 = vpop.xlane.xlu0 %1780
      %1782 = vmax.xlane.f32.xlu0 %v1764
      %v1783 = vpop.xlane.xlu0 %1782
      %1784 = vmax.xlane.f32.xlu0 %v1765
      %v1785 = vpop.xlane.xlu0 %1784
      %1786 = vmax.xlane.f32.xlu0 %v1766
      %v1787 = vpop.xlane.xlu0 %1786
      %1788 = vmax.xlane.f32.xlu0 %v1767
      %v1789 = vpop.xlane.xlu0 %1788
      %1790 = vmax.xlane.f32.xlu0 %v1768
      %v1791 = vpop.xlane.xlu0 %1790
      %1792 = vmax.xlane.f32.xlu0 %v1769
      %v1793 = vpop.xlane.xlu0 %1792
      %1794 = vmax.xlane.f32.xlu0 %v1770
      %v1795 = vpop.xlane.xlu0 %1794
      %1796 = vmax.xlane.f32.xlu0 %v1771
      %v1797 = vpop.xlane.xlu0 %1796
      %1798 = vmax.xlane.f32.xlu0 %v1772
      %v1799 = vpop.xlane.xlu0 %1798
      %1800 = vmax.xlane.f32.xlu0 %v1773
      %v1801 = vpop.xlane.xlu0 %1800
      %1802 = vmax.xlane.f32.xlu0 %v1774
      %v1803 = vpop.xlane.xlu0 %1802
      %1804 = vmax.xlane.f32.xlu0 %v1775
      %v1805 = vpop.xlane.xlu0 %1804
      %1806 = vmax.xlane.f32.xlu0 %v1776
      %v1807 = vpop.xlane.xlu0 %1806
      %1808 = vmax.xlane.f32.xlu0 %v1777
      %v1809 = vpop.xlane.xlu0 %1808
      %v1810 = vsub.f32 %v1762, %v1779
      %v1811 = vsub.f32 %v1763, %v1781
      %v1812 = vsub.f32 %v1764, %v1783
      %v1813 = vsub.f32 %v1765, %v1785
      %v1814 = vsub.f32 %v1766, %v1787
      %v1815 = vsub.f32 %v1767, %v1789
      %v1816 = vsub.f32 %v1768, %v1791
      %v1817 = vsub.f32 %v1769, %v1793
      %v1818 = vsub.f32 %v1770, %v1795
      %v1819 = vsub.f32 %v1771, %v1797
      %v1820 = vsub.f32 %v1772, %v1799
      %v1821 = vsub.f32 %v1773, %v1801
      %v1822 = vsub.f32 %v1774, %v1803
      %v1823 = vsub.f32 %v1775, %v1805
      %v1824 = vsub.f32 %v1776, %v1807
      %v1825 = vsub.f32 %v1777, %v1809
      %v1826 = vmul.f32 %v1810, 1.442695
      %v1827 = vpow.pop %v1826
      %v1828 = vmul.f32 %v1811, 1.442695
      %v1829 = vpow.pop %v1828
      %v1830 = vmul.f32 %v1812, 1.442695
      %v1831 = vpow.pop %v1830
      %v1832 = vmul.f32 %v1813, 1.442695
      %v1833 = vpow.pop %v1832
      %v1834 = vmul.f32 %v1814, 1.442695
      %v1835 = vpow.pop %v1834
      %v1836 = vmul.f32 %v1815, 1.442695
      %v1837 = vpow.pop %v1836
      %v1838 = vmul.f32 %v1816, 1.442695
      %v1839 = vpow.pop %v1838
      %v1840 = vmul.f32 %v1817, 1.442695
      %v1841 = vpow.pop %v1840
      %v1842 = vmul.f32 %v1818, 1.442695
      %v1843 = vpow.pop %v1842
      %v1844 = vmul.f32 %v1819, 1.442695
      %v1845 = vpow.pop %v1844
      %v1846 = vmul.f32 %v1820, 1.442695
      %v1847 = vpow.pop %v1846
      %v1848 = vmul.f32 %v1821, 1.442695
      %v1849 = vpow.pop %v1848
      %v1850 = vmul.f32 %v1822, 1.442695
      %v1851 = vpow.pop %v1850
      %v1852 = vmul.f32 %v1823, 1.442695
      %v1853 = vpow.pop %v1852
      %v1854 = vmul.f32 %v1824, 1.442695
      %v1855 = vpow.pop %v1854
      %v1856 = vmul.f32 %v1825, 1.442695
      %v1857 = vpow.pop %v1856
      %1858 = vadd.xlane.f32.xlu0 %v1827
      %v1859 = vpop.xlane.xlu0 %1858
      %1860 = vadd.xlane.f32.xlu0 %v1829
      %v1861 = vpop.xlane.xlu0 %1860
      %1862 = vadd.xlane.f32.xlu0 %v1831
      %v1863 = vpop.xlane.xlu0 %1862
      %1864 = vadd.xlane.f32.xlu0 %v1833
      %v1865 = vpop.xlane.xlu0 %1864
      %1866 = vadd.xlane.f32.xlu0 %v1835
      %v1867 = vpop.xlane.xlu0 %1866
      %1868 = vadd.xlane.f32.xlu0 %v1837
      %v1869 = vpop.xlane.xlu0 %1868
      %1870 = vadd.xlane.f32.xlu0 %v1839
      %v1871 = vpop.xlane.xlu0 %1870
      %1872 = vadd.xlane.f32.xlu0 %v1841
      %v1873 = vpop.xlane.xlu0 %1872
      %1874 = vadd.xlane.f32.xlu0 %v1843
      %v1875 = vpop.xlane.xlu0 %1874
      %1876 = vadd.xlane.f32.xlu0 %v1845
      %v1877 = vpop.xlane.xlu0 %1876
      %1878 = vadd.xlane.f32.xlu0 %v1847
      %v1879 = vpop.xlane.xlu0 %1878
      %1880 = vadd.xlane.f32.xlu0 %v1849
      %v1881 = vpop.xlane.xlu0 %1880
      %1882 = vadd.xlane.f32.xlu0 %v1851
      %v1883 = vpop.xlane.xlu0 %1882
      %1884 = vadd.xlane.f32.xlu0 %v1853
      %v1885 = vpop.xlane.xlu0 %1884
      %1886 = vadd.xlane.f32.xlu0 %v1855
      %v1887 = vpop.xlane.xlu0 %1886
      %1888 = vadd.xlane.f32.xlu0 %v1857
      %v1889 = vpop.xlane.xlu0 %1888
      %v1890 = vrcp.pop %v1859
      %v1891 = vrcp.pop %v1861
      %v1892 = vrcp.pop %v1863
      %v1893 = vrcp.pop %v1865
      %v1894 = vrcp.pop %v1867
      %v1895 = vrcp.pop %v1869
      %v1896 = vrcp.pop %v1871
      %v1897 = vrcp.pop %v1873
      %v1898 = vrcp.pop %v1875
      %v1899 = vrcp.pop %v1877
      %v1900 = vrcp.pop %v1879
      %v1901 = vrcp.pop %v1881
      %v1902 = vrcp.pop %v1883
      %v1903 = vrcp.pop %v1885
      %v1904 = vrcp.pop %v1887
      %v1905 = vrcp.pop %v1889
      %v1906 = vmul.f32 %v1827, %v1890
      %v1907 = vmul.f32 %v1829, %v1891
      %v1908 = vmul.f32 %v1831, %v1892
      %v1909 = vmul.f32 %v1833, %v1893
      %v1910 = vmul.f32 %v1835, %v1894
      %v1911 = vmul.f32 %v1837, %v1895
      %v1912 = vmul.f32 %v1839, %v1896
      %v1913 = vmul.f32 %v1841, %v1897
      %v1914 = vmul.f32 %v1843, %v1898
      %v1915 = vmul.f32 %v1845, %v1899
      %v1916 = vmul.f32 %v1847, %v1900
      %v1917 = vmul.f32 %v1849, %v1901
      %v1918 = vmul.f32 %v1851, %v1902
      %v1919 = vmul.f32 %v1853, %v1903
      %v1920 = vmul.f32 %v1855, %v1904
      %v1921 = vmul.f32 %v1857, %v1905
      %v1922 = vpack.c.bf16 %v1907, %v1906
      %v1923 = vpack.c.bf16 %v1909, %v1908
      %v1924 = vpack.c.bf16 %v1911, %v1910
      %v1925 = vpack.c.bf16 %v1913, %v1912
      %v1926 = vpack.c.bf16 %v1915, %v1914
      %v1927 = vpack.c.bf16 %v1917, %v1916
      %v1928 = vpack.c.bf16 %v1919, %v1918
      %v1929 = vpack.c.bf16 %v1921, %v1920
      %1938 = vrot.lane.b32.xlu0 %v1259, 64
      %v1939 = vpop.permute.xlu0 %1938
      %1940 = vrot.lane.b32.xlu0 %v1260, 64
      %v1941 = vpop.permute.xlu0 %1940
      %1942 = vrot.lane.b32.xlu0 %v1261, 64
      %v1943 = vpop.permute.xlu0 %1942
      %1944 = vrot.lane.b32.xlu0 %v1262, 64
      %v1945 = vpop.permute.xlu0 %1944
      %1946 = vrot.lane.b32.xlu0 %v1263, 64
      %v1947 = vpop.permute.xlu0 %1946
      %1948 = vrot.lane.b32.xlu0 %v1264, 64
      %v1949 = vpop.permute.xlu0 %1948
      %1950 = vrot.lane.b32.xlu0 %v1265, 64
      %v1951 = vpop.permute.xlu0 %1950
      %1952 = vrot.lane.b32.xlu0 %v1266, 64
      %v1953 = vpop.permute.xlu0 %1952
      %1962 = vmatpush.bf16.msra.mxu0 %v1953
      %1963 = vmatpush.bf16.msra.mxu0 %v1951
      %1964 = vmatpush.bf16.msra.mxu0 %v1949
      %1965 = vmatpush.bf16.msra.mxu0 %v1947
      %1966 = vmatpush.bf16.msra.mxu0 %v1945
      %1967 = vmatpush.bf16.msra.mxu0 %v1943
      %1968 = vmatpush.bf16.msra.mxu0 %v1941
      %1969 = vmatpush.bf16.msra.mxu0 %v1939
      %1970 = vmatmul.bf16.gmra.mxu0 %v1922
      %v1971 = vpop.f32.mrf.mxu0
      %v1972 = vadd.f32 0.0, %v1971
      %v1973 = vpop.f32.mrf.mxu0
      %v1974 = vadd.f32 0.0, %v1973
      %1975 = vmatmul.bf16.gmra.mxu0 %v1923
      %v1976 = vpop.f32.mrf.mxu0
      %v1977 = vadd.f32 0.0, %v1976
      %v1978 = vpop.f32.mrf.mxu0
      %v1979 = vadd.f32 0.0, %v1978
      %1980 = vmatmul.bf16.gmra.mxu0 %v1924
      %v1981 = vpop.f32.mrf.mxu0
      %v1982 = vadd.f32 0.0, %v1981
      %v1983 = vpop.f32.mrf.mxu0
      %v1984 = vadd.f32 0.0, %v1983
      %1985 = vmatmul.bf16.gmra.mxu0 %v1925
      %v1986 = vpop.f32.mrf.mxu0
      %v1987 = vadd.f32 0.0, %v1986
      %v1988 = vpop.f32.mrf.mxu0
      %v1989 = vadd.f32 0.0, %v1988
      %1990 = vmatmul.bf16.gmra.mxu0 %v1926
      %v1991 = vpop.f32.mrf.mxu0
      %v1992 = vadd.f32 0.0, %v1991
      %v1993 = vpop.f32.mrf.mxu0
      %v1994 = vadd.f32 0.0, %v1993
      %1995 = vmatmul.bf16.gmra.mxu0 %v1927
      %v1996 = vpop.f32.mrf.mxu0
      %v1997 = vadd.f32 0.0, %v1996
      %v1998 = vpop.f32.mrf.mxu0
      %v1999 = vadd.f32 0.0, %v1998
      %2000 = vmatmul.bf16.gmra.mxu0 %v1928
      %v2001 = vpop.f32.mrf.mxu0
      %v2002 = vadd.f32 0.0, %v2001
      %v2003 = vpop.f32.mrf.mxu0
      %v2004 = vadd.f32 0.0, %v2003
      %2005 = vmatmul.bf16.gmra.mxu0 %v1929
      %v2006 = vpop.f32.mrf.mxu0
      %v2007 = vadd.f32 0.0, %v2006
      %v2008 = vpop.f32.mrf.mxu0
      %v2009 = vadd.f32 0.0, %v2008
      %2010 = vdwg.mxu0
      %2027 = vrot.lane.b32.xlu0 %v1972, 64
      %v2028 = vpop.permute.xlu0 %2027
      %2029 = vrot.lane.b32.xlu0 %v1974, 64
      %v2030 = vpop.permute.xlu0 %2029
      %2031 = vrot.lane.b32.xlu0 %v1977, 64
      %v2032 = vpop.permute.xlu0 %2031
      %2033 = vrot.lane.b32.xlu0 %v1979, 64
      %v2034 = vpop.permute.xlu0 %2033
      %2035 = vrot.lane.b32.xlu0 %v1982, 64
      %v2036 = vpop.permute.xlu0 %2035
      %2037 = vrot.lane.b32.xlu0 %v1984, 64
      %v2038 = vpop.permute.xlu0 %2037
      %2039 = vrot.lane.b32.xlu0 %v1987, 64
      %v2040 = vpop.permute.xlu0 %2039
      %2041 = vrot.lane.b32.xlu0 %v1989, 64
      %v2042 = vpop.permute.xlu0 %2041
      %2043 = vrot.lane.b32.xlu0 %v1992, 64
      %v2044 = vpop.permute.xlu0 %2043
      %2045 = vrot.lane.b32.xlu0 %v1994, 64
      %v2046 = vpop.permute.xlu0 %2045
      %2047 = vrot.lane.b32.xlu0 %v1997, 64
      %v2048 = vpop.permute.xlu0 %2047
      %2049 = vrot.lane.b32.xlu0 %v1999, 64
      %v2050 = vpop.permute.xlu0 %2049
      %2051 = vrot.lane.b32.xlu0 %v2002, 64
      %v2052 = vpop.permute.xlu0 %2051
      %2053 = vrot.lane.b32.xlu0 %v2004, 64
      %v2054 = vpop.permute.xlu0 %2053
      %2055 = vrot.lane.b32.xlu0 %v2007, 64
      %v2056 = vpop.permute.xlu0 %2055
      %2057 = vrot.lane.b32.xlu0 %v2009, 64
      %v2058 = vpop.permute.xlu0 %2057
      %v2075 = vsel %vm1267, %v1562, %v2028
      %v2076 = vsel %vm1267, %v1564, %v2030
      %v2077 = vsel %vm1267, %v1567, %v2032
      %v2078 = vsel %vm1267, %v1569, %v2034
      %v2079 = vsel %vm1267, %v1572, %v2036
      %v2080 = vsel %vm1267, %v1574, %v2038
      %v2081 = vsel %vm1267, %v1577, %v2040
      %v2082 = vsel %vm1267, %v1579, %v2042
      %v2083 = vsel %vm1267, %v1582, %v2044
      %v2084 = vsel %vm1267, %v1584, %v2046
      %v2085 = vsel %vm1267, %v1587, %v2048
      %v2086 = vsel %vm1267, %v1589, %v2050
      %v2087 = vsel %vm1267, %v1592, %v2052
      %v2088 = vsel %vm1267, %v1594, %v2054
      %v2089 = vsel %vm1267, %v1597, %v2056
      %v2090 = vsel %vm1267, %v1599, %v2058
      %v2091 = vpack.c.bf16 %v2076, %v2075
      %v2092 = vpack.c.bf16 %v2078, %v2077
      %v2093 = vpack.c.bf16 %v2080, %v2079
      %v2094 = vpack.c.bf16 %v2082, %v2081
      %v2095 = vpack.c.bf16 %v2084, %v2083
      %v2096 = vpack.c.bf16 %v2086, %v2085
      %v2097 = vpack.c.bf16 %v2088, %v2087
      %v2098 = vpack.c.bf16 %v2090, %v2089
      %v2099 = vld [vmem:[%s6] sm:$0xf]
      %v2100 = vld [vmem:[%s6 + $0x4] sm:$0xf]
      %v2101 = vld [vmem:[%s6 + $0x8] sm:$0xf]
      %v2102 = vld [vmem:[%s6 + $0xc] sm:$0xf]
      %v2103 = vld [vmem:[%s6 + $0x10] sm:$0xf]
      %v2104 = vld [vmem:[%s6 + $0x14] sm:$0xf]
      %v2105 = vld [vmem:[%s6 + $0x18] sm:$0xf]
      %v2106 = vld [vmem:[%s6 + $0x1c] sm:$0xf]
      %v2107 = vld [vmem:[%s6 + $0x20] sm:$0xf]
      %v2108 = vld [vmem:[%s6 + $0x24] sm:$0xf]
      %v2109 = vld [vmem:[%s6 + $0x28] sm:$0xf]
      %v2110 = vld [vmem:[%s6 + $0x2c] sm:$0xf]
      %v2111 = vld [vmem:[%s6 + $0x30] sm:$0xf]
      %v2112 = vld [vmem:[%s6 + $0x34] sm:$0xf]
      %v2113 = vld [vmem:[%s6 + $0x38] sm:$0xf]
      %v2114 = vld [vmem:[%s6 + $0x3c] sm:$0xf]
      %v2115 = vld [vmem:[%s7] sm:$0x1]
      %v2117 = vperm.slane %v2115, 0
      %v2135 = vunpack.c.l.b16 %v2099
      %v2136 = vunpack.c.l.b16 %v2100
      %v2137 = vunpack.c.l.b16 %v2101
      %v2138 = vunpack.c.l.b16 %v2102
      %v2139 = vunpack.c.l.b16 %v2103
      %v2140 = vunpack.c.l.b16 %v2104
      %v2141 = vunpack.c.l.b16 %v2105
      %v2142 = vunpack.c.l.b16 %v2106
      %v2143 = vunpack.c.l.b16 %v2107
      %v2144 = vunpack.c.l.b16 %v2108
      %v2145 = vunpack.c.l.b16 %v2109
      %v2146 = vunpack.c.l.b16 %v2110
      %v2147 = vunpack.c.l.b16 %v2111
      %v2148 = vunpack.c.l.b16 %v2112
      %v2149 = vunpack.c.l.b16 %v2113
      %v2150 = vunpack.c.l.b16 %v2114
      %v2151 = vpack.c.b16 %v2136, %v2135
      %v2152 = vpack.c.b16 %v2138, %v2137
      %v2153 = vpack.c.b16 %v2140, %v2139
      %v2154 = vpack.c.b16 %v2142, %v2141
      %v2155 = vpack.c.b16 %v2144, %v2143
      %v2156 = vpack.c.b16 %v2146, %v2145
      %v2157 = vpack.c.b16 %v2148, %v2147
      %v2158 = vpack.c.b16 %v2150, %v2149
      %2167 = vmatpush.bf16.msra.mxu0 %v2158
      %2168 = vmatpush.bf16.msra.mxu0 %v2157
      %2169 = vmatpush.bf16.msra.mxu0 %v2156
      %2170 = vmatpush.bf16.msra.mxu0 %v2155
      %2171 = vmatpush.bf16.msra.mxu0 %v2154
      %2172 = vmatpush.bf16.msra.mxu0 %v2153
      %2173 = vmatpush.bf16.msra.mxu0 %v2152
      %2174 = vmatpush.bf16.msra.mxu0 %v2151
      %2175 = vmatmul.bf16.gmra.mxu0 %v2091
      %v2176 = vpop.f32.mrf.mxu0
      %v2177 = vadd.f32 %v2117, %v2176
      %v2178 = vpop.f32.mrf.mxu0
      %v2179 = vadd.f32 %v2117, %v2178
      %2180 = vmatmul.bf16.gmra.mxu0 %v2092
      %v2181 = vpop.f32.mrf.mxu0
      %v2182 = vadd.f32 %v2117, %v2181
      %v2183 = vpop.f32.mrf.mxu0
      %v2184 = vadd.f32 %v2117, %v2183
      %2185 = vmatmul.bf16.gmra.mxu0 %v2093
      %v2186 = vpop.f32.mrf.mxu0
      %v2187 = vadd.f32 %v2117, %v2186
      %v2188 = vpop.f32.mrf.mxu0
      %v2189 = vadd.f32 %v2117, %v2188
      %2190 = vmatmul.bf16.gmra.mxu0 %v2094
      %v2191 = vpop.f32.mrf.mxu0
      %v2192 = vadd.f32 %v2117, %v2191
      %v2193 = vpop.f32.mrf.mxu0
      %v2194 = vadd.f32 %v2117, %v2193
      %2195 = vmatmul.bf16.gmra.mxu0 %v2095
      %v2196 = vpop.f32.mrf.mxu0
      %v2197 = vadd.f32 %v2117, %v2196
      %v2198 = vpop.f32.mrf.mxu0
      %v2199 = vadd.f32 %v2117, %v2198
      %2200 = vmatmul.bf16.gmra.mxu0 %v2096
      %v2201 = vpop.f32.mrf.mxu0
      %v2202 = vadd.f32 %v2117, %v2201
      %v2203 = vpop.f32.mrf.mxu0
      %v2204 = vadd.f32 %v2117, %v2203
      %2205 = vmatmul.bf16.gmra.mxu0 %v2097
      %v2206 = vpop.f32.mrf.mxu0
      %v2207 = vadd.f32 %v2117, %v2206
      %v2208 = vpop.f32.mrf.mxu0
      %v2209 = vadd.f32 %v2117, %v2208
      %2210 = vmatmul.bf16.gmra.mxu0 %v2098
      %v2211 = vpop.f32.mrf.mxu0
      %v2212 = vadd.f32 %v2117, %v2211
      %v2213 = vpop.f32.mrf.mxu0
      %v2214 = vadd.f32 %v2117, %v2213
      %2215 = vdwg.mxu0
      %v2216 = vadd.f32 %v2177, %v903
      %v2217 = vadd.f32 %v2179, %v904
      %v2218 = vadd.f32 %v2182, %v905
      %v2219 = vadd.f32 %v2184, %v906
      %v2220 = vadd.f32 %v2187, %v907
      %v2221 = vadd.f32 %v2189, %v908
      %v2222 = vadd.f32 %v2192, %v909
      %v2223 = vadd.f32 %v2194, %v910
      %v2224 = vadd.f32 %v2197, %v911
      %v2225 = vadd.f32 %v2199, %v912
      %v2226 = vadd.f32 %v2202, %v913
      %v2227 = vadd.f32 %v2204, %v914
      %v2228 = vadd.f32 %v2207, %v915
      %v2229 = vadd.f32 %v2209, %v916
      %v2230 = vadd.f32 %v2212, %v917
      %v2231 = vadd.f32 %v2214, %v918
      %v2232 = vld [vmem:[%s8] sm:$0x1]
      %v2233 = vld [vmem:[%s9] sm:$0x1]
      %2234 = vadd.xlane.f32.xlu0 %v2216
      %v2235 = vpop.xlane.xlu0 %2234
      %2236 = vadd.xlane.f32.xlu0 %v2217
      %v2237 = vpop.xlane.xlu0 %2236
      %2238 = vadd.xlane.f32.xlu0 %v2218
      %v2239 = vpop.xlane.xlu0 %2238
      %2240 = vadd.xlane.f32.xlu0 %v2219
      %v2241 = vpop.xlane.xlu0 %2240
      %2242 = vadd.xlane.f32.xlu0 %v2220
      %v2243 = vpop.xlane.xlu0 %2242
      %2244 = vadd.xlane.f32.xlu0 %v2221
      %v2245 = vpop.xlane.xlu0 %2244
      %2246 = vadd.xlane.f32.xlu0 %v2222
      %v2247 = vpop.xlane.xlu0 %2246
      %2248 = vadd.xlane.f32.xlu0 %v2223
      %v2249 = vpop.xlane.xlu0 %2248
      %2250 = vadd.xlane.f32.xlu0 %v2224
      %v2251 = vpop.xlane.xlu0 %2250
      %2252 = vadd.xlane.f32.xlu0 %v2225
      %v2253 = vpop.xlane.xlu0 %2252
      %2254 = vadd.xlane.f32.xlu0 %v2226
      %v2255 = vpop.xlane.xlu0 %2254
      %2256 = vadd.xlane.f32.xlu0 %v2227
      %v2257 = vpop.xlane.xlu0 %2256
      %2258 = vadd.xlane.f32.xlu0 %v2228
      %v2259 = vpop.xlane.xlu0 %2258
      %2260 = vadd.xlane.f32.xlu0 %v2229
      %v2261 = vpop.xlane.xlu0 %2260
      %2262 = vadd.xlane.f32.xlu0 %v2230
      %v2263 = vpop.xlane.xlu0 %2262
      %2264 = vadd.xlane.f32.xlu0 %v2231
      %v2265 = vpop.xlane.xlu0 %2264
      %v2266 = vmul.f32 %v2235, %v592
      %v2267 = vmul.f32 %v2237, %v592
      %v2268 = vmul.f32 %v2239, %v592
      %v2269 = vmul.f32 %v2241, %v592
      %v2270 = vmul.f32 %v2243, %v592
      %v2271 = vmul.f32 %v2245, %v592
      %v2272 = vmul.f32 %v2247, %v592
      %v2273 = vmul.f32 %v2249, %v592
      %v2274 = vmul.f32 %v2251, %v592
      %v2275 = vmul.f32 %v2253, %v592
      %v2276 = vmul.f32 %v2255, %v592
      %v2277 = vmul.f32 %v2257, %v592
      %v2278 = vmul.f32 %v2259, %v592
      %v2279 = vmul.f32 %v2261, %v592
      %v2280 = vmul.f32 %v2263, %v592
      %v2281 = vmul.f32 %v2265, %v592
      %v2282 = vsub.f32 %v2216, %v2266
      %v2283 = vsub.f32 %v2217, %v2267
      %v2284 = vsub.f32 %v2218, %v2268
      %v2285 = vsub.f32 %v2219, %v2269
      %v2286 = vsub.f32 %v2220, %v2270
      %v2287 = vsub.f32 %v2221, %v2271
      %v2288 = vsub.f32 %v2222, %v2272
      %v2289 = vsub.f32 %v2223, %v2273
      %v2290 = vsub.f32 %v2224, %v2274
      %v2291 = vsub.f32 %v2225, %v2275
      %v2292 = vsub.f32 %v2226, %v2276
      %v2293 = vsub.f32 %v2227, %v2277
      %v2294 = vsub.f32 %v2228, %v2278
      %v2295 = vsub.f32 %v2229, %v2279
      %v2296 = vsub.f32 %v2230, %v2280
      %v2297 = vsub.f32 %v2231, %v2281
      %v2298 = vmul.f32 %v2282, %v2282
      %v2299 = vmul.f32 %v2283, %v2283
      %v2300 = vmul.f32 %v2284, %v2284
      %v2301 = vmul.f32 %v2285, %v2285
      %v2302 = vmul.f32 %v2286, %v2286
      %v2303 = vmul.f32 %v2287, %v2287
      %v2304 = vmul.f32 %v2288, %v2288
      %v2305 = vmul.f32 %v2289, %v2289
      %v2306 = vmul.f32 %v2290, %v2290
      %v2307 = vmul.f32 %v2291, %v2291
      %v2308 = vmul.f32 %v2292, %v2292
      %v2309 = vmul.f32 %v2293, %v2293
      %v2310 = vmul.f32 %v2294, %v2294
      %v2311 = vmul.f32 %v2295, %v2295
      %v2312 = vmul.f32 %v2296, %v2296
      %v2313 = vmul.f32 %v2297, %v2297
      %2314 = vadd.xlane.f32.xlu0 %v2298
      %v2315 = vpop.xlane.xlu0 %2314
      %2316 = vadd.xlane.f32.xlu0 %v2299
      %v2317 = vpop.xlane.xlu0 %2316
      %2318 = vadd.xlane.f32.xlu0 %v2300
      %v2319 = vpop.xlane.xlu0 %2318
      %2320 = vadd.xlane.f32.xlu0 %v2301
      %v2321 = vpop.xlane.xlu0 %2320
      %2322 = vadd.xlane.f32.xlu0 %v2302
      %v2323 = vpop.xlane.xlu0 %2322
      %2324 = vadd.xlane.f32.xlu0 %v2303
      %v2325 = vpop.xlane.xlu0 %2324
      %2326 = vadd.xlane.f32.xlu0 %v2304
      %v2327 = vpop.xlane.xlu0 %2326
      %2328 = vadd.xlane.f32.xlu0 %v2305
      %v2329 = vpop.xlane.xlu0 %2328
      %2330 = vadd.xlane.f32.xlu0 %v2306
      %v2331 = vpop.xlane.xlu0 %2330
      %2332 = vadd.xlane.f32.xlu0 %v2307
      %v2333 = vpop.xlane.xlu0 %2332
      %2334 = vadd.xlane.f32.xlu0 %v2308
      %v2335 = vpop.xlane.xlu0 %2334
      %2336 = vadd.xlane.f32.xlu0 %v2309
      %v2337 = vpop.xlane.xlu0 %2336
      %2338 = vadd.xlane.f32.xlu0 %v2310
      %v2339 = vpop.xlane.xlu0 %2338
      %2340 = vadd.xlane.f32.xlu0 %v2311
      %v2341 = vpop.xlane.xlu0 %2340
      %2342 = vadd.xlane.f32.xlu0 %v2312
      %v2343 = vpop.xlane.xlu0 %2342
      %2344 = vadd.xlane.f32.xlu0 %v2313
      %v2345 = vpop.xlane.xlu0 %2344
      %v2346 = vmul.f32 %v2315, %v592
      %v2347 = vmul.f32 %v2317, %v592
      %v2348 = vmul.f32 %v2319, %v592
      %v2349 = vmul.f32 %v2321, %v592
      %v2350 = vmul.f32 %v2323, %v592
      %v2351 = vmul.f32 %v2325, %v592
      %v2352 = vmul.f32 %v2327, %v592
      %v2353 = vmul.f32 %v2329, %v592
      %v2354 = vmul.f32 %v2331, %v592
      %v2355 = vmul.f32 %v2333, %v592
      %v2356 = vmul.f32 %v2335, %v592
      %v2357 = vmul.f32 %v2337, %v592
      %v2358 = vmul.f32 %v2339, %v592
      %v2359 = vmul.f32 %v2341, %v592
      %v2360 = vmul.f32 %v2343, %v592
      %v2361 = vmul.f32 %v2345, %v592
      %v2362 = vadd.f32 %v2346, 1e-12
      %v2363 = vadd.f32 %v2347, 1e-12
      %v2364 = vadd.f32 %v2348, 1e-12
      %v2365 = vadd.f32 %v2349, 1e-12
      %v2366 = vadd.f32 %v2350, 1e-12
      %v2367 = vadd.f32 %v2351, 1e-12
      %v2368 = vadd.f32 %v2352, 1e-12
      %v2369 = vadd.f32 %v2353, 1e-12
      %v2370 = vadd.f32 %v2354, 1e-12
      %v2371 = vadd.f32 %v2355, 1e-12
      %v2372 = vadd.f32 %v2356, 1e-12
      %v2373 = vadd.f32 %v2357, 1e-12
      %v2374 = vadd.f32 %v2358, 1e-12
      %v2375 = vadd.f32 %v2359, 1e-12
      %v2376 = vadd.f32 %v2360, 1e-12
      %v2377 = vadd.f32 %v2361, 1e-12
      %v2378 = vrsqrt.pop %v2362
      %v2379 = vmul.f32 %v2378, %v2362
      %v2380 = vmul.f32 %v2379, %v2378
      %v2381 = vmul.f32 0.5, %v2380
      %v2382 = vsub.f32 1.5, %v2381
      %v2383 = vmul.f32 %v2378, %v2382
      %vm2384 = vweird.f32 %v2362
      %vm2385 = vweird.f32 %v2378
      %vm2386 = vmor %vm2384, %vm2385
      %v2387 = vsel %vm2386, %v2378, %v2383
      %v2388 = vrsqrt.pop %v2363
      %v2389 = vmul.f32 %v2388, %v2363
      %v2390 = vmul.f32 %v2389, %v2388
      %v2391 = vmul.f32 0.5, %v2390
      %v2392 = vsub.f32 1.5, %v2391
      %v2393 = vmul.f32 %v2388, %v2392
      %vm2394 = vweird.f32 %v2363
      %vm2395 = vweird.f32 %v2388
      %vm2396 = vmor %vm2394, %vm2395
      %v2397 = vsel %vm2396, %v2388, %v2393
      %v2398 = vrsqrt.pop %v2364
      %v2399 = vmul.f32 %v2398, %v2364
      %v2400 = vmul.f32 %v2399, %v2398
      %v2401 = vmul.f32 0.5, %v2400
      %v2402 = vsub.f32 1.5, %v2401
      %v2403 = vmul.f32 %v2398, %v2402
      %vm2404 = vweird.f32 %v2364
      %vm2405 = vweird.f32 %v2398
      %vm2406 = vmor %vm2404, %vm2405
      %v2407 = vsel %vm2406, %v2398, %v2403
      %v2408 = vrsqrt.pop %v2365
      %v2409 = vmul.f32 %v2408, %v2365
      %v2410 = vmul.f32 %v2409, %v2408
      %v2411 = vmul.f32 0.5, %v2410
      %v2412 = vsub.f32 1.5, %v2411
      %v2413 = vmul.f32 %v2408, %v2412
      %vm2414 = vweird.f32 %v2365
      %vm2415 = vweird.f32 %v2408
      %vm2416 = vmor %vm2414, %vm2415
      %v2417 = vsel %vm2416, %v2408, %v2413
      %v2418 = vrsqrt.pop %v2366
      %v2419 = vmul.f32 %v2418, %v2366
      %v2420 = vmul.f32 %v2419, %v2418
      %v2421 = vmul.f32 0.5, %v2420
      %v2422 = vsub.f32 1.5, %v2421
      %v2423 = vmul.f32 %v2418, %v2422
      %vm2424 = vweird.f32 %v2366
      %vm2425 = vweird.f32 %v2418
      %vm2426 = vmor %vm2424, %vm2425
      %v2427 = vsel %vm2426, %v2418, %v2423
      %v2428 = vrsqrt.pop %v2367
      %v2429 = vmul.f32 %v2428, %v2367
      %v2430 = vmul.f32 %v2429, %v2428
      %v2431 = vmul.f32 0.5, %v2430
      %v2432 = vsub.f32 1.5, %v2431
      %v2433 = vmul.f32 %v2428, %v2432
      %vm2434 = vweird.f32 %v2367
      %vm2435 = vweird.f32 %v2428
      %vm2436 = vmor %vm2434, %vm2435
      %v2437 = vsel %vm2436, %v2428, %v2433
      %v2438 = vrsqrt.pop %v2368
      %v2439 = vmul.f32 %v2438, %v2368
      %v2440 = vmul.f32 %v2439, %v2438
      %v2441 = vmul.f32 0.5, %v2440
      %v2442 = vsub.f32 1.5, %v2441
      %v2443 = vmul.f32 %v2438, %v2442
      %vm2444 = vweird.f32 %v2368
      %vm2445 = vweird.f32 %v2438
      %vm2446 = vmor %vm2444, %vm2445
      %v2447 = vsel %vm2446, %v2438, %v2443
      %v2448 = vrsqrt.pop %v2369
      %v2449 = vmul.f32 %v2448, %v2369
      %v2450 = vmul.f32 %v2449, %v2448
      %v2451 = vmul.f32 0.5, %v2450
      %v2452 = vsub.f32 1.5, %v2451
      %v2453 = vmul.f32 %v2448, %v2452
      %vm2454 = vweird.f32 %v2369
      %vm2455 = vweird.f32 %v2448
      %vm2456 = vmor %vm2454, %vm2455
      %v2457 = vsel %vm2456, %v2448, %v2453
      %v2458 = vrsqrt.pop %v2370
      %v2459 = vmul.f32 %v2458, %v2370
      %v2460 = vmul.f32 %v2459, %v2458
      %v2461 = vmul.f32 0.5, %v2460
      %v2462 = vsub.f32 1.5, %v2461
      %v2463 = vmul.f32 %v2458, %v2462
      %vm2464 = vweird.f32 %v2370
      %vm2465 = vweird.f32 %v2458
      %vm2466 = vmor %vm2464, %vm2465
      %v2467 = vsel %vm2466, %v2458, %v2463
      %v2468 = vrsqrt.pop %v2371
      %v2469 = vmul.f32 %v2468, %v2371
      %v2470 = vmul.f32 %v2469, %v2468
      %v2471 = vmul.f32 0.5, %v2470
      %v2472 = vsub.f32 1.5, %v2471
      %v2473 = vmul.f32 %v2468, %v2472
      %vm2474 = vweird.f32 %v2371
      %vm2475 = vweird.f32 %v2468
      %vm2476 = vmor %vm2474, %vm2475
      %v2477 = vsel %vm2476, %v2468, %v2473
      %v2478 = vrsqrt.pop %v2372
      %v2479 = vmul.f32 %v2478, %v2372
      %v2480 = vmul.f32 %v2479, %v2478
      %v2481 = vmul.f32 0.5, %v2480
      %v2482 = vsub.f32 1.5, %v2481
      %v2483 = vmul.f32 %v2478, %v2482
      %vm2484 = vweird.f32 %v2372
      %vm2485 = vweird.f32 %v2478
      %vm2486 = vmor %vm2484, %vm2485
      %v2487 = vsel %vm2486, %v2478, %v2483
      %v2488 = vrsqrt.pop %v2373
      %v2489 = vmul.f32 %v2488, %v2373
      %v2490 = vmul.f32 %v2489, %v2488
      %v2491 = vmul.f32 0.5, %v2490
      %v2492 = vsub.f32 1.5, %v2491
      %v2493 = vmul.f32 %v2488, %v2492
      %vm2494 = vweird.f32 %v2373
      %vm2495 = vweird.f32 %v2488
      %vm2496 = vmor %vm2494, %vm2495
      %v2497 = vsel %vm2496, %v2488, %v2493
      %v2498 = vrsqrt.pop %v2374
      %v2499 = vmul.f32 %v2498, %v2374
      %v2500 = vmul.f32 %v2499, %v2498
      %v2501 = vmul.f32 0.5, %v2500
      %v2502 = vsub.f32 1.5, %v2501
      %v2503 = vmul.f32 %v2498, %v2502
      %vm2504 = vweird.f32 %v2374
      %vm2505 = vweird.f32 %v2498
      %vm2506 = vmor %vm2504, %vm2505
      %v2507 = vsel %vm2506, %v2498, %v2503
      %v2508 = vrsqrt.pop %v2375
      %v2509 = vmul.f32 %v2508, %v2375
      %v2510 = vmul.f32 %v2509, %v2508
      %v2511 = vmul.f32 0.5, %v2510
      %v2512 = vsub.f32 1.5, %v2511
      %v2513 = vmul.f32 %v2508, %v2512
      %vm2514 = vweird.f32 %v2375
      %vm2515 = vweird.f32 %v2508
      %vm2516 = vmor %vm2514, %vm2515
      %v2517 = vsel %vm2516, %v2508, %v2513
      %v2518 = vrsqrt.pop %v2376
      %v2519 = vmul.f32 %v2518, %v2376
      %v2520 = vmul.f32 %v2519, %v2518
      %v2521 = vmul.f32 0.5, %v2520
      %v2522 = vsub.f32 1.5, %v2521
      %v2523 = vmul.f32 %v2518, %v2522
      %vm2524 = vweird.f32 %v2376
      %vm2525 = vweird.f32 %v2518
      %vm2526 = vmor %vm2524, %vm2525
      %v2527 = vsel %vm2526, %v2518, %v2523
      %v2528 = vrsqrt.pop %v2377
      %v2529 = vmul.f32 %v2528, %v2377
      %v2530 = vmul.f32 %v2529, %v2528
      %v2531 = vmul.f32 0.5, %v2530
      %v2532 = vsub.f32 1.5, %v2531
      %v2533 = vmul.f32 %v2528, %v2532
      %vm2534 = vweird.f32 %v2377
      %vm2535 = vweird.f32 %v2528
      %vm2536 = vmor %vm2534, %vm2535
      %v2537 = vsel %vm2536, %v2528, %v2533
      %v2538 = vmul.f32 %v2282, %v2387
      %v2539 = vmul.f32 %v2283, %v2397
      %v2540 = vmul.f32 %v2284, %v2407
      %v2541 = vmul.f32 %v2285, %v2417
      %v2542 = vmul.f32 %v2286, %v2427
      %v2543 = vmul.f32 %v2287, %v2437
      %v2544 = vmul.f32 %v2288, %v2447
      %v2545 = vmul.f32 %v2289, %v2457
      %v2546 = vmul.f32 %v2290, %v2467
      %v2547 = vmul.f32 %v2291, %v2477
      %v2548 = vmul.f32 %v2292, %v2487
      %v2549 = vmul.f32 %v2293, %v2497
      %v2550 = vmul.f32 %v2294, %v2507
      %v2551 = vmul.f32 %v2295, %v2517
      %v2552 = vmul.f32 %v2296, %v2527
      %v2553 = vmul.f32 %v2297, %v2537
      %v2555 = vperm.slane %v2232, 0
      %v2557 = vmul.f32 %v2538, %v2555
      %v2558 = vmul.f32 %v2539, %v2555
      %v2559 = vmul.f32 %v2540, %v2555
      %v2560 = vmul.f32 %v2541, %v2555
      %v2561 = vmul.f32 %v2542, %v2555
      %v2562 = vmul.f32 %v2543, %v2555
      %v2563 = vmul.f32 %v2544, %v2555
      %v2564 = vmul.f32 %v2545, %v2555
      %v2565 = vmul.f32 %v2546, %v2555
      %v2566 = vmul.f32 %v2547, %v2555
      %v2567 = vmul.f32 %v2548, %v2555
      %v2568 = vmul.f32 %v2549, %v2555
      %v2569 = vmul.f32 %v2550, %v2555
      %v2570 = vmul.f32 %v2551, %v2555
      %v2571 = vmul.f32 %v2552, %v2555
      %v2572 = vmul.f32 %v2553, %v2555
      %v2574 = vperm.slane %v2233, 0
      %v2576 = vadd.f32 %v2557, %v2574
      %v2577 = vadd.f32 %v2558, %v2574
      %v2578 = vadd.f32 %v2559, %v2574
      %v2579 = vadd.f32 %v2560, %v2574
      %v2580 = vadd.f32 %v2561, %v2574
      %v2581 = vadd.f32 %v2562, %v2574
      %v2582 = vadd.f32 %v2563, %v2574
      %v2583 = vadd.f32 %v2564, %v2574
      %v2584 = vadd.f32 %v2565, %v2574
      %v2585 = vadd.f32 %v2566, %v2574
      %v2586 = vadd.f32 %v2567, %v2574
      %v2587 = vadd.f32 %v2568, %v2574
      %v2588 = vadd.f32 %v2569, %v2574
      %v2589 = vadd.f32 %v2570, %v2574
      %v2590 = vadd.f32 %v2571, %v2574
      %v2591 = vadd.f32 %v2572, %v2574
      %v2592 = vpack.c.bf16 %v2577, %v2576
      %v2593 = vpack.c.bf16 %v2579, %v2578
      %v2594 = vpack.c.bf16 %v2581, %v2580
      %v2595 = vpack.c.bf16 %v2583, %v2582
      %v2596 = vpack.c.bf16 %v2585, %v2584
      %v2597 = vpack.c.bf16 %v2587, %v2586
      %v2598 = vpack.c.bf16 %v2589, %v2588
      %v2599 = vpack.c.bf16 %v2591, %v2590
      %v2600 = vld [vmem:[%s10] sm:$0xff]
      %v2601 = vld [vmem:[%s10 + $0x8] sm:$0xff]
      %v2602 = vld [vmem:[%s10 + $0x10] sm:$0xff]
      %v2603 = vld [vmem:[%s10 + $0x18] sm:$0xff]
      %v2604 = vld [vmem:[%s10 + $0x20] sm:$0xff]
      %v2605 = vld [vmem:[%s10 + $0x28] sm:$0xff]
      %v2606 = vld [vmem:[%s10 + $0x30] sm:$0xff]
      %v2607 = vld [vmem:[%s10 + $0x38] sm:$0xff]
      %v2608 = vld [vmem:[%s10 + $0x40] sm:$0xff]
      %v2609 = vld [vmem:[%s10 + $0x48] sm:$0xff]
      %v2610 = vld [vmem:[%s10 + $0x50] sm:$0xff]
      %v2611 = vld [vmem:[%s10 + $0x58] sm:$0xff]
      %v2612 = vld [vmem:[%s10 + $0x60] sm:$0xff]
      %v2613 = vld [vmem:[%s10 + $0x68] sm:$0xff]
      %v2614 = vld [vmem:[%s10 + $0x70] sm:$0xff]
      %v2615 = vld [vmem:[%s10 + $0x78] sm:$0xff]
      %v2616 = vld [vmem:[%s11] sm:$0x3]
      %v2618 = vperm.slane %v2616, 0
      %v2619 = vperm.slane %v2616, 1
      %v2638 = vunpack.c.l.b16 %v2600
      %v2639 = vunpack.c.h.b16 %v2600
      %v2640 = vunpack.c.l.b16 %v2601
      %v2641 = vunpack.c.h.b16 %v2601
      %v2642 = vunpack.c.l.b16 %v2602
      %v2643 = vunpack.c.h.b16 %v2602
      %v2644 = vunpack.c.l.b16 %v2603
      %v2645 = vunpack.c.h.b16 %v2603
      %v2646 = vunpack.c.l.b16 %v2604
      %v2647 = vunpack.c.h.b16 %v2604
      %v2648 = vunpack.c.l.b16 %v2605
      %v2649 = vunpack.c.h.b16 %v2605
      %v2650 = vunpack.c.l.b16 %v2606
      %v2651 = vunpack.c.h.b16 %v2606
      %v2652 = vunpack.c.l.b16 %v2607
      %v2653 = vunpack.c.h.b16 %v2607
      %v2654 = vunpack.c.l.b16 %v2608
      %v2655 = vunpack.c.h.b16 %v2608
      %v2656 = vunpack.c.l.b16 %v2609
      %v2657 = vunpack.c.h.b16 %v2609
      %v2658 = vunpack.c.l.b16 %v2610
      %v2659 = vunpack.c.h.b16 %v2610
      %v2660 = vunpack.c.l.b16 %v2611
      %v2661 = vunpack.c.h.b16 %v2611
      %v2662 = vunpack.c.l.b16 %v2612
      %v2663 = vunpack.c.h.b16 %v2612
      %v2664 = vunpack.c.l.b16 %v2613
      %v2665 = vunpack.c.h.b16 %v2613
      %v2666 = vunpack.c.l.b16 %v2614
      %v2667 = vunpack.c.h.b16 %v2614
      %v2668 = vunpack.c.l.b16 %v2615
      %v2669 = vunpack.c.h.b16 %v2615
      %v2670 = vpack.c.b16 %v2640, %v2638
      %v2671 = vpack.c.b16 %v2641, %v2639
      %v2672 = vpack.c.b16 %v2644, %v2642
      %v2673 = vpack.c.b16 %v2645, %v2643
      %v2674 = vpack.c.b16 %v2648, %v2646
      %v2675 = vpack.c.b16 %v2649, %v2647
      %v2676 = vpack.c.b16 %v2652, %v2650
      %v2677 = vpack.c.b16 %v2653, %v2651
      %v2678 = vpack.c.b16 %v2656, %v2654
      %v2679 = vpack.c.b16 %v2657, %v2655
      %v2680 = vpack.c.b16 %v2660, %v2658
      %v2681 = vpack.c.b16 %v2661, %v2659
      %v2682 = vpack.c.b16 %v2664, %v2662
      %v2683 = vpack.c.b16 %v2665, %v2663
      %v2684 = vpack.c.b16 %v2668, %v2666
      %v2685 = vpack.c.b16 %v2669, %v2667
      %2702 = vmatpush.bf16.msra.mxu0 %v2684
      %2703 = vmatpush.bf16.msra.mxu0 %v2682
      %2704 = vmatpush.bf16.msra.mxu0 %v2680
      %2705 = vmatpush.bf16.msra.mxu0 %v2678
      %2706 = vmatpush.bf16.msra.mxu0 %v2676
      %2707 = vmatpush.bf16.msra.mxu0 %v2674
      %2708 = vmatpush.bf16.msra.mxu0 %v2672
      %2709 = vmatpush.bf16.msra.mxu0 %v2670
      %2710 = vmatmul.bf16.gmra.mxu0 %v2592
      %v2711 = vpop.f32.mrf.mxu0
      %v2712 = vadd.f32 %v2618, %v2711
      %v2713 = vpop.f32.mrf.mxu0
      %v2714 = vadd.f32 %v2618, %v2713
      %2715 = vmatmul.bf16.gmra.mxu0 %v2593
      %v2716 = vpop.f32.mrf.mxu0
      %v2717 = vadd.f32 %v2618, %v2716
      %v2718 = vpop.f32.mrf.mxu0
      %v2719 = vadd.f32 %v2618, %v2718
      %2720 = vmatmul.bf16.gmra.mxu0 %v2594
      %v2721 = vpop.f32.mrf.mxu0
      %v2722 = vadd.f32 %v2618, %v2721
      %v2723 = vpop.f32.mrf.mxu0
      %v2724 = vadd.f32 %v2618, %v2723
      %2725 = vmatmul.bf16.gmra.mxu0 %v2595
      %v2726 = vpop.f32.mrf.mxu0
      %v2727 = vadd.f32 %v2618, %v2726
      %v2728 = vpop.f32.mrf.mxu0
      %v2729 = vadd.f32 %v2618, %v2728
      %2730 = vmatmul.bf16.gmra.mxu0 %v2596
      %v2731 = vpop.f32.mrf.mxu0
      %v2732 = vadd.f32 %v2618, %v2731
      %v2733 = vpop.f32.mrf.mxu0
      %v2734 = vadd.f32 %v2618, %v2733
      %2735 = vmatmul.bf16.gmra.mxu0 %v2597
      %v2736 = vpop.f32.mrf.mxu0
      %v2737 = vadd.f32 %v2618, %v2736
      %v2738 = vpop.f32.mrf.mxu0
      %v2739 = vadd.f32 %v2618, %v2738
      %2740 = vmatmul.bf16.gmra.mxu0 %v2598
      %v2741 = vpop.f32.mrf.mxu0
      %v2742 = vadd.f32 %v2618, %v2741
      %v2743 = vpop.f32.mrf.mxu0
      %v2744 = vadd.f32 %v2618, %v2743
      %2745 = vmatmul.bf16.gmra.mxu0 %v2599
      %v2746 = vpop.f32.mrf.mxu0
      %v2747 = vadd.f32 %v2618, %v2746
      %v2748 = vpop.f32.mrf.mxu0
      %v2749 = vadd.f32 %v2618, %v2748
      %2750 = vdwg.mxu0
      %2751 = vmatpush.bf16.msra.mxu0 %v2685
      %2752 = vmatpush.bf16.msra.mxu0 %v2683
      %2753 = vmatpush.bf16.msra.mxu0 %v2681
      %2754 = vmatpush.bf16.msra.mxu0 %v2679
      %2755 = vmatpush.bf16.msra.mxu0 %v2677
      %2756 = vmatpush.bf16.msra.mxu0 %v2675
      %2757 = vmatpush.bf16.msra.mxu0 %v2673
      %2758 = vmatpush.bf16.msra.mxu0 %v2671
      %2759 = vmatmul.bf16.gmra.mxu0 %v2592
      %v2760 = vpop.f32.mrf.mxu0
      %v2761 = vadd.f32 %v2619, %v2760
      %v2762 = vpop.f32.mrf.mxu0
      %v2763 = vadd.f32 %v2619, %v2762
      %2764 = vmatmul.bf16.gmra.mxu0 %v2593
      %v2765 = vpop.f32.mrf.mxu0
      %v2766 = vadd.f32 %v2619, %v2765
      %v2767 = vpop.f32.mrf.mxu0
      %v2768 = vadd.f32 %v2619, %v2767
      %2769 = vmatmul.bf16.gmra.mxu0 %v2594
      %v2770 = vpop.f32.mrf.mxu0
      %v2771 = vadd.f32 %v2619, %v2770
      %v2772 = vpop.f32.mrf.mxu0
      %v2773 = vadd.f32 %v2619, %v2772
      %2774 = vmatmul.bf16.gmra.mxu0 %v2595
      %v2775 = vpop.f32.mrf.mxu0
      %v2776 = vadd.f32 %v2619, %v2775
      %v2777 = vpop.f32.mrf.mxu0
      %v2778 = vadd.f32 %v2619, %v2777
      %2779 = vmatmul.bf16.gmra.mxu0 %v2596
      %v2780 = vpop.f32.mrf.mxu0
      %v2781 = vadd.f32 %v2619, %v2780
      %v2782 = vpop.f32.mrf.mxu0
      %v2783 = vadd.f32 %v2619, %v2782
      %2784 = vmatmul.bf16.gmra.mxu0 %v2597
      %v2785 = vpop.f32.mrf.mxu0
      %v2786 = vadd.f32 %v2619, %v2785
      %v2787 = vpop.f32.mrf.mxu0
      %v2788 = vadd.f32 %v2619, %v2787
      %2789 = vmatmul.bf16.gmra.mxu0 %v2598
      %v2790 = vpop.f32.mrf.mxu0
      %v2791 = vadd.f32 %v2619, %v2790
      %v2792 = vpop.f32.mrf.mxu0
      %v2793 = vadd.f32 %v2619, %v2792
      %2794 = vmatmul.bf16.gmra.mxu0 %v2599
      %v2795 = vpop.f32.mrf.mxu0
      %v2796 = vadd.f32 %v2619, %v2795
      %v2797 = vpop.f32.mrf.mxu0
      %v2798 = vadd.f32 %v2619, %v2797
      %2799 = vdwg.mxu0
      %v2800 = vmul.f32 %v2712, %v2712
      %v2801 = vmul.f32 %v2761, %v2761
      %v2802 = vmul.f32 %v2714, %v2714
      %v2803 = vmul.f32 %v2763, %v2763
      %v2804 = vmul.f32 %v2717, %v2717
      %v2805 = vmul.f32 %v2766, %v2766
      %v2806 = vmul.f32 %v2719, %v2719
      %v2807 = vmul.f32 %v2768, %v2768
      %v2808 = vmul.f32 %v2722, %v2722
      %v2809 = vmul.f32 %v2771, %v2771
      %v2810 = vmul.f32 %v2724, %v2724
      %v2811 = vmul.f32 %v2773, %v2773
      %v2812 = vmul.f32 %v2727, %v2727
      %v2813 = vmul.f32 %v2776, %v2776
      %v2814 = vmul.f32 %v2729, %v2729
      %v2815 = vmul.f32 %v2778, %v2778
      %v2816 = vmul.f32 %v2732, %v2732
      %v2817 = vmul.f32 %v2781, %v2781
      %v2818 = vmul.f32 %v2734, %v2734
      %v2819 = vmul.f32 %v2783, %v2783
      %v2820 = vmul.f32 %v2737, %v2737
      %v2821 = vmul.f32 %v2786, %v2786
      %v2822 = vmul.f32 %v2739, %v2739
      %v2823 = vmul.f32 %v2788, %v2788
      %v2824 = vmul.f32 %v2742, %v2742
      %v2825 = vmul.f32 %v2791, %v2791
      %v2826 = vmul.f32 %v2744, %v2744
      %v2827 = vmul.f32 %v2793, %v2793
      %v2828 = vmul.f32 %v2747, %v2747
      %v2829 = vmul.f32 %v2796, %v2796
      %v2830 = vmul.f32 %v2749, %v2749
      %v2831 = vmul.f32 %v2798, %v2798
      %v2832 = vmul.f32 %v2712, %v2800
      %v2833 = vmul.f32 %v2761, %v2801
      %v2834 = vmul.f32 %v2714, %v2802
      %v2835 = vmul.f32 %v2763, %v2803
      %v2836 = vmul.f32 %v2717, %v2804
      %v2837 = vmul.f32 %v2766, %v2805
      %v2838 = vmul.f32 %v2719, %v2806
      %v2839 = vmul.f32 %v2768, %v2807
      %v2840 = vmul.f32 %v2722, %v2808
      %v2841 = vmul.f32 %v2771, %v2809
      %v2842 = vmul.f32 %v2724, %v2810
      %v2843 = vmul.f32 %v2773, %v2811
      %v2844 = vmul.f32 %v2727, %v2812
      %v2845 = vmul.f32 %v2776, %v2813
      %v2846 = vmul.f32 %v2729, %v2814
      %v2847 = vmul.f32 %v2778, %v2815
      %v2848 = vmul.f32 %v2732, %v2816
      %v2849 = vmul.f32 %v2781, %v2817
      %v2850 = vmul.f32 %v2734, %v2818
      %v2851 = vmul.f32 %v2783, %v2819
      %v2852 = vmul.f32 %v2737, %v2820
      %v2853 = vmul.f32 %v2786, %v2821
      %v2854 = vmul.f32 %v2739, %v2822
      %v2855 = vmul.f32 %v2788, %v2823
      %v2856 = vmul.f32 %v2742, %v2824
      %v2857 = vmul.f32 %v2791, %v2825
      %v2858 = vmul.f32 %v2744, %v2826
      %v2859 = vmul.f32 %v2793, %v2827
      %v2860 = vmul.f32 %v2747, %v2828
      %v2861 = vmul.f32 %v2796, %v2829
      %v2862 = vmul.f32 %v2749, %v2830
      %v2863 = vmul.f32 %v2798, %v2831
      %v2864 = vmul.f32 %v2832, 0.044715
      %v2865 = vmul.f32 %v2833, 0.044715
      %v2866 = vmul.f32 %v2834, 0.044715
      %v2867 = vmul.f32 %v2835, 0.044715
      %v2868 = vmul.f32 %v2836, 0.044715
      %v2869 = vmul.f32 %v2837, 0.044715
      %v2870 = vmul.f32 %v2838, 0.044715
      %v2871 = vmul.f32 %v2839, 0.044715
      %v2872 = vmul.f32 %v2840, 0.044715
      %v2873 = vmul.f32 %v2841, 0.044715
      %v2874 = vmul.f32 %v2842, 0.044715
      %v2875 = vmul.f32 %v2843, 0.044715
      %v2876 = vmul.f32 %v2844, 0.044715
      %v2877 = vmul.f32 %v2845, 0.044715
      %v2878 = vmul.f32 %v2846, 0.044715
      %v2879 = vmul.f32 %v2847, 0.044715
      %v2880 = vmul.f32 %v2848, 0.044715
      %v2881 = vmul.f32 %v2849, 0.044715
      %v2882 = vmul.f32 %v2850, 0.044715
      %v2883 = vmul.f32 %v2851, 0.044715
      %v2884 = vmul.f32 %v2852, 0.044715
      %v2885 = vmul.f32 %v2853, 0.044715
      %v2886 = vmul.f32 %v2854, 0.044715
      %v2887 = vmul.f32 %v2855, 0.044715
      %v2888 = vmul.f32 %v2856, 0.044715
      %v2889 = vmul.f32 %v2857, 0.044715
      %v2890 = vmul.f32 %v2858, 0.044715
      %v2891 = vmul.f32 %v2859, 0.044715
      %v2892 = vmul.f32 %v2860, 0.044715
      %v2893 = vmul.f32 %v2861, 0.044715
      %v2894 = vmul.f32 %v2862, 0.044715
      %v2895 = vmul.f32 %v2863, 0.044715
      %v2896 = vadd.f32 %v2712, %v2864
      %v2897 = vadd.f32 %v2761, %v2865
      %v2898 = vadd.f32 %v2714, %v2866
      %v2899 = vadd.f32 %v2763, %v2867
      %v2900 = vadd.f32 %v2717, %v2868
      %v2901 = vadd.f32 %v2766, %v2869
      %v2902 = vadd.f32 %v2719, %v2870
      %v2903 = vadd.f32 %v2768, %v2871
      %v2904 = vadd.f32 %v2722, %v2872
      %v2905 = vadd.f32 %v2771, %v2873
      %v2906 = vadd.f32 %v2724, %v2874
      %v2907 = vadd.f32 %v2773, %v2875
      %v2908 = vadd.f32 %v2727, %v2876
      %v2909 = vadd.f32 %v2776, %v2877
      %v2910 = vadd.f32 %v2729, %v2878
      %v2911 = vadd.f32 %v2778, %v2879
      %v2912 = vadd.f32 %v2732, %v2880
      %v2913 = vadd.f32 %v2781, %v2881
      %v2914 = vadd.f32 %v2734, %v2882
      %v2915 = vadd.f32 %v2783, %v2883
      %v2916 = vadd.f32 %v2737, %v2884
      %v2917 = vadd.f32 %v2786, %v2885
      %v2918 = vadd.f32 %v2739, %v2886
      %v2919 = vadd.f32 %v2788, %v2887
      %v2920 = vadd.f32 %v2742, %v2888
      %v2921 = vadd.f32 %v2791, %v2889
      %v2922 = vadd.f32 %v2744, %v2890
      %v2923 = vadd.f32 %v2793, %v2891
      %v2924 = vadd.f32 %v2747, %v2892
      %v2925 = vadd.f32 %v2796, %v2893
      %v2926 = vadd.f32 %v2749, %v2894
      %v2927 = vadd.f32 %v2798, %v2895
      %v2928 = vmul.f32 %v2896, 0.7978846
      %v2929 = vmul.f32 %v2897, 0.7978846
      %v2930 = vmul.f32 %v2898, 0.7978846
      %v2931 = vmul.f32 %v2899, 0.7978846
      %v2932 = vmul.f32 %v2900, 0.7978846
      %v2933 = vmul.f32 %v2901, 0.7978846
      %v2934 = vmul.f32 %v2902, 0.7978846
      %v2935 = vmul.f32 %v2903, 0.7978846
      %v2936 = vmul.f32 %v2904, 0.7978846
      %v2937 = vmul.f32 %v2905, 0.7978846
      %v2938 = vmul.f32 %v2906, 0.7978846
      %v2939 = vmul.f32 %v2907, 0.7978846
      %v2940 = vmul.f32 %v2908, 0.7978846
      %v2941 = vmul.f32 %v2909, 0.7978846
      %v2942 = vmul.f32 %v2910, 0.7978846
      %v2943 = vmul.f32 %v2911, 0.7978846
      %v2944 = vmul.f32 %v2912, 0.7978846
      %v2945 = vmul.f32 %v2913, 0.7978846
      %v2946 = vmul.f32 %v2914, 0.7978846
      %v2947 = vmul.f32 %v2915, 0.7978846
      %v2948 = vmul.f32 %v2916, 0.7978846
      %v2949 = vmul.f32 %v2917, 0.7978846
      %v2950 = vmul.f32 %v2918, 0.7978846
      %v2951 = vmul.f32 %v2919, 0.7978846
      %v2952 = vmul.f32 %v2920, 0.7978846
      %v2953 = vmul.f32 %v2921, 0.7978846
      %v2954 = vmul.f32 %v2922, 0.7978846
      %v2955 = vmul.f32 %v2923, 0.7978846
      %v2956 = vmul.f32 %v2924, 0.7978846
      %v2957 = vmul.f32 %v2925, 0.7978846
      %v2958 = vmul.f32 %v2926, 0.7978846
      %v2959 = vmul.f32 %v2927, 0.7978846
      %v2960 = vtanh.pop %v2928
      %v2961 = vtanh.pop %v2929
      %v2962 = vtanh.pop %v2930
      %v2963 = vtanh.pop %v2931
      %v2964 = vtanh.pop %v2932
      %v2965 = vtanh.pop %v2933
      %v2966 = vtanh.pop %v2934
      %v2967 = vtanh.pop %v2935
      %v2968 = vtanh.pop %v2936
      %v2969 = vtanh.pop %v2937
      %v2970 = vtanh.pop %v2938
      %v2971 = vtanh.pop %v2939
      %v2972 = vtanh.pop %v2940
      %v2973 = vtanh.pop %v2941
      %v2974 = vtanh.pop %v2942
      %v2975 = vtanh.pop %v2943
      %v2976 = vtanh.pop %v2944
      %v2977 = vtanh.pop %v2945
      %v2978 = vtanh.pop %v2946
      %v2979 = vtanh.pop %v2947
      %v2980 = vtanh.pop %v2948
      %v2981 = vtanh.pop %v2949
      %v2982 = vtanh.pop %v2950
      %v2983 = vtanh.pop %v2951
      %v2984 = vtanh.pop %v2952
      %v2985 = vtanh.pop %v2953
      %v2986 = vtanh.pop %v2954
      %v2987 = vtanh.pop %v2955
      %v2988 = vtanh.pop %v2956
      %v2989 = vtanh.pop %v2957
      %v2990 = vtanh.pop %v2958
      %v2991 = vtanh.pop %v2959
      %v2992 = vadd.f32 %v2960, 1.0
      %v2993 = vadd.f32 %v2961, 1.0
      %v2994 = vadd.f32 %v2962, 1.0
      %v2995 = vadd.f32 %v2963, 1.0
      %v2996 = vadd.f32 %v2964, 1.0
      %v2997 = vadd.f32 %v2965, 1.0
      %v2998 = vadd.f32 %v2966, 1.0
      %v2999 = vadd.f32 %v2967, 1.0
      %v3000 = vadd.f32 %v2968, 1.0
      %v3001 = vadd.f32 %v2969, 1.0
      %v3002 = vadd.f32 %v2970, 1.0
      %v3003 = vadd.f32 %v2971, 1.0
      %v3004 = vadd.f32 %v2972, 1.0
      %v3005 = vadd.f32 %v2973, 1.0
      %v3006 = vadd.f32 %v2974, 1.0
      %v3007 = vadd.f32 %v2975, 1.0
      %v3008 = vadd.f32 %v2976, 1.0
      %v3009 = vadd.f32 %v2977, 1.0
      %v3010 = vadd.f32 %v2978, 1.0
      %v3011 = vadd.f32 %v2979, 1.0
      %v3012 = vadd.f32 %v2980, 1.0
      %v3013 = vadd.f32 %v2981, 1.0
      %v3014 = vadd.f32 %v2982, 1.0
      %v3015 = vadd.f32 %v2983, 1.0
      %v3016 = vadd.f32 %v2984, 1.0
      %v3017 = vadd.f32 %v2985, 1.0
      %v3018 = vadd.f32 %v2986, 1.0
      %v3019 = vadd.f32 %v2987, 1.0
      %v3020 = vadd.f32 %v2988, 1.0
      %v3021 = vadd.f32 %v2989, 1.0
      %v3022 = vadd.f32 %v2990, 1.0
      %v3023 = vadd.f32 %v2991, 1.0
      %v3024 = vmul.f32 %v2992, 0.5
      %v3025 = vmul.f32 %v2993, 0.5
      %v3026 = vmul.f32 %v2994, 0.5
      %v3027 = vmul.f32 %v2995, 0.5
      %v3028 = vmul.f32 %v2996, 0.5
      %v3029 = vmul.f32 %v2997, 0.5
      %v3030 = vmul.f32 %v2998, 0.5
      %v3031 = vmul.f32 %v2999, 0.5
      %v3032 = vmul.f32 %v3000, 0.5
      %v3033 = vmul.f32 %v3001, 0.5
      %v3034 = vmul.f32 %v3002, 0.5
      %v3035 = vmul.f32 %v3003, 0.5
      %v3036 = vmul.f32 %v3004, 0.5
      %v3037 = vmul.f32 %v3005, 0.5
      %v3038 = vmul.f32 %v3006, 0.5
      %v3039 = vmul.f32 %v3007, 0.5
      %v3040 = vmul.f32 %v3008, 0.5
      %v3041 = vmul.f32 %v3009, 0.5
      %v3042 = vmul.f32 %v3010, 0.5
      %v3043 = vmul.f32 %v3011, 0.5
      %v3044 = vmul.f32 %v3012, 0.5
      %v3045 = vmul.f32 %v3013, 0.5
      %v3046 = vmul.f32 %v3014, 0.5
      %v3047 = vmul.f32 %v3015, 0.5
      %v3048 = vmul.f32 %v3016, 0.5
      %v3049 = vmul.f32 %v3017, 0.5
      %v3050 = vmul.f32 %v3018, 0.5
      %v3051 = vmul.f32 %v3019, 0.5
      %v3052 = vmul.f32 %v3020, 0.5
      %v3053 = vmul.f32 %v3021, 0.5
      %v3054 = vmul.f32 %v3022, 0.5
      %v3055 = vmul.f32 %v3023, 0.5
      %v3056 = vmul.f32 %v2712, %v3024
      %v3057 = vmul.f32 %v2761, %v3025
      %v3058 = vmul.f32 %v2714, %v3026
      %v3059 = vmul.f32 %v2763, %v3027
      %v3060 = vmul.f32 %v2717, %v3028
      %v3061 = vmul.f32 %v2766, %v3029
      %v3062 = vmul.f32 %v2719, %v3030
      %v3063 = vmul.f32 %v2768, %v3031
      %v3064 = vmul.f32 %v2722, %v3032
      %v3065 = vmul.f32 %v2771, %v3033
      %v3066 = vmul.f32 %v2724, %v3034
      %v3067 = vmul.f32 %v2773, %v3035
      %v3068 = vmul.f32 %v2727, %v3036
      %v3069 = vmul.f32 %v2776, %v3037
      %v3070 = vmul.f32 %v2729, %v3038
      %v3071 = vmul.f32 %v2778, %v3039
      %v3072 = vmul.f32 %v2732, %v3040
      %v3073 = vmul.f32 %v2781, %v3041
      %v3074 = vmul.f32 %v2734, %v3042
      %v3075 = vmul.f32 %v2783, %v3043
      %v3076 = vmul.f32 %v2737, %v3044
      %v3077 = vmul.f32 %v2786, %v3045
      %v3078 = vmul.f32 %v2739, %v3046
      %v3079 = vmul.f32 %v2788, %v3047
      %v3080 = vmul.f32 %v2742, %v3048
      %v3081 = vmul.f32 %v2791, %v3049
      %v3082 = vmul.f32 %v2744, %v3050
      %v3083 = vmul.f32 %v2793, %v3051
      %v3084 = vmul.f32 %v2747, %v3052
      %v3085 = vmul.f32 %v2796, %v3053
      %v3086 = vmul.f32 %v2749, %v3054
      %v3087 = vmul.f32 %v2798, %v3055
      %v3088 = vpack.c.bf16 %v3058, %v3056
      %v3089 = vpack.c.bf16 %v3059, %v3057
      %v3090 = vpack.c.bf16 %v3062, %v3060
      %v3091 = vpack.c.bf16 %v3063, %v3061
      %v3092 = vpack.c.bf16 %v3066, %v3064
      %v3093 = vpack.c.bf16 %v3067, %v3065
      %v3094 = vpack.c.bf16 %v3070, %v3068
      %v3095 = vpack.c.bf16 %v3071, %v3069
      %v3096 = vpack.c.bf16 %v3074, %v3072
      %v3097 = vpack.c.bf16 %v3075, %v3073
      %v3098 = vpack.c.bf16 %v3078, %v3076
      %v3099 = vpack.c.bf16 %v3079, %v3077
      %v3100 = vpack.c.bf16 %v3082, %v3080
      %v3101 = vpack.c.bf16 %v3083, %v3081
      %v3102 = vpack.c.bf16 %v3086, %v3084
      %v3103 = vpack.c.bf16 %v3087, %v3085
      %v3104 = vld [vmem:[%s12] sm:$0xf]
      %v3105 = vld [vmem:[%s12 + $0x4] sm:$0xf]
      %v3106 = vld [vmem:[%s12 + $0x8] sm:$0xf]
      %v3107 = vld [vmem:[%s12 + $0xc] sm:$0xf]
      %v3108 = vld [vmem:[%s12 + $0x10] sm:$0xf]
      %v3109 = vld [vmem:[%s12 + $0x14] sm:$0xf]
      %v3110 = vld [vmem:[%s12 + $0x18] sm:$0xf]
      %v3111 = vld [vmem:[%s12 + $0x1c] sm:$0xf]
      %v3112 = vld [vmem:[%s12 + $0x20] sm:$0xf]
      %v3113 = vld [vmem:[%s12 + $0x24] sm:$0xf]
      %v3114 = vld [vmem:[%s12 + $0x28] sm:$0xf]
      %v3115 = vld [vmem:[%s12 + $0x2c] sm:$0xf]
      %v3116 = vld [vmem:[%s12 + $0x30] sm:$0xf]
      %v3117 = vld [vmem:[%s12 + $0x34] sm:$0xf]
      %v3118 = vld [vmem:[%s12 + $0x38] sm:$0xf]
      %v3119 = vld [vmem:[%s12 + $0x3c] sm:$0xf]
      %v3120 = vld [vmem:[%s12 + $0x40] sm:$0xf]
      %v3121 = vld [vmem:[%s12 + $0x44] sm:$0xf]
      %v3122 = vld [vmem:[%s12 + $0x48] sm:$0xf]
      %v3123 = vld [vmem:[%s12 + $0x4c] sm:$0xf]
      %v3124 = vld [vmem:[%s12 + $0x50] sm:$0xf]
      %v3125 = vld [vmem:[%s12 + $0x54] sm:$0xf]
      %v3126 = vld [vmem:[%s12 + $0x58] sm:$0xf]
      %v3127 = vld [vmem:[%s12 + $0x5c] sm:$0xf]
      %v3128 = vld [vmem:[%s12 + $0x60] sm:$0xf]
      %v3129 = vld [vmem:[%s12 + $0x64] sm:$0xf]
      %v3130 = vld [vmem:[%s12 + $0x68] sm:$0xf]
      %v3131 = vld [vmem:[%s12 + $0x6c] sm:$0xf]
      %v3132 = vld [vmem:[%s12 + $0x70] sm:$0xf]
      %v3133 = vld [vmem:[%s12 + $0x74] sm:$0xf]
      %v3134 = vld [vmem:[%s12 + $0x78] sm:$0xf]
      %v3135 = vld [vmem:[%s12 + $0x7c] sm:$0xf]
      %v3136 = vld [vmem:[%s13] sm:$0x1]
      %v3138 = vperm.slane %v3136, 0
      %v3172 = vunpack.c.l.b16 %v3104
      %v3173 = vunpack.c.l.b16 %v3105
      %v3174 = vunpack.c.l.b16 %v3106
      %v3175 = vunpack.c.l.b16 %v3107
      %v3176 = vunpack.c.l.b16 %v3108
      %v3177 = vunpack.c.l.b16 %v3109
      %v3178 = vunpack.c.l.b16 %v3110
      %v3179 = vunpack.c.l.b16 %v3111
      %v3180 = vunpack.c.l.b16 %v3112
      %v3181 = vunpack.c.l.b16 %v3113
      %v3182 = vunpack.c.l.b16 %v3114
      %v3183 = vunpack.c.l.b16 %v3115
      %v3184 = vunpack.c.l.b16 %v3116
      %v3185 = vunpack.c.l.b16 %v3117
      %v3186 = vunpack.c.l.b16 %v3118
      %v3187 = vunpack.c.l.b16 %v3119
      %v3188 = vunpack.c.l.b16 %v3120
      %v3189 = vunpack.c.l.b16 %v3121
      %v3190 = vunpack.c.l.b16 %v3122
      %v3191 = vunpack.c.l.b16 %v3123
      %v3192 = vunpack.c.l.b16 %v3124
      %v3193 = vunpack.c.l.b16 %v3125
      %v3194 = vunpack.c.l.b16 %v3126
      %v3195 = vunpack.c.l.b16 %v3127
      %v3196 = vunpack.c.l.b16 %v3128
      %v3197 = vunpack.c.l.b16 %v3129
      %v3198 = vunpack.c.l.b16 %v3130
      %v3199 = vunpack.c.l.b16 %v3131
      %v3200 = vunpack.c.l.b16 %v3132
      %v3201 = vunpack.c.l.b16 %v3133
      %v3202 = vunpack.c.l.b16 %v3134
      %v3203 = vunpack.c.l.b16 %v3135
      %v3204 = vpack.c.b16 %v3173, %v3172
      %v3205 = vpack.c.b16 %v3175, %v3174
      %v3206 = vpack.c.b16 %v3177, %v3176
      %v3207 = vpack.c.b16 %v3179, %v3178
      %v3208 = vpack.c.b16 %v3181, %v3180
      %v3209 = vpack.c.b16 %v3183, %v3182
      %v3210 = vpack.c.b16 %v3185, %v3184
      %v3211 = vpack.c.b16 %v3187, %v3186
      %v3212 = vpack.c.b16 %v3189, %v3188
      %v3213 = vpack.c.b16 %v3191, %v3190
      %v3214 = vpack.c.b16 %v3193, %v3192
      %v3215 = vpack.c.b16 %v3195, %v3194
      %v3216 = vpack.c.b16 %v3197, %v3196
      %v3217 = vpack.c.b16 %v3199, %v3198
      %v3218 = vpack.c.b16 %v3201, %v3200
      %v3219 = vpack.c.b16 %v3203, %v3202
      %3236 = vmatpush.bf16.msra.mxu0 %v3211
      %3237 = vmatpush.bf16.msra.mxu0 %v3210
      %3238 = vmatpush.bf16.msra.mxu0 %v3209
      %3239 = vmatpush.bf16.msra.mxu0 %v3208
      %3240 = vmatpush.bf16.msra.mxu0 %v3207
      %3241 = vmatpush.bf16.msra.mxu0 %v3206
      %3242 = vmatpush.bf16.msra.mxu0 %v3205
      %3243 = vmatpush.bf16.msra.mxu0 %v3204
      %3244 = vmatmul.bf16.gmra.mxu0 %v3088
      %v3245 = vpop.f32.mrf.mxu0
      %v3246 = vadd.f32 %v3138, %v3245
      %v3247 = vpop.f32.mrf.mxu0
      %v3248 = vadd.f32 %v3138, %v3247
      %3249 = vmatmul.bf16.gmra.mxu0 %v3090
      %v3250 = vpop.f32.mrf.mxu0
      %v3251 = vadd.f32 %v3138, %v3250
      %v3252 = vpop.f32.mrf.mxu0
      %v3253 = vadd.f32 %v3138, %v3252
      %3254 = vmatmul.bf16.gmra.mxu0 %v3092
      %v3255 = vpop.f32.mrf.mxu0
      %v3256 = vadd.f32 %v3138, %v3255
      %v3257 = vpop.f32.mrf.mxu0
      %v3258 = vadd.f32 %v3138, %v3257
      %3259 = vmatmul.bf16.gmra.mxu0 %v3094
      %v3260 = vpop.f32.mrf.mxu0
      %v3261 = vadd.f32 %v3138, %v3260
      %v3262 = vpop.f32.mrf.mxu0
      %v3263 = vadd.f32 %v3138, %v3262
      %3264 = vmatmul.bf16.gmra.mxu0 %v3096
      %v3265 = vpop.f32.mrf.mxu0
      %v3266 = vadd.f32 %v3138, %v3265
      %v3267 = vpop.f32.mrf.mxu0
      %v3268 = vadd.f32 %v3138, %v3267
      %3269 = vmatmul.bf16.gmra.mxu0 %v3098
      %v3270 = vpop.f32.mrf.mxu0
      %v3271 = vadd.f32 %v3138, %v3270
      %v3272 = vpop.f32.mrf.mxu0
      %v3273 = vadd.f32 %v3138, %v3272
      %3274 = vmatmul.bf16.gmra.mxu0 %v3100
      %v3275 = vpop.f32.mrf.mxu0
      %v3276 = vadd.f32 %v3138, %v3275
      %v3277 = vpop.f32.mrf.mxu0
      %v3278 = vadd.f32 %v3138, %v3277
      %3279 = vmatmul.bf16.gmra.mxu0 %v3102
      %v3280 = vpop.f32.mrf.mxu0
      %v3281 = vadd.f32 %v3138, %v3280
      %v3282 = vpop.f32.mrf.mxu0
      %v3283 = vadd.f32 %v3138, %v3282
      %3284 = vdwg.mxu0
      %3285 = vmatpush.bf16.msra.mxu0 %v3219
      %3286 = vmatpush.bf16.msra.mxu0 %v3218
      %3287 = vmatpush.bf16.msra.mxu0 %v3217
      %3288 = vmatpush.bf16.msra.mxu0 %v3216
      %3289 = vmatpush.bf16.msra.mxu0 %v3215
      %3290 = vmatpush.bf16.msra.mxu0 %v3214
      %3291 = vmatpush.bf16.msra.mxu0 %v3213
      %3292 = vmatpush.bf16.msra.mxu0 %v3212
      %3293 = vmatmul.bf16.gmra.mxu0 %v3089
      %v3294 = vpop.f32.mrf.mxu0
      %v3295 = vadd.f32 %v3246, %v3294
      %v3296 = vpop.f32.mrf.mxu0
      %v3297 = vadd.f32 %v3248, %v3296
      %3298 = vmatmul.bf16.gmra.mxu0 %v3091
      %v3299 = vpop.f32.mrf.mxu0
      %v3300 = vadd.f32 %v3251, %v3299
      %v3301 = vpop.f32.mrf.mxu0
      %v3302 = vadd.f32 %v3253, %v3301
      %3303 = vmatmul.bf16.gmra.mxu0 %v3093
      %v3304 = vpop.f32.mrf.mxu0
      %v3305 = vadd.f32 %v3256, %v3304
      %v3306 = vpop.f32.mrf.mxu0
      %v3307 = vadd.f32 %v3258, %v3306
      %3308 = vmatmul.bf16.gmra.mxu0 %v3095
      %v3309 = vpop.f32.mrf.mxu0
      %v3310 = vadd.f32 %v3261, %v3309
      %v3311 = vpop.f32.mrf.mxu0
      %v3312 = vadd.f32 %v3263, %v3311
      %3313 = vmatmul.bf16.gmra.mxu0 %v3097
      %v3314 = vpop.f32.mrf.mxu0
      %v3315 = vadd.f32 %v3266, %v3314
      %v3316 = vpop.f32.mrf.mxu0
      %v3317 = vadd.f32 %v3268, %v3316
      %3318 = vmatmul.bf16.gmra.mxu0 %v3099
      %v3319 = vpop.f32.mrf.mxu0
      %v3320 = vadd.f32 %v3271, %v3319
      %v3321 = vpop.f32.mrf.mxu0
      %v3322 = vadd.f32 %v3273, %v3321
      %3323 = vmatmul.bf16.gmra.mxu0 %v3101
      %v3324 = vpop.f32.mrf.mxu0
      %v3325 = vadd.f32 %v3276, %v3324
      %v3326 = vpop.f32.mrf.mxu0
      %v3327 = vadd.f32 %v3278, %v3326
      %3328 = vmatmul.bf16.gmra.mxu0 %v3103
      %v3329 = vpop.f32.mrf.mxu0
      %v3330 = vadd.f32 %v3281, %v3329
      %v3331 = vpop.f32.mrf.mxu0
      %v3332 = vadd.f32 %v3283, %v3331
      %3333 = vdwg.mxu0
      %v3334 = vadd.f32 %v3295, %v2576
      %v3335 = vadd.f32 %v3297, %v2577
      %v3336 = vadd.f32 %v3300, %v2578
      %v3337 = vadd.f32 %v3302, %v2579
      %v3338 = vadd.f32 %v3305, %v2580
      %v3339 = vadd.f32 %v3307, %v2581
      %v3340 = vadd.f32 %v3310, %v2582
      %v3341 = vadd.f32 %v3312, %v2583
      %v3342 = vadd.f32 %v3315, %v2584
      %v3343 = vadd.f32 %v3317, %v2585
      %v3344 = vadd.f32 %v3320, %v2586
      %v3345 = vadd.f32 %v3322, %v2587
      %v3346 = vadd.f32 %v3325, %v2588
      %v3347 = vadd.f32 %v3327, %v2589
      %v3348 = vadd.f32 %v3330, %v2590
      %v3349 = vadd.f32 %v3332, %v2591
      %v3350 = vld [vmem:[%s14] sm:$0x1]
      %v3351 = vld [vmem:[%s15] sm:$0x1]
      %3352 = vadd.xlane.f32.xlu0 %v3334
      %v3353 = vpop.xlane.xlu0 %3352
      %3354 = vadd.xlane.f32.xlu0 %v3335
      %v3355 = vpop.xlane.xlu0 %3354
      %3356 = vadd.xlane.f32.xlu0 %v3336
      %v3357 = vpop.xlane.xlu0 %3356
      %3358 = vadd.xlane.f32.xlu0 %v3337
      %v3359 = vpop.xlane.xlu0 %3358
      %3360 = vadd.xlane.f32.xlu0 %v3338
      %v3361 = vpop.xlane.xlu0 %3360
      %3362 = vadd.xlane.f32.xlu0 %v3339
      %v3363 = vpop.xlane.xlu0 %3362
      %3364 = vadd.xlane.f32.xlu0 %v3340
      %v3365 = vpop.xlane.xlu0 %3364
      %3366 = vadd.xlane.f32.xlu0 %v3341
      %v3367 = vpop.xlane.xlu0 %3366
      %3368 = vadd.xlane.f32.xlu0 %v3342
      %v3369 = vpop.xlane.xlu0 %3368
      %3370 = vadd.xlane.f32.xlu0 %v3343
      %v3371 = vpop.xlane.xlu0 %3370
      %3372 = vadd.xlane.f32.xlu0 %v3344
      %v3373 = vpop.xlane.xlu0 %3372
      %3374 = vadd.xlane.f32.xlu0 %v3345
      %v3375 = vpop.xlane.xlu0 %3374
      %3376 = vadd.xlane.f32.xlu0 %v3346
      %v3377 = vpop.xlane.xlu0 %3376
      %3378 = vadd.xlane.f32.xlu0 %v3347
      %v3379 = vpop.xlane.xlu0 %3378
      %3380 = vadd.xlane.f32.xlu0 %v3348
      %v3381 = vpop.xlane.xlu0 %3380
      %3382 = vadd.xlane.f32.xlu0 %v3349
      %v3383 = vpop.xlane.xlu0 %3382
      %v3384 = vmul.f32 %v3353, %v592
      %v3385 = vmul.f32 %v3355, %v592
      %v3386 = vmul.f32 %v3357, %v592
      %v3387 = vmul.f32 %v3359, %v592
      %v3388 = vmul.f32 %v3361, %v592
      %v3389 = vmul.f32 %v3363, %v592
      %v3390 = vmul.f32 %v3365, %v592
      %v3391 = vmul.f32 %v3367, %v592
      %v3392 = vmul.f32 %v3369, %v592
      %v3393 = vmul.f32 %v3371, %v592
      %v3394 = vmul.f32 %v3373, %v592
      %v3395 = vmul.f32 %v3375, %v592
      %v3396 = vmul.f32 %v3377, %v592
      %v3397 = vmul.f32 %v3379, %v592
      %v3398 = vmul.f32 %v3381, %v592
      %v3399 = vmul.f32 %v3383, %v592
      %v3400 = vsub.f32 %v3334, %v3384
      %v3401 = vsub.f32 %v3335, %v3385
      %v3402 = vsub.f32 %v3336, %v3386
      %v3403 = vsub.f32 %v3337, %v3387
      %v3404 = vsub.f32 %v3338, %v3388
      %v3405 = vsub.f32 %v3339, %v3389
      %v3406 = vsub.f32 %v3340, %v3390
      %v3407 = vsub.f32 %v3341, %v3391
      %v3408 = vsub.f32 %v3342, %v3392
      %v3409 = vsub.f32 %v3343, %v3393
      %v3410 = vsub.f32 %v3344, %v3394
      %v3411 = vsub.f32 %v3345, %v3395
      %v3412 = vsub.f32 %v3346, %v3396
      %v3413 = vsub.f32 %v3347, %v3397
      %v3414 = vsub.f32 %v3348, %v3398
      %v3415 = vsub.f32 %v3349, %v3399
      %v3416 = vmul.f32 %v3400, %v3400
      %v3417 = vmul.f32 %v3401, %v3401
      %v3418 = vmul.f32 %v3402, %v3402
      %v3419 = vmul.f32 %v3403, %v3403
      %v3420 = vmul.f32 %v3404, %v3404
      %v3421 = vmul.f32 %v3405, %v3405
      %v3422 = vmul.f32 %v3406, %v3406
      %v3423 = vmul.f32 %v3407, %v3407
      %v3424 = vmul.f32 %v3408, %v3408
      %v3425 = vmul.f32 %v3409, %v3409
      %v3426 = vmul.f32 %v3410, %v3410
      %v3427 = vmul.f32 %v3411, %v3411
      %v3428 = vmul.f32 %v3412, %v3412
      %v3429 = vmul.f32 %v3413, %v3413
      %v3430 = vmul.f32 %v3414, %v3414
      %v3431 = vmul.f32 %v3415, %v3415
      %3432 = vadd.xlane.f32.xlu0 %v3416
      %v3433 = vpop.xlane.xlu0 %3432
      %3434 = vadd.xlane.f32.xlu0 %v3417
      %v3435 = vpop.xlane.xlu0 %3434
      %3436 = vadd.xlane.f32.xlu0 %v3418
      %v3437 = vpop.xlane.xlu0 %3436
      %3438 = vadd.xlane.f32.xlu0 %v3419
      %v3439 = vpop.xlane.xlu0 %3438
      %3440 = vadd.xlane.f32.xlu0 %v3420
      %v3441 = vpop.xlane.xlu0 %3440
      %3442 = vadd.xlane.f32.xlu0 %v3421
      %v3443 = vpop.xlane.xlu0 %3442
      %3444 = vadd.xlane.f32.xlu0 %v3422
      %v3445 = vpop.xlane.xlu0 %3444
      %3446 = vadd.xlane.f32.xlu0 %v3423
      %v3447 = vpop.xlane.xlu0 %3446
      %3448 = vadd.xlane.f32.xlu0 %v3424
      %v3449 = vpop.xlane.xlu0 %3448
      %3450 = vadd.xlane.f32.xlu0 %v3425
      %v3451 = vpop.xlane.xlu0 %3450
      %3452 = vadd.xlane.f32.xlu0 %v3426
      %v3453 = vpop.xlane.xlu0 %3452
      %3454 = vadd.xlane.f32.xlu0 %v3427
      %v3455 = vpop.xlane.xlu0 %3454
      %3456 = vadd.xlane.f32.xlu0 %v3428
      %v3457 = vpop.xlane.xlu0 %3456
      %3458 = vadd.xlane.f32.xlu0 %v3429
      %v3459 = vpop.xlane.xlu0 %3458
      %3460 = vadd.xlane.f32.xlu0 %v3430
      %v3461 = vpop.xlane.xlu0 %3460
      %3462 = vadd.xlane.f32.xlu0 %v3431
      %v3463 = vpop.xlane.xlu0 %3462
      %v3464 = vmul.f32 %v3433, %v592
      %v3465 = vmul.f32 %v3435, %v592
      %v3466 = vmul.f32 %v3437, %v592
      %v3467 = vmul.f32 %v3439, %v592
      %v3468 = vmul.f32 %v3441, %v592
      %v3469 = vmul.f32 %v3443, %v592
      %v3470 = vmul.f32 %v3445, %v592
      %v3471 = vmul.f32 %v3447, %v592
      %v3472 = vmul.f32 %v3449, %v592
      %v3473 = vmul.f32 %v3451, %v592
      %v3474 = vmul.f32 %v3453, %v592
      %v3475 = vmul.f32 %v3455, %v592
      %v3476 = vmul.f32 %v3457, %v592
      %v3477 = vmul.f32 %v3459, %v592
      %v3478 = vmul.f32 %v3461, %v592
      %v3479 = vmul.f32 %v3463, %v592
      %v3480 = vadd.f32 %v3464, 1e-12
      %v3481 = vadd.f32 %v3465, 1e-12
      %v3482 = vadd.f32 %v3466, 1e-12
      %v3483 = vadd.f32 %v3467, 1e-12
      %v3484 = vadd.f32 %v3468, 1e-12
      %v3485 = vadd.f32 %v3469, 1e-12
      %v3486 = vadd.f32 %v3470, 1e-12
      %v3487 = vadd.f32 %v3471, 1e-12
      %v3488 = vadd.f32 %v3472, 1e-12
      %v3489 = vadd.f32 %v3473, 1e-12
      %v3490 = vadd.f32 %v3474, 1e-12
      %v3491 = vadd.f32 %v3475, 1e-12
      %v3492 = vadd.f32 %v3476, 1e-12
      %v3493 = vadd.f32 %v3477, 1e-12
      %v3494 = vadd.f32 %v3478, 1e-12
      %v3495 = vadd.f32 %v3479, 1e-12
      %v3496 = vrsqrt.pop %v3480
      %v3497 = vmul.f32 %v3496, %v3480
      %v3498 = vmul.f32 %v3497, %v3496
      %v3499 = vmul.f32 0.5, %v3498
      %v3500 = vsub.f32 1.5, %v3499
      %v3501 = vmul.f32 %v3496, %v3500
      %vm3502 = vweird.f32 %v3480
      %vm3503 = vweird.f32 %v3496
      %vm3504 = vmor %vm3502, %vm3503
      %v3505 = vsel %vm3504, %v3496, %v3501
      %v3506 = vrsqrt.pop %v3481
      %v3507 = vmul.f32 %v3506, %v3481
      %v3508 = vmul.f32 %v3507, %v3506
      %v3509 = vmul.f32 0.5, %v3508
      %v3510 = vsub.f32 1.5, %v3509
      %v3511 = vmul.f32 %v3506, %v3510
      %vm3512 = vweird.f32 %v3481
      %vm3513 = vweird.f32 %v3506
      %vm3514 = vmor %vm3512, %vm3513
      %v3515 = vsel %vm3514, %v3506, %v3511
      %v3516 = vrsqrt.pop %v3482
      %v3517 = vmul.f32 %v3516, %v3482
      %v3518 = vmul.f32 %v3517, %v3516
      %v3519 = vmul.f32 0.5, %v3518
      %v3520 = vsub.f32 1.5, %v3519
      %v3521 = vmul.f32 %v3516, %v3520
      %vm3522 = vweird.f32 %v3482
      %vm3523 = vweird.f32 %v3516
      %vm3524 = vmor %vm3522, %vm3523
      %v3525 = vsel %vm3524, %v3516, %v3521
      %v3526 = vrsqrt.pop %v3483
      %v3527 = vmul.f32 %v3526, %v3483
      %v3528 = vmul.f32 %v3527, %v3526
      %v3529 = vmul.f32 0.5, %v3528
      %v3530 = vsub.f32 1.5, %v3529
      %v3531 = vmul.f32 %v3526, %v3530
      %vm3532 = vweird.f32 %v3483
      %vm3533 = vweird.f32 %v3526
      %vm3534 = vmor %vm3532, %vm3533
      %v3535 = vsel %vm3534, %v3526, %v3531
      %v3536 = vrsqrt.pop %v3484
      %v3537 = vmul.f32 %v3536, %v3484
      %v3538 = vmul.f32 %v3537, %v3536
      %v3539 = vmul.f32 0.5, %v3538
      %v3540 = vsub.f32 1.5, %v3539
      %v3541 = vmul.f32 %v3536, %v3540
      %vm3542 = vweird.f32 %v3484
      %vm3543 = vweird.f32 %v3536
      %vm3544 = vmor %vm3542, %vm3543
      %v3545 = vsel %vm3544, %v3536, %v3541
      %v3546 = vrsqrt.pop %v3485
      %v3547 = vmul.f32 %v3546, %v3485
      %v3548 = vmul.f32 %v3547, %v3546
      %v3549 = vmul.f32 0.5, %v3548
      %v3550 = vsub.f32 1.5, %v3549
      %v3551 = vmul.f32 %v3546, %v3550
      %vm3552 = vweird.f32 %v3485
      %vm3553 = vweird.f32 %v3546
      %vm3554 = vmor %vm3552, %vm3553
      %v3555 = vsel %vm3554, %v3546, %v3551
      %v3556 = vrsqrt.pop %v3486
      %v3557 = vmul.f32 %v3556, %v3486
      %v3558 = vmul.f32 %v3557, %v3556
      %v3559 = vmul.f32 0.5, %v3558
      %v3560 = vsub.f32 1.5, %v3559
      %v3561 = vmul.f32 %v3556, %v3560
      %vm3562 = vweird.f32 %v3486
      %vm3563 = vweird.f32 %v3556
      %vm3564 = vmor %vm3562, %vm3563
      %v3565 = vsel %vm3564, %v3556, %v3561
      %v3566 = vrsqrt.pop %v3487
      %v3567 = vmul.f32 %v3566, %v3487
      %v3568 = vmul.f32 %v3567, %v3566
      %v3569 = vmul.f32 0.5, %v3568
      %v3570 = vsub.f32 1.5, %v3569
      %v3571 = vmul.f32 %v3566, %v3570
      %vm3572 = vweird.f32 %v3487
      %vm3573 = vweird.f32 %v3566
      %vm3574 = vmor %vm3572, %vm3573
      %v3575 = vsel %vm3574, %v3566, %v3571
      %v3576 = vrsqrt.pop %v3488
      %v3577 = vmul.f32 %v3576, %v3488
      %v3578 = vmul.f32 %v3577, %v3576
      %v3579 = vmul.f32 0.5, %v3578
      %v3580 = vsub.f32 1.5, %v3579
      %v3581 = vmul.f32 %v3576, %v3580
      %vm3582 = vweird.f32 %v3488
      %vm3583 = vweird.f32 %v3576
      %vm3584 = vmor %vm3582, %vm3583
      %v3585 = vsel %vm3584, %v3576, %v3581
      %v3586 = vrsqrt.pop %v3489
      %v3587 = vmul.f32 %v3586, %v3489
      %v3588 = vmul.f32 %v3587, %v3586
      %v3589 = vmul.f32 0.5, %v3588
      %v3590 = vsub.f32 1.5, %v3589
      %v3591 = vmul.f32 %v3586, %v3590
      %vm3592 = vweird.f32 %v3489
      %vm3593 = vweird.f32 %v3586
      %vm3594 = vmor %vm3592, %vm3593
      %v3595 = vsel %vm3594, %v3586, %v3591
      %v3596 = vrsqrt.pop %v3490
      %v3597 = vmul.f32 %v3596, %v3490
      %v3598 = vmul.f32 %v3597, %v3596
      %v3599 = vmul.f32 0.5, %v3598
      %v3600 = vsub.f32 1.5, %v3599
      %v3601 = vmul.f32 %v3596, %v3600
      %vm3602 = vweird.f32 %v3490
      %vm3603 = vweird.f32 %v3596
      %vm3604 = vmor %vm3602, %vm3603
      %v3605 = vsel %vm3604, %v3596, %v3601
      %v3606 = vrsqrt.pop %v3491
      %v3607 = vmul.f32 %v3606, %v3491
      %v3608 = vmul.f32 %v3607, %v3606
      %v3609 = vmul.f32 0.5, %v3608
      %v3610 = vsub.f32 1.5, %v3609
      %v3611 = vmul.f32 %v3606, %v3610
      %vm3612 = vweird.f32 %v3491
      %vm3613 = vweird.f32 %v3606
      %vm3614 = vmor %vm3612, %vm3613
      %v3615 = vsel %vm3614, %v3606, %v3611
      %v3616 = vrsqrt.pop %v3492
      %v3617 = vmul.f32 %v3616, %v3492
      %v3618 = vmul.f32 %v3617, %v3616
      %v3619 = vmul.f32 0.5, %v3618
      %v3620 = vsub.f32 1.5, %v3619
      %v3621 = vmul.f32 %v3616, %v3620
      %vm3622 = vweird.f32 %v3492
      %vm3623 = vweird.f32 %v3616
      %vm3624 = vmor %vm3622, %vm3623
      %v3625 = vsel %vm3624, %v3616, %v3621
      %v3626 = vrsqrt.pop %v3493
      %v3627 = vmul.f32 %v3626, %v3493
      %v3628 = vmul.f32 %v3627, %v3626
      %v3629 = vmul.f32 0.5, %v3628
      %v3630 = vsub.f32 1.5, %v3629
      %v3631 = vmul.f32 %v3626, %v3630
      %vm3632 = vweird.f32 %v3493
      %vm3633 = vweird.f32 %v3626
      %vm3634 = vmor %vm3632, %vm3633
      %v3635 = vsel %vm3634, %v3626, %v3631
      %v3636 = vrsqrt.pop %v3494
      %v3637 = vmul.f32 %v3636, %v3494
      %v3638 = vmul.f32 %v3637, %v3636
      %v3639 = vmul.f32 0.5, %v3638
      %v3640 = vsub.f32 1.5, %v3639
      %v3641 = vmul.f32 %v3636, %v3640
      %vm3642 = vweird.f32 %v3494
      %vm3643 = vweird.f32 %v3636
      %vm3644 = vmor %vm3642, %vm3643
      %v3645 = vsel %vm3644, %v3636, %v3641
      %v3646 = vrsqrt.pop %v3495
      %v3647 = vmul.f32 %v3646, %v3495
      %v3648 = vmul.f32 %v3647, %v3646
      %v3649 = vmul.f32 0.5, %v3648
      %v3650 = vsub.f32 1.5, %v3649
      %v3651 = vmul.f32 %v3646, %v3650
      %vm3652 = vweird.f32 %v3495
      %vm3653 = vweird.f32 %v3646
      %vm3654 = vmor %vm3652, %vm3653
      %v3655 = vsel %vm3654, %v3646, %v3651
      %v3656 = vmul.f32 %v3400, %v3505
      %v3657 = vmul.f32 %v3401, %v3515
      %v3658 = vmul.f32 %v3402, %v3525
      %v3659 = vmul.f32 %v3403, %v3535
      %v3660 = vmul.f32 %v3404, %v3545
      %v3661 = vmul.f32 %v3405, %v3555
      %v3662 = vmul.f32 %v3406, %v3565
      %v3663 = vmul.f32 %v3407, %v3575
      %v3664 = vmul.f32 %v3408, %v3585
      %v3665 = vmul.f32 %v3409, %v3595
      %v3666 = vmul.f32 %v3410, %v3605
      %v3667 = vmul.f32 %v3411, %v3615
      %v3668 = vmul.f32 %v3412, %v3625
      %v3669 = vmul.f32 %v3413, %v3635
      %v3670 = vmul.f32 %v3414, %v3645
      %v3671 = vmul.f32 %v3415, %v3655
      %v3673 = vperm.slane %v3350, 0
      %v3675 = vmul.f32 %v3656, %v3673
      %v3676 = vmul.f32 %v3657, %v3673
      %v3677 = vmul.f32 %v3658, %v3673
      %v3678 = vmul.f32 %v3659, %v3673
      %v3679 = vmul.f32 %v3660, %v3673
      %v3680 = vmul.f32 %v3661, %v3673
      %v3681 = vmul.f32 %v3662, %v3673
      %v3682 = vmul.f32 %v3663, %v3673
      %v3683 = vmul.f32 %v3664, %v3673
      %v3684 = vmul.f32 %v3665, %v3673
      %v3685 = vmul.f32 %v3666, %v3673
      %v3686 = vmul.f32 %v3667, %v3673
      %v3687 = vmul.f32 %v3668, %v3673
      %v3688 = vmul.f32 %v3669, %v3673
      %v3689 = vmul.f32 %v3670, %v3673
      %v3690 = vmul.f32 %v3671, %v3673
      %v3692 = vperm.slane %v3351, 0
      %v3694 = vadd.f32 %v3675, %v3692
      %v3695 = vadd.f32 %v3676, %v3692
      %v3696 = vadd.f32 %v3677, %v3692
      %v3697 = vadd.f32 %v3678, %v3692
      %v3698 = vadd.f32 %v3679, %v3692
      %v3699 = vadd.f32 %v3680, %v3692
      %v3700 = vadd.f32 %v3681, %v3692
      %v3701 = vadd.f32 %v3682, %v3692
      %v3702 = vadd.f32 %v3683, %v3692
      %v3703 = vadd.f32 %v3684, %v3692
      %v3704 = vadd.f32 %v3685, %v3692
      %v3705 = vadd.f32 %v3686, %v3692
      %v3706 = vadd.f32 %v3687, %v3692
      %v3707 = vadd.f32 %v3688, %v3692
      %v3708 = vadd.f32 %v3689, %v3692
      %v3709 = vadd.f32 %v3690, %v3692
      %v3710 = vpack.c.bf16 %v3695, %v3694
      %v3711 = vpack.c.bf16 %v3697, %v3696
      %v3712 = vpack.c.bf16 %v3699, %v3698
      %v3713 = vpack.c.bf16 %v3701, %v3700
      %v3714 = vpack.c.bf16 %v3703, %v3702
      %v3715 = vpack.c.bf16 %v3705, %v3704
      %v3716 = vpack.c.bf16 %v3707, %v3706
      %v3717 = vpack.c.bf16 %v3709, %v3708
      %s3718 = scalar_lea.vmem %s4, 192
      %v3719 = vld [vmem:[%s3718] sm:$0xff]
      %v3720 = vld [vmem:[%s3718 + $0x8] sm:$0xf]
      %v3721 = vld [vmem:[%s3718 + $0xc] sm:$0xff]
      %v3722 = vld [vmem:[%s3718 + $0x14] sm:$0xf]
      %v3723 = vld [vmem:[%s3718 + $0x18] sm:$0xff]
      %v3724 = vld [vmem:[%s3718 + $0x20] sm:$0xf]
      %v3725 = vld [vmem:[%s3718 + $0x24] sm:$0xff]
      %v3726 = vld [vmem:[%s3718 + $0x2c] sm:$0xf]
      %v3727 = vld [vmem:[%s3718 + $0x30] sm:$0xff]
      %v3728 = vld [vmem:[%s3718 + $0x38] sm:$0xf]
      %v3729 = vld [vmem:[%s3718 + $0x3c] sm:$0xff]
      %v3730 = vld [vmem:[%s3718 + $0x44] sm:$0xf]
      %v3731 = vld [vmem:[%s3718 + $0x48] sm:$0xff]
      %v3732 = vld [vmem:[%s3718 + $0x50] sm:$0xf]
      %v3733 = vld [vmem:[%s3718 + $0x54] sm:$0xff]
      %v3734 = vld [vmem:[%s3718 + $0x5c] sm:$0xf]
      %v3735 = vld [vmem:[%s3718 + $0x60] sm:$0xff]
      %v3736 = vld [vmem:[%s3718 + $0x68] sm:$0xf]
      %v3737 = vld [vmem:[%s3718 + $0x6c] sm:$0xff]
      %v3738 = vld [vmem:[%s3718 + $0x74] sm:$0xf]
      %v3739 = vld [vmem:[%s3718 + $0x78] sm:$0xff]
      %v3740 = vld [vmem:[%s3718 + $0x80] sm:$0xf]
      %v3741 = vld [vmem:[%s3718 + $0x84] sm:$0xff]
      %v3742 = vld [vmem:[%s3718 + $0x8c] sm:$0xf]
      %v3743 = vld [vmem:[%s3718 + $0x90] sm:$0xff]
      %v3744 = vld [vmem:[%s3718 + $0x98] sm:$0xf]
      %v3745 = vld [vmem:[%s3718 + $0x9c] sm:$0xff]
      %v3746 = vld [vmem:[%s3718 + $0xa4] sm:$0xf]
      %v3747 = vld [vmem:[%s3718 + $0xa8] sm:$0xff]
      %v3748 = vld [vmem:[%s3718 + $0xb0] sm:$0xf]
      %v3749 = vld [vmem:[%s3718 + $0xb4] sm:$0xff]
      %v3750 = vld [vmem:[%s3718 + $0xbc] sm:$0xf]
      %s3751 = scalar_lea.vmem %s5, 3
      %v3752 = vld [vmem:[%s3751] sm:$0x7]
      %v3754 = vperm.slane %v3752, 0
      %v3755 = vperm.slane %v3752, 1
      %v3756 = vperm.slane %v3752, 2
      %v3792 = vunpack.c.l.b16 %v3719
      %v3793 = vunpack.c.h.b16 %v3719
      %v3794 = vunpack.c.l.b16 %v3720
      %v3795 = vunpack.c.l.b16 %v3721
      %v3796 = vunpack.c.h.b16 %v3721
      %v3797 = vunpack.c.l.b16 %v3722
      %v3798 = vunpack.c.l.b16 %v3723
      %v3799 = vunpack.c.h.b16 %v3723
      %v3800 = vunpack.c.l.b16 %v3724
      %v3801 = vunpack.c.l.b16 %v3725
      %v3802 = vunpack.c.h.b16 %v3725
      %v3803 = vunpack.c.l.b16 %v3726
      %v3804 = vunpack.c.l.b16 %v3727
      %v3805 = vunpack.c.h.b16 %v3727
      %v3806 = vunpack.c.l.b16 %v3728
      %v3807 = vunpack.c.l.b16 %v3729
      %v3808 = vunpack.c.h.b16 %v3729
      %v3809 = vunpack.c.l.b16 %v3730
      %v3810 = vunpack.c.l.b16 %v3731
      %v3811 = vunpack.c.h.b16 %v3731
      %v3812 = vunpack.c.l.b16 %v3732
      %v3813 = vunpack.c.l.b16 %v3733
      %v3814 = vunpack.c.h.b16 %v3733
      %v3815 = vunpack.c.l.b16 %v3734
      %v3816 = vunpack.c.l.b16 %v3735
      %v3817 = vunpack.c.h.b16 %v3735
      %v3818 = vunpack.c.l.b16 %v3736
      %v3819 = vunpack.c.l.b16 %v3737
      %v3820 = vunpack.c.h.b16 %v3737
      %v3821 = vunpack.c.l.b16 %v3738
      %v3822 = vunpack.c.l.b16 %v3739
      %v3823 = vunpack.c.h.b16 %v3739
      %v3824 = vunpack.c.l.b16 %v3740
      %v3825 = vunpack.c.l.b16 %v3741
      %v3826 = vunpack.c.h.b16 %v3741
      %v3827 = vunpack.c.l.b16 %v3742
      %v3828 = vunpack.c.l.b16 %v3743
      %v3829 = vunpack.c.h.b16 %v3743
      %v3830 = vunpack.c.l.b16 %v3744
      %v3831 = vunpack.c.l.b16 %v3745
      %v3832 = vunpack.c.h.b16 %v3745
      %v3833 = vunpack.c.l.b16 %v3746
      %v3834 = vunpack.c.l.b16 %v3747
      %v3835 = vunpack.c.h.b16 %v3747
      %v3836 = vunpack.c.l.b16 %v3748
      %v3837 = vunpack.c.l.b16 %v3749
      %v3838 = vunpack.c.h.b16 %v3749
      %v3839 = vunpack.c.l.b16 %v3750
      %v3840 = vpack.c.b16 %v3795, %v3792
      %v3841 = vpack.c.b16 %v3796, %v3793
      %v3842 = vpack.c.b16 %v3797, %v3794
      %v3843 = vpack.c.b16 %v3801, %v3798
      %v3844 = vpack.c.b16 %v3802, %v3799
      %v3845 = vpack.c.b16 %v3803, %v3800
      %v3846 = vpack.c.b16 %v3807, %v3804
      %v3847 = vpack.c.b16 %v3808, %v3805
      %v3848 = vpack.c.b16 %v3809, %v3806
      %v3849 = vpack.c.b16 %v3813, %v3810
      %v3850 = vpack.c.b16 %v3814, %v3811
      %v3851 = vpack.c.b16 %v3815, %v3812
      %v3852 = vpack.c.b16 %v3819, %v3816
      %v3853 = vpack.c.b16 %v3820, %v3817
      %v3854 = vpack.c.b16 %v3821, %v3818
      %v3855 = vpack.c.b16 %v3825, %v3822
      %v3856 = vpack.c.b16 %v3826, %v3823
      %v3857 = vpack.c.b16 %v3827, %v3824
      %v3858 = vpack.c.b16 %v3831, %v3828
      %v3859 = vpack.c.b16 %v3832, %v3829
      %v3860 = vpack.c.b16 %v3833, %v3830
      %v3861 = vpack.c.b16 %v3837, %v3834
      %v3862 = vpack.c.b16 %v3838, %v3835
      %v3863 = vpack.c.b16 %v3839, %v3836
      %3888 = vmatpush.bf16.msra.mxu0 %v3861
      %3889 = vmatpush.bf16.msra.mxu0 %v3858
      %3890 = vmatpush.bf16.msra.mxu0 %v3855
      %3891 = vmatpush.bf16.msra.mxu0 %v3852
      %3892 = vmatpush.bf16.msra.mxu0 %v3849
      %3893 = vmatpush.bf16.msra.mxu0 %v3846
      %3894 = vmatpush.bf16.msra.mxu0 %v3843
      %3895 = vmatpush.bf16.msra.mxu0 %v3840
      %3896 = vmatmul.bf16.gmra.mxu0 %v3710
      %v3897 = vpop.f32.mrf.mxu0
      %v3898 = vadd.f32 %v3754, %v3897
      %v3899 = vpop.f32.mrf.mxu0
      %v3900 = vadd.f32 %v3754, %v3899
      %3901 = vmatmul.bf16.gmra.mxu0 %v3711
      %v3902 = vpop.f32.mrf.mxu0
      %v3903 = vadd.f32 %v3754, %v3902
      %v3904 = vpop.f32.mrf.mxu0
      %v3905 = vadd.f32 %v3754, %v3904
      %3906 = vmatmul.bf16.gmra.mxu0 %v3712
      %v3907 = vpop.f32.mrf.mxu0
      %v3908 = vadd.f32 %v3754, %v3907
      %v3909 = vpop.f32.mrf.mxu0
      %v3910 = vadd.f32 %v3754, %v3909
      %3911 = vmatmul.bf16.gmra.mxu0 %v3713
      %v3912 = vpop.f32.mrf.mxu0
      %v3913 = vadd.f32 %v3754, %v3912
      %v3914 = vpop.f32.mrf.mxu0
      %v3915 = vadd.f32 %v3754, %v3914
      %3916 = vmatmul.bf16.gmra.mxu0 %v3714
      %v3917 = vpop.f32.mrf.mxu0
      %v3918 = vadd.f32 %v3754, %v3917
      %v3919 = vpop.f32.mrf.mxu0
      %v3920 = vadd.f32 %v3754, %v3919
      %3921 = vmatmul.bf16.gmra.mxu0 %v3715
      %v3922 = vpop.f32.mrf.mxu0
      %v3923 = vadd.f32 %v3754, %v3922
      %v3924 = vpop.f32.mrf.mxu0
      %v3925 = vadd.f32 %v3754, %v3924
      %3926 = vmatmul.bf16.gmra.mxu0 %v3716
      %v3927 = vpop.f32.mrf.mxu0
      %v3928 = vadd.f32 %v3754, %v3927
      %v3929 = vpop.f32.mrf.mxu0
      %v3930 = vadd.f32 %v3754, %v3929
      %3931 = vmatmul.bf16.gmra.mxu0 %v3717
      %v3932 = vpop.f32.mrf.mxu0
      %v3933 = vadd.f32 %v3754, %v3932
      %v3934 = vpop.f32.mrf.mxu0
      %v3935 = vadd.f32 %v3754, %v3934
      %3936 = vdwg.mxu0
      %3937 = vmatpush.bf16.msra.mxu0 %v3862
      %3938 = vmatpush.bf16.msra.mxu0 %v3859
      %3939 = vmatpush.bf16.msra.mxu0 %v3856
      %3940 = vmatpush.bf16.msra.mxu0 %v3853
      %3941 = vmatpush.bf16.msra.mxu0 %v3850
      %3942 = vmatpush.bf16.msra.mxu0 %v3847
      %3943 = vmatpush.bf16.msra.mxu0 %v3844
      %3944 = vmatpush.bf16.msra.mxu0 %v3841
      %3945 = vmatmul.bf16.gmra.mxu0 %v3710
      %v3946 = vpop.f32.mrf.mxu0
      %v3947 = vadd.f32 %v3755, %v3946
      %v3948 = vpop.f32.mrf.mxu0
      %v3949 = vadd.f32 %v3755, %v3948
      %3950 = vmatmul.bf16.gmra.mxu0 %v3711
      %v3951 = vpop.f32.mrf.mxu0
      %v3952 = vadd.f32 %v3755, %v3951
      %v3953 = vpop.f32.mrf.mxu0
      %v3954 = vadd.f32 %v3755, %v3953
      %3955 = vmatmul.bf16.gmra.mxu0 %v3712
      %v3956 = vpop.f32.mrf.mxu0
      %v3957 = vadd.f32 %v3755, %v3956
      %v3958 = vpop.f32.mrf.mxu0
      %v3959 = vadd.f32 %v3755, %v3958
      %3960 = vmatmul.bf16.gmra.mxu0 %v3713
      %v3961 = vpop.f32.mrf.mxu0
      %v3962 = vadd.f32 %v3755, %v3961
      %v3963 = vpop.f32.mrf.mxu0
      %v3964 = vadd.f32 %v3755, %v3963
      %3965 = vmatmul.bf16.gmra.mxu0 %v3714
      %v3966 = vpop.f32.mrf.mxu0
      %v3967 = vadd.f32 %v3755, %v3966
      %v3968 = vpop.f32.mrf.mxu0
      %v3969 = vadd.f32 %v3755, %v3968
      %3970 = vmatmul.bf16.gmra.mxu0 %v3715
      %v3971 = vpop.f32.mrf.mxu0
      %v3972 = vadd.f32 %v3755, %v3971
      %v3973 = vpop.f32.mrf.mxu0
      %v3974 = vadd.f32 %v3755, %v3973
      %3975 = vmatmul.bf16.gmra.mxu0 %v3716
      %v3976 = vpop.f32.mrf.mxu0
      %v3977 = vadd.f32 %v3755, %v3976
      %v3978 = vpop.f32.mrf.mxu0
      %v3979 = vadd.f32 %v3755, %v3978
      %3980 = vmatmul.bf16.gmra.mxu0 %v3717
      %v3981 = vpop.f32.mrf.mxu0
      %v3982 = vadd.f32 %v3755, %v3981
      %v3983 = vpop.f32.mrf.mxu0
      %v3984 = vadd.f32 %v3755, %v3983
      %3985 = vdwg.mxu0
      %3986 = vmatpush.bf16.msra.mxu0 %v3863
      %3987 = vmatpush.bf16.msra.mxu0 %v3860
      %3988 = vmatpush.bf16.msra.mxu0 %v3857
      %3989 = vmatpush.bf16.msra.mxu0 %v3854
      %3990 = vmatpush.bf16.msra.mxu0 %v3851
      %3991 = vmatpush.bf16.msra.mxu0 %v3848
      %3992 = vmatpush.bf16.msra.mxu0 %v3845
      %3993 = vmatpush.bf16.msra.mxu0 %v3842
      %3994 = vmatmul.bf16.gmra.mxu0 %v3710
      %v3995 = vpop.f32.mrf.mxu0
      %v3996 = vadd.f32 %v3756, %v3995
      %v3997 = vpop.f32.mrf.mxu0
      %v3998 = vadd.f32 %v3756, %v3997
      %3999 = vmatmul.bf16.gmra.mxu0 %v3711
      %v4000 = vpop.f32.mrf.mxu0
      %v4001 = vadd.f32 %v3756, %v4000
      %v4002 = vpop.f32.mrf.mxu0
      %v4003 = vadd.f32 %v3756, %v4002
      %4004 = vmatmul.bf16.gmra.mxu0 %v3712
      %v4005 = vpop.f32.mrf.mxu0
      %v4006 = vadd.f32 %v3756, %v4005
      %v4007 = vpop.f32.mrf.mxu0
      %v4008 = vadd.f32 %v3756, %v4007
      %4009 = vmatmul.bf16.gmra.mxu0 %v3713
      %v4010 = vpop.f32.mrf.mxu0
      %v4011 = vadd.f32 %v3756, %v4010
      %v4012 = vpop.f32.mrf.mxu0
      %v4013 = vadd.f32 %v3756, %v4012
      %4014 = vmatmul.bf16.gmra.mxu0 %v3714
      %v4015 = vpop.f32.mrf.mxu0
      %v4016 = vadd.f32 %v3756, %v4015
      %v4017 = vpop.f32.mrf.mxu0
      %v4018 = vadd.f32 %v3756, %v4017
      %4019 = vmatmul.bf16.gmra.mxu0 %v3715
      %v4020 = vpop.f32.mrf.mxu0
      %v4021 = vadd.f32 %v3756, %v4020
      %v4022 = vpop.f32.mrf.mxu0
      %v4023 = vadd.f32 %v3756, %v4022
      %4024 = vmatmul.bf16.gmra.mxu0 %v3716
      %v4025 = vpop.f32.mrf.mxu0
      %v4026 = vadd.f32 %v3756, %v4025
      %v4027 = vpop.f32.mrf.mxu0
      %v4028 = vadd.f32 %v3756, %v4027
      %4029 = vmatmul.bf16.gmra.mxu0 %v3717
      %v4030 = vpop.f32.mrf.mxu0
      %v4031 = vadd.f32 %v3756, %v4030
      %v4032 = vpop.f32.mrf.mxu0
      %v4033 = vadd.f32 %v3756, %v4032
      %4034 = vdwg.mxu0
      %v4035 = vpack.c.bf16 %v3900, %v3898
      %v4036 = vpack.c.bf16 %v3905, %v3903
      %v4037 = vpack.c.bf16 %v3910, %v3908
      %v4038 = vpack.c.bf16 %v3915, %v3913
      %v4039 = vpack.c.bf16 %v3920, %v3918
      %v4040 = vpack.c.bf16 %v3925, %v3923
      %v4041 = vpack.c.bf16 %v3930, %v3928
      %v4042 = vpack.c.bf16 %v3935, %v3933
      %v4043 = vpack.c.bf16 %v3949, %v3947
      %v4044 = vpack.c.bf16 %v3954, %v3952
      %v4045 = vpack.c.bf16 %v3959, %v3957
      %v4046 = vpack.c.bf16 %v3964, %v3962
      %v4047 = vpack.c.bf16 %v3969, %v3967
      %v4048 = vpack.c.bf16 %v3974, %v3972
      %v4049 = vpack.c.bf16 %v3979, %v3977
      %v4050 = vpack.c.bf16 %v3984, %v3982
      %v4051 = vpack.c.bf16 %v3998, %v3996
      %v4052 = vpack.c.bf16 %v4003, %v4001
      %v4053 = vpack.c.bf16 %v4008, %v4006
      %v4054 = vpack.c.bf16 %v4013, %v4011
      %v4055 = vpack.c.bf16 %v4018, %v4016
      %v4056 = vpack.c.bf16 %v4023, %v4021
      %v4057 = vpack.c.bf16 %v4028, %v4026
      %v4058 = vpack.c.bf16 %v4033, %v4031
      %v4060 = vsel %vm1267, %v4035, 0
      %v4063 = vsel %vm1267, %v4036, 0
      %v4066 = vsel %vm1267, %v4037, 0
      %v4069 = vsel %vm1267, %v4038, 0
      %v4072 = vsel %vm1267, %v4039, 0
      %v4075 = vsel %vm1267, %v4040, 0
      %v4078 = vsel %vm1267, %v4041, 0
      %v4081 = vsel %vm1267, %v4042, 0
      %v4084 = vsel %vm1267, %v4043, 0
      %v4087 = vsel %vm1267, %v4044, 0
      %v4090 = vsel %vm1267, %v4045, 0
      %v4093 = vsel %vm1267, %v4046, 0
      %v4096 = vsel %vm1267, %v4047, 0
      %v4099 = vsel %vm1267, %v4048, 0
      %v4102 = vsel %vm1267, %v4049, 0
      %v4105 = vsel %vm1267, %v4050, 0
      %4107 = vmatpush.bf16.xpose.msra.mxu0 %v4105
      %4108 = vmatpush.bf16.xpose.msra.mxu0 %v4102
      %4109 = vmatpush.bf16.xpose.msra.mxu0 %v4099
      %4110 = vmatpush.bf16.xpose.msra.mxu0 %v4096
      %4111 = vmatpush.bf16.xpose.msra.mxu0 %v4093
      %4112 = vmatpush.bf16.xpose.msra.mxu0 %v4090
      %4113 = vmatpush.bf16.xpose.msra.mxu0 %v4087
      %4114 = vmatpush.bf16.xpose.msra.mxu0 %v4084
      %4115 = vmatmul.bf16.gmra.mxu0 %v4060
      %v4116 = vpop.f32.mrf.mxu0
      %v4117 = vadd.f32 0.0, %v4116
      %v4118 = vpop.f32.mrf.mxu0
      %v4119 = vadd.f32 0.0, %v4118
      %4120 = vmatmul.bf16.gmra.mxu0 %v4063
      %v4121 = vpop.f32.mrf.mxu0
      %v4122 = vadd.f32 0.0, %v4121
      %v4123 = vpop.f32.mrf.mxu0
      %v4124 = vadd.f32 0.0, %v4123
      %4125 = vmatmul.bf16.gmra.mxu0 %v4066
      %v4126 = vpop.f32.mrf.mxu0
      %v4127 = vadd.f32 0.0, %v4126
      %v4128 = vpop.f32.mrf.mxu0
      %v4129 = vadd.f32 0.0, %v4128
      %4130 = vmatmul.bf16.gmra.mxu0 %v4069
      %v4131 = vpop.f32.mrf.mxu0
      %v4132 = vadd.f32 0.0, %v4131
      %v4133 = vpop.f32.mrf.mxu0
      %v4134 = vadd.f32 0.0, %v4133
      %4135 = vmatmul.bf16.gmra.mxu0 %v4072
      %v4136 = vpop.f32.mrf.mxu0
      %v4137 = vadd.f32 0.0, %v4136
      %v4138 = vpop.f32.mrf.mxu0
      %v4139 = vadd.f32 0.0, %v4138
      %4140 = vmatmul.bf16.gmra.mxu0 %v4075
      %v4141 = vpop.f32.mrf.mxu0
      %v4142 = vadd.f32 0.0, %v4141
      %v4143 = vpop.f32.mrf.mxu0
      %v4144 = vadd.f32 0.0, %v4143
      %4145 = vmatmul.bf16.gmra.mxu0 %v4078
      %v4146 = vpop.f32.mrf.mxu0
      %v4147 = vadd.f32 0.0, %v4146
      %v4148 = vpop.f32.mrf.mxu0
      %v4149 = vadd.f32 0.0, %v4148
      %4150 = vmatmul.bf16.gmra.mxu0 %v4081
      %v4151 = vpop.f32.mrf.mxu0
      %v4152 = vadd.f32 0.0, %v4151
      %v4153 = vpop.f32.mrf.mxu0
      %v4154 = vadd.f32 0.0, %v4153
      %4155 = vdwg.mxu0
      %v4156 = vmul.f32 %v4117, 0.125
      %v4157 = vmul.f32 %v4119, 0.125
      %v4158 = vmul.f32 %v4122, 0.125
      %v4159 = vmul.f32 %v4124, 0.125
      %v4160 = vmul.f32 %v4127, 0.125
      %v4161 = vmul.f32 %v4129, 0.125
      %v4162 = vmul.f32 %v4132, 0.125
      %v4163 = vmul.f32 %v4134, 0.125
      %v4164 = vmul.f32 %v4137, 0.125
      %v4165 = vmul.f32 %v4139, 0.125
      %v4166 = vmul.f32 %v4142, 0.125
      %v4167 = vmul.f32 %v4144, 0.125
      %v4168 = vmul.f32 %v4147, 0.125
      %v4169 = vmul.f32 %v4149, 0.125
      %v4170 = vmul.f32 %v4152, 0.125
      %v4171 = vmul.f32 %v4154, 0.125
      %v4172 = vadd.f32 %v4156, %v1382
      %v4173 = vadd.f32 %v4157, %v1382
      %v4174 = vadd.f32 %v4158, %v1382
      %v4175 = vadd.f32 %v4159, %v1382
      %v4176 = vadd.f32 %v4160, %v1382
      %v4177 = vadd.f32 %v4161, %v1382
      %v4178 = vadd.f32 %v4162, %v1382
      %v4179 = vadd.f32 %v4163, %v1382
      %v4180 = vadd.f32 %v4164, %v1382
      %v4181 = vadd.f32 %v4165, %v1382
      %v4182 = vadd.f32 %v4166, %v1382
      %v4183 = vadd.f32 %v4167, %v1382
      %v4184 = vadd.f32 %v4168, %v1382
      %v4185 = vadd.f32 %v4169, %v1382
      %v4186 = vadd.f32 %v4170, %v1382
      %v4187 = vadd.f32 %v4171, %v1382
      %4188 = vmax.xlane.f32.xlu0 %v4172
      %v4189 = vpop.xlane.xlu0 %4188
      %4190 = vmax.xlane.f32.xlu0 %v4173
      %v4191 = vpop.xlane.xlu0 %4190
      %4192 = vmax.xlane.f32.xlu0 %v4174
      %v4193 = vpop.xlane.xlu0 %4192
      %4194 = vmax.xlane.f32.xlu0 %v4175
      %v4195 = vpop.xlane.xlu0 %4194
      %4196 = vmax.xlane.f32.xlu0 %v4176
      %v4197 = vpop.xlane.xlu0 %4196
      %4198 = vmax.xlane.f32.xlu0 %v4177
      %v4199 = vpop.xlane.xlu0 %4198
      %4200 = vmax.xlane.f32.xlu0 %v4178
      %v4201 = vpop.xlane.xlu0 %4200
      %4202 = vmax.xlane.f32.xlu0 %v4179
      %v4203 = vpop.xlane.xlu0 %4202
      %4204 = vmax.xlane.f32.xlu0 %v4180
      %v4205 = vpop.xlane.xlu0 %4204
      %4206 = vmax.xlane.f32.xlu0 %v4181
      %v4207 = vpop.xlane.xlu0 %4206
      %4208 = vmax.xlane.f32.xlu0 %v4182
      %v4209 = vpop.xlane.xlu0 %4208
      %4210 = vmax.xlane.f32.xlu0 %v4183
      %v4211 = vpop.xlane.xlu0 %4210
      %4212 = vmax.xlane.f32.xlu0 %v4184
      %v4213 = vpop.xlane.xlu0 %4212
      %4214 = vmax.xlane.f32.xlu0 %v4185
      %v4215 = vpop.xlane.xlu0 %4214
      %4216 = vmax.xlane.f32.xlu0 %v4186
      %v4217 = vpop.xlane.xlu0 %4216
      %4218 = vmax.xlane.f32.xlu0 %v4187
      %v4219 = vpop.xlane.xlu0 %4218
      %v4220 = vsub.f32 %v4172, %v4189
      %v4221 = vsub.f32 %v4173, %v4191
      %v4222 = vsub.f32 %v4174, %v4193
      %v4223 = vsub.f32 %v4175, %v4195
      %v4224 = vsub.f32 %v4176, %v4197
      %v4225 = vsub.f32 %v4177, %v4199
      %v4226 = vsub.f32 %v4178, %v4201
      %v4227 = vsub.f32 %v4179, %v4203
      %v4228 = vsub.f32 %v4180, %v4205
      %v4229 = vsub.f32 %v4181, %v4207
      %v4230 = vsub.f32 %v4182, %v4209
      %v4231 = vsub.f32 %v4183, %v4211
      %v4232 = vsub.f32 %v4184, %v4213
      %v4233 = vsub.f32 %v4185, %v4215
      %v4234 = vsub.f32 %v4186, %v4217
      %v4235 = vsub.f32 %v4187, %v4219
      %v4236 = vmul.f32 %v4220, 1.442695
      %v4237 = vpow.pop %v4236
      %v4238 = vmul.f32 %v4221, 1.442695
      %v4239 = vpow.pop %v4238
      %v4240 = vmul.f32 %v4222, 1.442695
      %v4241 = vpow.pop %v4240
      %v4242 = vmul.f32 %v4223, 1.442695
      %v4243 = vpow.pop %v4242
      %v4244 = vmul.f32 %v4224, 1.442695
      %v4245 = vpow.pop %v4244
      %v4246 = vmul.f32 %v4225, 1.442695
      %v4247 = vpow.pop %v4246
      %v4248 = vmul.f32 %v4226, 1.442695
      %v4249 = vpow.pop %v4248
      %v4250 = vmul.f32 %v4227, 1.442695
      %v4251 = vpow.pop %v4250
      %v4252 = vmul.f32 %v4228, 1.442695
      %v4253 = vpow.pop %v4252
      %v4254 = vmul.f32 %v4229, 1.442695
      %v4255 = vpow.pop %v4254
      %v4256 = vmul.f32 %v4230, 1.442695
      %v4257 = vpow.pop %v4256
      %v4258 = vmul.f32 %v4231, 1.442695
      %v4259 = vpow.pop %v4258
      %v4260 = vmul.f32 %v4232, 1.442695
      %v4261 = vpow.pop %v4260
      %v4262 = vmul.f32 %v4233, 1.442695
      %v4263 = vpow.pop %v4262
      %v4264 = vmul.f32 %v4234, 1.442695
      %v4265 = vpow.pop %v4264
      %v4266 = vmul.f32 %v4235, 1.442695
      %v4267 = vpow.pop %v4266
      %4268 = vadd.xlane.f32.xlu0 %v4237
      %v4269 = vpop.xlane.xlu0 %4268
      %4270 = vadd.xlane.f32.xlu0 %v4239
      %v4271 = vpop.xlane.xlu0 %4270
      %4272 = vadd.xlane.f32.xlu0 %v4241
      %v4273 = vpop.xlane.xlu0 %4272
      %4274 = vadd.xlane.f32.xlu0 %v4243
      %v4275 = vpop.xlane.xlu0 %4274
      %4276 = vadd.xlane.f32.xlu0 %v4245
      %v4277 = vpop.xlane.xlu0 %4276
      %4278 = vadd.xlane.f32.xlu0 %v4247
      %v4279 = vpop.xlane.xlu0 %4278
      %4280 = vadd.xlane.f32.xlu0 %v4249
      %v4281 = vpop.xlane.xlu0 %4280
      %4282 = vadd.xlane.f32.xlu0 %v4251
      %v4283 = vpop.xlane.xlu0 %4282
      %4284 = vadd.xlane.f32.xlu0 %v4253
      %v4285 = vpop.xlane.xlu0 %4284
      %4286 = vadd.xlane.f32.xlu0 %v4255
      %v4287 = vpop.xlane.xlu0 %4286
      %4288 = vadd.xlane.f32.xlu0 %v4257
      %v4289 = vpop.xlane.xlu0 %4288
      %4290 = vadd.xlane.f32.xlu0 %v4259
      %v4291 = vpop.xlane.xlu0 %4290
      %4292 = vadd.xlane.f32.xlu0 %v4261
      %v4293 = vpop.xlane.xlu0 %4292
      %4294 = vadd.xlane.f32.xlu0 %v4263
      %v4295 = vpop.xlane.xlu0 %4294
      %4296 = vadd.xlane.f32.xlu0 %v4265
      %v4297 = vpop.xlane.xlu0 %4296
      %4298 = vadd.xlane.f32.xlu0 %v4267
      %v4299 = vpop.xlane.xlu0 %4298
      %v4300 = vrcp.pop %v4269
      %v4301 = vrcp.pop %v4271
      %v4302 = vrcp.pop %v4273
      %v4303 = vrcp.pop %v4275
      %v4304 = vrcp.pop %v4277
      %v4305 = vrcp.pop %v4279
      %v4306 = vrcp.pop %v4281
      %v4307 = vrcp.pop %v4283
      %v4308 = vrcp.pop %v4285
      %v4309 = vrcp.pop %v4287
      %v4310 = vrcp.pop %v4289
      %v4311 = vrcp.pop %v4291
      %v4312 = vrcp.pop %v4293
      %v4313 = vrcp.pop %v4295
      %v4314 = vrcp.pop %v4297
      %v4315 = vrcp.pop %v4299
      %v4316 = vmul.f32 %v4237, %v4300
      %v4317 = vmul.f32 %v4239, %v4301
      %v4318 = vmul.f32 %v4241, %v4302
      %v4319 = vmul.f32 %v4243, %v4303
      %v4320 = vmul.f32 %v4245, %v4304
      %v4321 = vmul.f32 %v4247, %v4305
      %v4322 = vmul.f32 %v4249, %v4306
      %v4323 = vmul.f32 %v4251, %v4307
      %v4324 = vmul.f32 %v4253, %v4308
      %v4325 = vmul.f32 %v4255, %v4309
      %v4326 = vmul.f32 %v4257, %v4310
      %v4327 = vmul.f32 %v4259, %v4311
      %v4328 = vmul.f32 %v4261, %v4312
      %v4329 = vmul.f32 %v4263, %v4313
      %v4330 = vmul.f32 %v4265, %v4314
      %v4331 = vmul.f32 %v4267, %v4315
      %v4332 = vpack.c.bf16 %v4317, %v4316
      %v4333 = vpack.c.bf16 %v4319, %v4318
      %v4334 = vpack.c.bf16 %v4321, %v4320
      %v4335 = vpack.c.bf16 %v4323, %v4322
      %v4336 = vpack.c.bf16 %v4325, %v4324
      %v4337 = vpack.c.bf16 %v4327, %v4326
      %v4338 = vpack.c.bf16 %v4329, %v4328
      %v4339 = vpack.c.bf16 %v4331, %v4330
      %4340 = vmatpush.bf16.msra.mxu0 %v4058
      %4341 = vmatpush.bf16.msra.mxu0 %v4057
      %4342 = vmatpush.bf16.msra.mxu0 %v4056
      %4343 = vmatpush.bf16.msra.mxu0 %v4055
      %4344 = vmatpush.bf16.msra.mxu0 %v4054
      %4345 = vmatpush.bf16.msra.mxu0 %v4053
      %4346 = vmatpush.bf16.msra.mxu0 %v4052
      %4347 = vmatpush.bf16.msra.mxu0 %v4051
      %4348 = vmatmul.bf16.gmra.mxu0 %v4332
      %v4349 = vpop.f32.mrf.mxu0
      %v4350 = vadd.f32 0.0, %v4349
      %v4351 = vpop.f32.mrf.mxu0
      %v4352 = vadd.f32 0.0, %v4351
      %4353 = vmatmul.bf16.gmra.mxu0 %v4333
      %v4354 = vpop.f32.mrf.mxu0
      %v4355 = vadd.f32 0.0, %v4354
      %v4356 = vpop.f32.mrf.mxu0
      %v4357 = vadd.f32 0.0, %v4356
      %4358 = vmatmul.bf16.gmra.mxu0 %v4334
      %v4359 = vpop.f32.mrf.mxu0
      %v4360 = vadd.f32 0.0, %v4359
      %v4361 = vpop.f32.mrf.mxu0
      %v4362 = vadd.f32 0.0, %v4361
      %4363 = vmatmul.bf16.gmra.mxu0 %v4335
      %v4364 = vpop.f32.mrf.mxu0
      %v4365 = vadd.f32 0.0, %v4364
      %v4366 = vpop.f32.mrf.mxu0
      %v4367 = vadd.f32 0.0, %v4366
      %4368 = vmatmul.bf16.gmra.mxu0 %v4336
      %v4369 = vpop.f32.mrf.mxu0
      %v4370 = vadd.f32 0.0, %v4369
      %v4371 = vpop.f32.mrf.mxu0
      %v4372 = vadd.f32 0.0, %v4371
      %4373 = vmatmul.bf16.gmra.mxu0 %v4337
      %v4374 = vpop.f32.mrf.mxu0
      %v4375 = vadd.f32 0.0, %v4374
      %v4376 = vpop.f32.mrf.mxu0
      %v4377 = vadd.f32 0.0, %v4376
      %4378 = vmatmul.bf16.gmra.mxu0 %v4338
      %v4379 = vpop.f32.mrf.mxu0
      %v4380 = vadd.f32 0.0, %v4379
      %v4381 = vpop.f32.mrf.mxu0
      %v4382 = vadd.f32 0.0, %v4381
      %4383 = vmatmul.bf16.gmra.mxu0 %v4339
      %v4384 = vpop.f32.mrf.mxu0
      %v4385 = vadd.f32 0.0, %v4384
      %v4386 = vpop.f32.mrf.mxu0
      %v4387 = vadd.f32 0.0, %v4386
      %4388 = vdwg.mxu0
      %4397 = vrot.lane.b32.xlu0 %v4035, 64
      %v4398 = vpop.permute.xlu0 %4397
      %4399 = vrot.lane.b32.xlu0 %v4036, 64
      %v4400 = vpop.permute.xlu0 %4399
      %4401 = vrot.lane.b32.xlu0 %v4037, 64
      %v4402 = vpop.permute.xlu0 %4401
      %4403 = vrot.lane.b32.xlu0 %v4038, 64
      %v4404 = vpop.permute.xlu0 %4403
      %4405 = vrot.lane.b32.xlu0 %v4039, 64
      %v4406 = vpop.permute.xlu0 %4405
      %4407 = vrot.lane.b32.xlu0 %v4040, 64
      %v4408 = vpop.permute.xlu0 %4407
      %4409 = vrot.lane.b32.xlu0 %v4041, 64
      %v4410 = vpop.permute.xlu0 %4409
      %4411 = vrot.lane.b32.xlu0 %v4042, 64
      %v4412 = vpop.permute.xlu0 %4411
      %4421 = vrot.lane.b32.xlu0 %v4043, 64
      %v4422 = vpop.permute.xlu0 %4421
      %4423 = vrot.lane.b32.xlu0 %v4044, 64
      %v4424 = vpop.permute.xlu0 %4423
      %4425 = vrot.lane.b32.xlu0 %v4045, 64
      %v4426 = vpop.permute.xlu0 %4425
      %4427 = vrot.lane.b32.xlu0 %v4046, 64
      %v4428 = vpop.permute.xlu0 %4427
      %4429 = vrot.lane.b32.xlu0 %v4047, 64
      %v4430 = vpop.permute.xlu0 %4429
      %4431 = vrot.lane.b32.xlu0 %v4048, 64
      %v4432 = vpop.permute.xlu0 %4431
      %4433 = vrot.lane.b32.xlu0 %v4049, 64
      %v4434 = vpop.permute.xlu0 %4433
      %4435 = vrot.lane.b32.xlu0 %v4050, 64
      %v4436 = vpop.permute.xlu0 %4435
      %v4438 = vsel %vm1267, %v4398, 0
      %v4441 = vsel %vm1267, %v4400, 0
      %v4444 = vsel %vm1267, %v4402, 0
      %v4447 = vsel %vm1267, %v4404, 0
      %v4450 = vsel %vm1267, %v4406, 0
      %v4453 = vsel %vm1267, %v4408, 0
      %v4456 = vsel %vm1267, %v4410, 0
      %v4459 = vsel %vm1267, %v4412, 0
      %v4462 = vsel %vm1267, %v4422, 0
      %v4465 = vsel %vm1267, %v4424, 0
      %v4468 = vsel %vm1267, %v4426, 0
      %v4471 = vsel %vm1267, %v4428, 0
      %v4474 = vsel %vm1267, %v4430, 0
      %v4477 = vsel %vm1267, %v4432, 0
      %v4480 = vsel %vm1267, %v4434, 0
      %v4483 = vsel %vm1267, %v4436, 0
      %4485 = vmatpush.bf16.xpose.msra.mxu0 %v4483
      %4486 = vmatpush.bf16.xpose.msra.mxu0 %v4480
      %4487 = vmatpush.bf16.xpose.msra.mxu0 %v4477
      %4488 = vmatpush.bf16.xpose.msra.mxu0 %v4474
      %4489 = vmatpush.bf16.xpose.msra.mxu0 %v4471
      %4490 = vmatpush.bf16.xpose.msra.mxu0 %v4468
      %4491 = vmatpush.bf16.xpose.msra.mxu0 %v4465
      %4492 = vmatpush.bf16.xpose.msra.mxu0 %v4462
      %4493 = vmatmul.bf16.gmra.mxu0 %v4438
      %v4494 = vpop.f32.mrf.mxu0
      %v4495 = vadd.f32 0.0, %v4494
      %v4496 = vpop.f32.mrf.mxu0
      %v4497 = vadd.f32 0.0, %v4496
      %4498 = vmatmul.bf16.gmra.mxu0 %v4441
      %v4499 = vpop.f32.mrf.mxu0
      %v4500 = vadd.f32 0.0, %v4499
      %v4501 = vpop.f32.mrf.mxu0
      %v4502 = vadd.f32 0.0, %v4501
      %4503 = vmatmul.bf16.gmra.mxu0 %v4444
      %v4504 = vpop.f32.mrf.mxu0
      %v4505 = vadd.f32 0.0, %v4504
      %v4506 = vpop.f32.mrf.mxu0
      %v4507 = vadd.f32 0.0, %v4506
      %4508 = vmatmul.bf16.gmra.mxu0 %v4447
      %v4509 = vpop.f32.mrf.mxu0
      %v4510 = vadd.f32 0.0, %v4509
      %v4511 = vpop.f32.mrf.mxu0
      %v4512 = vadd.f32 0.0, %v4511
      %4513 = vmatmul.bf16.gmra.mxu0 %v4450
      %v4514 = vpop.f32.mrf.mxu0
      %v4515 = vadd.f32 0.0, %v4514
      %v4516 = vpop.f32.mrf.mxu0
      %v4517 = vadd.f32 0.0, %v4516
      %4518 = vmatmul.bf16.gmra.mxu0 %v4453
      %v4519 = vpop.f32.mrf.mxu0
      %v4520 = vadd.f32 0.0, %v4519
      %v4521 = vpop.f32.mrf.mxu0
      %v4522 = vadd.f32 0.0, %v4521
      %4523 = vmatmul.bf16.gmra.mxu0 %v4456
      %v4524 = vpop.f32.mrf.mxu0
      %v4525 = vadd.f32 0.0, %v4524
      %v4526 = vpop.f32.mrf.mxu0
      %v4527 = vadd.f32 0.0, %v4526
      %4528 = vmatmul.bf16.gmra.mxu0 %v4459
      %v4529 = vpop.f32.mrf.mxu0
      %v4530 = vadd.f32 0.0, %v4529
      %v4531 = vpop.f32.mrf.mxu0
      %v4532 = vadd.f32 0.0, %v4531
      %4533 = vdwg.mxu0
      %v4534 = vmul.f32 %v4495, 0.125
      %v4535 = vmul.f32 %v4497, 0.125
      %v4536 = vmul.f32 %v4500, 0.125
      %v4537 = vmul.f32 %v4502, 0.125
      %v4538 = vmul.f32 %v4505, 0.125
      %v4539 = vmul.f32 %v4507, 0.125
      %v4540 = vmul.f32 %v4510, 0.125
      %v4541 = vmul.f32 %v4512, 0.125
      %v4542 = vmul.f32 %v4515, 0.125
      %v4543 = vmul.f32 %v4517, 0.125
      %v4544 = vmul.f32 %v4520, 0.125
      %v4545 = vmul.f32 %v4522, 0.125
      %v4546 = vmul.f32 %v4525, 0.125
      %v4547 = vmul.f32 %v4527, 0.125
      %v4548 = vmul.f32 %v4530, 0.125
      %v4549 = vmul.f32 %v4532, 0.125
      %v4550 = vadd.f32 %v4534, %v1382
      %v4551 = vadd.f32 %v4535, %v1382
      %v4552 = vadd.f32 %v4536, %v1382
      %v4553 = vadd.f32 %v4537, %v1382
      %v4554 = vadd.f32 %v4538, %v1382
      %v4555 = vadd.f32 %v4539, %v1382
      %v4556 = vadd.f32 %v4540, %v1382
      %v4557 = vadd.f32 %v4541, %v1382
      %v4558 = vadd.f32 %v4542, %v1382
      %v4559 = vadd.f32 %v4543, %v1382
      %v4560 = vadd.f32 %v4544, %v1382
      %v4561 = vadd.f32 %v4545, %v1382
      %v4562 = vadd.f32 %v4546, %v1382
      %v4563 = vadd.f32 %v4547, %v1382
      %v4564 = vadd.f32 %v4548, %v1382
      %v4565 = vadd.f32 %v4549, %v1382
      %4566 = vmax.xlane.f32.xlu0 %v4550
      %v4567 = vpop.xlane.xlu0 %4566
      %4568 = vmax.xlane.f32.xlu0 %v4551
      %v4569 = vpop.xlane.xlu0 %4568
      %4570 = vmax.xlane.f32.xlu0 %v4552
      %v4571 = vpop.xlane.xlu0 %4570
      %4572 = vmax.xlane.f32.xlu0 %v4553
      %v4573 = vpop.xlane.xlu0 %4572
      %4574 = vmax.xlane.f32.xlu0 %v4554
      %v4575 = vpop.xlane.xlu0 %4574
      %4576 = vmax.xlane.f32.xlu0 %v4555
      %v4577 = vpop.xlane.xlu0 %4576
      %4578 = vmax.xlane.f32.xlu0 %v4556
      %v4579 = vpop.xlane.xlu0 %4578
      %4580 = vmax.xlane.f32.xlu0 %v4557
      %v4581 = vpop.xlane.xlu0 %4580
      %4582 = vmax.xlane.f32.xlu0 %v4558
      %v4583 = vpop.xlane.xlu0 %4582
      %4584 = vmax.xlane.f32.xlu0 %v4559
      %v4585 = vpop.xlane.xlu0 %4584
      %4586 = vmax.xlane.f32.xlu0 %v4560
      %v4587 = vpop.xlane.xlu0 %4586
      %4588 = vmax.xlane.f32.xlu0 %v4561
      %v4589 = vpop.xlane.xlu0 %4588
      %4590 = vmax.xlane.f32.xlu0 %v4562
      %v4591 = vpop.xlane.xlu0 %4590
      %4592 = vmax.xlane.f32.xlu0 %v4563
      %v4593 = vpop.xlane.xlu0 %4592
      %4594 = vmax.xlane.f32.xlu0 %v4564
      %v4595 = vpop.xlane.xlu0 %4594
      %4596 = vmax.xlane.f32.xlu0 %v4565
      %v4597 = vpop.xlane.xlu0 %4596
      %v4598 = vsub.f32 %v4550, %v4567
      %v4599 = vsub.f32 %v4551, %v4569
      %v4600 = vsub.f32 %v4552, %v4571
      %v4601 = vsub.f32 %v4553, %v4573
      %v4602 = vsub.f32 %v4554, %v4575
      %v4603 = vsub.f32 %v4555, %v4577
      %v4604 = vsub.f32 %v4556, %v4579
      %v4605 = vsub.f32 %v4557, %v4581
      %v4606 = vsub.f32 %v4558, %v4583
      %v4607 = vsub.f32 %v4559, %v4585
      %v4608 = vsub.f32 %v4560, %v4587
      %v4609 = vsub.f32 %v4561, %v4589
      %v4610 = vsub.f32 %v4562, %v4591
      %v4611 = vsub.f32 %v4563, %v4593
      %v4612 = vsub.f32 %v4564, %v4595
      %v4613 = vsub.f32 %v4565, %v4597
      %v4614 = vmul.f32 %v4598, 1.442695
      %v4615 = vpow.pop %v4614
      %v4616 = vmul.f32 %v4599, 1.442695
      %v4617 = vpow.pop %v4616
      %v4618 = vmul.f32 %v4600, 1.442695
      %v4619 = vpow.pop %v4618
      %v4620 = vmul.f32 %v4601, 1.442695
      %v4621 = vpow.pop %v4620
      %v4622 = vmul.f32 %v4602, 1.442695
      %v4623 = vpow.pop %v4622
      %v4624 = vmul.f32 %v4603, 1.442695
      %v4625 = vpow.pop %v4624
      %v4626 = vmul.f32 %v4604, 1.442695
      %v4627 = vpow.pop %v4626
      %v4628 = vmul.f32 %v4605, 1.442695
      %v4629 = vpow.pop %v4628
      %v4630 = vmul.f32 %v4606, 1.442695
      %v4631 = vpow.pop %v4630
      %v4632 = vmul.f32 %v4607, 1.442695
      %v4633 = vpow.pop %v4632
      %v4634 = vmul.f32 %v4608, 1.442695
      %v4635 = vpow.pop %v4634
      %v4636 = vmul.f32 %v4609, 1.442695
      %v4637 = vpow.pop %v4636
      %v4638 = vmul.f32 %v4610, 1.442695
      %v4639 = vpow.pop %v4638
      %v4640 = vmul.f32 %v4611, 1.442695
      %v4641 = vpow.pop %v4640
      %v4642 = vmul.f32 %v4612, 1.442695
      %v4643 = vpow.pop %v4642
      %v4644 = vmul.f32 %v4613, 1.442695
      %v4645 = vpow.pop %v4644
      %4646 = vadd.xlane.f32.xlu0 %v4615
      %v4647 = vpop.xlane.xlu0 %4646
      %4648 = vadd.xlane.f32.xlu0 %v4617
      %v4649 = vpop.xlane.xlu0 %4648
      %4650 = vadd.xlane.f32.xlu0 %v4619
      %v4651 = vpop.xlane.xlu0 %4650
      %4652 = vadd.xlane.f32.xlu0 %v4621
      %v4653 = vpop.xlane.xlu0 %4652
      %4654 = vadd.xlane.f32.xlu0 %v4623
      %v4655 = vpop.xlane.xlu0 %4654
      %4656 = vadd.xlane.f32.xlu0 %v4625
      %v4657 = vpop.xlane.xlu0 %4656
      %4658 = vadd.xlane.f32.xlu0 %v4627
      %v4659 = vpop.xlane.xlu0 %4658
      %4660 = vadd.xlane.f32.xlu0 %v4629
      %v4661 = vpop.xlane.xlu0 %4660
      %4662 = vadd.xlane.f32.xlu0 %v4631
      %v4663 = vpop.xlane.xlu0 %4662
      %4664 = vadd.xlane.f32.xlu0 %v4633
      %v4665 = vpop.xlane.xlu0 %4664
      %4666 = vadd.xlane.f32.xlu0 %v4635
      %v4667 = vpop.xlane.xlu0 %4666
      %4668 = vadd.xlane.f32.xlu0 %v4637
      %v4669 = vpop.xlane.xlu0 %4668
      %4670 = vadd.xlane.f32.xlu0 %v4639
      %v4671 = vpop.xlane.xlu0 %4670
      %4672 = vadd.xlane.f32.xlu0 %v4641
      %v4673 = vpop.xlane.xlu0 %4672
      %4674 = vadd.xlane.f32.xlu0 %v4643
      %v4675 = vpop.xlane.xlu0 %4674
      %4676 = vadd.xlane.f32.xlu0 %v4645
      %v4677 = vpop.xlane.xlu0 %4676
      %v4678 = vrcp.pop %v4647
      %v4679 = vrcp.pop %v4649
      %v4680 = vrcp.pop %v4651
      %v4681 = vrcp.pop %v4653
      %v4682 = vrcp.pop %v4655
      %v4683 = vrcp.pop %v4657
      %v4684 = vrcp.pop %v4659
      %v4685 = vrcp.pop %v4661
      %v4686 = vrcp.pop %v4663
      %v4687 = vrcp.pop %v4665
      %v4688 = vrcp.pop %v4667
      %v4689 = vrcp.pop %v4669
      %v4690 = vrcp.pop %v4671
      %v4691 = vrcp.pop %v4673
      %v4692 = vrcp.pop %v4675
      %v4693 = vrcp.pop %v4677
      %v4694 = vmul.f32 %v4615, %v4678
      %v4695 = vmul.f32 %v4617, %v4679
      %v4696 = vmul.f32 %v4619, %v4680
      %v4697 = vmul.f32 %v4621, %v4681
      %v4698 = vmul.f32 %v4623, %v4682
      %v4699 = vmul.f32 %v4625, %v4683
      %v4700 = vmul.f32 %v4627, %v4684
      %v4701 = vmul.f32 %v4629, %v4685
      %v4702 = vmul.f32 %v4631, %v4686
      %v4703 = vmul.f32 %v4633, %v4687
      %v4704 = vmul.f32 %v4635, %v4688
      %v4705 = vmul.f32 %v4637, %v4689
      %v4706 = vmul.f32 %v4639, %v4690
      %v4707 = vmul.f32 %v4641, %v4691
      %v4708 = vmul.f32 %v4643, %v4692
      %v4709 = vmul.f32 %v4645, %v4693
      %v4710 = vpack.c.bf16 %v4695, %v4694
      %v4711 = vpack.c.bf16 %v4697, %v4696
      %v4712 = vpack.c.bf16 %v4699, %v4698
      %v4713 = vpack.c.bf16 %v4701, %v4700
      %v4714 = vpack.c.bf16 %v4703, %v4702
      %v4715 = vpack.c.bf16 %v4705, %v4704
      %v4716 = vpack.c.bf16 %v4707, %v4706
      %v4717 = vpack.c.bf16 %v4709, %v4708
      %4726 = vrot.lane.b32.xlu0 %v4051, 64
      %v4727 = vpop.permute.xlu0 %4726
      %4728 = vrot.lane.b32.xlu0 %v4052, 64
      %v4729 = vpop.permute.xlu0 %4728
      %4730 = vrot.lane.b32.xlu0 %v4053, 64
      %v4731 = vpop.permute.xlu0 %4730
      %4732 = vrot.lane.b32.xlu0 %v4054, 64
      %v4733 = vpop.permute.xlu0 %4732
      %4734 = vrot.lane.b32.xlu0 %v4055, 64
      %v4735 = vpop.permute.xlu0 %4734
      %4736 = vrot.lane.b32.xlu0 %v4056, 64
      %v4737 = vpop.permute.xlu0 %4736
      %4738 = vrot.lane.b32.xlu0 %v4057, 64
      %v4739 = vpop.permute.xlu0 %4738
      %4740 = vrot.lane.b32.xlu0 %v4058, 64
      %v4741 = vpop.permute.xlu0 %4740
      %4750 = vmatpush.bf16.msra.mxu0 %v4741
      %4751 = vmatpush.bf16.msra.mxu0 %v4739
      %4752 = vmatpush.bf16.msra.mxu0 %v4737
      %4753 = vmatpush.bf16.msra.mxu0 %v4735
      %4754 = vmatpush.bf16.msra.mxu0 %v4733
      %4755 = vmatpush.bf16.msra.mxu0 %v4731
      %4756 = vmatpush.bf16.msra.mxu0 %v4729
      %4757 = vmatpush.bf16.msra.mxu0 %v4727
      %4758 = vmatmul.bf16.gmra.mxu0 %v4710
      %v4759 = vpop.f32.mrf.mxu0
      %v4760 = vadd.f32 0.0, %v4759
      %v4761 = vpop.f32.mrf.mxu0
      %v4762 = vadd.f32 0.0, %v4761
      %4763 = vmatmul.bf16.gmra.mxu0 %v4711
      %v4764 = vpop.f32.mrf.mxu0
      %v4765 = vadd.f32 0.0, %v4764
      %v4766 = vpop.f32.mrf.mxu0
      %v4767 = vadd.f32 0.0, %v4766
      %4768 = vmatmul.bf16.gmra.mxu0 %v4712
      %v4769 = vpop.f32.mrf.mxu0
      %v4770 = vadd.f32 0.0, %v4769
      %v4771 = vpop.f32.mrf.mxu0
      %v4772 = vadd.f32 0.0, %v4771
      %4773 = vmatmul.bf16.gmra.mxu0 %v4713
      %v4774 = vpop.f32.mrf.mxu0
      %v4775 = vadd.f32 0.0, %v4774
      %v4776 = vpop.f32.mrf.mxu0
      %v4777 = vadd.f32 0.0, %v4776
      %4778 = vmatmul.bf16.gmra.mxu0 %v4714
      %v4779 = vpop.f32.mrf.mxu0
      %v4780 = vadd.f32 0.0, %v4779
      %v4781 = vpop.f32.mrf.mxu0
      %v4782 = vadd.f32 0.0, %v4781
      %4783 = vmatmul.bf16.gmra.mxu0 %v4715
      %v4784 = vpop.f32.mrf.mxu0
      %v4785 = vadd.f32 0.0, %v4784
      %v4786 = vpop.f32.mrf.mxu0
      %v4787 = vadd.f32 0.0, %v4786
      %4788 = vmatmul.bf16.gmra.mxu0 %v4716
      %v4789 = vpop.f32.mrf.mxu0
      %v4790 = vadd.f32 0.0, %v4789
      %v4791 = vpop.f32.mrf.mxu0
      %v4792 = vadd.f32 0.0, %v4791
      %4793 = vmatmul.bf16.gmra.mxu0 %v4717
      %v4794 = vpop.f32.mrf.mxu0
      %v4795 = vadd.f32 0.0, %v4794
      %v4796 = vpop.f32.mrf.mxu0
      %v4797 = vadd.f32 0.0, %v4796
      %4798 = vdwg.mxu0
      %4815 = vrot.lane.b32.xlu0 %v4760, 64
      %v4816 = vpop.permute.xlu0 %4815
      %4817 = vrot.lane.b32.xlu0 %v4762, 64
      %v4818 = vpop.permute.xlu0 %4817
      %4819 = vrot.lane.b32.xlu0 %v4765, 64
      %v4820 = vpop.permute.xlu0 %4819
      %4821 = vrot.lane.b32.xlu0 %v4767, 64
      %v4822 = vpop.permute.xlu0 %4821
      %4823 = vrot.lane.b32.xlu0 %v4770, 64
      %v4824 = vpop.permute.xlu0 %4823
      %4825 = vrot.lane.b32.xlu0 %v4772, 64
      %v4826 = vpop.permute.xlu0 %4825
      %4827 = vrot.lane.b32.xlu0 %v4775, 64
      %v4828 = vpop.permute.xlu0 %4827
      %4829 = vrot.lane.b32.xlu0 %v4777, 64
      %v4830 = vpop.permute.xlu0 %4829
      %4831 = vrot.lane.b32.xlu0 %v4780, 64
      %v4832 = vpop.permute.xlu0 %4831
      %4833 = vrot.lane.b32.xlu0 %v4782, 64
      %v4834 = vpop.permute.xlu0 %4833
      %4835 = vrot.lane.b32.xlu0 %v4785, 64
      %v4836 = vpop.permute.xlu0 %4835
      %4837 = vrot.lane.b32.xlu0 %v4787, 64
      %v4838 = vpop.permute.xlu0 %4837
      %4839 = vrot.lane.b32.xlu0 %v4790, 64
      %v4840 = vpop.permute.xlu0 %4839
      %4841 = vrot.lane.b32.xlu0 %v4792, 64
      %v4842 = vpop.permute.xlu0 %4841
      %4843 = vrot.lane.b32.xlu0 %v4795, 64
      %v4844 = vpop.permute.xlu0 %4843
      %4845 = vrot.lane.b32.xlu0 %v4797, 64
      %v4846 = vpop.permute.xlu0 %4845
      %v4863 = vsel %vm1267, %v4350, %v4816
      %v4864 = vsel %vm1267, %v4352, %v4818
      %v4865 = vsel %vm1267, %v4355, %v4820
      %v4866 = vsel %vm1267, %v4357, %v4822
      %v4867 = vsel %vm1267, %v4360, %v4824
      %v4868 = vsel %vm1267, %v4362, %v4826
      %v4869 = vsel %vm1267, %v4365, %v4828
      %v4870 = vsel %vm1267, %v4367, %v4830
      %v4871 = vsel %vm1267, %v4370, %v4832
      %v4872 = vsel %vm1267, %v4372, %v4834
      %v4873 = vsel %vm1267, %v4375, %v4836
      %v4874 = vsel %vm1267, %v4377, %v4838
      %v4875 = vsel %vm1267, %v4380, %v4840
      %v4876 = vsel %vm1267, %v4382, %v4842
      %v4877 = vsel %vm1267, %v4385, %v4844
      %v4878 = vsel %vm1267, %v4387, %v4846
      %v4879 = vpack.c.bf16 %v4864, %v4863
      %v4880 = vpack.c.bf16 %v4866, %v4865
      %v4881 = vpack.c.bf16 %v4868, %v4867
      %v4882 = vpack.c.bf16 %v4870, %v4869
      %v4883 = vpack.c.bf16 %v4872, %v4871
      %v4884 = vpack.c.bf16 %v4874, %v4873
      %v4885 = vpack.c.bf16 %v4876, %v4875
      %v4886 = vpack.c.bf16 %v4878, %v4877
      %s4887 = scalar_lea.vmem %s6, 64
      %v4888 = vld [vmem:[%s4887] sm:$0xf]
      %v4889 = vld [vmem:[%s4887 + $0x4] sm:$0xf]
      %v4890 = vld [vmem:[%s4887 + $0x8] sm:$0xf]
      %v4891 = vld [vmem:[%s4887 + $0xc] sm:$0xf]
      %v4892 = vld [vmem:[%s4887 + $0x10] sm:$0xf]
      %v4893 = vld [vmem:[%s4887 + $0x14] sm:$0xf]
      %v4894 = vld [vmem:[%s4887 + $0x18] sm:$0xf]
      %v4895 = vld [vmem:[%s4887 + $0x1c] sm:$0xf]
      %v4896 = vld [vmem:[%s4887 + $0x20] sm:$0xf]
      %v4897 = vld [vmem:[%s4887 + $0x24] sm:$0xf]
      %v4898 = vld [vmem:[%s4887 + $0x28] sm:$0xf]
      %v4899 = vld [vmem:[%s4887 + $0x2c] sm:$0xf]
      %v4900 = vld [vmem:[%s4887 + $0x30] sm:$0xf]
      %v4901 = vld [vmem:[%s4887 + $0x34] sm:$0xf]
      %v4902 = vld [vmem:[%s4887 + $0x38] sm:$0xf]
      %v4903 = vld [vmem:[%s4887 + $0x3c] sm:$0xf]
      %s4904 = scalar_lea.vmem %s7, 1
      %v4905 = vld [vmem:[%s4904] sm:$0x1]
      %v4907 = vperm.slane %v4905, 0
      %v4925 = vunpack.c.l.b16 %v4888
      %v4926 = vunpack.c.l.b16 %v4889
      %v4927 = vunpack.c.l.b16 %v4890
      %v4928 = vunpack.c.l.b16 %v4891
      %v4929 = vunpack.c.l.b16 %v4892
      %v4930 = vunpack.c.l.b16 %v4893
      %v4931 = vunpack.c.l.b16 %v4894
      %v4932 = vunpack.c.l.b16 %v4895
      %v4933 = vunpack.c.l.b16 %v4896
      %v4934 = vunpack.c.l.b16 %v4897
      %v4935 = vunpack.c.l.b16 %v4898
      %v4936 = vunpack.c.l.b16 %v4899
      %v4937 = vunpack.c.l.b16 %v4900
      %v4938 = vunpack.c.l.b16 %v4901
      %v4939 = vunpack.c.l.b16 %v4902
      %v4940 = vunpack.c.l.b16 %v4903
      %v4941 = vpack.c.b16 %v4926, %v4925
      %v4942 = vpack.c.b16 %v4928, %v4927
      %v4943 = vpack.c.b16 %v4930, %v4929
      %v4944 = vpack.c.b16 %v4932, %v4931
      %v4945 = vpack.c.b16 %v4934, %v4933
      %v4946 = vpack.c.b16 %v4936, %v4935
      %v4947 = vpack.c.b16 %v4938, %v4937
      %v4948 = vpack.c.b16 %v4940, %v4939
      %4957 = vmatpush.bf16.msra.mxu0 %v4948
      %4958 = vmatpush.bf16.msra.mxu0 %v4947
      %4959 = vmatpush.bf16.msra.mxu0 %v4946
      %4960 = vmatpush.bf16.msra.mxu0 %v4945
      %4961 = vmatpush.bf16.msra.mxu0 %v4944
      %4962 = vmatpush.bf16.msra.mxu0 %v4943
      %4963 = vmatpush.bf16.msra.mxu0 %v4942
      %4964 = vmatpush.bf16.msra.mxu0 %v4941
      %4965 = vmatmul.bf16.gmra.mxu0 %v4879
      %v4966 = vpop.f32.mrf.mxu0
      %v4967 = vadd.f32 %v4907, %v4966
      %v4968 = vpop.f32.mrf.mxu0
      %v4969 = vadd.f32 %v4907, %v4968
      %4970 = vmatmul.bf16.gmra.mxu0 %v4880
      %v4971 = vpop.f32.mrf.mxu0
      %v4972 = vadd.f32 %v4907, %v4971
      %v4973 = vpop.f32.mrf.mxu0
      %v4974 = vadd.f32 %v4907, %v4973
      %4975 = vmatmul.bf16.gmra.mxu0 %v4881
      %v4976 = vpop.f32.mrf.mxu0
      %v4977 = vadd.f32 %v4907, %v4976
      %v4978 = vpop.f32.mrf.mxu0
      %v4979 = vadd.f32 %v4907, %v4978
      %4980 = vmatmul.bf16.gmra.mxu0 %v4882
      %v4981 = vpop.f32.mrf.mxu0
      %v4982 = vadd.f32 %v4907, %v4981
      %v4983 = vpop.f32.mrf.mxu0
      %v4984 = vadd.f32 %v4907, %v4983
      %4985 = vmatmul.bf16.gmra.mxu0 %v4883
      %v4986 = vpop.f32.mrf.mxu0
      %v4987 = vadd.f32 %v4907, %v4986
      %v4988 = vpop.f32.mrf.mxu0
      %v4989 = vadd.f32 %v4907, %v4988
      %4990 = vmatmul.bf16.gmra.mxu0 %v4884
      %v4991 = vpop.f32.mrf.mxu0
      %v4992 = vadd.f32 %v4907, %v4991
      %v4993 = vpop.f32.mrf.mxu0
      %v4994 = vadd.f32 %v4907, %v4993
      %4995 = vmatmul.bf16.gmra.mxu0 %v4885
      %v4996 = vpop.f32.mrf.mxu0
      %v4997 = vadd.f32 %v4907, %v4996
      %v4998 = vpop.f32.mrf.mxu0
      %v4999 = vadd.f32 %v4907, %v4998
      %5000 = vmatmul.bf16.gmra.mxu0 %v4886
      %v5001 = vpop.f32.mrf.mxu0
      %v5002 = vadd.f32 %v4907, %v5001
      %v5003 = vpop.f32.mrf.mxu0
      %v5004 = vadd.f32 %v4907, %v5003
      %5005 = vdwg.mxu0
      %v5006 = vadd.f32 %v4967, %v3694
      %v5007 = vadd.f32 %v4969, %v3695
      %v5008 = vadd.f32 %v4972, %v3696
      %v5009 = vadd.f32 %v4974, %v3697
      %v5010 = vadd.f32 %v4977, %v3698
      %v5011 = vadd.f32 %v4979, %v3699
      %v5012 = vadd.f32 %v4982, %v3700
      %v5013 = vadd.f32 %v4984, %v3701
      %v5014 = vadd.f32 %v4987, %v3702
      %v5015 = vadd.f32 %v4989, %v3703
      %v5016 = vadd.f32 %v4992, %v3704
      %v5017 = vadd.f32 %v4994, %v3705
      %v5018 = vadd.f32 %v4997, %v3706
      %v5019 = vadd.f32 %v4999, %v3707
      %v5020 = vadd.f32 %v5002, %v3708
      %v5021 = vadd.f32 %v5004, %v3709
      %s5022 = scalar_lea.vmem %s8, 1
      %v5023 = vld [vmem:[%s5022] sm:$0x1]
      %s5024 = scalar_lea.vmem %s9, 1
      %v5025 = vld [vmem:[%s5024] sm:$0x1]
      %5026 = vadd.xlane.f32.xlu0 %v5006
      %v5027 = vpop.xlane.xlu0 %5026
      %5028 = vadd.xlane.f32.xlu0 %v5007
      %v5029 = vpop.xlane.xlu0 %5028
      %5030 = vadd.xlane.f32.xlu0 %v5008
      %v5031 = vpop.xlane.xlu0 %5030
      %5032 = vadd.xlane.f32.xlu0 %v5009
      %v5033 = vpop.xlane.xlu0 %5032
      %5034 = vadd.xlane.f32.xlu0 %v5010
      %v5035 = vpop.xlane.xlu0 %5034
      %5036 = vadd.xlane.f32.xlu0 %v5011
      %v5037 = vpop.xlane.xlu0 %5036
      %5038 = vadd.xlane.f32.xlu0 %v5012
      %v5039 = vpop.xlane.xlu0 %5038
      %5040 = vadd.xlane.f32.xlu0 %v5013
      %v5041 = vpop.xlane.xlu0 %5040
      %5042 = vadd.xlane.f32.xlu0 %v5014
      %v5043 = vpop.xlane.xlu0 %5042
      %5044 = vadd.xlane.f32.xlu0 %v5015
      %v5045 = vpop.xlane.xlu0 %5044
      %5046 = vadd.xlane.f32.xlu0 %v5016
      %v5047 = vpop.xlane.xlu0 %5046
      %5048 = vadd.xlane.f32.xlu0 %v5017
      %v5049 = vpop.xlane.xlu0 %5048
      %5050 = vadd.xlane.f32.xlu0 %v5018
      %v5051 = vpop.xlane.xlu0 %5050
      %5052 = vadd.xlane.f32.xlu0 %v5019
      %v5053 = vpop.xlane.xlu0 %5052
      %5054 = vadd.xlane.f32.xlu0 %v5020
      %v5055 = vpop.xlane.xlu0 %5054
      %5056 = vadd.xlane.f32.xlu0 %v5021
      %v5057 = vpop.xlane.xlu0 %5056
      %v5058 = vmul.f32 %v5027, %v592
      %v5059 = vmul.f32 %v5029, %v592
      %v5060 = vmul.f32 %v5031, %v592
      %v5061 = vmul.f32 %v5033, %v592
      %v5062 = vmul.f32 %v5035, %v592
      %v5063 = vmul.f32 %v5037, %v592
      %v5064 = vmul.f32 %v5039, %v592
      %v5065 = vmul.f32 %v5041, %v592
      %v5066 = vmul.f32 %v5043, %v592
      %v5067 = vmul.f32 %v5045, %v592
      %v5068 = vmul.f32 %v5047, %v592
      %v5069 = vmul.f32 %v5049, %v592
      %v5070 = vmul.f32 %v5051, %v592
      %v5071 = vmul.f32 %v5053, %v592
      %v5072 = vmul.f32 %v5055, %v592
      %v5073 = vmul.f32 %v5057, %v592
      %v5074 = vsub.f32 %v5006, %v5058
      %v5075 = vsub.f32 %v5007, %v5059
      %v5076 = vsub.f32 %v5008, %v5060
      %v5077 = vsub.f32 %v5009, %v5061
      %v5078 = vsub.f32 %v5010, %v5062
      %v5079 = vsub.f32 %v5011, %v5063
      %v5080 = vsub.f32 %v5012, %v5064
      %v5081 = vsub.f32 %v5013, %v5065
      %v5082 = vsub.f32 %v5014, %v5066
      %v5083 = vsub.f32 %v5015, %v5067
      %v5084 = vsub.f32 %v5016, %v5068
      %v5085 = vsub.f32 %v5017, %v5069
      %v5086 = vsub.f32 %v5018, %v5070
      %v5087 = vsub.f32 %v5019, %v5071
      %v5088 = vsub.f32 %v5020, %v5072
      %v5089 = vsub.f32 %v5021, %v5073
      %v5090 = vmul.f32 %v5074, %v5074
      %v5091 = vmul.f32 %v5075, %v5075
      %v5092 = vmul.f32 %v5076, %v5076
      %v5093 = vmul.f32 %v5077, %v5077
      %v5094 = vmul.f32 %v5078, %v5078
      %v5095 = vmul.f32 %v5079, %v5079
      %v5096 = vmul.f32 %v5080, %v5080
      %v5097 = vmul.f32 %v5081, %v5081
      %v5098 = vmul.f32 %v5082, %v5082
      %v5099 = vmul.f32 %v5083, %v5083
      %v5100 = vmul.f32 %v5084, %v5084
      %v5101 = vmul.f32 %v5085, %v5085
      %v5102 = vmul.f32 %v5086, %v5086
      %v5103 = vmul.f32 %v5087, %v5087
      %v5104 = vmul.f32 %v5088, %v5088
      %v5105 = vmul.f32 %v5089, %v5089
      %5106 = vadd.xlane.f32.xlu0 %v5090
      %v5107 = vpop.xlane.xlu0 %5106
      %5108 = vadd.xlane.f32.xlu0 %v5091
      %v5109 = vpop.xlane.xlu0 %5108
      %5110 = vadd.xlane.f32.xlu0 %v5092
      %v5111 = vpop.xlane.xlu0 %5110
      %5112 = vadd.xlane.f32.xlu0 %v5093
      %v5113 = vpop.xlane.xlu0 %5112
      %5114 = vadd.xlane.f32.xlu0 %v5094
      %v5115 = vpop.xlane.xlu0 %5114
      %5116 = vadd.xlane.f32.xlu0 %v5095
      %v5117 = vpop.xlane.xlu0 %5116
      %5118 = vadd.xlane.f32.xlu0 %v5096
      %v5119 = vpop.xlane.xlu0 %5118
      %5120 = vadd.xlane.f32.xlu0 %v5097
      %v5121 = vpop.xlane.xlu0 %5120
      %5122 = vadd.xlane.f32.xlu0 %v5098
      %v5123 = vpop.xlane.xlu0 %5122
      %5124 = vadd.xlane.f32.xlu0 %v5099
      %v5125 = vpop.xlane.xlu0 %5124
      %5126 = vadd.xlane.f32.xlu0 %v5100
      %v5127 = vpop.xlane.xlu0 %5126
      %5128 = vadd.xlane.f32.xlu0 %v5101
      %v5129 = vpop.xlane.xlu0 %5128
      %5130 = vadd.xlane.f32.xlu0 %v5102
      %v5131 = vpop.xlane.xlu0 %5130
      %5132 = vadd.xlane.f32.xlu0 %v5103
      %v5133 = vpop.xlane.xlu0 %5132
      %5134 = vadd.xlane.f32.xlu0 %v5104
      %v5135 = vpop.xlane.xlu0 %5134
      %5136 = vadd.xlane.f32.xlu0 %v5105
      %v5137 = vpop.xlane.xlu0 %5136
      %v5138 = vmul.f32 %v5107, %v592
      %v5139 = vmul.f32 %v5109, %v592
      %v5140 = vmul.f32 %v5111, %v592
      %v5141 = vmul.f32 %v5113, %v592
      %v5142 = vmul.f32 %v5115, %v592
      %v5143 = vmul.f32 %v5117, %v592
      %v5144 = vmul.f32 %v5119, %v592
      %v5145 = vmul.f32 %v5121, %v592
      %v5146 = vmul.f32 %v5123, %v592
      %v5147 = vmul.f32 %v5125, %v592
      %v5148 = vmul.f32 %v5127, %v592
      %v5149 = vmul.f32 %v5129, %v592
      %v5150 = vmul.f32 %v5131, %v592
      %v5151 = vmul.f32 %v5133, %v592
      %v5152 = vmul.f32 %v5135, %v592
      %v5153 = vmul.f32 %v5137, %v592
      %v5154 = vadd.f32 %v5138, 1e-12
      %v5155 = vadd.f32 %v5139, 1e-12
      %v5156 = vadd.f32 %v5140, 1e-12
      %v5157 = vadd.f32 %v5141, 1e-12
      %v5158 = vadd.f32 %v5142, 1e-12
      %v5159 = vadd.f32 %v5143, 1e-12
      %v5160 = vadd.f32 %v5144, 1e-12
      %v5161 = vadd.f32 %v5145, 1e-12
      %v5162 = vadd.f32 %v5146, 1e-12
      %v5163 = vadd.f32 %v5147, 1e-12
      %v5164 = vadd.f32 %v5148, 1e-12
      %v5165 = vadd.f32 %v5149, 1e-12
      %v5166 = vadd.f32 %v5150, 1e-12
      %v5167 = vadd.f32 %v5151, 1e-12
      %v5168 = vadd.f32 %v5152, 1e-12
      %v5169 = vadd.f32 %v5153, 1e-12
      %v5170 = vrsqrt.pop %v5154
      %v5171 = vmul.f32 %v5170, %v5154
      %v5172 = vmul.f32 %v5171, %v5170
      %v5173 = vmul.f32 0.5, %v5172
      %v5174 = vsub.f32 1.5, %v5173
      %v5175 = vmul.f32 %v5170, %v5174
      %vm5176 = vweird.f32 %v5154
      %vm5177 = vweird.f32 %v5170
      %vm5178 = vmor %vm5176, %vm5177
      %v5179 = vsel %vm5178, %v5170, %v5175
      %v5180 = vrsqrt.pop %v5155
      %v5181 = vmul.f32 %v5180, %v5155
      %v5182 = vmul.f32 %v5181, %v5180
      %v5183 = vmul.f32 0.5, %v5182
      %v5184 = vsub.f32 1.5, %v5183
      %v5185 = vmul.f32 %v5180, %v5184
      %vm5186 = vweird.f32 %v5155
      %vm5187 = vweird.f32 %v5180
      %vm5188 = vmor %vm5186, %vm5187
      %v5189 = vsel %vm5188, %v5180, %v5185
      %v5190 = vrsqrt.pop %v5156
      %v5191 = vmul.f32 %v5190, %v5156
      %v5192 = vmul.f32 %v5191, %v5190
      %v5193 = vmul.f32 0.5, %v5192
      %v5194 = vsub.f32 1.5, %v5193
      %v5195 = vmul.f32 %v5190, %v5194
      %vm5196 = vweird.f32 %v5156
      %vm5197 = vweird.f32 %v5190
      %vm5198 = vmor %vm5196, %vm5197
      %v5199 = vsel %vm5198, %v5190, %v5195
      %v5200 = vrsqrt.pop %v5157
      %v5201 = vmul.f32 %v5200, %v5157
      %v5202 = vmul.f32 %v5201, %v5200
      %v5203 = vmul.f32 0.5, %v5202
      %v5204 = vsub.f32 1.5, %v5203
      %v5205 = vmul.f32 %v5200, %v5204
      %vm5206 = vweird.f32 %v5157
      %vm5207 = vweird.f32 %v5200
      %vm5208 = vmor %vm5206, %vm5207
      %v5209 = vsel %vm5208, %v5200, %v5205
      %v5210 = vrsqrt.pop %v5158
      %v5211 = vmul.f32 %v5210, %v5158
      %v5212 = vmul.f32 %v5211, %v5210
      %v5213 = vmul.f32 0.5, %v5212
      %v5214 = vsub.f32 1.5, %v5213
      %v5215 = vmul.f32 %v5210, %v5214
      %vm5216 = vweird.f32 %v5158
      %vm5217 = vweird.f32 %v5210
      %vm5218 = vmor %vm5216, %vm5217
      %v5219 = vsel %vm5218, %v5210, %v5215
      %v5220 = vrsqrt.pop %v5159
      %v5221 = vmul.f32 %v5220, %v5159
      %v5222 = vmul.f32 %v5221, %v5220
      %v5223 = vmul.f32 0.5, %v5222
      %v5224 = vsub.f32 1.5, %v5223
      %v5225 = vmul.f32 %v5220, %v5224
      %vm5226 = vweird.f32 %v5159
      %vm5227 = vweird.f32 %v5220
      %vm5228 = vmor %vm5226, %vm5227
      %v5229 = vsel %vm5228, %v5220, %v5225
      %v5230 = vrsqrt.pop %v5160
      %v5231 = vmul.f32 %v5230, %v5160
      %v5232 = vmul.f32 %v5231, %v5230
      %v5233 = vmul.f32 0.5, %v5232
      %v5234 = vsub.f32 1.5, %v5233
      %v5235 = vmul.f32 %v5230, %v5234
      %vm5236 = vweird.f32 %v5160
      %vm5237 = vweird.f32 %v5230
      %vm5238 = vmor %vm5236, %vm5237
      %v5239 = vsel %vm5238, %v5230, %v5235
      %v5240 = vrsqrt.pop %v5161
      %v5241 = vmul.f32 %v5240, %v5161
      %v5242 = vmul.f32 %v5241, %v5240
      %v5243 = vmul.f32 0.5, %v5242
      %v5244 = vsub.f32 1.5, %v5243
      %v5245 = vmul.f32 %v5240, %v5244
      %vm5246 = vweird.f32 %v5161
      %vm5247 = vweird.f32 %v5240
      %vm5248 = vmor %vm5246, %vm5247
      %v5249 = vsel %vm5248, %v5240, %v5245
      %v5250 = vrsqrt.pop %v5162
      %v5251 = vmul.f32 %v5250, %v5162
      %v5252 = vmul.f32 %v5251, %v5250
      %v5253 = vmul.f32 0.5, %v5252
      %v5254 = vsub.f32 1.5, %v5253
      %v5255 = vmul.f32 %v5250, %v5254
      %vm5256 = vweird.f32 %v5162
      %vm5257 = vweird.f32 %v5250
      %vm5258 = vmor %vm5256, %vm5257
      %v5259 = vsel %vm5258, %v5250, %v5255
      %v5260 = vrsqrt.pop %v5163
      %v5261 = vmul.f32 %v5260, %v5163
      %v5262 = vmul.f32 %v5261, %v5260
      %v5263 = vmul.f32 0.5, %v5262
      %v5264 = vsub.f32 1.5, %v5263
      %v5265 = vmul.f32 %v5260, %v5264
      %vm5266 = vweird.f32 %v5163
      %vm5267 = vweird.f32 %v5260
      %vm5268 = vmor %vm5266, %vm5267
      %v5269 = vsel %vm5268, %v5260, %v5265
      %v5270 = vrsqrt.pop %v5164
      %v5271 = vmul.f32 %v5270, %v5164
      %v5272 = vmul.f32 %v5271, %v5270
      %v5273 = vmul.f32 0.5, %v5272
      %v5274 = vsub.f32 1.5, %v5273
      %v5275 = vmul.f32 %v5270, %v5274
      %vm5276 = vweird.f32 %v5164
      %vm5277 = vweird.f32 %v5270
      %vm5278 = vmor %vm5276, %vm5277
      %v5279 = vsel %vm5278, %v5270, %v5275
      %v5280 = vrsqrt.pop %v5165
      %v5281 = vmul.f32 %v5280, %v5165
      %v5282 = vmul.f32 %v5281, %v5280
      %v5283 = vmul.f32 0.5, %v5282
      %v5284 = vsub.f32 1.5, %v5283
      %v5285 = vmul.f32 %v5280, %v5284
      %vm5286 = vweird.f32 %v5165
      %vm5287 = vweird.f32 %v5280
      %vm5288 = vmor %vm5286, %vm5287
      %v5289 = vsel %vm5288, %v5280, %v5285
      %v5290 = vrsqrt.pop %v5166
      %v5291 = vmul.f32 %v5290, %v5166
      %v5292 = vmul.f32 %v5291, %v5290
      %v5293 = vmul.f32 0.5, %v5292
      %v5294 = vsub.f32 1.5, %v5293
      %v5295 = vmul.f32 %v5290, %v5294
      %vm5296 = vweird.f32 %v5166
      %vm5297 = vweird.f32 %v5290
      %vm5298 = vmor %vm5296, %vm5297
      %v5299 = vsel %vm5298, %v5290, %v5295
      %v5300 = vrsqrt.pop %v5167
      %v5301 = vmul.f32 %v5300, %v5167
      %v5302 = vmul.f32 %v5301, %v5300
      %v5303 = vmul.f32 0.5, %v5302
      %v5304 = vsub.f32 1.5, %v5303
      %v5305 = vmul.f32 %v5300, %v5304
      %vm5306 = vweird.f32 %v5167
      %vm5307 = vweird.f32 %v5300
      %vm5308 = vmor %vm5306, %vm5307
      %v5309 = vsel %vm5308, %v5300, %v5305
      %v5310 = vrsqrt.pop %v5168
      %v5311 = vmul.f32 %v5310, %v5168
      %v5312 = vmul.f32 %v5311, %v5310
      %v5313 = vmul.f32 0.5, %v5312
      %v5314 = vsub.f32 1.5, %v5313
      %v5315 = vmul.f32 %v5310, %v5314
      %vm5316 = vweird.f32 %v5168
      %vm5317 = vweird.f32 %v5310
      %vm5318 = vmor %vm5316, %vm5317
      %v5319 = vsel %vm5318, %v5310, %v5315
      %v5320 = vrsqrt.pop %v5169
      %v5321 = vmul.f32 %v5320, %v5169
      %v5322 = vmul.f32 %v5321, %v5320
      %v5323 = vmul.f32 0.5, %v5322
      %v5324 = vsub.f32 1.5, %v5323
      %v5325 = vmul.f32 %v5320, %v5324
      %vm5326 = vweird.f32 %v5169
      %vm5327 = vweird.f32 %v5320
      %vm5328 = vmor %vm5326, %vm5327
      %v5329 = vsel %vm5328, %v5320, %v5325
      %v5330 = vmul.f32 %v5074, %v5179
      %v5331 = vmul.f32 %v5075, %v5189
      %v5332 = vmul.f32 %v5076, %v5199
      %v5333 = vmul.f32 %v5077, %v5209
      %v5334 = vmul.f32 %v5078, %v5219
      %v5335 = vmul.f32 %v5079, %v5229
      %v5336 = vmul.f32 %v5080, %v5239
      %v5337 = vmul.f32 %v5081, %v5249
      %v5338 = vmul.f32 %v5082, %v5259
      %v5339 = vmul.f32 %v5083, %v5269
      %v5340 = vmul.f32 %v5084, %v5279
      %v5341 = vmul.f32 %v5085, %v5289
      %v5342 = vmul.f32 %v5086, %v5299
      %v5343 = vmul.f32 %v5087, %v5309
      %v5344 = vmul.f32 %v5088, %v5319
      %v5345 = vmul.f32 %v5089, %v5329
      %v5347 = vperm.slane %v5023, 0
      %v5349 = vmul.f32 %v5330, %v5347
      %v5350 = vmul.f32 %v5331, %v5347
      %v5351 = vmul.f32 %v5332, %v5347
      %v5352 = vmul.f32 %v5333, %v5347
      %v5353 = vmul.f32 %v5334, %v5347
      %v5354 = vmul.f32 %v5335, %v5347
      %v5355 = vmul.f32 %v5336, %v5347
      %v5356 = vmul.f32 %v5337, %v5347
      %v5357 = vmul.f32 %v5338, %v5347
      %v5358 = vmul.f32 %v5339, %v5347
      %v5359 = vmul.f32 %v5340, %v5347
      %v5360 = vmul.f32 %v5341, %v5347
      %v5361 = vmul.f32 %v5342, %v5347
      %v5362 = vmul.f32 %v5343, %v5347
      %v5363 = vmul.f32 %v5344, %v5347
      %v5364 = vmul.f32 %v5345, %v5347
      %v5366 = vperm.slane %v5025, 0
      %v5368 = vadd.f32 %v5349, %v5366
      %v5369 = vadd.f32 %v5350, %v5366
      %v5370 = vadd.f32 %v5351, %v5366
      %v5371 = vadd.f32 %v5352, %v5366
      %v5372 = vadd.f32 %v5353, %v5366
      %v5373 = vadd.f32 %v5354, %v5366
      %v5374 = vadd.f32 %v5355, %v5366
      %v5375 = vadd.f32 %v5356, %v5366
      %v5376 = vadd.f32 %v5357, %v5366
      %v5377 = vadd.f32 %v5358, %v5366
      %v5378 = vadd.f32 %v5359, %v5366
      %v5379 = vadd.f32 %v5360, %v5366
      %v5380 = vadd.f32 %v5361, %v5366
      %v5381 = vadd.f32 %v5362, %v5366
      %v5382 = vadd.f32 %v5363, %v5366
      %v5383 = vadd.f32 %v5364, %v5366
      %v5384 = vpack.c.bf16 %v5369, %v5368
      %v5385 = vpack.c.bf16 %v5371, %v5370
      %v5386 = vpack.c.bf16 %v5373, %v5372
      %v5387 = vpack.c.bf16 %v5375, %v5374
      %v5388 = vpack.c.bf16 %v5377, %v5376
      %v5389 = vpack.c.bf16 %v5379, %v5378
      %v5390 = vpack.c.bf16 %v5381, %v5380
      %v5391 = vpack.c.bf16 %v5383, %v5382
      %s5392 = scalar_lea.vmem %s10, 128
      %v5393 = vld [vmem:[%s5392] sm:$0xff]
      %v5394 = vld [vmem:[%s5392 + $0x8] sm:$0xff]
      %v5395 = vld [vmem:[%s5392 + $0x10] sm:$0xff]
      %v5396 = vld [vmem:[%s5392 + $0x18] sm:$0xff]
      %v5397 = vld [vmem:[%s5392 + $0x20] sm:$0xff]
      %v5398 = vld [vmem:[%s5392 + $0x28] sm:$0xff]
      %v5399 = vld [vmem:[%s5392 + $0x30] sm:$0xff]
      %v5400 = vld [vmem:[%s5392 + $0x38] sm:$0xff]
      %v5401 = vld [vmem:[%s5392 + $0x40] sm:$0xff]
      %v5402 = vld [vmem:[%s5392 + $0x48] sm:$0xff]
      %v5403 = vld [vmem:[%s5392 + $0x50] sm:$0xff]
      %v5404 = vld [vmem:[%s5392 + $0x58] sm:$0xff]
      %v5405 = vld [vmem:[%s5392 + $0x60] sm:$0xff]
      %v5406 = vld [vmem:[%s5392 + $0x68] sm:$0xff]
      %v5407 = vld [vmem:[%s5392 + $0x70] sm:$0xff]
      %v5408 = vld [vmem:[%s5392 + $0x78] sm:$0xff]
      %s5409 = scalar_lea.vmem %s11, 2
      %v5410 = vld [vmem:[%s5409] sm:$0x3]
      %v5412 = vperm.slane %v5410, 0
      %v5413 = vperm.slane %v5410, 1
      %v5432 = vunpack.c.l.b16 %v5393
      %v5433 = vunpack.c.h.b16 %v5393
      %v5434 = vunpack.c.l.b16 %v5394
      %v5435 = vunpack.c.h.b16 %v5394
      %v5436 = vunpack.c.l.b16 %v5395
      %v5437 = vunpack.c.h.b16 %v5395
      %v5438 = vunpack.c.l.b16 %v5396
      %v5439 = vunpack.c.h.b16 %v5396
      %v5440 = vunpack.c.l.b16 %v5397
      %v5441 = vunpack.c.h.b16 %v5397
      %v5442 = vunpack.c.l.b16 %v5398
      %v5443 = vunpack.c.h.b16 %v5398
      %v5444 = vunpack.c.l.b16 %v5399
      %v5445 = vunpack.c.h.b16 %v5399
      %v5446 = vunpack.c.l.b16 %v5400
      %v5447 = vunpack.c.h.b16 %v5400
      %v5448 = vunpack.c.l.b16 %v5401
      %v5449 = vunpack.c.h.b16 %v5401
      %v5450 = vunpack.c.l.b16 %v5402
      %v5451 = vunpack.c.h.b16 %v5402
      %v5452 = vunpack.c.l.b16 %v5403
      %v5453 = vunpack.c.h.b16 %v5403
      %v5454 = vunpack.c.l.b16 %v5404
      %v5455 = vunpack.c.h.b16 %v5404
      %v5456 = vunpack.c.l.b16 %v5405
      %v5457 = vunpack.c.h.b16 %v5405
      %v5458 = vunpack.c.l.b16 %v5406
      %v5459 = vunpack.c.h.b16 %v5406
      %v5460 = vunpack.c.l.b16 %v5407
      %v5461 = vunpack.c.h.b16 %v5407
      %v5462 = vunpack.c.l.b16 %v5408
      %v5463 = vunpack.c.h.b16 %v5408
      %v5464 = vpack.c.b16 %v5434, %v5432
      %v5465 = vpack.c.b16 %v5435, %v5433
      %v5466 = vpack.c.b16 %v5438, %v5436
      %v5467 = vpack.c.b16 %v5439, %v5437
      %v5468 = vpack.c.b16 %v5442, %v5440
      %v5469 = vpack.c.b16 %v5443, %v5441
      %v5470 = vpack.c.b16 %v5446, %v5444
      %v5471 = vpack.c.b16 %v5447, %v5445
      %v5472 = vpack.c.b16 %v5450, %v5448
      %v5473 = vpack.c.b16 %v5451, %v5449
      %v5474 = vpack.c.b16 %v5454, %v5452
      %v5475 = vpack.c.b16 %v5455, %v5453
      %v5476 = vpack.c.b16 %v5458, %v5456
      %v5477 = vpack.c.b16 %v5459, %v5457
      %v5478 = vpack.c.b16 %v5462, %v5460
      %v5479 = vpack.c.b16 %v5463, %v5461
      %5496 = vmatpush.bf16.msra.mxu0 %v5478
      %5497 = vmatpush.bf16.msra.mxu0 %v5476
      %5498 = vmatpush.bf16.msra.mxu0 %v5474
      %5499 = vmatpush.bf16.msra.mxu0 %v5472
      %5500 = vmatpush.bf16.msra.mxu0 %v5470
      %5501 = vmatpush.bf16.msra.mxu0 %v5468
      %5502 = vmatpush.bf16.msra.mxu0 %v5466
      %5503 = vmatpush.bf16.msra.mxu0 %v5464
      %5504 = vmatmul.bf16.gmra.mxu0 %v5384
      %v5505 = vpop.f32.mrf.mxu0
      %v5506 = vadd.f32 %v5412, %v5505
      %v5507 = vpop.f32.mrf.mxu0
      %v5508 = vadd.f32 %v5412, %v5507
      %5509 = vmatmul.bf16.gmra.mxu0 %v5385
      %v5510 = vpop.f32.mrf.mxu0
      %v5511 = vadd.f32 %v5412, %v5510
      %v5512 = vpop.f32.mrf.mxu0
      %v5513 = vadd.f32 %v5412, %v5512
      %5514 = vmatmul.bf16.gmra.mxu0 %v5386
      %v5515 = vpop.f32.mrf.mxu0
      %v5516 = vadd.f32 %v5412, %v5515
      %v5517 = vpop.f32.mrf.mxu0
      %v5518 = vadd.f32 %v5412, %v5517
      %5519 = vmatmul.bf16.gmra.mxu0 %v5387
      %v5520 = vpop.f32.mrf.mxu0
      %v5521 = vadd.f32 %v5412, %v5520
      %v5522 = vpop.f32.mrf.mxu0
      %v5523 = vadd.f32 %v5412, %v5522
      %5524 = vmatmul.bf16.gmra.mxu0 %v5388
      %v5525 = vpop.f32.mrf.mxu0
      %v5526 = vadd.f32 %v5412, %v5525
      %v5527 = vpop.f32.mrf.mxu0
      %v5528 = vadd.f32 %v5412, %v5527
      %5529 = vmatmul.bf16.gmra.mxu0 %v5389
      %v5530 = vpop.f32.mrf.mxu0
      %v5531 = vadd.f32 %v5412, %v5530
      %v5532 = vpop.f32.mrf.mxu0
      %v5533 = vadd.f32 %v5412, %v5532
      %5534 = vmatmul.bf16.gmra.mxu0 %v5390
      %v5535 = vpop.f32.mrf.mxu0
      %v5536 = vadd.f32 %v5412, %v5535
      %v5537 = vpop.f32.mrf.mxu0
      %v5538 = vadd.f32 %v5412, %v5537
      %5539 = vmatmul.bf16.gmra.mxu0 %v5391
      %v5540 = vpop.f32.mrf.mxu0
      %v5541 = vadd.f32 %v5412, %v5540
      %v5542 = vpop.f32.mrf.mxu0
      %v5543 = vadd.f32 %v5412, %v5542
      %5544 = vdwg.mxu0
      %5545 = vmatpush.bf16.msra.mxu0 %v5479
      %5546 = vmatpush.bf16.msra.mxu0 %v5477
      %5547 = vmatpush.bf16.msra.mxu0 %v5475
      %5548 = vmatpush.bf16.msra.mxu0 %v5473
      %5549 = vmatpush.bf16.msra.mxu0 %v5471
      %5550 = vmatpush.bf16.msra.mxu0 %v5469
      %5551 = vmatpush.bf16.msra.mxu0 %v5467
      %5552 = vmatpush.bf16.msra.mxu0 %v5465
      %5553 = vmatmul.bf16.gmra.mxu0 %v5384
      %v5554 = vpop.f32.mrf.mxu0
      %v5555 = vadd.f32 %v5413, %v5554
      %v5556 = vpop.f32.mrf.mxu0
      %v5557 = vadd.f32 %v5413, %v5556
      %5558 = vmatmul.bf16.gmra.mxu0 %v5385
      %v5559 = vpop.f32.mrf.mxu0
      %v5560 = vadd.f32 %v5413, %v5559
      %v5561 = vpop.f32.mrf.mxu0
      %v5562 = vadd.f32 %v5413, %v5561
      %5563 = vmatmul.bf16.gmra.mxu0 %v5386
      %v5564 = vpop.f32.mrf.mxu0
      %v5565 = vadd.f32 %v5413, %v5564
      %v5566 = vpop.f32.mrf.mxu0
      %v5567 = vadd.f32 %v5413, %v5566
      %5568 = vmatmul.bf16.gmra.mxu0 %v5387
      %v5569 = vpop.f32.mrf.mxu0
      %v5570 = vadd.f32 %v5413, %v5569
      %v5571 = vpop.f32.mrf.mxu0
      %v5572 = vadd.f32 %v5413, %v5571
      %5573 = vmatmul.bf16.gmra.mxu0 %v5388
      %v5574 = vpop.f32.mrf.mxu0
      %v5575 = vadd.f32 %v5413, %v5574
      %v5576 = vpop.f32.mrf.mxu0
      %v5577 = vadd.f32 %v5413, %v5576
      %5578 = vmatmul.bf16.gmra.mxu0 %v5389
      %v5579 = vpop.f32.mrf.mxu0
      %v5580 = vadd.f32 %v5413, %v5579
      %v5581 = vpop.f32.mrf.mxu0
      %v5582 = vadd.f32 %v5413, %v5581
      %5583 = vmatmul.bf16.gmra.mxu0 %v5390
      %v5584 = vpop.f32.mrf.mxu0
      %v5585 = vadd.f32 %v5413, %v5584
      %v5586 = vpop.f32.mrf.mxu0
      %v5587 = vadd.f32 %v5413, %v5586
      %5588 = vmatmul.bf16.gmra.mxu0 %v5391
      %v5589 = vpop.f32.mrf.mxu0
      %v5590 = vadd.f32 %v5413, %v5589
      %v5591 = vpop.f32.mrf.mxu0
      %v5592 = vadd.f32 %v5413, %v5591
      %5593 = vdwg.mxu0
      %v5594 = vmul.f32 %v5506, %v5506
      %v5595 = vmul.f32 %v5555, %v5555
      %v5596 = vmul.f32 %v5508, %v5508
      %v5597 = vmul.f32 %v5557, %v5557
      %v5598 = vmul.f32 %v5511, %v5511
      %v5599 = vmul.f32 %v5560, %v5560
      %v5600 = vmul.f32 %v5513, %v5513
      %v5601 = vmul.f32 %v5562, %v5562
      %v5602 = vmul.f32 %v5516, %v5516
      %v5603 = vmul.f32 %v5565, %v5565
      %v5604 = vmul.f32 %v5518, %v5518
      %v5605 = vmul.f32 %v5567, %v5567
      %v5606 = vmul.f32 %v5521, %v5521
      %v5607 = vmul.f32 %v5570, %v5570
      %v5608 = vmul.f32 %v5523, %v5523
      %v5609 = vmul.f32 %v5572, %v5572
      %v5610 = vmul.f32 %v5526, %v5526
      %v5611 = vmul.f32 %v5575, %v5575
      %v5612 = vmul.f32 %v5528, %v5528
      %v5613 = vmul.f32 %v5577, %v5577
      %v5614 = vmul.f32 %v5531, %v5531
      %v5615 = vmul.f32 %v5580, %v5580
      %v5616 = vmul.f32 %v5533, %v5533
      %v5617 = vmul.f32 %v5582, %v5582
      %v5618 = vmul.f32 %v5536, %v5536
      %v5619 = vmul.f32 %v5585, %v5585
      %v5620 = vmul.f32 %v5538, %v5538
      %v5621 = vmul.f32 %v5587, %v5587
      %v5622 = vmul.f32 %v5541, %v5541
      %v5623 = vmul.f32 %v5590, %v5590
      %v5624 = vmul.f32 %v5543, %v5543
      %v5625 = vmul.f32 %v5592, %v5592
      %v5626 = vmul.f32 %v5506, %v5594
      %v5627 = vmul.f32 %v5555, %v5595
      %v5628 = vmul.f32 %v5508, %v5596
      %v5629 = vmul.f32 %v5557, %v5597
      %v5630 = vmul.f32 %v5511, %v5598
      %v5631 = vmul.f32 %v5560, %v5599
      %v5632 = vmul.f32 %v5513, %v5600
      %v5633 = vmul.f32 %v5562, %v5601
      %v5634 = vmul.f32 %v5516, %v5602
      %v5635 = vmul.f32 %v5565, %v5603
      %v5636 = vmul.f32 %v5518, %v5604
      %v5637 = vmul.f32 %v5567, %v5605
      %v5638 = vmul.f32 %v5521, %v5606
      %v5639 = vmul.f32 %v5570, %v5607
      %v5640 = vmul.f32 %v5523, %v5608
      %v5641 = vmul.f32 %v5572, %v5609
      %v5642 = vmul.f32 %v5526, %v5610
      %v5643 = vmul.f32 %v5575, %v5611
      %v5644 = vmul.f32 %v5528, %v5612
      %v5645 = vmul.f32 %v5577, %v5613
      %v5646 = vmul.f32 %v5531, %v5614
      %v5647 = vmul.f32 %v5580, %v5615
      %v5648 = vmul.f32 %v5533, %v5616
      %v5649 = vmul.f32 %v5582, %v5617
      %v5650 = vmul.f32 %v5536, %v5618
      %v5651 = vmul.f32 %v5585, %v5619
      %v5652 = vmul.f32 %v5538, %v5620
      %v5653 = vmul.f32 %v5587, %v5621
      %v5654 = vmul.f32 %v5541, %v5622
      %v5655 = vmul.f32 %v5590, %v5623
      %v5656 = vmul.f32 %v5543, %v5624
      %v5657 = vmul.f32 %v5592, %v5625
      %v5658 = vmul.f32 %v5626, 0.044715
      %v5659 = vmul.f32 %v5627, 0.044715
      %v5660 = vmul.f32 %v5628, 0.044715
      %v5661 = vmul.f32 %v5629, 0.044715
      %v5662 = vmul.f32 %v5630, 0.044715
      %v5663 = vmul.f32 %v5631, 0.044715
      %v5664 = vmul.f32 %v5632, 0.044715
      %v5665 = vmul.f32 %v5633, 0.044715
      %v5666 = vmul.f32 %v5634, 0.044715
      %v5667 = vmul.f32 %v5635, 0.044715
      %v5668 = vmul.f32 %v5636, 0.044715
      %v5669 = vmul.f32 %v5637, 0.044715
      %v5670 = vmul.f32 %v5638, 0.044715
      %v5671 = vmul.f32 %v5639, 0.044715
      %v5672 = vmul.f32 %v5640, 0.044715
      %v5673 = vmul.f32 %v5641, 0.044715
      %v5674 = vmul.f32 %v5642, 0.044715
      %v5675 = vmul.f32 %v5643, 0.044715
      %v5676 = vmul.f32 %v5644, 0.044715
      %v5677 = vmul.f32 %v5645, 0.044715
      %v5678 = vmul.f32 %v5646, 0.044715
      %v5679 = vmul.f32 %v5647, 0.044715
      %v5680 = vmul.f32 %v5648, 0.044715
      %v5681 = vmul.f32 %v5649, 0.044715
      %v5682 = vmul.f32 %v5650, 0.044715
      %v5683 = vmul.f32 %v5651, 0.044715
      %v5684 = vmul.f32 %v5652, 0.044715
      %v5685 = vmul.f32 %v5653, 0.044715
      %v5686 = vmul.f32 %v5654, 0.044715
      %v5687 = vmul.f32 %v5655, 0.044715
      %v5688 = vmul.f32 %v5656, 0.044715
      %v5689 = vmul.f32 %v5657, 0.044715
      %v5690 = vadd.f32 %v5506, %v5658
      %v5691 = vadd.f32 %v5555, %v5659
      %v5692 = vadd.f32 %v5508, %v5660
      %v5693 = vadd.f32 %v5557, %v5661
      %v5694 = vadd.f32 %v5511, %v5662
      %v5695 = vadd.f32 %v5560, %v5663
      %v5696 = vadd.f32 %v5513, %v5664
      %v5697 = vadd.f32 %v5562, %v5665
      %v5698 = vadd.f32 %v5516, %v5666
      %v5699 = vadd.f32 %v5565, %v5667
      %v5700 = vadd.f32 %v5518, %v5668
      %v5701 = vadd.f32 %v5567, %v5669
      %v5702 = vadd.f32 %v5521, %v5670
      %v5703 = vadd.f32 %v5570, %v5671
      %v5704 = vadd.f32 %v5523, %v5672
      %v5705 = vadd.f32 %v5572, %v5673
      %v5706 = vadd.f32 %v5526, %v5674
      %v5707 = vadd.f32 %v5575, %v5675
      %v5708 = vadd.f32 %v5528, %v5676
      %v5709 = vadd.f32 %v5577, %v5677
      %v5710 = vadd.f32 %v5531, %v5678
      %v5711 = vadd.f32 %v5580, %v5679
      %v5712 = vadd.f32 %v5533, %v5680
      %v5713 = vadd.f32 %v5582, %v5681
      %v5714 = vadd.f32 %v5536, %v5682
      %v5715 = vadd.f32 %v5585, %v5683
      %v5716 = vadd.f32 %v5538, %v5684
      %v5717 = vadd.f32 %v5587, %v5685
      %v5718 = vadd.f32 %v5541, %v5686
      %v5719 = vadd.f32 %v5590, %v5687
      %v5720 = vadd.f32 %v5543, %v5688
      %v5721 = vadd.f32 %v5592, %v5689
      %v5722 = vmul.f32 %v5690, 0.7978846
      %v5723 = vmul.f32 %v5691, 0.7978846
      %v5724 = vmul.f32 %v5692, 0.7978846
      %v5725 = vmul.f32 %v5693, 0.7978846
      %v5726 = vmul.f32 %v5694, 0.7978846
      %v5727 = vmul.f32 %v5695, 0.7978846
      %v5728 = vmul.f32 %v5696, 0.7978846
      %v5729 = vmul.f32 %v5697, 0.7978846
      %v5730 = vmul.f32 %v5698, 0.7978846
      %v5731 = vmul.f32 %v5699, 0.7978846
      %v5732 = vmul.f32 %v5700, 0.7978846
      %v5733 = vmul.f32 %v5701, 0.7978846
      %v5734 = vmul.f32 %v5702, 0.7978846
      %v5735 = vmul.f32 %v5703, 0.7978846
      %v5736 = vmul.f32 %v5704, 0.7978846
      %v5737 = vmul.f32 %v5705, 0.7978846
      %v5738 = vmul.f32 %v5706, 0.7978846
      %v5739 = vmul.f32 %v5707, 0.7978846
      %v5740 = vmul.f32 %v5708, 0.7978846
      %v5741 = vmul.f32 %v5709, 0.7978846
      %v5742 = vmul.f32 %v5710, 0.7978846
      %v5743 = vmul.f32 %v5711, 0.7978846
      %v5744 = vmul.f32 %v5712, 0.7978846
      %v5745 = vmul.f32 %v5713, 0.7978846
      %v5746 = vmul.f32 %v5714, 0.7978846
      %v5747 = vmul.f32 %v5715, 0.7978846
      %v5748 = vmul.f32 %v5716, 0.7978846
      %v5749 = vmul.f32 %v5717, 0.7978846
      %v5750 = vmul.f32 %v5718, 0.7978846
      %v5751 = vmul.f32 %v5719, 0.7978846
      %v5752 = vmul.f32 %v5720, 0.7978846
      %v5753 = vmul.f32 %v5721, 0.7978846
      %v5754 = vtanh.pop %v5722
      %v5755 = vtanh.pop %v5723
      %v5756 = vtanh.pop %v5724
      %v5757 = vtanh.pop %v5725
      %v5758 = vtanh.pop %v5726
      %v5759 = vtanh.pop %v5727
      %v5760 = vtanh.pop %v5728
      %v5761 = vtanh.pop %v5729
      %v5762 = vtanh.pop %v5730
      %v5763 = vtanh.pop %v5731
      %v5764 = vtanh.pop %v5732
      %v5765 = vtanh.pop %v5733
      %v5766 = vtanh.pop %v5734
      %v5767 = vtanh.pop %v5735
      %v5768 = vtanh.pop %v5736
      %v5769 = vtanh.pop %v5737
      %v5770 = vtanh.pop %v5738
      %v5771 = vtanh.pop %v5739
      %v5772 = vtanh.pop %v5740
      %v5773 = vtanh.pop %v5741
      %v5774 = vtanh.pop %v5742
      %v5775 = vtanh.pop %v5743
      %v5776 = vtanh.pop %v5744
      %v5777 = vtanh.pop %v5745
      %v5778 = vtanh.pop %v5746
      %v5779 = vtanh.pop %v5747
      %v5780 = vtanh.pop %v5748
      %v5781 = vtanh.pop %v5749
      %v5782 = vtanh.pop %v5750
      %v5783 = vtanh.pop %v5751
      %v5784 = vtanh.pop %v5752
      %v5785 = vtanh.pop %v5753
      %v5786 = vadd.f32 %v5754, 1.0
      %v5787 = vadd.f32 %v5755, 1.0
      %v5788 = vadd.f32 %v5756, 1.0
      %v5789 = vadd.f32 %v5757, 1.0
      %v5790 = vadd.f32 %v5758, 1.0
      %v5791 = vadd.f32 %v5759, 1.0
      %v5792 = vadd.f32 %v5760, 1.0
      %v5793 = vadd.f32 %v5761, 1.0
      %v5794 = vadd.f32 %v5762, 1.0
      %v5795 = vadd.f32 %v5763, 1.0
      %v5796 = vadd.f32 %v5764, 1.0
      %v5797 = vadd.f32 %v5765, 1.0
      %v5798 = vadd.f32 %v5766, 1.0
      %v5799 = vadd.f32 %v5767, 1.0
      %v5800 = vadd.f32 %v5768, 1.0
      %v5801 = vadd.f32 %v5769, 1.0
      %v5802 = vadd.f32 %v5770, 1.0
      %v5803 = vadd.f32 %v5771, 1.0
      %v5804 = vadd.f32 %v5772, 1.0
      %v5805 = vadd.f32 %v5773, 1.0
      %v5806 = vadd.f32 %v5774, 1.0
      %v5807 = vadd.f32 %v5775, 1.0
      %v5808 = vadd.f32 %v5776, 1.0
      %v5809 = vadd.f32 %v5777, 1.0
      %v5810 = vadd.f32 %v5778, 1.0
      %v5811 = vadd.f32 %v5779, 1.0
      %v5812 = vadd.f32 %v5780, 1.0
      %v5813 = vadd.f32 %v5781, 1.0
      %v5814 = vadd.f32 %v5782, 1.0
      %v5815 = vadd.f32 %v5783, 1.0
      %v5816 = vadd.f32 %v5784, 1.0
      %v5817 = vadd.f32 %v5785, 1.0
      %v5818 = vmul.f32 %v5786, 0.5
      %v5819 = vmul.f32 %v5787, 0.5
      %v5820 = vmul.f32 %v5788, 0.5
      %v5821 = vmul.f32 %v5789, 0.5
      %v5822 = vmul.f32 %v5790, 0.5
      %v5823 = vmul.f32 %v5791, 0.5
      %v5824 = vmul.f32 %v5792, 0.5
      %v5825 = vmul.f32 %v5793, 0.5
      %v5826 = vmul.f32 %v5794, 0.5
      %v5827 = vmul.f32 %v5795, 0.5
      %v5828 = vmul.f32 %v5796, 0.5
      %v5829 = vmul.f32 %v5797, 0.5
      %v5830 = vmul.f32 %v5798, 0.5
      %v5831 = vmul.f32 %v5799, 0.5
      %v5832 = vmul.f32 %v5800, 0.5
      %v5833 = vmul.f32 %v5801, 0.5
      %v5834 = vmul.f32 %v5802, 0.5
      %v5835 = vmul.f32 %v5803, 0.5
      %v5836 = vmul.f32 %v5804, 0.5
      %v5837 = vmul.f32 %v5805, 0.5
      %v5838 = vmul.f32 %v5806, 0.5
      %v5839 = vmul.f32 %v5807, 0.5
      %v5840 = vmul.f32 %v5808, 0.5
      %v5841 = vmul.f32 %v5809, 0.5
      %v5842 = vmul.f32 %v5810, 0.5
      %v5843 = vmul.f32 %v5811, 0.5
      %v5844 = vmul.f32 %v5812, 0.5
      %v5845 = vmul.f32 %v5813, 0.5
      %v5846 = vmul.f32 %v5814, 0.5
      %v5847 = vmul.f32 %v5815, 0.5
      %v5848 = vmul.f32 %v5816, 0.5
      %v5849 = vmul.f32 %v5817, 0.5
      %v5850 = vmul.f32 %v5506, %v5818
      %v5851 = vmul.f32 %v5555, %v5819
      %v5852 = vmul.f32 %v5508, %v5820
      %v5853 = vmul.f32 %v5557, %v5821
      %v5854 = vmul.f32 %v5511, %v5822
      %v5855 = vmul.f32 %v5560, %v5823
      %v5856 = vmul.f32 %v5513, %v5824
      %v5857 = vmul.f32 %v5562, %v5825
      %v5858 = vmul.f32 %v5516, %v5826
      %v5859 = vmul.f32 %v5565, %v5827
      %v5860 = vmul.f32 %v5518, %v5828
      %v5861 = vmul.f32 %v5567, %v5829
      %v5862 = vmul.f32 %v5521, %v5830
      %v5863 = vmul.f32 %v5570, %v5831
      %v5864 = vmul.f32 %v5523, %v5832
      %v5865 = vmul.f32 %v5572, %v5833
      %v5866 = vmul.f32 %v5526, %v5834
      %v5867 = vmul.f32 %v5575, %v5835
      %v5868 = vmul.f32 %v5528, %v5836
      %v5869 = vmul.f32 %v5577, %v5837
      %v5870 = vmul.f32 %v5531, %v5838
      %v5871 = vmul.f32 %v5580, %v5839
      %v5872 = vmul.f32 %v5533, %v5840
      %v5873 = vmul.f32 %v5582, %v5841
      %v5874 = vmul.f32 %v5536, %v5842
      %v5875 = vmul.f32 %v5585, %v5843
      %v5876 = vmul.f32 %v5538, %v5844
      %v5877 = vmul.f32 %v5587, %v5845
      %v5878 = vmul.f32 %v5541, %v5846
      %v5879 = vmul.f32 %v5590, %v5847
      %v5880 = vmul.f32 %v5543, %v5848
      %v5881 = vmul.f32 %v5592, %v5849
      %v5882 = vpack.c.bf16 %v5852, %v5850
      %v5883 = vpack.c.bf16 %v5853, %v5851
      %v5884 = vpack.c.bf16 %v5856, %v5854
      %v5885 = vpack.c.bf16 %v5857, %v5855
      %v5886 = vpack.c.bf16 %v5860, %v5858
      %v5887 = vpack.c.bf16 %v5861, %v5859
      %v5888 = vpack.c.bf16 %v5864, %v5862
      %v5889 = vpack.c.bf16 %v5865, %v5863
      %v5890 = vpack.c.bf16 %v5868, %v5866
      %v5891 = vpack.c.bf16 %v5869, %v5867
      %v5892 = vpack.c.bf16 %v5872, %v5870
      %v5893 = vpack.c.bf16 %v5873, %v5871
      %v5894 = vpack.c.bf16 %v5876, %v5874
      %v5895 = vpack.c.bf16 %v5877, %v5875
      %v5896 = vpack.c.bf16 %v5880, %v5878
      %v5897 = vpack.c.bf16 %v5881, %v5879
      %s5898 = scalar_lea.vmem %s12, 128
      %v5899 = vld [vmem:[%s5898] sm:$0xf]
      %v5900 = vld [vmem:[%s5898 + $0x4] sm:$0xf]
      %v5901 = vld [vmem:[%s5898 + $0x8] sm:$0xf]
      %v5902 = vld [vmem:[%s5898 + $0xc] sm:$0xf]
      %v5903 = vld [vmem:[%s5898 + $0x10] sm:$0xf]
      %v5904 = vld [vmem:[%s5898 + $0x14] sm:$0xf]
      %v5905 = vld [vmem:[%s5898 + $0x18] sm:$0xf]
      %v5906 = vld [vmem:[%s5898 + $0x1c] sm:$0xf]
      %v5907 = vld [vmem:[%s5898 + $0x20] sm:$0xf]
      %v5908 = vld [vmem:[%s5898 + $0x24] sm:$0xf]
      %v5909 = vld [vmem:[%s5898 + $0x28] sm:$0xf]
      %v5910 = vld [vmem:[%s5898 + $0x2c] sm:$0xf]
      %v5911 = vld [vmem:[%s5898 + $0x30] sm:$0xf]
      %v5912 = vld [vmem:[%s5898 + $0x34] sm:$0xf]
      %v5913 = vld [vmem:[%s5898 + $0x38] sm:$0xf]
      %v5914 = vld [vmem:[%s5898 + $0x3c] sm:$0xf]
      %v5915 = vld [vmem:[%s5898 + $0x40] sm:$0xf]
      %v5916 = vld [vmem:[%s5898 + $0x44] sm:$0xf]
      %v5917 = vld [vmem:[%s5898 + $0x48] sm:$0xf]
      %v5918 = vld [vmem:[%s5898 + $0x4c] sm:$0xf]
      %v5919 = vld [vmem:[%s5898 + $0x50] sm:$0xf]
      %v5920 = vld [vmem:[%s5898 + $0x54] sm:$0xf]
      %v5921 = vld [vmem:[%s5898 + $0x58] sm:$0xf]
      %v5922 = vld [vmem:[%s5898 + $0x5c] sm:$0xf]
      %v5923 = vld [vmem:[%s5898 + $0x60] sm:$0xf]
      %v5924 = vld [vmem:[%s5898 + $0x64] sm:$0xf]
      %v5925 = vld [vmem:[%s5898 + $0x68] sm:$0xf]
      %v5926 = vld [vmem:[%s5898 + $0x6c] sm:$0xf]
      %v5927 = vld [vmem:[%s5898 + $0x70] sm:$0xf]
      %v5928 = vld [vmem:[%s5898 + $0x74] sm:$0xf]
      %v5929 = vld [vmem:[%s5898 + $0x78] sm:$0xf]
      %v5930 = vld [vmem:[%s5898 + $0x7c] sm:$0xf]
      %s5931 = scalar_lea.vmem %s13, 1
      %v5932 = vld [vmem:[%s5931] sm:$0x1]
      %v5934 = vperm.slane %v5932, 0
      %v5968 = vunpack.c.l.b16 %v5899
      %v5969 = vunpack.c.l.b16 %v5900
      %v5970 = vunpack.c.l.b16 %v5901
      %v5971 = vunpack.c.l.b16 %v5902
      %v5972 = vunpack.c.l.b16 %v5903
      %v5973 = vunpack.c.l.b16 %v5904
      %v5974 = vunpack.c.l.b16 %v5905
      %v5975 = vunpack.c.l.b16 %v5906
      %v5976 = vunpack.c.l.b16 %v5907
      %v5977 = vunpack.c.l.b16 %v5908
      %v5978 = vunpack.c.l.b16 %v5909
      %v5979 = vunpack.c.l.b16 %v5910
      %v5980 = vunpack.c.l.b16 %v5911
      %v5981 = vunpack.c.l.b16 %v5912
      %v5982 = vunpack.c.l.b16 %v5913
      %v5983 = vunpack.c.l.b16 %v5914
      %v5984 = vunpack.c.l.b16 %v5915
      %v5985 = vunpack.c.l.b16 %v5916
      %v5986 = vunpack.c.l.b16 %v5917
      %v5987 = vunpack.c.l.b16 %v5918
      %v5988 = vunpack.c.l.b16 %v5919
      %v5989 = vunpack.c.l.b16 %v5920
      %v5990 = vunpack.c.l.b16 %v5921
      %v5991 = vunpack.c.l.b16 %v5922
      %v5992 = vunpack.c.l.b16 %v5923
      %v5993 = vunpack.c.l.b16 %v5924
      %v5994 = vunpack.c.l.b16 %v5925
      %v5995 = vunpack.c.l.b16 %v5926
      %v5996 = vunpack.c.l.b16 %v5927
      %v5997 = vunpack.c.l.b16 %v5928
      %v5998 = vunpack.c.l.b16 %v5929
      %v5999 = vunpack.c.l.b16 %v5930
      %v6000 = vpack.c.b16 %v5969, %v5968
      %v6001 = vpack.c.b16 %v5971, %v5970
      %v6002 = vpack.c.b16 %v5973, %v5972
      %v6003 = vpack.c.b16 %v5975, %v5974
      %v6004 = vpack.c.b16 %v5977, %v5976
      %v6005 = vpack.c.b16 %v5979, %v5978
      %v6006 = vpack.c.b16 %v5981, %v5980
      %v6007 = vpack.c.b16 %v5983, %v5982
      %v6008 = vpack.c.b16 %v5985, %v5984
      %v6009 = vpack.c.b16 %v5987, %v5986
      %v6010 = vpack.c.b16 %v5989, %v5988
      %v6011 = vpack.c.b16 %v5991, %v5990
      %v6012 = vpack.c.b16 %v5993, %v5992
      %v6013 = vpack.c.b16 %v5995, %v5994
      %v6014 = vpack.c.b16 %v5997, %v5996
      %v6015 = vpack.c.b16 %v5999, %v5998
      %6032 = vmatpush.bf16.msra.mxu0 %v6007
      %6033 = vmatpush.bf16.msra.mxu0 %v6006
      %6034 = vmatpush.bf16.msra.mxu0 %v6005
      %6035 = vmatpush.bf16.msra.mxu0 %v6004
      %6036 = vmatpush.bf16.msra.mxu0 %v6003
      %6037 = vmatpush.bf16.msra.mxu0 %v6002
      %6038 = vmatpush.bf16.msra.mxu0 %v6001
      %6039 = vmatpush.bf16.msra.mxu0 %v6000
      %6040 = vmatmul.bf16.gmra.mxu0 %v5882
      %v6041 = vpop.f32.mrf.mxu0
      %v6042 = vadd.f32 %v5934, %v6041
      %v6043 = vpop.f32.mrf.mxu0
      %v6044 = vadd.f32 %v5934, %v6043
      %6045 = vmatmul.bf16.gmra.mxu0 %v5884
      %v6046 = vpop.f32.mrf.mxu0
      %v6047 = vadd.f32 %v5934, %v6046
      %v6048 = vpop.f32.mrf.mxu0
      %v6049 = vadd.f32 %v5934, %v6048
      %6050 = vmatmul.bf16.gmra.mxu0 %v5886
      %v6051 = vpop.f32.mrf.mxu0
      %v6052 = vadd.f32 %v5934, %v6051
      %v6053 = vpop.f32.mrf.mxu0
      %v6054 = vadd.f32 %v5934, %v6053
      %6055 = vmatmul.bf16.gmra.mxu0 %v5888
      %v6056 = vpop.f32.mrf.mxu0
      %v6057 = vadd.f32 %v5934, %v6056
      %v6058 = vpop.f32.mrf.mxu0
      %v6059 = vadd.f32 %v5934, %v6058
      %6060 = vmatmul.bf16.gmra.mxu0 %v5890
      %v6061 = vpop.f32.mrf.mxu0
      %v6062 = vadd.f32 %v5934, %v6061
      %v6063 = vpop.f32.mrf.mxu0
      %v6064 = vadd.f32 %v5934, %v6063
      %6065 = vmatmul.bf16.gmra.mxu0 %v5892
      %v6066 = vpop.f32.mrf.mxu0
      %v6067 = vadd.f32 %v5934, %v6066
      %v6068 = vpop.f32.mrf.mxu0
      %v6069 = vadd.f32 %v5934, %v6068
      %6070 = vmatmul.bf16.gmra.mxu0 %v5894
      %v6071 = vpop.f32.mrf.mxu0
      %v6072 = vadd.f32 %v5934, %v6071
      %v6073 = vpop.f32.mrf.mxu0
      %v6074 = vadd.f32 %v5934, %v6073
      %6075 = vmatmul.bf16.gmra.mxu0 %v5896
      %v6076 = vpop.f32.mrf.mxu0
      %v6077 = vadd.f32 %v5934, %v6076
      %v6078 = vpop.f32.mrf.mxu0
      %v6079 = vadd.f32 %v5934, %v6078
      %6080 = vdwg.mxu0
      %6081 = vmatpush.bf16.msra.mxu0 %v6015
      %6082 = vmatpush.bf16.msra.mxu0 %v6014
      %6083 = vmatpush.bf16.msra.mxu0 %v6013
      %6084 = vmatpush.bf16.msra.mxu0 %v6012
      %6085 = vmatpush.bf16.msra.mxu0 %v6011
      %6086 = vmatpush.bf16.msra.mxu0 %v6010
      %6087 = vmatpush.bf16.msra.mxu0 %v6009
      %6088 = vmatpush.bf16.msra.mxu0 %v6008
      %6089 = vmatmul.bf16.gmra.mxu0 %v5883
      %v6090 = vpop.f32.mrf.mxu0
      %v6091 = vadd.f32 %v6042, %v6090
      %v6092 = vpop.f32.mrf.mxu0
      %v6093 = vadd.f32 %v6044, %v6092
      %6094 = vmatmul.bf16.gmra.mxu0 %v5885
      %v6095 = vpop.f32.mrf.mxu0
      %v6096 = vadd.f32 %v6047, %v6095
      %v6097 = vpop.f32.mrf.mxu0
      %v6098 = vadd.f32 %v6049, %v6097
      %6099 = vmatmul.bf16.gmra.mxu0 %v5887
      %v6100 = vpop.f32.mrf.mxu0
      %v6101 = vadd.f32 %v6052, %v6100
      %v6102 = vpop.f32.mrf.mxu0
      %v6103 = vadd.f32 %v6054, %v6102
      %6104 = vmatmul.bf16.gmra.mxu0 %v5889
      %v6105 = vpop.f32.mrf.mxu0
      %v6106 = vadd.f32 %v6057, %v6105
      %v6107 = vpop.f32.mrf.mxu0
      %v6108 = vadd.f32 %v6059, %v6107
      %6109 = vmatmul.bf16.gmra.mxu0 %v5891
      %v6110 = vpop.f32.mrf.mxu0
      %v6111 = vadd.f32 %v6062, %v6110
      %v6112 = vpop.f32.mrf.mxu0
      %v6113 = vadd.f32 %v6064, %v6112
      %6114 = vmatmul.bf16.gmra.mxu0 %v5893
      %v6115 = vpop.f32.mrf.mxu0
      %v6116 = vadd.f32 %v6067, %v6115
      %v6117 = vpop.f32.mrf.mxu0
      %v6118 = vadd.f32 %v6069, %v6117
      %6119 = vmatmul.bf16.gmra.mxu0 %v5895
      %v6120 = vpop.f32.mrf.mxu0
      %v6121 = vadd.f32 %v6072, %v6120
      %v6122 = vpop.f32.mrf.mxu0
      %v6123 = vadd.f32 %v6074, %v6122
      %6124 = vmatmul.bf16.gmra.mxu0 %v5897
      %v6125 = vpop.f32.mrf.mxu0
      %v6126 = vadd.f32 %v6077, %v6125
      %v6127 = vpop.f32.mrf.mxu0
      %v6128 = vadd.f32 %v6079, %v6127
      %6129 = vdwg.mxu0
      %v6130 = vadd.f32 %v6091, %v5368
      %v6131 = vadd.f32 %v6093, %v5369
      %v6132 = vadd.f32 %v6096, %v5370
      %v6133 = vadd.f32 %v6098, %v5371
      %v6134 = vadd.f32 %v6101, %v5372
      %v6135 = vadd.f32 %v6103, %v5373
      %v6136 = vadd.f32 %v6106, %v5374
      %v6137 = vadd.f32 %v6108, %v5375
      %v6138 = vadd.f32 %v6111, %v5376
      %v6139 = vadd.f32 %v6113, %v5377
      %v6140 = vadd.f32 %v6116, %v5378
      %v6141 = vadd.f32 %v6118, %v5379
      %v6142 = vadd.f32 %v6121, %v5380
      %v6143 = vadd.f32 %v6123, %v5381
      %v6144 = vadd.f32 %v6126, %v5382
      %v6145 = vadd.f32 %v6128, %v5383
      %s6146 = scalar_lea.vmem %s14, 1
      %v6147 = vld [vmem:[%s6146] sm:$0x1]
      %s6148 = scalar_lea.vmem %s15, 1
      %v6149 = vld [vmem:[%s6148] sm:$0x1]
      %6150 = vadd.xlane.f32.xlu0 %v6130
      %v6151 = vpop.xlane.xlu0 %6150
      %6152 = vadd.xlane.f32.xlu0 %v6131
      %v6153 = vpop.xlane.xlu0 %6152
      %6154 = vadd.xlane.f32.xlu0 %v6132
      %v6155 = vpop.xlane.xlu0 %6154
      %6156 = vadd.xlane.f32.xlu0 %v6133
      %v6157 = vpop.xlane.xlu0 %6156
      %6158 = vadd.xlane.f32.xlu0 %v6134
      %v6159 = vpop.xlane.xlu0 %6158
      %6160 = vadd.xlane.f32.xlu0 %v6135
      %v6161 = vpop.xlane.xlu0 %6160
      %6162 = vadd.xlane.f32.xlu0 %v6136
      %v6163 = vpop.xlane.xlu0 %6162
      %6164 = vadd.xlane.f32.xlu0 %v6137
      %v6165 = vpop.xlane.xlu0 %6164
      %6166 = vadd.xlane.f32.xlu0 %v6138
      %v6167 = vpop.xlane.xlu0 %6166
      %6168 = vadd.xlane.f32.xlu0 %v6139
      %v6169 = vpop.xlane.xlu0 %6168
      %6170 = vadd.xlane.f32.xlu0 %v6140
      %v6171 = vpop.xlane.xlu0 %6170
      %6172 = vadd.xlane.f32.xlu0 %v6141
      %v6173 = vpop.xlane.xlu0 %6172
      %6174 = vadd.xlane.f32.xlu0 %v6142
      %v6175 = vpop.xlane.xlu0 %6174
      %6176 = vadd.xlane.f32.xlu0 %v6143
      %v6177 = vpop.xlane.xlu0 %6176
      %6178 = vadd.xlane.f32.xlu0 %v6144
      %v6179 = vpop.xlane.xlu0 %6178
      %6180 = vadd.xlane.f32.xlu0 %v6145
      %v6181 = vpop.xlane.xlu0 %6180
      %v6182 = vmul.f32 %v6151, %v592
      %v6183 = vmul.f32 %v6153, %v592
      %v6184 = vmul.f32 %v6155, %v592
      %v6185 = vmul.f32 %v6157, %v592
      %v6186 = vmul.f32 %v6159, %v592
      %v6187 = vmul.f32 %v6161, %v592
      %v6188 = vmul.f32 %v6163, %v592
      %v6189 = vmul.f32 %v6165, %v592
      %v6190 = vmul.f32 %v6167, %v592
      %v6191 = vmul.f32 %v6169, %v592
      %v6192 = vmul.f32 %v6171, %v592
      %v6193 = vmul.f32 %v6173, %v592
      %v6194 = vmul.f32 %v6175, %v592
      %v6195 = vmul.f32 %v6177, %v592
      %v6196 = vmul.f32 %v6179, %v592
      %v6197 = vmul.f32 %v6181, %v592
      %v6198 = vsub.f32 %v6130, %v6182
      %v6199 = vsub.f32 %v6131, %v6183
      %v6200 = vsub.f32 %v6132, %v6184
      %v6201 = vsub.f32 %v6133, %v6185
      %v6202 = vsub.f32 %v6134, %v6186
      %v6203 = vsub.f32 %v6135, %v6187
      %v6204 = vsub.f32 %v6136, %v6188
      %v6205 = vsub.f32 %v6137, %v6189
      %v6206 = vsub.f32 %v6138, %v6190
      %v6207 = vsub.f32 %v6139, %v6191
      %v6208 = vsub.f32 %v6140, %v6192
      %v6209 = vsub.f32 %v6141, %v6193
      %v6210 = vsub.f32 %v6142, %v6194
      %v6211 = vsub.f32 %v6143, %v6195
      %v6212 = vsub.f32 %v6144, %v6196
      %v6213 = vsub.f32 %v6145, %v6197
      %v6214 = vmul.f32 %v6198, %v6198
      %v6215 = vmul.f32 %v6199, %v6199
      %v6216 = vmul.f32 %v6200, %v6200
      %v6217 = vmul.f32 %v6201, %v6201
      %v6218 = vmul.f32 %v6202, %v6202
      %v6219 = vmul.f32 %v6203, %v6203
      %v6220 = vmul.f32 %v6204, %v6204
      %v6221 = vmul.f32 %v6205, %v6205
      %v6222 = vmul.f32 %v6206, %v6206
      %v6223 = vmul.f32 %v6207, %v6207
      %v6224 = vmul.f32 %v6208, %v6208
      %v6225 = vmul.f32 %v6209, %v6209
      %v6226 = vmul.f32 %v6210, %v6210
      %v6227 = vmul.f32 %v6211, %v6211
      %v6228 = vmul.f32 %v6212, %v6212
      %v6229 = vmul.f32 %v6213, %v6213
      %6230 = vadd.xlane.f32.xlu0 %v6214
      %v6231 = vpop.xlane.xlu0 %6230
      %6232 = vadd.xlane.f32.xlu0 %v6215
      %v6233 = vpop.xlane.xlu0 %6232
      %6234 = vadd.xlane.f32.xlu0 %v6216
      %v6235 = vpop.xlane.xlu0 %6234
      %6236 = vadd.xlane.f32.xlu0 %v6217
      %v6237 = vpop.xlane.xlu0 %6236
      %6238 = vadd.xlane.f32.xlu0 %v6218
      %v6239 = vpop.xlane.xlu0 %6238
      %6240 = vadd.xlane.f32.xlu0 %v6219
      %v6241 = vpop.xlane.xlu0 %6240
      %6242 = vadd.xlane.f32.xlu0 %v6220
      %v6243 = vpop.xlane.xlu0 %6242
      %6244 = vadd.xlane.f32.xlu0 %v6221
      %v6245 = vpop.xlane.xlu0 %6244
      %6246 = vadd.xlane.f32.xlu0 %v6222
      %v6247 = vpop.xlane.xlu0 %6246
      %6248 = vadd.xlane.f32.xlu0 %v6223
      %v6249 = vpop.xlane.xlu0 %6248
      %6250 = vadd.xlane.f32.xlu0 %v6224
      %v6251 = vpop.xlane.xlu0 %6250
      %6252 = vadd.xlane.f32.xlu0 %v6225
      %v6253 = vpop.xlane.xlu0 %6252
      %6254 = vadd.xlane.f32.xlu0 %v6226
      %v6255 = vpop.xlane.xlu0 %6254
      %6256 = vadd.xlane.f32.xlu0 %v6227
      %v6257 = vpop.xlane.xlu0 %6256
      %6258 = vadd.xlane.f32.xlu0 %v6228
      %v6259 = vpop.xlane.xlu0 %6258
      %6260 = vadd.xlane.f32.xlu0 %v6229
      %v6261 = vpop.xlane.xlu0 %6260
      %v6262 = vmul.f32 %v6231, %v592
      %v6263 = vmul.f32 %v6233, %v592
      %v6264 = vmul.f32 %v6235, %v592
      %v6265 = vmul.f32 %v6237, %v592
      %v6266 = vmul.f32 %v6239, %v592
      %v6267 = vmul.f32 %v6241, %v592
      %v6268 = vmul.f32 %v6243, %v592
      %v6269 = vmul.f32 %v6245, %v592
      %v6270 = vmul.f32 %v6247, %v592
      %v6271 = vmul.f32 %v6249, %v592
      %v6272 = vmul.f32 %v6251, %v592
      %v6273 = vmul.f32 %v6253, %v592
      %v6274 = vmul.f32 %v6255, %v592
      %v6275 = vmul.f32 %v6257, %v592
      %v6276 = vmul.f32 %v6259, %v592
      %v6277 = vmul.f32 %v6261, %v592
      %v6278 = vadd.f32 %v6262, 1e-12
      %v6279 = vadd.f32 %v6263, 1e-12
      %v6280 = vadd.f32 %v6264, 1e-12
      %v6281 = vadd.f32 %v6265, 1e-12
      %v6282 = vadd.f32 %v6266, 1e-12
      %v6283 = vadd.f32 %v6267, 1e-12
      %v6284 = vadd.f32 %v6268, 1e-12
      %v6285 = vadd.f32 %v6269, 1e-12
      %v6286 = vadd.f32 %v6270, 1e-12
      %v6287 = vadd.f32 %v6271, 1e-12
      %v6288 = vadd.f32 %v6272, 1e-12
      %v6289 = vadd.f32 %v6273, 1e-12
      %v6290 = vadd.f32 %v6274, 1e-12
      %v6291 = vadd.f32 %v6275, 1e-12
      %v6292 = vadd.f32 %v6276, 1e-12
      %v6293 = vadd.f32 %v6277, 1e-12
      %v6294 = vrsqrt.pop %v6278
      %v6295 = vmul.f32 %v6294, %v6278
      %v6296 = vmul.f32 %v6295, %v6294
      %v6297 = vmul.f32 0.5, %v6296
      %v6298 = vsub.f32 1.5, %v6297
      %v6299 = vmul.f32 %v6294, %v6298
      %vm6300 = vweird.f32 %v6278
      %vm6301 = vweird.f32 %v6294
      %vm6302 = vmor %vm6300, %vm6301
      %v6303 = vsel %vm6302, %v6294, %v6299
      %v6304 = vrsqrt.pop %v6279
      %v6305 = vmul.f32 %v6304, %v6279
      %v6306 = vmul.f32 %v6305, %v6304
      %v6307 = vmul.f32 0.5, %v6306
      %v6308 = vsub.f32 1.5, %v6307
      %v6309 = vmul.f32 %v6304, %v6308
      %vm6310 = vweird.f32 %v6279
      %vm6311 = vweird.f32 %v6304
      %vm6312 = vmor %vm6310, %vm6311
      %v6313 = vsel %vm6312, %v6304, %v6309
      %v6314 = vrsqrt.pop %v6280
      %v6315 = vmul.f32 %v6314, %v6280
      %v6316 = vmul.f32 %v6315, %v6314
      %v6317 = vmul.f32 0.5, %v6316
      %v6318 = vsub.f32 1.5, %v6317
      %v6319 = vmul.f32 %v6314, %v6318
      %vm6320 = vweird.f32 %v6280
      %vm6321 = vweird.f32 %v6314
      %vm6322 = vmor %vm6320, %vm6321
      %v6323 = vsel %vm6322, %v6314, %v6319
      %v6324 = vrsqrt.pop %v6281
      %v6325 = vmul.f32 %v6324, %v6281
      %v6326 = vmul.f32 %v6325, %v6324
      %v6327 = vmul.f32 0.5, %v6326
      %v6328 = vsub.f32 1.5, %v6327
      %v6329 = vmul.f32 %v6324, %v6328
      %vm6330 = vweird.f32 %v6281
      %vm6331 = vweird.f32 %v6324
      %vm6332 = vmor %vm6330, %vm6331
      %v6333 = vsel %vm6332, %v6324, %v6329
      %v6334 = vrsqrt.pop %v6282
      %v6335 = vmul.f32 %v6334, %v6282
      %v6336 = vmul.f32 %v6335, %v6334
      %v6337 = vmul.f32 0.5, %v6336
      %v6338 = vsub.f32 1.5, %v6337
      %v6339 = vmul.f32 %v6334, %v6338
      %vm6340 = vweird.f32 %v6282
      %vm6341 = vweird.f32 %v6334
      %vm6342 = vmor %vm6340, %vm6341
      %v6343 = vsel %vm6342, %v6334, %v6339
      %v6344 = vrsqrt.pop %v6283
      %v6345 = vmul.f32 %v6344, %v6283
      %v6346 = vmul.f32 %v6345, %v6344
      %v6347 = vmul.f32 0.5, %v6346
      %v6348 = vsub.f32 1.5, %v6347
      %v6349 = vmul.f32 %v6344, %v6348
      %vm6350 = vweird.f32 %v6283
      %vm6351 = vweird.f32 %v6344
      %vm6352 = vmor %vm6350, %vm6351
      %v6353 = vsel %vm6352, %v6344, %v6349
      %v6354 = vrsqrt.pop %v6284
      %v6355 = vmul.f32 %v6354, %v6284
      %v6356 = vmul.f32 %v6355, %v6354
      %v6357 = vmul.f32 0.5, %v6356
      %v6358 = vsub.f32 1.5, %v6357
      %v6359 = vmul.f32 %v6354, %v6358
      %vm6360 = vweird.f32 %v6284
      %vm6361 = vweird.f32 %v6354
      %vm6362 = vmor %vm6360, %vm6361
      %v6363 = vsel %vm6362, %v6354, %v6359
      %v6364 = vrsqrt.pop %v6285
      %v6365 = vmul.f32 %v6364, %v6285
      %v6366 = vmul.f32 %v6365, %v6364
      %v6367 = vmul.f32 0.5, %v6366
      %v6368 = vsub.f32 1.5, %v6367
      %v6369 = vmul.f32 %v6364, %v6368
      %vm6370 = vweird.f32 %v6285
      %vm6371 = vweird.f32 %v6364
      %vm6372 = vmor %vm6370, %vm6371
      %v6373 = vsel %vm6372, %v6364, %v6369
      %v6374 = vrsqrt.pop %v6286
      %v6375 = vmul.f32 %v6374, %v6286
      %v6376 = vmul.f32 %v6375, %v6374
      %v6377 = vmul.f32 0.5, %v6376
      %v6378 = vsub.f32 1.5, %v6377
      %v6379 = vmul.f32 %v6374, %v6378
      %vm6380 = vweird.f32 %v6286
      %vm6381 = vweird.f32 %v6374
      %vm6382 = vmor %vm6380, %vm6381
      %v6383 = vsel %vm6382, %v6374, %v6379
      %v6384 = vrsqrt.pop %v6287
      %v6385 = vmul.f32 %v6384, %v6287
      %v6386 = vmul.f32 %v6385, %v6384
      %v6387 = vmul.f32 0.5, %v6386
      %v6388 = vsub.f32 1.5, %v6387
      %v6389 = vmul.f32 %v6384, %v6388
      %vm6390 = vweird.f32 %v6287
      %vm6391 = vweird.f32 %v6384
      %vm6392 = vmor %vm6390, %vm6391
      %v6393 = vsel %vm6392, %v6384, %v6389
      %v6394 = vrsqrt.pop %v6288
      %v6395 = vmul.f32 %v6394, %v6288
      %v6396 = vmul.f32 %v6395, %v6394
      %v6397 = vmul.f32 0.5, %v6396
      %v6398 = vsub.f32 1.5, %v6397
      %v6399 = vmul.f32 %v6394, %v6398
      %vm6400 = vweird.f32 %v6288
      %vm6401 = vweird.f32 %v6394
      %vm6402 = vmor %vm6400, %vm6401
      %v6403 = vsel %vm6402, %v6394, %v6399
      %v6404 = vrsqrt.pop %v6289
      %v6405 = vmul.f32 %v6404, %v6289
      %v6406 = vmul.f32 %v6405, %v6404
      %v6407 = vmul.f32 0.5, %v6406
      %v6408 = vsub.f32 1.5, %v6407
      %v6409 = vmul.f32 %v6404, %v6408
      %vm6410 = vweird.f32 %v6289
      %vm6411 = vweird.f32 %v6404
      %vm6412 = vmor %vm6410, %vm6411
      %v6413 = vsel %vm6412, %v6404, %v6409
      %v6414 = vrsqrt.pop %v6290
      %v6415 = vmul.f32 %v6414, %v6290
      %v6416 = vmul.f32 %v6415, %v6414
      %v6417 = vmul.f32 0.5, %v6416
      %v6418 = vsub.f32 1.5, %v6417
      %v6419 = vmul.f32 %v6414, %v6418
      %vm6420 = vweird.f32 %v6290
      %vm6421 = vweird.f32 %v6414
      %vm6422 = vmor %vm6420, %vm6421
      %v6423 = vsel %vm6422, %v6414, %v6419
      %v6424 = vrsqrt.pop %v6291
      %v6425 = vmul.f32 %v6424, %v6291
      %v6426 = vmul.f32 %v6425, %v6424
      %v6427 = vmul.f32 0.5, %v6426
      %v6428 = vsub.f32 1.5, %v6427
      %v6429 = vmul.f32 %v6424, %v6428
      %vm6430 = vweird.f32 %v6291
      %vm6431 = vweird.f32 %v6424
      %vm6432 = vmor %vm6430, %vm6431
      %v6433 = vsel %vm6432, %v6424, %v6429
      %v6434 = vrsqrt.pop %v6292
      %v6435 = vmul.f32 %v6434, %v6292
      %v6436 = vmul.f32 %v6435, %v6434
      %v6437 = vmul.f32 0.5, %v6436
      %v6438 = vsub.f32 1.5, %v6437
      %v6439 = vmul.f32 %v6434, %v6438
      %vm6440 = vweird.f32 %v6292
      %vm6441 = vweird.f32 %v6434
      %vm6442 = vmor %vm6440, %vm6441
      %v6443 = vsel %vm6442, %v6434, %v6439
      %v6444 = vrsqrt.pop %v6293
      %v6445 = vmul.f32 %v6444, %v6293
      %v6446 = vmul.f32 %v6445, %v6444
      %v6447 = vmul.f32 0.5, %v6446
      %v6448 = vsub.f32 1.5, %v6447
      %v6449 = vmul.f32 %v6444, %v6448
      %vm6450 = vweird.f32 %v6293
      %vm6451 = vweird.f32 %v6444
      %vm6452 = vmor %vm6450, %vm6451
      %v6453 = vsel %vm6452, %v6444, %v6449
      %v6454 = vmul.f32 %v6198, %v6303
      %v6455 = vmul.f32 %v6199, %v6313
      %v6456 = vmul.f32 %v6200, %v6323
      %v6457 = vmul.f32 %v6201, %v6333
      %v6458 = vmul.f32 %v6202, %v6343
      %v6459 = vmul.f32 %v6203, %v6353
      %v6460 = vmul.f32 %v6204, %v6363
      %v6461 = vmul.f32 %v6205, %v6373
      %v6462 = vmul.f32 %v6206, %v6383
      %v6463 = vmul.f32 %v6207, %v6393
      %v6464 = vmul.f32 %v6208, %v6403
      %v6465 = vmul.f32 %v6209, %v6413
      %v6466 = vmul.f32 %v6210, %v6423
      %v6467 = vmul.f32 %v6211, %v6433
      %v6468 = vmul.f32 %v6212, %v6443
      %v6469 = vmul.f32 %v6213, %v6453
      %v6471 = vperm.slane %v6147, 0
      %v6473 = vmul.f32 %v6454, %v6471
      %v6474 = vmul.f32 %v6455, %v6471
      %v6475 = vmul.f32 %v6456, %v6471
      %v6476 = vmul.f32 %v6457, %v6471
      %v6477 = vmul.f32 %v6458, %v6471
      %v6478 = vmul.f32 %v6459, %v6471
      %v6479 = vmul.f32 %v6460, %v6471
      %v6480 = vmul.f32 %v6461, %v6471
      %v6481 = vmul.f32 %v6462, %v6471
      %v6482 = vmul.f32 %v6463, %v6471
      %v6483 = vmul.f32 %v6464, %v6471
      %v6484 = vmul.f32 %v6465, %v6471
      %v6485 = vmul.f32 %v6466, %v6471
      %v6486 = vmul.f32 %v6467, %v6471
      %v6487 = vmul.f32 %v6468, %v6471
      %v6488 = vmul.f32 %v6469, %v6471
      %v6490 = vperm.slane %v6149, 0
      %v6492 = vadd.f32 %v6473, %v6490
      %v6493 = vadd.f32 %v6474, %v6490
      %v6494 = vadd.f32 %v6475, %v6490
      %v6495 = vadd.f32 %v6476, %v6490
      %v6496 = vadd.f32 %v6477, %v6490
      %v6497 = vadd.f32 %v6478, %v6490
      %v6498 = vadd.f32 %v6479, %v6490
      %v6499 = vadd.f32 %v6480, %v6490
      %v6500 = vadd.f32 %v6481, %v6490
      %v6501 = vadd.f32 %v6482, %v6490
      %v6502 = vadd.f32 %v6483, %v6490
      %v6503 = vadd.f32 %v6484, %v6490
      %v6504 = vadd.f32 %v6485, %v6490
      %v6505 = vadd.f32 %v6486, %v6490
      %v6506 = vadd.f32 %v6487, %v6490
      %v6507 = vadd.f32 %v6488, %v6490
      %6508 = vst [vmem:[%s535] sm:$0xff] %v6492
      %6509 = vst [vmem:[%s535 + $0x8] sm:$0xff] %v6493
      %6510 = vst [vmem:[%s535 + $0x10] sm:$0xff] %v6494
      %6511 = vst [vmem:[%s535 + $0x18] sm:$0xff] %v6495
      %6512 = vst [vmem:[%s535 + $0x20] sm:$0xff] %v6496
      %6513 = vst [vmem:[%s535 + $0x28] sm:$0xff] %v6497
      %6514 = vst [vmem:[%s535 + $0x30] sm:$0xff] %v6498
      %6515 = vst [vmem:[%s535 + $0x38] sm:$0xff] %v6499
      %6516 = vst [vmem:[%s535 + $0x40] sm:$0xff] %v6500
      %6517 = vst [vmem:[%s535 + $0x48] sm:$0xff] %v6501
      %6518 = vst [vmem:[%s535 + $0x50] sm:$0xff] %v6502
      %6519 = vst [vmem:[%s535 + $0x58] sm:$0xff] %v6503
      %6520 = vst [vmem:[%s535 + $0x60] sm:$0xff] %v6504
      %6521 = vst [vmem:[%s535 + $0x68] sm:$0xff] %v6505
      %6522 = vst [vmem:[%s535 + $0x70] sm:$0xff] %v6506
      %6523 = vst [vmem:[%s535 + $0x78] sm:$0xff] %v6507
      %p6524 = scmp.lt.s32.totalorder %s27, 1
      %s6525 = scalar_select %p6524, %s27, 1
      %s6526 = smul.addr %s6525, 16
      %s6527 = smul.addr %s6526, 8
      %s6528 = scalar_lea.vmem %s16, %s6527
      // Predicated region
      $region85: #{_lambda_.2} parent=83 // pred_check
        %p6529 = pneg %p391
      $region86: #{_lambda_.2} parent=83 // pred_check_branch
        %6531 = sbr.rel (%p6529) target = $region88
      $region87: #{_lambda_.2} parent=83 // pred_region
        _
      $region88: #{_lambda_.2} parent=83 // pred_fallthru
        _
    $region84: #{_lambda_.2} parent=5 // pred_fallthru
      _
    %p6532 = scmp.le.s32.totalorder 2, %s22
    // Predicated region
    $region89: #{_lambda_.2} parent=5 // pred_check
      %p6533 = pneg %p6532
    $region90: #{_lambda_.2} parent=5 // pred_check_branch
      %6535 = sbr.rel (%p6533) target = $region92
    $region91: #{_lambda_.2} parent=5 // pred_region
      %s6536 = ssub.s32 %s22, 2
      // Predicated region
      $region93: #{_lambda_.2} parent=91 // pred_check
        %p6537 = pneg %p397
      $region94: #{_lambda_.2} parent=91 // pred_check_branch
        %6539 = sbr.rel (%p6537) target = $region96
      $region95: #{_lambda_.2} parent=91 // pred_region
        %p6540 = scmp.lt.s32.totalorder %s28, 1
        %s6541 = scalar_select %p6540, %s28, 1
        %s6542 = smul.addr %s6541, 16
        %s6543 = smul.addr %s6542, 8
        %s6544 = scalar_lea.vmem %s16, %s6543
      $region96: #{_lambda_.2} parent=91 // pred_fallthru
        _
    $region92: #{_lambda_.2} parent=5 // pred_fallthru
      _
  $region6: #{_lambda_.2} parent=0 // loop_footer
    %s26 = sadd.s32 1, %s22
  $region7: #{_lambda_.2} parent=0 // loop_footer_branch
    %21 = sbr.rel target = $region3
  $region8: #{_lambda_.2} parent=0 // loop_exit
    _

</llo_original>
